<compile_context>
chip_gen: v7x
topology: tpu7x:2x2x1
jax: 0.10.0
libtpu: 0.0.40
codegen_flags: <defaults>
</compile_context>

<pallas_src>
import functools

import jax
import jax.numpy as jnp
from jax.experimental import pallas as pl
from jax.experimental.pallas import tpu as pltpu


LANE = 128


def _ceil_to(x, m):
    return ((x + m - 1) // m) * m


# ----------------------------------------------------------------------------
# Pallas kernels: full-K GEMM tile + fused BN affine (+ ReLU / residual)
# ----------------------------------------------------------------------------
def _gemm_bn_kernel(a_ref, b_ref, scale_ref, shift_ref, o_ref, *, relu):
    acc = jnp.dot(a_ref[...], b_ref[...], preferred_element_type=jnp.float32)
    y = acc * scale_ref[...] + shift_ref[...]
    if relu:
        y = jnp.maximum(y, 0.0)
    o_ref[...] = y


def _gemm_bn_res_kernel(a_ref, b_ref, scale_ref, shift_ref, res_ref, o_ref):
    acc = jnp.dot(a_ref[...], b_ref[...], preferred_element_type=jnp.float32)
    o_ref[...] = jnp.maximum(
        acc * scale_ref[...] + shift_ref[...] + res_ref[...], 0.0)


def gemm_bn(a_bf16, b_bf16, scale_p, shift_p, *, tm, relu, residual=None):
    """(Mp,Kp)bf16 @ (Kp,Np)bf16 -> f32, * scale + shift [+ residual], opt. ReLU."""
    Mp, Kp = a_bf16.shape
    _, Np = b_bf16.shape
    grid = (Mp // tm,)

    in_specs = [
        pl.BlockSpec((tm, Kp), lambda i: (i, 0)),
        pl.BlockSpec((Kp, Np), lambda i: (0, 0)),
        pl.BlockSpec((1, Np), lambda i: (0, 0)),
        pl.BlockSpec((1, Np), lambda i: (0, 0)),
    ]
    args = [a_bf16, b_bf16, scale_p, shift_p]

    if residual is None:
        kernel = functools.partial(_gemm_bn_kernel, relu=relu)
    else:
        kernel = _gemm_bn_res_kernel
        in_specs.append(pl.BlockSpec((tm, Np), lambda i: (i, 0)))
        args.append(residual)

    return pl.pallas_call(
        kernel,
        out_shape=jax.ShapeDtypeStruct((Mp, Np), jnp.float32),
        grid_spec=pltpu.PrefetchScalarGridSpec(
            num_scalar_prefetch=0,
            grid=grid,
            in_specs=in_specs,
            out_specs=pl.BlockSpec((tm, Np), lambda i: (i, 0)),
        ),
        compiler_params=pltpu.CompilerParams(
            dimension_semantics=("parallel",)),
    )(*args)


# ----------------------------------------------------------------------------
# Conv-as-GEMM glue (im2col in plain JAX, GEMM + epilogue in Pallas)
# ----------------------------------------------------------------------------
def _im2col(x_nhwc, kh, kw, stride, pad, Mp, Kp):
    """NHWC patches in (kh, kw, c) K-order, cast to bf16, padded to (Mp, Kp)."""
    x = jnp.pad(x_nhwc, ((0, 0), (pad, pad), (pad, pad), (0, 0)))
    n, hp, wp, c = x.shape
    oh = (hp - kh) // stride + 1
    ow = (wp - kw) // stride + 1
    cols = []
    for i in range(kh):
        for j in range(kw):
            cols.append(x[:, i:i + stride * oh:stride, j:j + stride * ow:stride, :])
    patches = jnp.concatenate(cols, axis=-1).reshape(n * oh * ow, kh * kw * c)
    patches = patches.astype(jnp.bfloat16)
    M, K = patches.shape
    patches = jnp.pad(patches, ((0, Mp - M), (0, Kp - K)))
    return patches, oh, ow


def conv_bn(x_nhwc, cp, *, kh, kw, oc, stride, pad, relu, residual=None):
    """Conv2d (no bias) + folded eval-mode BN (+ ReLU / fused residual-add-ReLU)."""
    n, h, w, _ = x_nhwc.shape
    Kp, Np = cp["wmat"].shape
    oh = (h + 2 * pad - kh) // stride + 1
    ow = (w + 2 * pad - kw) // stride + 1
    M = n * oh * ow
    tm = min(512, _ceil_to(M, 8))
    Mp = _ceil_to(M, tm)

    patches, oh, ow = _im2col(x_nhwc, kh, kw, stride, pad, Mp, Kp)

    res_p = None
    if residual is not None:
        r = residual.reshape(M, oc)                       # NHWC row order matches
        res_p = jnp.pad(r, ((0, Mp - M), (0, Np - oc)))

    out = gemm_bn(patches, cp["wmat"], cp["scale"], cp["shift"],
                  tm=tm, relu=relu, residual=res_p)
    return out[:M, :oc].reshape(n, oh, ow, oc)


def maxpool_3x3_s2(x_nhwc):
    # TODO(synk): 3x3/s2 maxpool kept as plain-JAX window max (glue).
    x = jnp.pad(x_nhwc, ((0, 0), (1, 1), (1, 1), (0, 0)),
                constant_values=-jnp.inf)
    _, hp, wp, _ = x.shape
    oh = (hp - 3) // 2 + 1
    ow = (wp - 3) // 2 + 1
    vals = []
    for i in range(3):
        for j in range(3):
            vals.append(x[:, i:i + 2 * oh:2, j:j + 2 * ow:2, :])
    return jnp.max(jnp.stack(vals, 0), axis=0)


# ----------------------------------------------------------------------------
# ResNet-18-style backbone (eval mode, BN folded) + CAM forward
# ----------------------------------------------------------------------------
def _init_conv_bn(key, oc, ic, kh, kw):
    kw_, kg, kb, km, kv = jax.random.split(key, 5)
    w = 0.1 * jax.random.normal(kw_, (oc, ic, kh, kw), jnp.float32)
    gamma = 1.0 + 0.1 * jax.random.normal(kg, (oc,), jnp.float32)
    beta = 0.1 * jax.random.normal(kb, (oc,), jnp.float32)
    mean = 0.1 * jax.random.normal(km, (oc,), jnp.float32)
    var = 1.0 + 0.1 * jnp.abs(jax.random.normal(kv, (oc,), jnp.float32))
    scale = gamma / jnp.sqrt(var + 1e-5)
    shift = beta - mean * scale
    # Fold to GEMM form once at build time: bf16 (Kp, Np) weights in (kh, kw, c)
    # K-order, f32 (1, Np) scale/shift.  No per-forward padding copies.
    K = kh * kw * ic
    Kp, Np = _ceil_to(K, LANE), _ceil_to(oc, LANE)
    wmat = jnp.transpose(w, (2, 3, 1, 0)).reshape(K, oc)
    wmat_p = jnp.pad(wmat, ((0, Kp - K), (0, Np - oc))).astype(jnp.bfloat16)
    scale_p = jnp.pad(scale, (0, Np - oc)).reshape(1, Np)
    shift_p = jnp.pad(shift, (0, Np - oc)).reshape(1, Np)
    return {"wmat": wmat_p, "scale": scale_p, "shift": shift_p}


def make_params(key, base=8, num_classes=10, in_ch=3):
    """Params pytree contains arrays only; architecture is implied structurally."""
    keys = iter(jax.random.split(key, 64))
    params = {"conv1": _init_conv_bn(next(keys), base, in_ch, 7, 7)}
    widths = [base, base * 2, base * 4, base * 8]
    in_c = base
    for li, out_c in enumerate(widths):
        layer = []
        for bi in range(2):
            stride = 2 if (li > 0 and bi == 0) else 1
            block = {
                "conv1": _init_conv_bn(next(keys), out_c, in_c, 3, 3),
                "conv2": _init_conv_bn(next(keys), out_c, out_c, 3, 3),
            }
            if stride != 1 or in_c != out_c:
                block["downsample"] = _init_conv_bn(next(keys), out_c, in_c, 1, 1)
            layer.append(block)
            in_c = out_c
        params[f"layer{li + 1}"] = layer
    params["fc"] = {
        "w": 0.1 * jax.random.normal(next(keys), (widths[-1], num_classes),
                                     jnp.float32),
        "b": jnp.zeros((num_classes,), jnp.float32),
    }
    return params


def cam_forward(params, x_nchw, *, base=8):
    """Equivalent of CAM.forward: run the full model, return the layer4 activation."""
    widths = [base, base * 2, base * 4, base * 8]
    x = jnp.transpose(x_nchw, (0, 2, 3, 1))                       # -> NHWC
    out = conv_bn(x, params["conv1"], kh=7, kw=7, oc=base,
                  stride=2, pad=3, relu=True)
    out = maxpool_3x3_s2(out)

    conv_activation = None
    for li, out_c in enumerate(widths):
        for bi, blk in enumerate(params[f"layer{li + 1}"]):
            stride = 2 if (li > 0 and bi == 0) else 1             # static
            identity = out
            h = conv_bn(out, blk["conv1"], kh=3, kw=3, oc=out_c,
                        stride=stride, pad=1, relu=True)
            if "downsample" in blk:                               # static (pytree)
                identity = conv_bn(out, blk["downsample"], kh=1, kw=1, oc=out_c,
                                   stride=stride, pad=0, relu=False)
            # conv2 + BN + residual add + ReLU fused into one Pallas epilogue.
            out = conv_bn(h, blk["conv2"], kh=3, kw=3, oc=out_c,
                          stride=1, pad=1, relu=True, residual=identity)
        if li == 3:
            conv_activation = out                                 # hook on layer4

    # Classifier head is executed (as `_ = self.model(x)` does) but discarded.
    pooled = jnp.mean(conv_activation, axis=(1, 2))
    _ = pooled @ params["fc"]["w"] + params["fc"]["b"]
    return jnp.transpose(conv_activation, (0, 3, 1, 2))           # NCHW out


if __name__ == "__main__":
    key = jax.random.PRNGKey(0)
    k_x, k_p = jax.random.split(key)
    x = jax.random.normal(k_x, (2, 3, 64, 64), jnp.float32)       # NCHW, like PyTorch
    params = make_params(k_p, base=8, num_classes=10)

    fwd = jax.jit(cam_forward)
    act = fwd(params, x)
    act = jax.block_until_ready(act)

    # layer4 activation of a ResNet-18-style net: (N, 8*base, H/32, W/32)
    assert act.shape == (2, 64, 2, 2), act.shape
    assert jnp.all(jnp.isfinite(act))
    print("KERNEL_OK")
</pallas_src>

<mosaic_0001>
module attributes {stable_mosaic.version = 11 : i64} {
  func.func @_gemm_bn_kernel(%arg0: i32, %arg1: memref<512x256xbf16, #tpu.memory_space<vmem>>, %arg2: memref<256x128xbf16, #tpu.memory_space<vmem>>, %arg3: memref<1x128xf32, #tpu.memory_space<vmem>>, %arg4: memref<1x128xf32, #tpu.memory_space<vmem>>, %arg5: memref<512x128xf32, #tpu.memory_space<vmem>>) attributes {dimension_semantics = [#tpu.dimension_semantics<parallel>], iteration_bounds = array<i64: 4>, scalar_prefetch = 0 : i64, scratch_operands = 0 : i64, tpu.core_type = #tpu.core_type<tc>, window_params = [{transform_indices = @transform_0, window_bounds = array<i64: 512, 256>}, {pipeline_mode = #tpu.pipeline_mode<synchronous>, transform_indices = @transform_1, window_bounds = array<i64: 256, 128>}, {pipeline_mode = #tpu.pipeline_mode<synchronous>, transform_indices = @transform_2, window_bounds = array<i64: 1, 128>}, {pipeline_mode = #tpu.pipeline_mode<synchronous>, transform_indices = @transform_3, window_bounds = array<i64: 1, 128>}, {transform_indices = @transform_4, window_bounds = array<i64: 512, 128>}]} {
    %c0 = arith.constant 0 : index
    %c0_0 = arith.constant 0 : index
    %0 = vector.load %arg1[%c0, %c0_0] : memref<512x256xbf16, #tpu.memory_space<vmem>>, vector<512x256xbf16>
    %c0_1 = arith.constant 0 : index
    %c0_2 = arith.constant 0 : index
    %1 = vector.load %arg2[%c0_1, %c0_2] : memref<256x128xbf16, #tpu.memory_space<vmem>>, vector<256x128xbf16>
    %cst = arith.constant dense<0.000000e+00> : vector<512x128xf32>
    %2 = tpu.matmul %0, %1, %cst {dimension_numbers = #tpu.dot_dimension_numbers<[1], [0], [0], [1], [0, 0, 1, 1], [], []>} : vector<512x256xbf16>, vector<256x128xbf16>, vector<512x128xf32> -> vector<512x128xf32>
    %c0_3 = arith.constant 0 : index
    %c0_4 = arith.constant 0 : index
    %3 = vector.load %arg3[%c0_3, %c0_4] : memref<1x128xf32, #tpu.memory_space<vmem>>, vector<1x128xf32>
    %4 = vector.broadcast %3 : vector<1x128xf32> to vector<512x128xf32>
    %5 = arith.mulf %2, %4 : vector<512x128xf32>
    %c0_5 = arith.constant 0 : index
    %c0_6 = arith.constant 0 : index
    %6 = vector.load %arg4[%c0_5, %c0_6] : memref<1x128xf32, #tpu.memory_space<vmem>>, vector<1x128xf32>
    %7 = vector.broadcast %6 : vector<1x128xf32> to vector<512x128xf32>
    %8 = arith.addf %5, %7 : vector<512x128xf32>
    %cst_7 = arith.constant 0.000000e+00 : f32
    %9 = vector.broadcast %cst_7 : f32 to vector<512x128xf32>
    %10 = arith.maximumf %8, %9 : vector<512x128xf32>
    %c0_8 = arith.constant 0 : index
    %c0_9 = arith.constant 0 : index
    %11 = vector.load %arg5[%c0_8, %c0_9] : memref<512x128xf32, #tpu.memory_space<vmem>>, vector<512x128xf32>
    tpu.vector_store %arg5[%c0_8, %c0_9], %10 {strides = array<i32>} : memref<512x128xf32, #tpu.memory_space<vmem>>, vector<512x128xf32>,
    return
  }
  func.func @transform_0(%arg0: i32) -> (i32, i32) {
    %c0_i32 = arith.constant 0 : i32
    %c0_i32_0 = arith.constant 0 : i32
    return %arg0, %c0_i32 : i32, i32
  }
  func.func @transform_1(%arg0: i32) -> (i32, i32) {
    %c0_i32 = arith.constant 0 : i32
    %c0_i32_0 = arith.constant 0 : i32
    %c0_i32_1 = arith.constant 0 : i32
    return %c0_i32, %c0_i32_0 : i32, i32
  }
  func.func @transform_2(%arg0: i32) -> (i32, i32) {
    %c0_i32 = arith.constant 0 : i32
    %c0_i32_0 = arith.constant 0 : i32
    %c0_i32_1 = arith.constant 0 : i32
    return %c0_i32, %c0_i32_0 : i32, i32
  }
  func.func @transform_3(%arg0: i32) -> (i32, i32) {
    %c0_i32 = arith.constant 0 : i32
    %c0_i32_0 = arith.constant 0 : i32
    %c0_i32_1 = arith.constant 0 : i32
    return %c0_i32, %c0_i32_0 : i32, i32
  }
  func.func @transform_4(%arg0: i32) -> (i32, i32) {
    %c0_i32 = arith.constant 0 : i32
    %c0_i32_0 = arith.constant 0 : i32
    return %arg0, %c0_i32 : i32, i32
  }
}

module attributes {stable_mosaic.version = 11 : i64} {
  func.func @_gemm_bn_kernel(%arg0: i32, %arg1: memref<512x128xbf16, #tpu.memory_space<vmem>>, %arg2: memref<128x128xbf16, #tpu.memory_space<vmem>>, %arg3: memref<1x128xf32, #tpu.memory_space<vmem>>, %arg4: memref<1x128xf32, #tpu.memory_space<vmem>>, %arg5: memref<512x128xf32, #tpu.memory_space<vmem>>) attributes {dimension_semantics = [#tpu.dimension_semantics<parallel>], iteration_bounds = array<i64: 1>, scalar_prefetch = 0 : i64, scratch_operands = 0 : i64, tpu.core_type = #tpu.core_type<tc>, window_params = [{transform_indices = @transform_0, window_bounds = array<i64: 512, 128>}, {pipeline_mode = #tpu.pipeline_mode<synchronous>, transform_indices = @transform_1, window_bounds = array<i64: 128, 128>}, {pipeline_mode = #tpu.pipeline_mode<synchronous>, transform_indices = @transform_2, window_bounds = array<i64: 1, 128>}, {pipeline_mode = #tpu.pipeline_mode<synchronous>, transform_indices = @transform_3, window_bounds = array<i64: 1, 128>}, {transform_indices = @transform_4, window_bounds = array<i64: 512, 128>}]} {
    %c0 = arith.constant 0 : index
    %c0_0 = arith.constant 0 : index
    %0 = vector.load %arg1[%c0, %c0_0] : memref<512x128xbf16, #tpu.memory_space<vmem>>, vector<512x128xbf16>
    %c0_1 = arith.constant 0 : index
    %c0_2 = arith.constant 0 : index
    %1 = vector.load %arg2[%c0_1, %c0_2] : memref<128x128xbf16, #tpu.memory_space<vmem>>, vector<128x128xbf16>
    %cst = arith.constant dense<0.000000e+00> : vector<512x128xf32>
    %2 = tpu.matmul %0, %1, %cst {dimension_numbers = #tpu.dot_dimension_numbers<[1], [0], [0], [1], [0, 0, 1, 1], [], []>} : vector<512x128xbf16>, vector<128x128xbf16>, vector<512x128xf32> -> vector<512x128xf32>
    %c0_3 = arith.constant 0 : index
    %c0_4 = arith.constant 0 : index
    %3 = vector.load %arg3[%c0_3, %c0_4] : memref<1x128xf32, #tpu.memory_space<vmem>>, vector<1x128xf32>
    %4 = vector.broadcast %3 : vector<1x128xf32> to vector<512x128xf32>
    %5 = arith.mulf %2, %4 : vector<512x128xf32>
    %c0_5 = arith.constant 0 : index
    %c0_6 = arith.constant 0 : index
    %6 = vector.load %arg4[%c0_5, %c0_6] : memref<1x128xf32, #tpu.memory_space<vmem>>, vector<1x128xf32>
    %7 = vector.broadcast %6 : vector<1x128xf32> to vector<512x128xf32>
    %8 = arith.addf %5, %7 : vector<512x128xf32>
    %cst_7 = arith.constant 0.000000e+00 : f32
    %9 = vector.broadcast %cst_7 : f32 to vector<512x128xf32>
    %10 = arith.maximumf %8, %9 : vector<512x128xf32>
    %c0_8 = arith.constant 0 : index
    %c0_9 = arith.constant 0 : index
    %11 = vector.load %arg5[%c0_8, %c0_9] : memref<512x128xf32, #tpu.memory_space<vmem>>, vector<512x128xf32>
    tpu.vector_store %arg5[%c0_8, %c0_9], %10 {strides = array<i32>} : memref<512x128xf32, #tpu.memory_space<vmem>>, vector<512x128xf32>,
    return
  }
  func.func @transform_0(%arg0: i32) -> (i32, i32) {
    %c0_i32 = arith.constant 0 : i32
    %c0_i32_0 = arith.constant 0 : i32
    return %arg0, %c0_i32 : i32, i32
  }
  func.func @transform_1(%arg0: i32) -> (i32, i32) {
    %c0_i32 = arith.constant 0 : i32
    %c0_i32_0 = arith.constant 0 : i32
    %c0_i32_1 = arith.constant 0 : i32
    return %c0_i32, %c0_i32_0 : i32, i32
  }
  func.func @transform_2(%arg0: i32) -> (i32, i32) {
    %c0_i32 = arith.constant 0 : i32
    %c0_i32_0 = arith.constant 0 : i32
    %c0_i32_1 = arith.constant 0 : i32
    return %c0_i32, %c0_i32_0 : i32, i32
  }
  func.func @transform_3(%arg0: i32) -> (i32, i32) {
    %c0_i32 = arith.constant 0 : i32
    %c0_i32_0 = arith.constant 0 : i32
    %c0_i32_1 = arith.constant 0 : i32
    return %c0_i32, %c0_i32_0 : i32, i32
  }
  func.func @transform_4(%arg0: i32) -> (i32, i32) {
    %c0_i32 = arith.constant 0 : i32
    %c0_i32_0 = arith.constant 0 : i32
    return %arg0, %c0_i32 : i32, i32
  }
}

module attributes {stable_mosaic.version = 11 : i64} {
  func.func @_gemm_bn_res_kernel(%arg0: i32, %arg1: memref<512x128xbf16, #tpu.memory_space<vmem>>, %arg2: memref<128x128xbf16, #tpu.memory_space<vmem>>, %arg3: memref<1x128xf32, #tpu.memory_space<vmem>>, %arg4: memref<1x128xf32, #tpu.memory_space<vmem>>, %arg5: memref<512x128xf32, #tpu.memory_space<vmem>>, %arg6: memref<512x128xf32, #tpu.memory_space<vmem>>) attributes {dimension_semantics = [#tpu.dimension_semantics<parallel>], iteration_bounds = array<i64: 1>, scalar_prefetch = 0 : i64, scratch_operands = 0 : i64, tpu.core_type = #tpu.core_type<tc>, window_params = [{transform_indices = @transform_0, window_bounds = array<i64: 512, 128>}, {pipeline_mode = #tpu.pipeline_mode<synchronous>, transform_indices = @transform_1, window_bounds = array<i64: 128, 128>}, {pipeline_mode = #tpu.pipeline_mode<synchronous>, transform_indices = @transform_2, window_bounds = array<i64: 1, 128>}, {pipeline_mode = #tpu.pipeline_mode<synchronous>, transform_indices = @transform_3, window_bounds = array<i64: 1, 128>}, {transform_indices = @transform_4, window_bounds = array<i64: 512, 128>}, {transform_indices = @transform_5, window_bounds = array<i64: 512, 128>}]} {
    %c0 = arith.constant 0 : index
    %c0_0 = arith.constant 0 : index
    %0 = vector.load %arg1[%c0, %c0_0] : memref<512x128xbf16, #tpu.memory_space<vmem>>, vector<512x128xbf16>
    %c0_1 = arith.constant 0 : index
    %c0_2 = arith.constant 0 : index
    %1 = vector.load %arg2[%c0_1, %c0_2] : memref<128x128xbf16, #tpu.memory_space<vmem>>, vector<128x128xbf16>
    %cst = arith.constant dense<0.000000e+00> : vector<512x128xf32>
    %2 = tpu.matmul %0, %1, %cst {dimension_numbers = #tpu.dot_dimension_numbers<[1], [0], [0], [1], [0, 0, 1, 1], [], []>} : vector<512x128xbf16>, vector<128x128xbf16>, vector<512x128xf32> -> vector<512x128xf32>
    %c0_3 = arith.constant 0 : index
    %c0_4 = arith.constant 0 : index
    %3 = vector.load %arg3[%c0_3, %c0_4] : memref<1x128xf32, #tpu.memory_space<vmem>>, vector<1x128xf32>
    %4 = vector.broadcast %3 : vector<1x128xf32> to vector<512x128xf32>
    %5 = arith.mulf %2, %4 : vector<512x128xf32>
    %c0_5 = arith.constant 0 : index
    %c0_6 = arith.constant 0 : index
    %6 = vector.load %arg4[%c0_5, %c0_6] : memref<1x128xf32, #tpu.memory_space<vmem>>, vector<1x128xf32>
    %7 = vector.broadcast %6 : vector<1x128xf32> to vector<512x128xf32>
    %8 = arith.addf %5, %7 : vector<512x128xf32>
    %c0_7 = arith.constant 0 : index
    %c0_8 = arith.constant 0 : index
    %9 = vector.load %arg5[%c0_7, %c0_8] : memref<512x128xf32, #tpu.memory_space<vmem>>, vector<512x128xf32>
    %10 = arith.addf %8, %9 : vector<512x128xf32>
    %cst_9 = arith.constant 0.000000e+00 : f32
    %11 = vector.broadcast %cst_9 : f32 to vector<512x128xf32>
    %12 = arith.maximumf %10, %11 : vector<512x128xf32>
    %c0_10 = arith.constant 0 : index
    %c0_11 = arith.constant 0 : index
    %13 = vector.load %arg6[%c0_10, %c0_11] : memref<512x128xf32, #tpu.memory_space<vmem>>, vector<512x128xf32>
    tpu.vector_store %arg6[%c0_10, %c0_11], %12 {strides = array<i32>} : memref<512x128xf32, #tpu.memory_space<vmem>>, vector<512x128xf32>,
    return
  }
  func.func @transform_0(%arg0: i32) -> (i32, i32) {
    %c0_i32 = arith.constant 0 : i32
    %c0_i32_0 = arith.constant 0 : i32
    return %arg0, %c0_i32 : i32, i32
  }
  func.func @transform_1(%arg0: i32) -> (i32, i32) {
    %c0_i32 = arith.constant 0 : i32
    %c0_i32_0 = arith.constant 0 : i32
    %c0_i32_1 = arith.constant 0 : i32
    return %c0_i32, %c0_i32_0 : i32, i32
  }
  func.func @transform_2(%arg0: i32) -> (i32, i32) {
    %c0_i32 = arith.constant 0 : i32
    %c0_i32_0 = arith.constant 0 : i32
    %c0_i32_1 = arith.constant 0 : i32
    return %c0_i32, %c0_i32_0 : i32, i32
  }
  func.func @transform_3(%arg0: i32) -> (i32, i32) {
    %c0_i32 = arith.constant 0 : i32
    %c0_i32_0 = arith.constant 0 : i32
    %c0_i32_1 = arith.constant 0 : i32
    return %c0_i32, %c0_i32_0 : i32, i32
  }
  func.func @transform_4(%arg0: i32) -> (i32, i32) {
    %c0_i32 = arith.constant 0 : i32
    %c0_i32_0 = arith.constant 0 : i32
    return %arg0, %c0_i32 : i32, i32
  }
  func.func @transform_5(%arg0: i32) -> (i32, i32) {
    %c0_i32 = arith.constant 0 : i32
    %c0_i32_0 = arith.constant 0 : i32
    return %arg0, %c0_i32 : i32, i32
  }
}

module attributes {stable_mosaic.version = 11 : i64} {
  func.func @_gemm_bn_kernel(%arg0: i32, %arg1: memref<128x128xbf16, #tpu.memory_space<vmem>>, %arg2: memref<128x128xbf16, #tpu.memory_space<vmem>>, %arg3: memref<1x128xf32, #tpu.memory_space<vmem>>, %arg4: memref<1x128xf32, #tpu.memory_space<vmem>>, %arg5: memref<128x128xf32, #tpu.memory_space<vmem>>) attributes {dimension_semantics = [#tpu.dimension_semantics<parallel>], iteration_bounds = array<i64: 1>, scalar_prefetch = 0 : i64, scratch_operands = 0 : i64, tpu.core_type = #tpu.core_type<tc>, window_params = [{transform_indices = @transform_0, window_bounds = array<i64: 128, 128>}, {pipeline_mode = #tpu.pipeline_mode<synchronous>, transform_indices = @transform_1, window_bounds = array<i64: 128, 128>}, {pipeline_mode = #tpu.pipeline_mode<synchronous>, transform_indices = @transform_2, window_bounds = array<i64: 1, 128>}, {pipeline_mode = #tpu.pipeline_mode<synchronous>, transform_indices = @transform_3, window_bounds = array<i64: 1, 128>}, {transform_indices = @transform_4, window_bounds = array<i64: 128, 128>}]} {
    %c0 = arith.constant 0 : index
    %c0_0 = arith.constant 0 : index
    %0 = vector.load %arg1[%c0, %c0_0] : memref<128x128xbf16, #tpu.memory_space<vmem>>, vector<128x128xbf16>
    %c0_1 = arith.constant 0 : index
    %c0_2 = arith.constant 0 : index
    %1 = vector.load %arg2[%c0_1, %c0_2] : memref<128x128xbf16, #tpu.memory_space<vmem>>, vector<128x128xbf16>
    %cst = arith.constant dense<0.000000e+00> : vector<128x128xf32>
    %2 = tpu.matmul %0, %1, %cst {dimension_numbers = #tpu.dot_dimension_numbers<[1], [0], [0], [1], [0, 0, 1, 1], [], []>} : vector<128x128xbf16>, vector<128x128xbf16>, vector<128x128xf32> -> vector<128x128xf32>
    %c0_3 = arith.constant 0 : index
    %c0_4 = arith.constant 0 : index
    %3 = vector.load %arg3[%c0_3, %c0_4] : memref<1x128xf32, #tpu.memory_space<vmem>>, vector<1x128xf32>
    %4 = vector.broadcast %3 : vector<1x128xf32> to vector<128x128xf32>
    %5 = arith.mulf %2, %4 : vector<128x128xf32>
    %c0_5 = arith.constant 0 : index
    %c0_6 = arith.constant 0 : index
    %6 = vector.load %arg4[%c0_5, %c0_6] : memref<1x128xf32, #tpu.memory_space<vmem>>, vector<1x128xf32>
    %7 = vector.broadcast %6 : vector<1x128xf32> to vector<128x128xf32>
    %8 = arith.addf %5, %7 : vector<128x128xf32>
    %c0_7 = arith.constant 0 : index
    %c0_8 = arith.constant 0 : index
    %9 = vector.load %arg5[%c0_7, %c0_8] : memref<128x128xf32, #tpu.memory_space<vmem>>, vector<128x128xf32>
    tpu.vector_store %arg5[%c0_7, %c0_8], %8 {strides = array<i32>} : memref<128x128xf32, #tpu.memory_space<vmem>>, vector<128x128xf32>,
    return
  }
  func.func @transform_0(%arg0: i32) -> (i32, i32) {
    %c0_i32 = arith.constant 0 : i32
    %c0_i32_0 = arith.constant 0 : i32
    return %arg0, %c0_i32 : i32, i32
  }
  func.func @transform_1(%arg0: i32) -> (i32, i32) {
    %c0_i32 = arith.constant 0 : i32
    %c0_i32_0 = arith.constant 0 : i32
    %c0_i32_1 = arith.constant 0 : i32
    return %c0_i32, %c0_i32_0 : i32, i32
  }
  func.func @transform_2(%arg0: i32) -> (i32, i32) {
    %c0_i32 = arith.constant 0 : i32
    %c0_i32_0 = arith.constant 0 : i32
    %c0_i32_1 = arith.constant 0 : i32
    return %c0_i32, %c0_i32_0 : i32, i32
  }
  func.func @transform_3(%arg0: i32) -> (i32, i32) {
    %c0_i32 = arith.constant 0 : i32
    %c0_i32_0 = arith.constant 0 : i32
    %c0_i32_1 = arith.constant 0 : i32
    return %c0_i32, %c0_i32_0 : i32, i32
  }
  func.func @transform_4(%arg0: i32) -> (i32, i32) {
    %c0_i32 = arith.constant 0 : i32
    %c0_i32_0 = arith.constant 0 : i32
    return %arg0, %c0_i32 : i32, i32
  }
}

module attributes {stable_mosaic.version = 11 : i64} {
  func.func @_gemm_bn_kernel(%arg0: i32, %arg1: memref<128x128xbf16, #tpu.memory_space<vmem>>, %arg2: memref<128x128xbf16, #tpu.memory_space<vmem>>, %arg3: memref<1x128xf32, #tpu.memory_space<vmem>>, %arg4: memref<1x128xf32, #tpu.memory_space<vmem>>, %arg5: memref<128x128xf32, #tpu.memory_space<vmem>>) attributes {dimension_semantics = [#tpu.dimension_semantics<parallel>], iteration_bounds = array<i64: 1>, scalar_prefetch = 0 : i64, scratch_operands = 0 : i64, tpu.core_type = #tpu.core_type<tc>, window_params = [{transform_indices = @transform_0, window_bounds = array<i64: 128, 128>}, {pipeline_mode = #tpu.pipeline_mode<synchronous>, transform_indices = @transform_1, window_bounds = array<i64: 128, 128>}, {pipeline_mode = #tpu.pipeline_mode<synchronous>, transform_indices = @transform_2, window_bounds = array<i64: 1, 128>}, {pipeline_mode = #tpu.pipeline_mode<synchronous>, transform_indices = @transform_3, window_bounds = array<i64: 1, 128>}, {transform_indices = @transform_4, window_bounds = array<i64: 128, 128>}]} {
    %c0 = arith.constant 0 : index
    %c0_0 = arith.constant 0 : index
    %0 = vector.load %arg1[%c0, %c0_0] : memref<128x128xbf16, #tpu.memory_space<vmem>>, vector<128x128xbf16>
    %c0_1 = arith.constant 0 : index
    %c0_2 = arith.constant 0 : index
    %1 = vector.load %arg2[%c0_1, %c0_2] : memref<128x128xbf16, #tpu.memory_space<vmem>>, vector<128x128xbf16>
    %cst = arith.constant dense<0.000000e+00> : vector<128x128xf32>
    %2 = tpu.matmul %0, %1, %cst {dimension_numbers = #tpu.dot_dimension_numbers<[1], [0], [0], [1], [0, 0, 1, 1], [], []>} : vector<128x128xbf16>, vector<128x128xbf16>, vector<128x128xf32> -> vector<128x128xf32>
    %c0_3 = arith.constant 0 : index
    %c0_4 = arith.constant 0 : index
    %3 = vector.load %arg3[%c0_3, %c0_4] : memref<1x128xf32, #tpu.memory_space<vmem>>, vector<1x128xf32>
    %4 = vector.broadcast %3 : vector<1x128xf32> to vector<128x128xf32>
    %5 = arith.mulf %2, %4 : vector<128x128xf32>
    %c0_5 = arith.constant 0 : index
    %c0_6 = arith.constant 0 : index
    %6 = vector.load %arg4[%c0_5, %c0_6] : memref<1x128xf32, #tpu.memory_space<vmem>>, vector<1x128xf32>
    %7 = vector.broadcast %6 : vector<1x128xf32> to vector<128x128xf32>
    %8 = arith.addf %5, %7 : vector<128x128xf32>
    %cst_7 = arith.constant 0.000000e+00 : f32
    %9 = vector.broadcast %cst_7 : f32 to vector<128x128xf32>
    %10 = arith.maximumf %8, %9 : vector<128x128xf32>
    %c0_8 = arith.constant 0 : index
    %c0_9 = arith.constant 0 : index
    %11 = vector.load %arg5[%c0_8, %c0_9] : memref<128x128xf32, #tpu.memory_space<vmem>>, vector<128x128xf32>
    tpu.vector_store %arg5[%c0_8, %c0_9], %10 {strides = array<i32>} : memref<128x128xf32, #tpu.memory_space<vmem>>, vector<128x128xf32>,
    return
  }
  func.func @transform_0(%arg0: i32) -> (i32, i32) {
    %c0_i32 = arith.constant 0 : i32
    %c0_i32_0 = arith.constant 0 : i32
    return %arg0, %c0_i32 : i32, i32
  }
  func.func @transform_1(%arg0: i32) -> (i32, i32) {
    %c0_i32 = arith.constant 0 : i32
    %c0_i32_0 = arith.constant 0 : i32
    %c0_i32_1 = arith.constant 0 : i32
    return %c0_i32, %c0_i32_0 : i32, i32
  }
  func.func @transform_2(%arg0: i32) -> (i32, i32) {
    %c0_i32 = arith.constant 0 : i32
    %c0_i32_0 = arith.constant 0 : i32
    %c0_i32_1 = arith.constant 0 : i32
    return %c0_i32, %c0_i32_0 : i32, i32
  }
  func.func @transform_3(%arg0: i32) -> (i32, i32) {
    %c0_i32 = arith.constant 0 : i32
    %c0_i32_0 = arith.constant 0 : i32
    %c0_i32_1 = arith.constant 0 : i32
    return %c0_i32, %c0_i32_0 : i32, i32
  }
  func.func @transform_4(%arg0: i32) -> (i32, i32) {
    %c0_i32 = arith.constant 0 : i32
    %c0_i32_0 = arith.constant 0 : i32
    return %arg0, %c0_i32 : i32, i32
  }
}

module attributes {stable_mosaic.version = 11 : i64} {
  func.func @_gemm_bn_res_kernel(%arg0: i32, %arg1: memref<128x256xbf16, #tpu.memory_space<vmem>>, %arg2: memref<256x128xbf16, #tpu.memory_space<vmem>>, %arg3: memref<1x128xf32, #tpu.memory_space<vmem>>, %arg4: memref<1x128xf32, #tpu.memory_space<vmem>>, %arg5: memref<128x128xf32, #tpu.memory_space<vmem>>, %arg6: memref<128x128xf32, #tpu.memory_space<vmem>>) attributes {dimension_semantics = [#tpu.dimension_semantics<parallel>], iteration_bounds = array<i64: 1>, scalar_prefetch = 0 : i64, scratch_operands = 0 : i64, tpu.core_type = #tpu.core_type<tc>, window_params = [{transform_indices = @transform_0, window_bounds = array<i64: 128, 256>}, {pipeline_mode = #tpu.pipeline_mode<synchronous>, transform_indices = @transform_1, window_bounds = array<i64: 256, 128>}, {pipeline_mode = #tpu.pipeline_mode<synchronous>, transform_indices = @transform_2, window_bounds = array<i64: 1, 128>}, {pipeline_mode = #tpu.pipeline_mode<synchronous>, transform_indices = @transform_3, window_bounds = array<i64: 1, 128>}, {transform_indices = @transform_4, window_bounds = array<i64: 128, 128>}, {transform_indices = @transform_5, window_bounds = array<i64: 128, 128>}]} {
    %c0 = arith.constant 0 : index
    %c0_0 = arith.constant 0 : index
    %0 = vector.load %arg1[%c0, %c0_0] : memref<128x256xbf16, #tpu.memory_space<vmem>>, vector<128x256xbf16>
    %c0_1 = arith.constant 0 : index
    %c0_2 = arith.constant 0 : index
    %1 = vector.load %arg2[%c0_1, %c0_2] : memref<256x128xbf16, #tpu.memory_space<vmem>>, vector<256x128xbf16>
    %cst = arith.constant dense<0.000000e+00> : vector<128x128xf32>
    %2 = tpu.matmul %0, %1, %cst {dimension_numbers = #tpu.dot_dimension_numbers<[1], [0], [0], [1], [0, 0, 1, 1], [], []>} : vector<128x256xbf16>, vector<256x128xbf16>, vector<128x128xf32> -> vector<128x128xf32>
    %c0_3 = arith.constant 0 : index
    %c0_4 = arith.constant 0 : index
    %3 = vector.load %arg3[%c0_3, %c0_4] : memref<1x128xf32, #tpu.memory_space<vmem>>, vector<1x128xf32>
    %4 = vector.broadcast %3 : vector<1x128xf32> to vector<128x128xf32>
    %5 = arith.mulf %2, %4 : vector<128x128xf32>
    %c0_5 = arith.constant 0 : index
    %c0_6 = arith.constant 0 : index
    %6 = vector.load %arg4[%c0_5, %c0_6] : memref<1x128xf32, #tpu.memory_space<vmem>>, vector<1x128xf32>
    %7 = vector.broadcast %6 : vector<1x128xf32> to vector<128x128xf32>
    %8 = arith.addf %5, %7 : vector<128x128xf32>
    %c0_7 = arith.constant 0 : index
    %c0_8 = arith.constant 0 : index
    %9 = vector.load %arg5[%c0_7, %c0_8] : memref<128x128xf32, #tpu.memory_space<vmem>>, vector<128x128xf32>
    %10 = arith.addf %8, %9 : vector<128x128xf32>
    %cst_9 = arith.constant 0.000000e+00 : f32
    %11 = vector.broadcast %cst_9 : f32 to vector<128x128xf32>
    %12 = arith.maximumf %10, %11 : vector<128x128xf32>
    %c0_10 = arith.constant 0 : index
    %c0_11 = arith.constant 0 : index
    %13 = vector.load %arg6[%c0_10, %c0_11] : memref<128x128xf32, #tpu.memory_space<vmem>>, vector<128x128xf32>
    tpu.vector_store %arg6[%c0_10, %c0_11], %12 {strides = array<i32>} : memref<128x128xf32, #tpu.memory_space<vmem>>, vector<128x128xf32>,
    return
  }
  func.func @transform_0(%arg0: i32) -> (i32, i32) {
    %c0_i32 = arith.constant 0 : i32
    %c0_i32_0 = arith.constant 0 : i32
    return %arg0, %c0_i32 : i32, i32
  }
  func.func @transform_1(%arg0: i32) -> (i32, i32) {
    %c0_i32 = arith.constant 0 : i32
    %c0_i32_0 = arith.constant 0 : i32
    %c0_i32_1 = arith.constant 0 : i32
    return %c0_i32, %c0_i32_0 : i32, i32
  }
  func.func @transform_2(%arg0: i32) -> (i32, i32) {
    %c0_i32 = arith.constant 0 : i32
    %c0_i32_0 = arith.constant 0 : i32
    %c0_i32_1 = arith.constant 0 : i32
    return %c0_i32, %c0_i32_0 : i32, i32
  }
  func.func @transform_3(%arg0: i32) -> (i32, i32) {
    %c0_i32 = arith.constant 0 : i32
    %c0_i32_0 = arith.constant 0 : i32
    %c0_i32_1 = arith.constant 0 : i32
    return %c0_i32, %c0_i32_0 : i32, i32
  }
  func.func @transform_4(%arg0: i32) -> (i32, i32) {
    %c0_i32 = arith.constant 0 : i32
    %c0_i32_0 = arith.constant 0 : i32
    return %arg0, %c0_i32 : i32, i32
  }
  func.func @transform_5(%arg0: i32) -> (i32, i32) {
    %c0_i32 = arith.constant 0 : i32
    %c0_i32_0 = arith.constant 0 : i32
    return %arg0, %c0_i32 : i32, i32
  }
}

module attributes {stable_mosaic.version = 11 : i64} {
  func.func @_gemm_bn_kernel(%arg0: i32, %arg1: memref<128x256xbf16, #tpu.memory_space<vmem>>, %arg2: memref<256x128xbf16, #tpu.memory_space<vmem>>, %arg3: memref<1x128xf32, #tpu.memory_space<vmem>>, %arg4: memref<1x128xf32, #tpu.memory_space<vmem>>, %arg5: memref<128x128xf32, #tpu.memory_space<vmem>>) attributes {dimension_semantics = [#tpu.dimension_semantics<parallel>], iteration_bounds = array<i64: 1>, scalar_prefetch = 0 : i64, scratch_operands = 0 : i64, tpu.core_type = #tpu.core_type<tc>, window_params = [{transform_indices = @transform_0, window_bounds = array<i64: 128, 256>}, {pipeline_mode = #tpu.pipeline_mode<synchronous>, transform_indices = @transform_1, window_bounds = array<i64: 256, 128>}, {pipeline_mode = #tpu.pipeline_mode<synchronous>, transform_indices = @transform_2, window_bounds = array<i64: 1, 128>}, {pipeline_mode = #tpu.pipeline_mode<synchronous>, transform_indices = @transform_3, window_bounds = array<i64: 1, 128>}, {transform_indices = @transform_4, window_bounds = array<i64: 128, 128>}]} {
    %c0 = arith.constant 0 : index
    %c0_0 = arith.constant 0 : index
    %0 = vector.load %arg1[%c0, %c0_0] : memref<128x256xbf16, #tpu.memory_space<vmem>>, vector<128x256xbf16>
    %c0_1 = arith.constant 0 : index
    %c0_2 = arith.constant 0 : index
    %1 = vector.load %arg2[%c0_1, %c0_2] : memref<256x128xbf16, #tpu.memory_space<vmem>>, vector<256x128xbf16>
    %cst = arith.constant dense<0.000000e+00> : vector<128x128xf32>
    %2 = tpu.matmul %0, %1, %cst {dimension_numbers = #tpu.dot_dimension_numbers<[1], [0], [0], [1], [0, 0, 1, 1], [], []>} : vector<128x256xbf16>, vector<256x128xbf16>, vector<128x128xf32> -> vector<128x128xf32>
    %c0_3 = arith.constant 0 : index
    %c0_4 = arith.constant 0 : index
    %3 = vector.load %arg3[%c0_3, %c0_4] : memref<1x128xf32, #tpu.memory_space<vmem>>, vector<1x128xf32>
    %4 = vector.broadcast %3 : vector<1x128xf32> to vector<128x128xf32>
    %5 = arith.mulf %2, %4 : vector<128x128xf32>
    %c0_5 = arith.constant 0 : index
    %c0_6 = arith.constant 0 : index
    %6 = vector.load %arg4[%c0_5, %c0_6] : memref<1x128xf32, #tpu.memory_space<vmem>>, vector<1x128xf32>
    %7 = vector.broadcast %6 : vector<1x128xf32> to vector<128x128xf32>
    %8 = arith.addf %5, %7 : vector<128x128xf32>
    %cst_7 = arith.constant 0.000000e+00 : f32
    %9 = vector.broadcast %cst_7 : f32 to vector<128x128xf32>
    %10 = arith.maximumf %8, %9 : vector<128x128xf32>
    %c0_8 = arith.constant 0 : index
    %c0_9 = arith.constant 0 : index
    %11 = vector.load %arg5[%c0_8, %c0_9] : memref<128x128xf32, #tpu.memory_space<vmem>>, vector<128x128xf32>
    tpu.vector_store %arg5[%c0_8, %c0_9], %10 {strides = array<i32>} : memref<128x128xf32, #tpu.memory_space<vmem>>, vector<128x128xf32>,
    return
  }
  func.func @transform_0(%arg0: i32) -> (i32, i32) {
    %c0_i32 = arith.constant 0 : i32
    %c0_i32_0 = arith.constant 0 : i32
    return %arg0, %c0_i32 : i32, i32
  }
  func.func @transform_1(%arg0: i32) -> (i32, i32) {
    %c0_i32 = arith.constant 0 : i32
    %c0_i32_0 = arith.constant 0 : i32
    %c0_i32_1 = arith.constant 0 : i32
    return %c0_i32, %c0_i32_0 : i32, i32
  }
  func.func @transform_2(%arg0: i32) -> (i32, i32) {
    %c0_i32 = arith.constant 0 : i32
    %c0_i32_0 = arith.constant 0 : i32
    %c0_i32_1 = arith.constant 0 : i32
    return %c0_i32, %c0_i32_0 : i32, i32
  }
  func.func @transform_3(%arg0: i32) -> (i32, i32) {
    %c0_i32 = arith.constant 0 : i32
    %c0_i32_0 = arith.constant 0 : i32
    %c0_i32_1 = arith.constant 0 : i32
    return %c0_i32, %c0_i32_0 : i32, i32
  }
  func.func @transform_4(%arg0: i32) -> (i32, i32) {
    %c0_i32 = arith.constant 0 : i32
    %c0_i32_0 = arith.constant 0 : i32
    return %arg0, %c0_i32 : i32, i32
  }
}

module attributes {stable_mosaic.version = 11 : i64} {
  func.func @_gemm_bn_kernel(%arg0: i32, %arg1: memref<32x128xbf16, #tpu.memory_space<vmem>>, %arg2: memref<128x128xbf16, #tpu.memory_space<vmem>>, %arg3: memref<1x128xf32, #tpu.memory_space<vmem>>, %arg4: memref<1x128xf32, #tpu.memory_space<vmem>>, %arg5: memref<32x128xf32, #tpu.memory_space<vmem>>) attributes {dimension_semantics = [#tpu.dimension_semantics<parallel>], iteration_bounds = array<i64: 1>, scalar_prefetch = 0 : i64, scratch_operands = 0 : i64, tpu.core_type = #tpu.core_type<tc>, window_params = [{transform_indices = @transform_0, window_bounds = array<i64: 32, 128>}, {pipeline_mode = #tpu.pipeline_mode<synchronous>, transform_indices = @transform_1, window_bounds = array<i64: 128, 128>}, {pipeline_mode = #tpu.pipeline_mode<synchronous>, transform_indices = @transform_2, window_bounds = array<i64: 1, 128>}, {pipeline_mode = #tpu.pipeline_mode<synchronous>, transform_indices = @transform_3, window_bounds = array<i64: 1, 128>}, {transform_indices = @transform_4, window_bounds = array<i64: 32, 128>}]} {
    %c0 = arith.constant 0 : index
    %c0_0 = arith.constant 0 : index
    %0 = vector.load %arg1[%c0, %c0_0] : memref<32x128xbf16, #tpu.memory_space<vmem>>, vector<32x128xbf16>
    %c0_1 = arith.constant 0 : index
    %c0_2 = arith.constant 0 : index
    %1 = vector.load %arg2[%c0_1, %c0_2] : memref<128x128xbf16, #tpu.memory_space<vmem>>, vector<128x128xbf16>
    %cst = arith.constant dense<0.000000e+00> : vector<32x128xf32>
    %2 = tpu.matmul %0, %1, %cst {dimension_numbers = #tpu.dot_dimension_numbers<[1], [0], [0], [1], [0, 0, 1, 1], [], []>} : vector<32x128xbf16>, vector<128x128xbf16>, vector<32x128xf32> -> vector<32x128xf32>
    %c0_3 = arith.constant 0 : index
    %c0_4 = arith.constant 0 : index
    %3 = vector.load %arg3[%c0_3, %c0_4] : memref<1x128xf32, #tpu.memory_space<vmem>>, vector<1x128xf32>
    %4 = vector.broadcast %3 : vector<1x128xf32> to vector<32x128xf32>
    %5 = arith.mulf %2, %4 : vector<32x128xf32>
    %c0_5 = arith.constant 0 : index
    %c0_6 = arith.constant 0 : index
    %6 = vector.load %arg4[%c0_5, %c0_6] : memref<1x128xf32, #tpu.memory_space<vmem>>, vector<1x128xf32>
    %7 = vector.broadcast %6 : vector<1x128xf32> to vector<32x128xf32>
    %8 = arith.addf %5, %7 : vector<32x128xf32>
    %c0_7 = arith.constant 0 : index
    %c0_8 = arith.constant 0 : index
    %9 = vector.load %arg5[%c0_7, %c0_8] : memref<32x128xf32, #tpu.memory_space<vmem>>, vector<32x128xf32>
    tpu.vector_store %arg5[%c0_7, %c0_8], %8 {strides = array<i32>} : memref<32x128xf32, #tpu.memory_space<vmem>>, vector<32x128xf32>,
    return
  }
  func.func @transform_0(%arg0: i32) -> (i32, i32) {
    %c0_i32 = arith.constant 0 : i32
    %c0_i32_0 = arith.constant 0 : i32
    return %arg0, %c0_i32 : i32, i32
  }
  func.func @transform_1(%arg0: i32) -> (i32, i32) {
    %c0_i32 = arith.constant 0 : i32
    %c0_i32_0 = arith.constant 0 : i32
    %c0_i32_1 = arith.constant 0 : i32
    return %c0_i32, %c0_i32_0 : i32, i32
  }
  func.func @transform_2(%arg0: i32) -> (i32, i32) {
    %c0_i32 = arith.constant 0 : i32
    %c0_i32_0 = arith.constant 0 : i32
    %c0_i32_1 = arith.constant 0 : i32
    return %c0_i32, %c0_i32_0 : i32, i32
  }
  func.func @transform_3(%arg0: i32) -> (i32, i32) {
    %c0_i32 = arith.constant 0 : i32
    %c0_i32_0 = arith.constant 0 : i32
    %c0_i32_1 = arith.constant 0 : i32
    return %c0_i32, %c0_i32_0 : i32, i32
  }
  func.func @transform_4(%arg0: i32) -> (i32, i32) {
    %c0_i32 = arith.constant 0 : i32
    %c0_i32_0 = arith.constant 0 : i32
    return %arg0, %c0_i32 : i32, i32
  }
}

module attributes {stable_mosaic.version = 11 : i64} {
  func.func @_gemm_bn_kernel(%arg0: i32, %arg1: memref<32x256xbf16, #tpu.memory_space<vmem>>, %arg2: memref<256x128xbf16, #tpu.memory_space<vmem>>, %arg3: memref<1x128xf32, #tpu.memory_space<vmem>>, %arg4: memref<1x128xf32, #tpu.memory_space<vmem>>, %arg5: memref<32x128xf32, #tpu.memory_space<vmem>>) attributes {dimension_semantics = [#tpu.dimension_semantics<parallel>], iteration_bounds = array<i64: 1>, scalar_prefetch = 0 : i64, scratch_operands = 0 : i64, tpu.core_type = #tpu.core_type<tc>, window_params = [{transform_indices = @transform_0, window_bounds = array<i64: 32, 256>}, {pipeline_mode = #tpu.pipeline_mode<synchronous>, transform_indices = @transform_1, window_bounds = array<i64: 256, 128>}, {pipeline_mode = #tpu.pipeline_mode<synchronous>, transform_indices = @transform_2, window_bounds = array<i64: 1, 128>}, {pipeline_mode = #tpu.pipeline_mode<synchronous>, transform_indices = @transform_3, window_bounds = array<i64: 1, 128>}, {transform_indices = @transform_4, window_bounds = array<i64: 32, 128>}]} {
    %c0 = arith.constant 0 : index
    %c0_0 = arith.constant 0 : index
    %0 = vector.load %arg1[%c0, %c0_0] : memref<32x256xbf16, #tpu.memory_space<vmem>>, vector<32x256xbf16>
    %c0_1 = arith.constant 0 : index
    %c0_2 = arith.constant 0 : index
    %1 = vector.load %arg2[%c0_1, %c0_2] : memref<256x128xbf16, #tpu.memory_space<vmem>>, vector<256x128xbf16>
    %cst = arith.constant dense<0.000000e+00> : vector<32x128xf32>
    %2 = tpu.matmul %0, %1, %cst {dimension_numbers = #tpu.dot_dimension_numbers<[1], [0], [0], [1], [0, 0, 1, 1], [], []>} : vector<32x256xbf16>, vector<256x128xbf16>, vector<32x128xf32> -> vector<32x128xf32>
    %c0_3 = arith.constant 0 : index
    %c0_4 = arith.constant 0 : index
    %3 = vector.load %arg3[%c0_3, %c0_4] : memref<1x128xf32, #tpu.memory_space<vmem>>, vector<1x128xf32>
    %4 = vector.broadcast %3 : vector<1x128xf32> to vector<32x128xf32>
    %5 = arith.mulf %2, %4 : vector<32x128xf32>
    %c0_5 = arith.constant 0 : index
    %c0_6 = arith.constant 0 : index
    %6 = vector.load %arg4[%c0_5, %c0_6] : memref<1x128xf32, #tpu.memory_space<vmem>>, vector<1x128xf32>
    %7 = vector.broadcast %6 : vector<1x128xf32> to vector<32x128xf32>
    %8 = arith.addf %5, %7 : vector<32x128xf32>
    %cst_7 = arith.constant 0.000000e+00 : f32
    %9 = vector.broadcast %cst_7 : f32 to vector<32x128xf32>
    %10 = arith.maximumf %8, %9 : vector<32x128xf32>
    %c0_8 = arith.constant 0 : index
    %c0_9 = arith.constant 0 : index
    %11 = vector.load %arg5[%c0_8, %c0_9] : memref<32x128xf32, #tpu.memory_space<vmem>>, vector<32x128xf32>
    tpu.vector_store %arg5[%c0_8, %c0_9], %10 {strides = array<i32>} : memref<32x128xf32, #tpu.memory_space<vmem>>, vector<32x128xf32>,
    return
  }
  func.func @transform_0(%arg0: i32) -> (i32, i32) {
    %c0_i32 = arith.constant 0 : i32
    %c0_i32_0 = arith.constant 0 : i32
    return %arg0, %c0_i32 : i32, i32
  }
  func.func @transform_1(%arg0: i32) -> (i32, i32) {
    %c0_i32 = arith.constant 0 : i32
    %c0_i32_0 = arith.constant 0 : i32
    %c0_i32_1 = arith.constant 0 : i32
    return %c0_i32, %c0_i32_0 : i32, i32
  }
  func.func @transform_2(%arg0: i32) -> (i32, i32) {
    %c0_i32 = arith.constant 0 : i32
    %c0_i32_0 = arith.constant 0 : i32
    %c0_i32_1 = arith.constant 0 : i32
    return %c0_i32, %c0_i32_0 : i32, i32
  }
  func.func @transform_3(%arg0: i32) -> (i32, i32) {
    %c0_i32 = arith.constant 0 : i32
    %c0_i32_0 = arith.constant 0 : i32
    %c0_i32_1 = arith.constant 0 : i32
    return %c0_i32, %c0_i32_0 : i32, i32
  }
  func.func @transform_4(%arg0: i32) -> (i32, i32) {
    %c0_i32 = arith.constant 0 : i32
    %c0_i32_0 = arith.constant 0 : i32
    return %arg0, %c0_i32 : i32, i32
  }
}

module attributes {stable_mosaic.version = 11 : i64} {
  func.func @_gemm_bn_kernel(%arg0: i32, %arg1: memref<32x384xbf16, #tpu.memory_space<vmem>>, %arg2: memref<384x128xbf16, #tpu.memory_space<vmem>>, %arg3: memref<1x128xf32, #tpu.memory_space<vmem>>, %arg4: memref<1x128xf32, #tpu.memory_space<vmem>>, %arg5: memref<32x128xf32, #tpu.memory_space<vmem>>) attributes {dimension_semantics = [#tpu.dimension_semantics<parallel>], iteration_bounds = array<i64: 1>, scalar_prefetch = 0 : i64, scratch_operands = 0 : i64, tpu.core_type = #tpu.core_type<tc>, window_params = [{transform_indices = @transform_0, window_bounds = array<i64: 32, 384>}, {pipeline_mode = #tpu.pipeline_mode<synchronous>, transform_indices = @transform_1, window_bounds = array<i64: 384, 128>}, {pipeline_mode = #tpu.pipeline_mode<synchronous>, transform_indices = @transform_2, window_bounds = array<i64: 1, 128>}, {pipeline_mode = #tpu.pipeline_mode<synchronous>, transform_indices = @transform_3, window_bounds = array<i64: 1, 128>}, {transform_indices = @transform_4, window_bounds = array<i64: 32, 128>}]} {
    %c0 = arith.constant 0 : index
    %c0_0 = arith.constant 0 : index
    %0 = vector.load %arg1[%c0, %c0_0] : memref<32x384xbf16, #tpu.memory_space<vmem>>, vector<32x384xbf16>
    %c0_1 = arith.constant 0 : index
    %c0_2 = arith.constant 0 : index
    %1 = vector.load %arg2[%c0_1, %c0_2] : memref<384x128xbf16, #tpu.memory_space<vmem>>, vector<384x128xbf16>
    %cst = arith.constant dense<0.000000e+00> : vector<32x128xf32>
    %2 = tpu.matmul %0, %1, %cst {dimension_numbers = #tpu.dot_dimension_numbers<[1], [0], [0], [1], [0, 0, 1, 1], [], []>} : vector<32x384xbf16>, vector<384x128xbf16>, vector<32x128xf32> -> vector<32x128xf32>
    %c0_3 = arith.constant 0 : index
    %c0_4 = arith.constant 0 : index
    %3 = vector.load %arg3[%c0_3, %c0_4] : memref<1x128xf32, #tpu.memory_space<vmem>>, vector<1x128xf32>
    %4 = vector.broadcast %3 : vector<1x128xf32> to vector<32x128xf32>
    %5 = arith.mulf %2, %4 : vector<32x128xf32>
    %c0_5 = arith.constant 0 : index
    %c0_6 = arith.constant 0 : index
    %6 = vector.load %arg4[%c0_5, %c0_6] : memref<1x128xf32, #tpu.memory_space<vmem>>, vector<1x128xf32>
    %7 = vector.broadcast %6 : vector<1x128xf32> to vector<32x128xf32>
    %8 = arith.addf %5, %7 : vector<32x128xf32>
    %cst_7 = arith.constant 0.000000e+00 : f32
    %9 = vector.broadcast %cst_7 : f32 to vector<32x128xf32>
    %10 = arith.maximumf %8, %9 : vector<32x128xf32>
    %c0_8 = arith.constant 0 : index
    %c0_9 = arith.constant 0 : index
    %11 = vector.load %arg5[%c0_8, %c0_9] : memref<32x128xf32, #tpu.memory_space<vmem>>, vector<32x128xf32>
    tpu.vector_store %arg5[%c0_8, %c0_9], %10 {strides = array<i32>} : memref<32x128xf32, #tpu.memory_space<vmem>>, vector<32x128xf32>,
    return
  }
  func.func @transform_0(%arg0: i32) -> (i32, i32) {
    %c0_i32 = arith.constant 0 : i32
    %c0_i32_0 = arith.constant 0 : i32
    return %arg0, %c0_i32 : i32, i32
  }
  func.func @transform_1(%arg0: i32) -> (i32, i32) {
    %c0_i32 = arith.constant 0 : i32
    %c0_i32_0 = arith.constant 0 : i32
    %c0_i32_1 = arith.constant 0 : i32
    return %c0_i32, %c0_i32_0 : i32, i32
  }
  func.func @transform_2(%arg0: i32) -> (i32, i32) {
    %c0_i32 = arith.constant 0 : i32
    %c0_i32_0 = arith.constant 0 : i32
    %c0_i32_1 = arith.constant 0 : i32
    return %c0_i32, %c0_i32_0 : i32, i32
  }
  func.func @transform_3(%arg0: i32) -> (i32, i32) {
    %c0_i32 = arith.constant 0 : i32
    %c0_i32_0 = arith.constant 0 : i32
    %c0_i32_1 = arith.constant 0 : i32
    return %c0_i32, %c0_i32_0 : i32, i32
  }
  func.func @transform_4(%arg0: i32) -> (i32, i32) {
    %c0_i32 = arith.constant 0 : i32
    %c0_i32_0 = arith.constant 0 : i32
    return %arg0, %c0_i32 : i32, i32
  }
}

module attributes {stable_mosaic.version = 11 : i64} {
  func.func @_gemm_bn_res_kernel(%arg0: i32, %arg1: memref<32x384xbf16, #tpu.memory_space<vmem>>, %arg2: memref<384x128xbf16, #tpu.memory_space<vmem>>, %arg3: memref<1x128xf32, #tpu.memory_space<vmem>>, %arg4: memref<1x128xf32, #tpu.memory_space<vmem>>, %arg5: memref<32x128xf32, #tpu.memory_space<vmem>>, %arg6: memref<32x128xf32, #tpu.memory_space<vmem>>) attributes {dimension_semantics = [#tpu.dimension_semantics<parallel>], iteration_bounds = array<i64: 1>, scalar_prefetch = 0 : i64, scratch_operands = 0 : i64, tpu.core_type = #tpu.core_type<tc>, window_params = [{transform_indices = @transform_0, window_bounds = array<i64: 32, 384>}, {pipeline_mode = #tpu.pipeline_mode<synchronous>, transform_indices = @transform_1, window_bounds = array<i64: 384, 128>}, {pipeline_mode = #tpu.pipeline_mode<synchronous>, transform_indices = @transform_2, window_bounds = array<i64: 1, 128>}, {pipeline_mode = #tpu.pipeline_mode<synchronous>, transform_indices = @transform_3, window_bounds = array<i64: 1, 128>}, {transform_indices = @transform_4, window_bounds = array<i64: 32, 128>}, {transform_indices = @transform_5, window_bounds = array<i64: 32, 128>}]} {
    %c0 = arith.constant 0 : index
    %c0_0 = arith.constant 0 : index
    %0 = vector.load %arg1[%c0, %c0_0] : memref<32x384xbf16, #tpu.memory_space<vmem>>, vector<32x384xbf16>
    %c0_1 = arith.constant 0 : index
    %c0_2 = arith.constant 0 : index
    %1 = vector.load %arg2[%c0_1, %c0_2] : memref<384x128xbf16, #tpu.memory_space<vmem>>, vector<384x128xbf16>
    %cst = arith.constant dense<0.000000e+00> : vector<32x128xf32>
    %2 = tpu.matmul %0, %1, %cst {dimension_numbers = #tpu.dot_dimension_numbers<[1], [0], [0], [1], [0, 0, 1, 1], [], []>} : vector<32x384xbf16>, vector<384x128xbf16>, vector<32x128xf32> -> vector<32x128xf32>
    %c0_3 = arith.constant 0 : index
    %c0_4 = arith.constant 0 : index
    %3 = vector.load %arg3[%c0_3, %c0_4] : memref<1x128xf32, #tpu.memory_space<vmem>>, vector<1x128xf32>
    %4 = vector.broadcast %3 : vector<1x128xf32> to vector<32x128xf32>
    %5 = arith.mulf %2, %4 : vector<32x128xf32>
    %c0_5 = arith.constant 0 : index
    %c0_6 = arith.constant 0 : index
    %6 = vector.load %arg4[%c0_5, %c0_6] : memref<1x128xf32, #tpu.memory_space<vmem>>, vector<1x128xf32>
    %7 = vector.broadcast %6 : vector<1x128xf32> to vector<32x128xf32>
    %8 = arith.addf %5, %7 : vector<32x128xf32>
    %c0_7 = arith.constant 0 : index
    %c0_8 = arith.constant 0 : index
    %9 = vector.load %arg5[%c0_7, %c0_8] : memref<32x128xf32, #tpu.memory_space<vmem>>, vector<32x128xf32>
    %10 = arith.addf %8, %9 : vector<32x128xf32>
    %cst_9 = arith.constant 0.000000e+00 : f32
    %11 = vector.broadcast %cst_9 : f32 to vector<32x128xf32>
    %12 = arith.maximumf %10, %11 : vector<32x128xf32>
    %c0_10 = arith.constant 0 : index
    %c0_11 = arith.constant 0 : index
    %13 = vector.load %arg6[%c0_10, %c0_11] : memref<32x128xf32, #tpu.memory_space<vmem>>, vector<32x128xf32>
    tpu.vector_store %arg6[%c0_10, %c0_11], %12 {strides = array<i32>} : memref<32x128xf32, #tpu.memory_space<vmem>>, vector<32x128xf32>,
    return
  }
  func.func @transform_0(%arg0: i32) -> (i32, i32) {
    %c0_i32 = arith.constant 0 : i32
    %c0_i32_0 = arith.constant 0 : i32
    return %arg0, %c0_i32 : i32, i32
  }
  func.func @transform_1(%arg0: i32) -> (i32, i32) {
    %c0_i32 = arith.constant 0 : i32
    %c0_i32_0 = arith.constant 0 : i32
    %c0_i32_1 = arith.constant 0 : i32
    return %c0_i32, %c0_i32_0 : i32, i32
  }
  func.func @transform_2(%arg0: i32) -> (i32, i32) {
    %c0_i32 = arith.constant 0 : i32
    %c0_i32_0 = arith.constant 0 : i32
    %c0_i32_1 = arith.constant 0 : i32
    return %c0_i32, %c0_i32_0 : i32, i32
  }
  func.func @transform_3(%arg0: i32) -> (i32, i32) {
    %c0_i32 = arith.constant 0 : i32
    %c0_i32_0 = arith.constant 0 : i32
    %c0_i32_1 = arith.constant 0 : i32
    return %c0_i32, %c0_i32_0 : i32, i32
  }
  func.func @transform_4(%arg0: i32) -> (i32, i32) {
    %c0_i32 = arith.constant 0 : i32
    %c0_i32_0 = arith.constant 0 : i32
    return %arg0, %c0_i32 : i32, i32
  }
  func.func @transform_5(%arg0: i32) -> (i32, i32) {
    %c0_i32 = arith.constant 0 : i32
    %c0_i32_0 = arith.constant 0 : i32
    return %arg0, %c0_i32 : i32, i32
  }
}

module attributes {stable_mosaic.version = 11 : i64} {
  func.func @_gemm_bn_kernel(%arg0: i32, %arg1: memref<8x128xbf16, #tpu.memory_space<vmem>>, %arg2: memref<128x128xbf16, #tpu.memory_space<vmem>>, %arg3: memref<1x128xf32, #tpu.memory_space<vmem>>, %arg4: memref<1x128xf32, #tpu.memory_space<vmem>>, %arg5: memref<8x128xf32, #tpu.memory_space<vmem>>) attributes {dimension_semantics = [#tpu.dimension_semantics<parallel>], iteration_bounds = array<i64: 1>, scalar_prefetch = 0 : i64, scratch_operands = 0 : i64, tpu.core_type = #tpu.core_type<tc>, window_params = [{transform_indices = @transform_0, window_bounds = array<i64: 8, 128>}, {pipeline_mode = #tpu.pipeline_mode<synchronous>, transform_indices = @transform_1, window_bounds = array<i64: 128, 128>}, {pipeline_mode = #tpu.pipeline_mode<synchronous>, transform_indices = @transform_2, window_bounds = array<i64: 1, 128>}, {pipeline_mode = #tpu.pipeline_mode<synchronous>, transform_indices = @transform_3, window_bounds = array<i64: 1, 128>}, {transform_indices = @transform_4, window_bounds = array<i64: 8, 128>}]} {
    %c0 = arith.constant 0 : index
    %c0_0 = arith.constant 0 : index
    %0 = vector.load %arg1[%c0, %c0_0] : memref<8x128xbf16, #tpu.memory_space<vmem>>, vector<8x128xbf16>
    %c0_1 = arith.constant 0 : index
    %c0_2 = arith.constant 0 : index
    %1 = vector.load %arg2[%c0_1, %c0_2] : memref<128x128xbf16, #tpu.memory_space<vmem>>, vector<128x128xbf16>
    %cst = arith.constant dense<0.000000e+00> : vector<8x128xf32>
    %2 = tpu.matmul %0, %1, %cst {dimension_numbers = #tpu.dot_dimension_numbers<[1], [0], [0], [1], [0, 0, 1, 1], [], []>} : vector<8x128xbf16>, vector<128x128xbf16>, vector<8x128xf32> -> vector<8x128xf32>
    %c0_3 = arith.constant 0 : index
    %c0_4 = arith.constant 0 : index
    %3 = vector.load %arg3[%c0_3, %c0_4] : memref<1x128xf32, #tpu.memory_space<vmem>>, vector<1x128xf32>
    %4 = vector.broadcast %3 : vector<1x128xf32> to vector<8x128xf32>
    %5 = arith.mulf %2, %4 : vector<8x128xf32>
    %c0_5 = arith.constant 0 : index
    %c0_6 = arith.constant 0 : index
    %6 = vector.load %arg4[%c0_5, %c0_6] : memref<1x128xf32, #tpu.memory_space<vmem>>, vector<1x128xf32>
    %7 = vector.broadcast %6 : vector<1x128xf32> to vector<8x128xf32>
    %8 = arith.addf %5, %7 : vector<8x128xf32>
    %c0_7 = arith.constant 0 : index
    %c0_8 = arith.constant 0 : index
    %9 = vector.load %arg5[%c0_7, %c0_8] : memref<8x128xf32, #tpu.memory_space<vmem>>, vector<8x128xf32>
    tpu.vector_store %arg5[%c0_7, %c0_8], %8 {strides = array<i32>} : memref<8x128xf32, #tpu.memory_space<vmem>>, vector<8x128xf32>,
    return
  }
  func.func @transform_0(%arg0: i32) -> (i32, i32) {
    %c0_i32 = arith.constant 0 : i32
    %c0_i32_0 = arith.constant 0 : i32
    return %arg0, %c0_i32 : i32, i32
  }
  func.func @transform_1(%arg0: i32) -> (i32, i32) {
    %c0_i32 = arith.constant 0 : i32
    %c0_i32_0 = arith.constant 0 : i32
    %c0_i32_1 = arith.constant 0 : i32
    return %c0_i32, %c0_i32_0 : i32, i32
  }
  func.func @transform_2(%arg0: i32) -> (i32, i32) {
    %c0_i32 = arith.constant 0 : i32
    %c0_i32_0 = arith.constant 0 : i32
    %c0_i32_1 = arith.constant 0 : i32
    return %c0_i32, %c0_i32_0 : i32, i32
  }
  func.func @transform_3(%arg0: i32) -> (i32, i32) {
    %c0_i32 = arith.constant 0 : i32
    %c0_i32_0 = arith.constant 0 : i32
    %c0_i32_1 = arith.constant 0 : i32
    return %c0_i32, %c0_i32_0 : i32, i32
  }
  func.func @transform_4(%arg0: i32) -> (i32, i32) {
    %c0_i32 = arith.constant 0 : i32
    %c0_i32_0 = arith.constant 0 : i32
    return %arg0, %c0_i32 : i32, i32
  }
}

module attributes {stable_mosaic.version = 11 : i64} {
  func.func @_gemm_bn_res_kernel(%arg0: i32, %arg1: memref<8x640xbf16, #tpu.memory_space<vmem>>, %arg2: memref<640x128xbf16, #tpu.memory_space<vmem>>, %arg3: memref<1x128xf32, #tpu.memory_space<vmem>>, %arg4: memref<1x128xf32, #tpu.memory_space<vmem>>, %arg5: memref<8x128xf32, #tpu.memory_space<vmem>>, %arg6: memref<8x128xf32, #tpu.memory_space<vmem>>) attributes {dimension_semantics = [#tpu.dimension_semantics<parallel>], iteration_bounds = array<i64: 1>, scalar_prefetch = 0 : i64, scratch_operands = 0 : i64, tpu.core_type = #tpu.core_type<tc>, window_params = [{transform_indices = @transform_0, window_bounds = array<i64: 8, 640>}, {pipeline_mode = #tpu.pipeline_mode<synchronous>, transform_indices = @transform_1, window_bounds = array<i64: 640, 128>}, {pipeline_mode = #tpu.pipeline_mode<synchronous>, transform_indices = @transform_2, window_bounds = array<i64: 1, 128>}, {pipeline_mode = #tpu.pipeline_mode<synchronous>, transform_indices = @transform_3, window_bounds = array<i64: 1, 128>}, {transform_indices = @transform_4, window_bounds = array<i64: 8, 128>}, {transform_indices = @transform_5, window_bounds = array<i64: 8, 128>}]} {
    %c0 = arith.constant 0 : index
    %c0_0 = arith.constant 0 : index
    %0 = vector.load %arg1[%c0, %c0_0] : memref<8x640xbf16, #tpu.memory_space<vmem>>, vector<8x640xbf16>
    %c0_1 = arith.constant 0 : index
    %c0_2 = arith.constant 0 : index
    %1 = vector.load %arg2[%c0_1, %c0_2] : memref<640x128xbf16, #tpu.memory_space<vmem>>, vector<640x128xbf16>
    %cst = arith.constant dense<0.000000e+00> : vector<8x128xf32>
    %2 = tpu.matmul %0, %1, %cst {dimension_numbers = #tpu.dot_dimension_numbers<[1], [0], [0], [1], [0, 0, 1, 1], [], []>} : vector<8x640xbf16>, vector<640x128xbf16>, vector<8x128xf32> -> vector<8x128xf32>
    %c0_3 = arith.constant 0 : index
    %c0_4 = arith.constant 0 : index
    %3 = vector.load %arg3[%c0_3, %c0_4] : memref<1x128xf32, #tpu.memory_space<vmem>>, vector<1x128xf32>
    %4 = vector.broadcast %3 : vector<1x128xf32> to vector<8x128xf32>
    %5 = arith.mulf %2, %4 : vector<8x128xf32>
    %c0_5 = arith.constant 0 : index
    %c0_6 = arith.constant 0 : index
    %6 = vector.load %arg4[%c0_5, %c0_6] : memref<1x128xf32, #tpu.memory_space<vmem>>, vector<1x128xf32>
    %7 = vector.broadcast %6 : vector<1x128xf32> to vector<8x128xf32>
    %8 = arith.addf %5, %7 : vector<8x128xf32>
    %c0_7 = arith.constant 0 : index
    %c0_8 = arith.constant 0 : index
    %9 = vector.load %arg5[%c0_7, %c0_8] : memref<8x128xf32, #tpu.memory_space<vmem>>, vector<8x128xf32>
    %10 = arith.addf %8, %9 : vector<8x128xf32>
    %cst_9 = arith.constant 0.000000e+00 : f32
    %11 = vector.broadcast %cst_9 : f32 to vector<8x128xf32>
    %12 = arith.maximumf %10, %11 : vector<8x128xf32>
    %c0_10 = arith.constant 0 : index
    %c0_11 = arith.constant 0 : index
    %13 = vector.load %arg6[%c0_10, %c0_11] : memref<8x128xf32, #tpu.memory_space<vmem>>, vector<8x128xf32>
    tpu.vector_store %arg6[%c0_10, %c0_11], %12 {strides = array<i32>} : memref<8x128xf32, #tpu.memory_space<vmem>>, vector<8x128xf32>,
    return
  }
  func.func @transform_0(%arg0: i32) -> (i32, i32) {
    %c0_i32 = arith.constant 0 : i32
    %c0_i32_0 = arith.constant 0 : i32
    return %arg0, %c0_i32 : i32, i32
  }
  func.func @transform_1(%arg0: i32) -> (i32, i32) {
    %c0_i32 = arith.constant 0 : i32
    %c0_i32_0 = arith.constant 0 : i32
    %c0_i32_1 = arith.constant 0 : i32
    return %c0_i32, %c0_i32_0 : i32, i32
  }
  func.func @transform_2(%arg0: i32) -> (i32, i32) {
    %c0_i32 = arith.constant 0 : i32
    %c0_i32_0 = arith.constant 0 : i32
    %c0_i32_1 = arith.constant 0 : i32
    return %c0_i32, %c0_i32_0 : i32, i32
  }
  func.func @transform_3(%arg0: i32) -> (i32, i32) {
    %c0_i32 = arith.constant 0 : i32
    %c0_i32_0 = arith.constant 0 : i32
    %c0_i32_1 = arith.constant 0 : i32
    return %c0_i32, %c0_i32_0 : i32, i32
  }
  func.func @transform_4(%arg0: i32) -> (i32, i32) {
    %c0_i32 = arith.constant 0 : i32
    %c0_i32_0 = arith.constant 0 : i32
    return %arg0, %c0_i32 : i32, i32
  }
  func.func @transform_5(%arg0: i32) -> (i32, i32) {
    %c0_i32 = arith.constant 0 : i32
    %c0_i32_0 = arith.constant 0 : i32
    return %arg0, %c0_i32 : i32, i32
  }
}

module attributes {stable_mosaic.version = 11 : i64} {
  func.func @_gemm_bn_kernel(%arg0: i32, %arg1: memref<8x384xbf16, #tpu.memory_space<vmem>>, %arg2: memref<384x128xbf16, #tpu.memory_space<vmem>>, %arg3: memref<1x128xf32, #tpu.memory_space<vmem>>, %arg4: memref<1x128xf32, #tpu.memory_space<vmem>>, %arg5: memref<8x128xf32, #tpu.memory_space<vmem>>) attributes {dimension_semantics = [#tpu.dimension_semantics<parallel>], iteration_bounds = array<i64: 1>, scalar_prefetch = 0 : i64, scratch_operands = 0 : i64, tpu.core_type = #tpu.core_type<tc>, window_params = [{transform_indices = @transform_0, window_bounds = array<i64: 8, 384>}, {pipeline_mode = #tpu.pipeline_mode<synchronous>, transform_indices = @transform_1, window_bounds = array<i64: 384, 128>}, {pipeline_mode = #tpu.pipeline_mode<synchronous>, transform_indices = @transform_2, window_bounds = array<i64: 1, 128>}, {pipeline_mode = #tpu.pipeline_mode<synchronous>, transform_indices = @transform_3, window_bounds = array<i64: 1, 128>}, {transform_indices = @transform_4, window_bounds = array<i64: 8, 128>}]} {
    %c0 = arith.constant 0 : index
    %c0_0 = arith.constant 0 : index
    %0 = vector.load %arg1[%c0, %c0_0] : memref<8x384xbf16, #tpu.memory_space<vmem>>, vector<8x384xbf16>
    %c0_1 = arith.constant 0 : index
    %c0_2 = arith.constant 0 : index
    %1 = vector.load %arg2[%c0_1, %c0_2] : memref<384x128xbf16, #tpu.memory_space<vmem>>, vector<384x128xbf16>
    %cst = arith.constant dense<0.000000e+00> : vector<8x128xf32>
    %2 = tpu.matmul %0, %1, %cst {dimension_numbers = #tpu.dot_dimension_numbers<[1], [0], [0], [1], [0, 0, 1, 1], [], []>} : vector<8x384xbf16>, vector<384x128xbf16>, vector<8x128xf32> -> vector<8x128xf32>
    %c0_3 = arith.constant 0 : index
    %c0_4 = arith.constant 0 : index
    %3 = vector.load %arg3[%c0_3, %c0_4] : memref<1x128xf32, #tpu.memory_space<vmem>>, vector<1x128xf32>
    %4 = vector.broadcast %3 : vector<1x128xf32> to vector<8x128xf32>
    %5 = arith.mulf %2, %4 : vector<8x128xf32>
    %c0_5 = arith.constant 0 : index
    %c0_6 = arith.constant 0 : index
    %6 = vector.load %arg4[%c0_5, %c0_6] : memref<1x128xf32, #tpu.memory_space<vmem>>, vector<1x128xf32>
    %7 = vector.broadcast %6 : vector<1x128xf32> to vector<8x128xf32>
    %8 = arith.addf %5, %7 : vector<8x128xf32>
    %cst_7 = arith.constant 0.000000e+00 : f32
    %9 = vector.broadcast %cst_7 : f32 to vector<8x128xf32>
    %10 = arith.maximumf %8, %9 : vector<8x128xf32>
    %c0_8 = arith.constant 0 : index
    %c0_9 = arith.constant 0 : index
    %11 = vector.load %arg5[%c0_8, %c0_9] : memref<8x128xf32, #tpu.memory_space<vmem>>, vector<8x128xf32>
    tpu.vector_store %arg5[%c0_8, %c0_9], %10 {strides = array<i32>} : memref<8x128xf32, #tpu.memory_space<vmem>>, vector<8x128xf32>,
    return
  }
  func.func @transform_0(%arg0: i32) -> (i32, i32) {
    %c0_i32 = arith.constant 0 : i32
    %c0_i32_0 = arith.constant 0 : i32
    return %arg0, %c0_i32 : i32, i32
  }
  func.func @transform_1(%arg0: i32) -> (i32, i32) {
    %c0_i32 = arith.constant 0 : i32
    %c0_i32_0 = arith.constant 0 : i32
    %c0_i32_1 = arith.constant 0 : i32
    return %c0_i32, %c0_i32_0 : i32, i32
  }
  func.func @transform_2(%arg0: i32) -> (i32, i32) {
    %c0_i32 = arith.constant 0 : i32
    %c0_i32_0 = arith.constant 0 : i32
    %c0_i32_1 = arith.constant 0 : i32
    return %c0_i32, %c0_i32_0 : i32, i32
  }
  func.func @transform_3(%arg0: i32) -> (i32, i32) {
    %c0_i32 = arith.constant 0 : i32
    %c0_i32_0 = arith.constant 0 : i32
    %c0_i32_1 = arith.constant 0 : i32
    return %c0_i32, %c0_i32_0 : i32, i32
  }
  func.func @transform_4(%arg0: i32) -> (i32, i32) {
    %c0_i32 = arith.constant 0 : i32
    %c0_i32_0 = arith.constant 0 : i32
    return %arg0, %c0_i32 : i32, i32
  }
}

module attributes {stable_mosaic.version = 11 : i64} {
  func.func @_gemm_bn_kernel(%arg0: i32, %arg1: memref<8x640xbf16, #tpu.memory_space<vmem>>, %arg2: memref<640x128xbf16, #tpu.memory_space<vmem>>, %arg3: memref<1x128xf32, #tpu.memory_space<vmem>>, %arg4: memref<1x128xf32, #tpu.memory_space<vmem>>, %arg5: memref<8x128xf32, #tpu.memory_space<vmem>>) attributes {dimension_semantics = [#tpu.dimension_semantics<parallel>], iteration_bounds = array<i64: 1>, scalar_prefetch = 0 : i64, scratch_operands = 0 : i64, tpu.core_type = #tpu.core_type<tc>, window_params = [{transform_indices = @transform_0, window_bounds = array<i64: 8, 640>}, {pipeline_mode = #tpu.pipeline_mode<synchronous>, transform_indices = @transform_1, window_bounds = array<i64: 640, 128>}, {pipeline_mode = #tpu.pipeline_mode<synchronous>, transform_indices = @transform_2, window_bounds = array<i64: 1, 128>}, {pipeline_mode = #tpu.pipeline_mode<synchronous>, transform_indices = @transform_3, window_bounds = array<i64: 1, 128>}, {transform_indices = @transform_4, window_bounds = array<i64: 8, 128>}]} {
    %c0 = arith.constant 0 : index
    %c0_0 = arith.constant 0 : index
    %0 = vector.load %arg1[%c0, %c0_0] : memref<8x640xbf16, #tpu.memory_space<vmem>>, vector<8x640xbf16>
    %c0_1 = arith.constant 0 : index
    %c0_2 = arith.constant 0 : index
    %1 = vector.load %arg2[%c0_1, %c0_2] : memref<640x128xbf16, #tpu.memory_space<vmem>>, vector<640x128xbf16>
    %cst = arith.constant dense<0.000000e+00> : vector<8x128xf32>
    %2 = tpu.matmul %0, %1, %cst {dimension_numbers = #tpu.dot_dimension_numbers<[1], [0], [0], [1], [0, 0, 1, 1], [], []>} : vector<8x640xbf16>, vector<640x128xbf16>, vector<8x128xf32> -> vector<8x128xf32>
    %c0_3 = arith.constant 0 : index
    %c0_4 = arith.constant 0 : index
    %3 = vector.load %arg3[%c0_3, %c0_4] : memref<1x128xf32, #tpu.memory_space<vmem>>, vector<1x128xf32>
    %4 = vector.broadcast %3 : vector<1x128xf32> to vector<8x128xf32>
    %5 = arith.mulf %2, %4 : vector<8x128xf32>
    %c0_5 = arith.constant 0 : index
    %c0_6 = arith.constant 0 : index
    %6 = vector.load %arg4[%c0_5, %c0_6] : memref<1x128xf32, #tpu.memory_space<vmem>>, vector<1x128xf32>
    %7 = vector.broadcast %6 : vector<1x128xf32> to vector<8x128xf32>
    %8 = arith.addf %5, %7 : vector<8x128xf32>
    %cst_7 = arith.constant 0.000000e+00 : f32
    %9 = vector.broadcast %cst_7 : f32 to vector<8x128xf32>
    %10 = arith.maximumf %8, %9 : vector<8x128xf32>
    %c0_8 = arith.constant 0 : index
    %c0_9 = arith.constant 0 : index
    %11 = vector.load %arg5[%c0_8, %c0_9] : memref<8x128xf32, #tpu.memory_space<vmem>>, vector<8x128xf32>
    tpu.vector_store %arg5[%c0_8, %c0_9], %10 {strides = array<i32>} : memref<8x128xf32, #tpu.memory_space<vmem>>, vector<8x128xf32>,
    return
  }
  func.func @transform_0(%arg0: i32) -> (i32, i32) {
    %c0_i32 = arith.constant 0 : i32
    %c0_i32_0 = arith.constant 0 : i32
    return %arg0, %c0_i32 : i32, i32
  }
  func.func @transform_1(%arg0: i32) -> (i32, i32) {
    %c0_i32 = arith.constant 0 : i32
    %c0_i32_0 = arith.constant 0 : i32
    %c0_i32_1 = arith.constant 0 : i32
    return %c0_i32, %c0_i32_0 : i32, i32
  }
  func.func @transform_2(%arg0: i32) -> (i32, i32) {
    %c0_i32 = arith.constant 0 : i32
    %c0_i32_0 = arith.constant 0 : i32
    %c0_i32_1 = arith.constant 0 : i32
    return %c0_i32, %c0_i32_0 : i32, i32
  }
  func.func @transform_3(%arg0: i32) -> (i32, i32) {
    %c0_i32 = arith.constant 0 : i32
    %c0_i32_0 = arith.constant 0 : i32
    %c0_i32_1 = arith.constant 0 : i32
    return %c0_i32, %c0_i32_0 : i32, i32
  }
  func.func @transform_4(%arg0: i32) -> (i32, i32) {
    %c0_i32 = arith.constant 0 : i32
    %c0_i32_0 = arith.constant 0 : i32
    return %arg0, %c0_i32 : i32, i32
  }
}

module attributes {stable_mosaic.version = 11 : i64} {
  func.func @_gemm_bn_res_kernel(%arg0: i32, %arg1: memref<8x640xbf16, #tpu.memory_space<vmem>>, %arg2: memref<640x128xbf16, #tpu.memory_space<vmem>>, %arg3: memref<1x128xf32, #tpu.memory_space<vmem>>, %arg4: memref<1x128xf32, #tpu.memory_space<vmem>>, %arg5: memref<8x128xf32, #tpu.memory_space<vmem>>, %arg6: memref<8x128xf32, #tpu.memory_space<vmem>>) attributes {dimension_semantics = [#tpu.dimension_semantics<parallel>], iteration_bounds = array<i64: 1>, scalar_prefetch = 0 : i64, scratch_operands = 0 : i64, tpu.core_type = #tpu.core_type<tc>, window_params = [{transform_indices = @transform_0, window_bounds = array<i64: 8, 640>}, {pipeline_mode = #tpu.pipeline_mode<synchronous>, transform_indices = @transform_1, window_bounds = array<i64: 640, 128>}, {pipeline_mode = #tpu.pipeline_mode<synchronous>, transform_indices = @transform_2, window_bounds = array<i64: 1, 128>}, {pipeline_mode = #tpu.pipeline_mode<synchronous>, transform_indices = @transform_3, window_bounds = array<i64: 1, 128>}, {transform_indices = @transform_4, window_bounds = array<i64: 8, 128>}, {transform_indices = @transform_5, window_bounds = array<i64: 8, 128>}]} {
    %c0 = arith.constant 0 : index
    %c0_0 = arith.constant 0 : index
    %0 = vector.load %arg1[%c0, %c0_0] : memref<8x640xbf16, #tpu.memory_space<vmem>>, vector<8x640xbf16>
    %c0_1 = arith.constant 0 : index
    %c0_2 = arith.constant 0 : index
    %1 = vector.load %arg2[%c0_1, %c0_2] : memref<640x128xbf16, #tpu.memory_space<vmem>>, vector<640x128xbf16>
    %cst = arith.constant dense<0.000000e+00> : vector<8x128xf32>
    %2 = tpu.matmul %0, %1, %cst {dimension_numbers = #tpu.dot_dimension_numbers<[1], [0], [0], [1], [0, 0, 1, 1], [], []>} : vector<8x640xbf16>, vector<640x128xbf16>, vector<8x128xf32> -> vector<8x128xf32>
    %c0_3 = arith.constant 0 : index
    %c0_4 = arith.constant 0 : index
    %3 = vector.load %arg3[%c0_3, %c0_4] : memref<1x128xf32, #tpu.memory_space<vmem>>, vector<1x128xf32>
    %4 = vector.broadcast %3 : vector<1x128xf32> to vector<8x128xf32>
    %5 = arith.mulf %2, %4 : vector<8x128xf32>
    %c0_5 = arith.constant 0 : index
    %c0_6 = arith.constant 0 : index
    %6 = vector.load %arg4[%c0_5, %c0_6] : memref<1x128xf32, #tpu.memory_space<vmem>>, vector<1x128xf32>
    %7 = vector.broadcast %6 : vector<1x128xf32> to vector<8x128xf32>
    %8 = arith.addf %5, %7 : vector<8x128xf32>
    %c0_7 = arith.constant 0 : index
    %c0_8 = arith.constant 0 : index
    %9 = vector.load %arg5[%c0_7, %c0_8] : memref<8x128xf32, #tpu.memory_space<vmem>>, vector<8x128xf32>
    %10 = arith.addf %8, %9 : vector<8x128xf32>
    %cst_9 = arith.constant 0.000000e+00 : f32
    %11 = vector.broadcast %cst_9 : f32 to vector<8x128xf32>
    %12 = arith.maximumf %10, %11 : vector<8x128xf32>
    %c0_10 = arith.constant 0 : index
    %c0_11 = arith.constant 0 : index
    %13 = vector.load %arg6[%c0_10, %c0_11] : memref<8x128xf32, #tpu.memory_space<vmem>>, vector<8x128xf32>
    tpu.vector_store %arg6[%c0_10, %c0_11], %12 {strides = array<i32>} : memref<8x128xf32, #tpu.memory_space<vmem>>, vector<8x128xf32>,
    return
  }
  func.func @transform_0(%arg0: i32) -> (i32, i32) {
    %c0_i32 = arith.constant 0 : i32
    %c0_i32_0 = arith.constant 0 : i32
    return %arg0, %c0_i32 : i32, i32
  }
  func.func @transform_1(%arg0: i32) -> (i32, i32) {
    %c0_i32 = arith.constant 0 : i32
    %c0_i32_0 = arith.constant 0 : i32
    %c0_i32_1 = arith.constant 0 : i32
    return %c0_i32, %c0_i32_0 : i32, i32
  }
  func.func @transform_2(%arg0: i32) -> (i32, i32) {
    %c0_i32 = arith.constant 0 : i32
    %c0_i32_0 = arith.constant 0 : i32
    %c0_i32_1 = arith.constant 0 : i32
    return %c0_i32, %c0_i32_0 : i32, i32
  }
  func.func @transform_3(%arg0: i32) -> (i32, i32) {
    %c0_i32 = arith.constant 0 : i32
    %c0_i32_0 = arith.constant 0 : i32
    %c0_i32_1 = arith.constant 0 : i32
    return %c0_i32, %c0_i32_0 : i32, i32
  }
  func.func @transform_4(%arg0: i32) -> (i32, i32) {
    %c0_i32 = arith.constant 0 : i32
    %c0_i32_0 = arith.constant 0 : i32
    return %arg0, %c0_i32 : i32, i32
  }
  func.func @transform_5(%arg0: i32) -> (i32, i32) {
    %c0_i32 = arith.constant 0 : i32
    %c0_i32_0 = arith.constant 0 : i32
    return %arg0, %c0_i32 : i32, i32
  }
}

</mosaic_0001>

<llo_original>
// kernel: cam_forward.20
$region0: #{cam_forward.20}
  #allocation0 [shape = 'u32[]', space=smem, size = 0x4, offset = 0x4, fixed_abs, tag = 'smem constant byte address 0x4 - core index']
  #allocation1 [shape = 'u32[144,128]{1,0:T(1,128)}', space=vmem, size = 0x12000, scoped, tag = 'internal scratch']
  %s0 = inlined_call_operand.vmem [shape: bf16[2048,256], index: 0, kind: input, shape index: {}]
  %s1 = inlined_call_operand.vmem [shape: bf16[256,128], index: 1, kind: input, shape index: {}]
  %s2 = inlined_call_operand.vmem [shape: f32[1,128], index: 2, kind: input, shape index: {}]
  %s3 = inlined_call_operand.vmem [shape: f32[1,128], index: 3, kind: input, shape index: {}]
  %s4 = inlined_call_operand.vmem [shape: f32[2048,128], index: 4, kind: output, shape index: {}]
  %s5 = sld [smem:[#allocation0]]
  $region49: #{cam_forward.20} parent=0
    _
  %s7 = ssub.s32 1, %s5
  %s8 = scalar_select 0, %s7, %s5
  loop: start=0, step=1, limit=6
  $region2: #{cam_forward.20} parent=0 // loop_pre_header
    _
  $region3: #{cam_forward.20} parent=0 // loop_header
    %s10 = sphi 0, %s14
    %p11 = scmp.ge.s32.totalorder %s10, 6
    %s20 = sphi 0, %s22
    %s23 = sphi 0, %s20
    %s24 = sphi 0, %s23
    %s40 = sphi 0, %s24
    %s44 = sphi 0, %s44
    %s46 = sphi 0, %s44
    %s47 = sphi 0, %s46
    %s61 = sphi 0, %s47
    %s65 = sphi 0, %s65
    %s67 = sphi 0, %s65
    %s68 = sphi 0, %s67
    %s82 = sphi 0, %s68
    %s86 = sphi 0, %s86
    %s88 = sphi 0, %s86
    %s89 = sphi 0, %s88
    %s103 = sphi 0, %s89
    %s109 = sphi 0, %s111
    %s112 = sphi 0, %s109
    %s113 = sphi 0, %s112
    %s129 = sphi 0, %s113
  $region4: #{cam_forward.20} parent=0 // loop_header_branch
    %13 = sbr.rel (%p11) target = $region8
  $region5: #{cam_forward.20} parent=0 // loop_body
    %s15 = ssub.s32 %s10, 1
    %s16 = ssub.s32 %s10, 2
    %s17 = sadd.s32 %s10, 1
    %s18 = ssub.s32 %s10, %s17
    %p19 = scmp.eq.s32.totalorder %s18, 0
    %s21 = sadd.s32 %s20, 1
    %s22 = scalar_select %p19, %s20, %s21
    %p25 = pneg %p19
    %p26 = scmp.eq.s32.totalorder %s10, 3
    %p27 = por %p25, %p26
    %p28 = scmp.ne.s32.totalorder %s20, %s23
    %p29 = scmp.eq.s32.totalorder %s10, 0
    %p30 = por %p28, %p29
    %p31 = scmp.ne.s32.totalorder %s20, %s23
    %p32 = scmp.eq.s32.totalorder %s15, 3
    %p33 = por %p31, %p32
    %p34 = scmp.ne.s32.totalorder %s23, %s24
    %p35 = scmp.eq.s32.totalorder %s15, 0
    %p36 = por %p34, %p35
    %p37 = scmp.ne.s32.totalorder %s23, %s24
    %p38 = scmp.eq.s32.totalorder %s16, 3
    %p39 = por %p37, %p38
    %p41 = scmp.ne.s32.totalorder %s24, %s40
    %p42 = scmp.eq.s32.totalorder %s16, 0
    %p43 = por %p41, %p42
    %s45 = sadd.s32 %s44, 1
    %p48 = scmp.eq.s32.totalorder %s10, 3
    %p49 = scmp.ne.s32.totalorder %s44, %s46
    %p50 = scmp.eq.s32.totalorder %s10, 0
    %p51 = por %p49, %p50
    %p52 = scmp.ne.s32.totalorder %s44, %s46
    %p53 = scmp.eq.s32.totalorder %s15, 3
    %p54 = por %p52, %p53
    %p55 = scmp.ne.s32.totalorder %s46, %s47
    %p56 = scmp.eq.s32.totalorder %s15, 0
    %p57 = por %p55, %p56
    %p58 = scmp.ne.s32.totalorder %s46, %s47
    %p59 = scmp.eq.s32.totalorder %s16, 3
    %p60 = por %p58, %p59
    %p62 = scmp.ne.s32.totalorder %s47, %s61
    %p63 = scmp.eq.s32.totalorder %s16, 0
    %p64 = por %p62, %p63
    %s66 = sadd.s32 %s65, 1
    %p69 = scmp.eq.s32.totalorder %s10, 3
    %p70 = scmp.ne.s32.totalorder %s65, %s67
    %p71 = scmp.eq.s32.totalorder %s10, 0
    %p72 = por %p70, %p71
    %p73 = scmp.ne.s32.totalorder %s65, %s67
    %p74 = scmp.eq.s32.totalorder %s15, 3
    %p75 = por %p73, %p74
    %p76 = scmp.ne.s32.totalorder %s67, %s68
    %p77 = scmp.eq.s32.totalorder %s15, 0
    %p78 = por %p76, %p77
    %p79 = scmp.ne.s32.totalorder %s67, %s68
    %p80 = scmp.eq.s32.totalorder %s16, 3
    %p81 = por %p79, %p80
    %p83 = scmp.ne.s32.totalorder %s68, %s82
    %p84 = scmp.eq.s32.totalorder %s16, 0
    %p85 = por %p83, %p84
    %s87 = sadd.s32 %s86, 1
    %p90 = scmp.eq.s32.totalorder %s10, 3
    %p91 = scmp.ne.s32.totalorder %s86, %s88
    %p92 = scmp.eq.s32.totalorder %s10, 0
    %p93 = por %p91, %p92
    %p94 = scmp.ne.s32.totalorder %s86, %s88
    %p95 = scmp.eq.s32.totalorder %s15, 3
    %p96 = por %p94, %p95
    %p97 = scmp.ne.s32.totalorder %s88, %s89
    %p98 = scmp.eq.s32.totalorder %s15, 0
    %p99 = por %p97, %p98
    %p100 = scmp.ne.s32.totalorder %s88, %s89
    %p101 = scmp.eq.s32.totalorder %s16, 3
    %p102 = por %p100, %p101
    %p104 = scmp.ne.s32.totalorder %s89, %s103
    %p105 = scmp.eq.s32.totalorder %s16, 0
    %p106 = por %p104, %p105
    %s107 = ssub.s32 %s10, %s17
    %p108 = scmp.eq.s32.totalorder %s107, 0
    %s110 = sadd.s32 %s109, 1
    %s111 = scalar_select %p108, %s109, %s110
    %p114 = pneg %p108
    %p115 = scmp.eq.s32.totalorder %s10, 3
    %p116 = por %p114, %p115
    %p117 = scmp.ne.s32.totalorder %s109, %s112
    %p118 = scmp.eq.s32.totalorder %s10, 0
    %p119 = por %p117, %p118
    %p120 = scmp.ne.s32.totalorder %s109, %s112
    %p121 = scmp.eq.s32.totalorder %s15, 3
    %p122 = por %p120, %p121
    %p123 = scmp.ne.s32.totalorder %s112, %s113
    %p124 = scmp.eq.s32.totalorder %s15, 0
    %p125 = por %p123, %p124
    %p126 = scmp.ne.s32.totalorder %s112, %s113
    %p127 = scmp.eq.s32.totalorder %s16, 3
    %p128 = por %p126, %p127
    %p130 = scmp.ne.s32.totalorder %s113, %s129
    %p131 = scmp.eq.s32.totalorder %s16, 0
    %p132 = por %p130, %p131
    %p133 = scmp.le.s32.totalorder 1, %s10
    %p134 = scmp.lt.s32.totalorder %s10, 5
    %p135 = pnand %p133, %p134
    %p136 = pneg %p135
    // Predicated region
    $region9: #{cam_forward.20} parent=5 // pred_check
      _
    $region10: #{cam_forward.20} parent=5 // pred_check_branch
      %138 = sbr.rel (%p135) target = $region12
    $region11: #{cam_forward.20} parent=5 // pred_region
      %s139 = ssub.s32 %s10, 1
      // Predicated region
      $region13: #{cam_forward.20} parent=11 // pred_check
        %p140 = pneg %p57
      $region14: #{cam_forward.20} parent=11 // pred_check_branch
        %142 = sbr.rel (%p140) target = $region16
      $region15: #{cam_forward.20} parent=11 // pred_region
        _
      $region16: #{cam_forward.20} parent=11 // pred_fallthru
        _
      // Predicated region
      $region17: #{cam_forward.20} parent=11 // pred_check
        %p143 = pneg %p78
      $region18: #{cam_forward.20} parent=11 // pred_check_branch
        %145 = sbr.rel (%p143) target = $region20
      $region19: #{cam_forward.20} parent=11 // pred_region
        _
      $region20: #{cam_forward.20} parent=11 // pred_fallthru
        _
      // Predicated region
      $region21: #{cam_forward.20} parent=11 // pred_check
        %p146 = pneg %p99
      $region22: #{cam_forward.20} parent=11 // pred_check_branch
        %148 = sbr.rel (%p146) target = $region24
      $region23: #{cam_forward.20} parent=11 // pred_region
        _
      $region24: #{cam_forward.20} parent=11 // pred_fallthru
        _
    $region12: #{cam_forward.20} parent=5 // pred_fallthru
      _
    %p149 = scmp.lt.s32.totalorder %s10, 4
    // Predicated region
    $region25: #{cam_forward.20} parent=5 // pred_check
      %p150 = pneg %p149
    $region26: #{cam_forward.20} parent=5 // pred_check_branch
      %152 = sbr.rel (%p150) target = $region28
    $region27: #{cam_forward.20} parent=5 // pred_region
      // Predicated region
      $region29: #{cam_forward.20} parent=27 // pred_check
        %p153 = pneg %p30
      $region30: #{cam_forward.20} parent=27 // pred_check_branch
        %155 = sbr.rel (%p153) target = $region32
      $region31: #{cam_forward.20} parent=27 // pred_region
        %s156 = smul.u32 64, %s10
        %p157 = scmp.lt.s32.totalorder %s156, 255
        %s158 = scalar_select %p157, %s156, 255
        %s159 = smul.addr %s158, 2
        %s160 = smul.addr %s159, 4
        %s161 = scalar_lea.vmem %s0, %s160
        %s162 = smul.u32 64, %s10
      $region32: #{cam_forward.20} parent=27 // pred_fallthru
        _
    $region28: #{cam_forward.20} parent=5 // pred_fallthru
      _
    %p163 = scmp.le.s32.totalorder 1, %s10
    %p164 = scmp.lt.s32.totalorder %s10, 5
    %p165 = pnand %p163, %p164
    %p166 = pneg %p165
    // Predicated region
    $region33: #{cam_forward.20} parent=5 // pred_check
      _
    $region34: #{cam_forward.20} parent=5 // pred_check_branch
      %168 = sbr.rel (%p165) target = $region36
    $region35: #{cam_forward.20} parent=5 // pred_region
      %s169 = ssub.s32 %s10, 1
      %s170 = smul.u32 64, %s15
      %p171 = scmp.lt.s32.totalorder %s170, 255
      %s172 = scalar_select %p171, %s170, 255
      %s173 = smul.addr %s172, 2
      %s174 = smul.addr %s173, 4
      %s175 = scalar_lea.vmem %s0, %s174
      %p176 = pneg %p36
      %p177 = pneg %p33
      %p178 = pneg %p57
      %p179 = pneg %p54
      %p180 = pneg %p78
      %p181 = pneg %p75
      %p182 = pneg %p99
      %p183 = pneg %p96
      %p184 = pneg %p125
      %p185 = pneg %p122
      %s186 = smul.u32 64, %s15
      %p187 = scmp.lt.s32.totalorder %s186, 255
      %s188 = scalar_select %p187, %s186, 255
      %s189 = smul.addr %s188, 8
      %s190 = scalar_lea.vmem %s4, %s189
      %s191 = smul.u32 64, %s15
      %p192 = scmp.lt.s32.totalorder %s191, 255
      %s193 = scalar_select %p192, %s191, 255
      %s194 = smul.addr %s193, 2
      %s195 = smul.addr %s194, 4
      %s196 = scalar_lea.vmem %s0, %s195
      %s197 = smul.u32 64, %s15
      %s198 = smul.u32 64, %s15
      %p199 = scmp.lt.s32.totalorder %s198, 255
      %s200 = scalar_select %p199, %s198, 255
      %s201 = smul.addr %s200, 8
      %s202 = scalar_lea.vmem %s4, %s201
      %s203 = smul.u32 64, %s15
      %v205 = vld [vmem:[%s196] sm:$0xff]
      %v206 = vld [vmem:[%s196 + $0x8] sm:$0xff]
      %v207 = vld [vmem:[%s196 + $0x10] sm:$0xff]
      %v208 = vld [vmem:[%s196 + $0x18] sm:$0xff]
      %v209 = vld [vmem:[%s196 + $0x20] sm:$0xff]
      %v210 = vld [vmem:[%s196 + $0x28] sm:$0xff]
      %v211 = vld [vmem:[%s196 + $0x30] sm:$0xff]
      %v212 = vld [vmem:[%s196 + $0x38] sm:$0xff]
      %v213 = vld [vmem:[%s196 + $0x40] sm:$0xff]
      %v214 = vld [vmem:[%s196 + $0x48] sm:$0xff]
      %v215 = vld [vmem:[%s196 + $0x50] sm:$0xff]
      %v216 = vld [vmem:[%s196 + $0x58] sm:$0xff]
      %v217 = vld [vmem:[%s196 + $0x60] sm:$0xff]
      %v218 = vld [vmem:[%s196 + $0x68] sm:$0xff]
      %v219 = vld [vmem:[%s196 + $0x70] sm:$0xff]
      %v220 = vld [vmem:[%s196 + $0x78] sm:$0xff]
      %v221 = vld [vmem:[%s196 + $0x80] sm:$0xff]
      %v222 = vld [vmem:[%s196 + $0x88] sm:$0xff]
      %v223 = vld [vmem:[%s196 + $0x90] sm:$0xff]
      %v224 = vld [vmem:[%s196 + $0x98] sm:$0xff]
      %v225 = vld [vmem:[%s196 + $0xa0] sm:$0xff]
      %v226 = vld [vmem:[%s196 + $0xa8] sm:$0xff]
      %v227 = vld [vmem:[%s196 + $0xb0] sm:$0xff]
      %v228 = vld [vmem:[%s196 + $0xb8] sm:$0xff]
      %v229 = vld [vmem:[%s196 + $0xc0] sm:$0xff]
      %v230 = vld [vmem:[%s196 + $0xc8] sm:$0xff]
      %v231 = vld [vmem:[%s196 + $0xd0] sm:$0xff]
      %v232 = vld [vmem:[%s196 + $0xd8] sm:$0xff]
      %v233 = vld [vmem:[%s196 + $0xe0] sm:$0xff]
      %v234 = vld [vmem:[%s196 + $0xe8] sm:$0xff]
      %v235 = vld [vmem:[%s196 + $0xf0] sm:$0xff]
      %v236 = vld [vmem:[%s196 + $0xf8] sm:$0xff]
      %v237 = vld [vmem:[%s196 + $0x100] sm:$0xff]
      %v238 = vld [vmem:[%s196 + $0x108] sm:$0xff]
      %v239 = vld [vmem:[%s196 + $0x110] sm:$0xff]
      %v240 = vld [vmem:[%s196 + $0x118] sm:$0xff]
      %v241 = vld [vmem:[%s196 + $0x120] sm:$0xff]
      %v242 = vld [vmem:[%s196 + $0x128] sm:$0xff]
      %v243 = vld [vmem:[%s196 + $0x130] sm:$0xff]
      %v244 = vld [vmem:[%s196 + $0x138] sm:$0xff]
      %v245 = vld [vmem:[%s196 + $0x140] sm:$0xff]
      %v246 = vld [vmem:[%s196 + $0x148] sm:$0xff]
      %v247 = vld [vmem:[%s196 + $0x150] sm:$0xff]
      %v248 = vld [vmem:[%s196 + $0x158] sm:$0xff]
      %v249 = vld [vmem:[%s196 + $0x160] sm:$0xff]
      %v250 = vld [vmem:[%s196 + $0x168] sm:$0xff]
      %v251 = vld [vmem:[%s196 + $0x170] sm:$0xff]
      %v252 = vld [vmem:[%s196 + $0x178] sm:$0xff]
      %v253 = vld [vmem:[%s196 + $0x180] sm:$0xff]
      %v254 = vld [vmem:[%s196 + $0x188] sm:$0xff]
      %v255 = vld [vmem:[%s196 + $0x190] sm:$0xff]
      %v256 = vld [vmem:[%s196 + $0x198] sm:$0xff]
      %v257 = vld [vmem:[%s196 + $0x1a0] sm:$0xff]
      %v258 = vld [vmem:[%s196 + $0x1a8] sm:$0xff]
      %v259 = vld [vmem:[%s196 + $0x1b0] sm:$0xff]
      %v260 = vld [vmem:[%s196 + $0x1b8] sm:$0xff]
      %v261 = vld [vmem:[%s196 + $0x1c0] sm:$0xff]
      %v262 = vld [vmem:[%s196 + $0x1c8] sm:$0xff]
      %v263 = vld [vmem:[%s196 + $0x1d0] sm:$0xff]
      %v264 = vld [vmem:[%s196 + $0x1d8] sm:$0xff]
      %v265 = vld [vmem:[%s196 + $0x1e0] sm:$0xff]
      %v266 = vld [vmem:[%s196 + $0x1e8] sm:$0xff]
      %v267 = vld [vmem:[%s196 + $0x1f0] sm:$0xff]
      %v268 = vld [vmem:[%s196 + $0x1f8] sm:$0xff]
      %v269 = vld [vmem:[%s1] sm:$0xf]
      %v270 = vld [vmem:[%s1 + $0x4] sm:$0xf]
      %v271 = vld [vmem:[%s1 + $0x8] sm:$0xf]
      %v272 = vld [vmem:[%s1 + $0xc] sm:$0xf]
      %v273 = vld [vmem:[%s1 + $0x10] sm:$0xf]
      %v274 = vld [vmem:[%s1 + $0x14] sm:$0xf]
      %v275 = vld [vmem:[%s1 + $0x18] sm:$0xf]
      %v276 = vld [vmem:[%s1 + $0x1c] sm:$0xf]
      %v277 = vld [vmem:[%s1 + $0x20] sm:$0xf]
      %v278 = vld [vmem:[%s1 + $0x24] sm:$0xf]
      %v279 = vld [vmem:[%s1 + $0x28] sm:$0xf]
      %v280 = vld [vmem:[%s1 + $0x2c] sm:$0xf]
      %v281 = vld [vmem:[%s1 + $0x30] sm:$0xf]
      %v282 = vld [vmem:[%s1 + $0x34] sm:$0xf]
      %v283 = vld [vmem:[%s1 + $0x38] sm:$0xf]
      %v284 = vld [vmem:[%s1 + $0x3c] sm:$0xf]
      %v285 = vld [vmem:[%s1 + $0x40] sm:$0xf]
      %v286 = vld [vmem:[%s1 + $0x44] sm:$0xf]
      %v287 = vld [vmem:[%s1 + $0x48] sm:$0xf]
      %v288 = vld [vmem:[%s1 + $0x4c] sm:$0xf]
      %v289 = vld [vmem:[%s1 + $0x50] sm:$0xf]
      %v290 = vld [vmem:[%s1 + $0x54] sm:$0xf]
      %v291 = vld [vmem:[%s1 + $0x58] sm:$0xf]
      %v292 = vld [vmem:[%s1 + $0x5c] sm:$0xf]
      %v293 = vld [vmem:[%s1 + $0x60] sm:$0xf]
      %v294 = vld [vmem:[%s1 + $0x64] sm:$0xf]
      %v295 = vld [vmem:[%s1 + $0x68] sm:$0xf]
      %v296 = vld [vmem:[%s1 + $0x6c] sm:$0xf]
      %v297 = vld [vmem:[%s1 + $0x70] sm:$0xf]
      %v298 = vld [vmem:[%s1 + $0x74] sm:$0xf]
      %v299 = vld [vmem:[%s1 + $0x78] sm:$0xf]
      %v300 = vld [vmem:[%s1 + $0x7c] sm:$0xf]
      %v365 = vunpack.c.l.b16 %v205
      %v366 = vunpack.c.h.b16 %v205
      %v367 = vunpack.c.l.b16 %v206
      %v368 = vunpack.c.h.b16 %v206
      %v369 = vunpack.c.l.b16 %v207
      %v370 = vunpack.c.h.b16 %v207
      %v371 = vunpack.c.l.b16 %v208
      %v372 = vunpack.c.h.b16 %v208
      %v373 = vunpack.c.l.b16 %v209
      %v374 = vunpack.c.h.b16 %v209
      %v375 = vunpack.c.l.b16 %v210
      %v376 = vunpack.c.h.b16 %v210
      %v377 = vunpack.c.l.b16 %v211
      %v378 = vunpack.c.h.b16 %v211
      %v379 = vunpack.c.l.b16 %v212
      %v380 = vunpack.c.h.b16 %v212
      %v381 = vunpack.c.l.b16 %v213
      %v382 = vunpack.c.h.b16 %v213
      %v383 = vunpack.c.l.b16 %v214
      %v384 = vunpack.c.h.b16 %v214
      %v385 = vunpack.c.l.b16 %v215
      %v386 = vunpack.c.h.b16 %v215
      %v387 = vunpack.c.l.b16 %v216
      %v388 = vunpack.c.h.b16 %v216
      %v389 = vunpack.c.l.b16 %v217
      %v390 = vunpack.c.h.b16 %v217
      %v391 = vunpack.c.l.b16 %v218
      %v392 = vunpack.c.h.b16 %v218
      %v393 = vunpack.c.l.b16 %v219
      %v394 = vunpack.c.h.b16 %v219
      %v395 = vunpack.c.l.b16 %v220
      %v396 = vunpack.c.h.b16 %v220
      %v397 = vunpack.c.l.b16 %v221
      %v398 = vunpack.c.h.b16 %v221
      %v399 = vunpack.c.l.b16 %v222
      %v400 = vunpack.c.h.b16 %v222
      %v401 = vunpack.c.l.b16 %v223
      %v402 = vunpack.c.h.b16 %v223
      %v403 = vunpack.c.l.b16 %v224
      %v404 = vunpack.c.h.b16 %v224
      %v405 = vunpack.c.l.b16 %v225
      %v406 = vunpack.c.h.b16 %v225
      %v407 = vunpack.c.l.b16 %v226
      %v408 = vunpack.c.h.b16 %v226
      %v409 = vunpack.c.l.b16 %v227
      %v410 = vunpack.c.h.b16 %v227
      %v411 = vunpack.c.l.b16 %v228
      %v412 = vunpack.c.h.b16 %v228
      %v413 = vunpack.c.l.b16 %v229
      %v414 = vunpack.c.h.b16 %v229
      %v415 = vunpack.c.l.b16 %v230
      %v416 = vunpack.c.h.b16 %v230
      %v417 = vunpack.c.l.b16 %v231
      %v418 = vunpack.c.h.b16 %v231
      %v419 = vunpack.c.l.b16 %v232
      %v420 = vunpack.c.h.b16 %v232
      %v421 = vunpack.c.l.b16 %v233
      %v422 = vunpack.c.h.b16 %v233
      %v423 = vunpack.c.l.b16 %v234
      %v424 = vunpack.c.h.b16 %v234
      %v425 = vunpack.c.l.b16 %v235
      %v426 = vunpack.c.h.b16 %v235
      %v427 = vunpack.c.l.b16 %v236
      %v428 = vunpack.c.h.b16 %v236
      %v429 = vunpack.c.l.b16 %v237
      %v430 = vunpack.c.h.b16 %v237
      %v431 = vunpack.c.l.b16 %v238
      %v432 = vunpack.c.h.b16 %v238
      %v433 = vunpack.c.l.b16 %v239
      %v434 = vunpack.c.h.b16 %v239
      %v435 = vunpack.c.l.b16 %v240
      %v436 = vunpack.c.h.b16 %v240
      %v437 = vunpack.c.l.b16 %v241
      %v438 = vunpack.c.h.b16 %v241
      %v439 = vunpack.c.l.b16 %v242
      %v440 = vunpack.c.h.b16 %v242
      %v441 = vunpack.c.l.b16 %v243
      %v442 = vunpack.c.h.b16 %v243
      %v443 = vunpack.c.l.b16 %v244
      %v444 = vunpack.c.h.b16 %v244
      %v445 = vunpack.c.l.b16 %v245
      %v446 = vunpack.c.h.b16 %v245
      %v447 = vunpack.c.l.b16 %v246
      %v448 = vunpack.c.h.b16 %v246
      %v449 = vunpack.c.l.b16 %v247
      %v450 = vunpack.c.h.b16 %v247
      %v451 = vunpack.c.l.b16 %v248
      %v452 = vunpack.c.h.b16 %v248
      %v453 = vunpack.c.l.b16 %v249
      %v454 = vunpack.c.h.b16 %v249
      %v455 = vunpack.c.l.b16 %v250
      %v456 = vunpack.c.h.b16 %v250
      %v457 = vunpack.c.l.b16 %v251
      %v458 = vunpack.c.h.b16 %v251
      %v459 = vunpack.c.l.b16 %v252
      %v460 = vunpack.c.h.b16 %v252
      %v461 = vunpack.c.l.b16 %v253
      %v462 = vunpack.c.h.b16 %v253
      %v463 = vunpack.c.l.b16 %v254
      %v464 = vunpack.c.h.b16 %v254
      %v465 = vunpack.c.l.b16 %v255
      %v466 = vunpack.c.h.b16 %v255
      %v467 = vunpack.c.l.b16 %v256
      %v468 = vunpack.c.h.b16 %v256
      %v469 = vunpack.c.l.b16 %v257
      %v470 = vunpack.c.h.b16 %v257
      %v471 = vunpack.c.l.b16 %v258
      %v472 = vunpack.c.h.b16 %v258
      %v473 = vunpack.c.l.b16 %v259
      %v474 = vunpack.c.h.b16 %v259
      %v475 = vunpack.c.l.b16 %v260
      %v476 = vunpack.c.h.b16 %v260
      %v477 = vunpack.c.l.b16 %v261
      %v478 = vunpack.c.h.b16 %v261
      %v479 = vunpack.c.l.b16 %v262
      %v480 = vunpack.c.h.b16 %v262
      %v481 = vunpack.c.l.b16 %v263
      %v482 = vunpack.c.h.b16 %v263
      %v483 = vunpack.c.l.b16 %v264
      %v484 = vunpack.c.h.b16 %v264
      %v485 = vunpack.c.l.b16 %v265
      %v486 = vunpack.c.h.b16 %v265
      %v487 = vunpack.c.l.b16 %v266
      %v488 = vunpack.c.h.b16 %v266
      %v489 = vunpack.c.l.b16 %v267
      %v490 = vunpack.c.h.b16 %v267
      %v491 = vunpack.c.l.b16 %v268
      %v492 = vunpack.c.h.b16 %v268
      %v493 = vpack.c.b16 %v367, %v365
      %v494 = vpack.c.b16 %v368, %v366
      %v495 = vpack.c.b16 %v371, %v369
      %v496 = vpack.c.b16 %v372, %v370
      %v497 = vpack.c.b16 %v375, %v373
      %v498 = vpack.c.b16 %v376, %v374
      %v499 = vpack.c.b16 %v379, %v377
      %v500 = vpack.c.b16 %v380, %v378
      %v501 = vpack.c.b16 %v383, %v381
      %v502 = vpack.c.b16 %v384, %v382
      %v503 = vpack.c.b16 %v387, %v385
      %v504 = vpack.c.b16 %v388, %v386
      %v505 = vpack.c.b16 %v391, %v389
      %v506 = vpack.c.b16 %v392, %v390
      %v507 = vpack.c.b16 %v395, %v393
      %v508 = vpack.c.b16 %v396, %v394
      %v509 = vpack.c.b16 %v399, %v397
      %v510 = vpack.c.b16 %v400, %v398
      %v511 = vpack.c.b16 %v403, %v401
      %v512 = vpack.c.b16 %v404, %v402
      %v513 = vpack.c.b16 %v407, %v405
      %v514 = vpack.c.b16 %v408, %v406
      %v515 = vpack.c.b16 %v411, %v409
      %v516 = vpack.c.b16 %v412, %v410
      %v517 = vpack.c.b16 %v415, %v413
      %v518 = vpack.c.b16 %v416, %v414
      %v519 = vpack.c.b16 %v419, %v417
      %v520 = vpack.c.b16 %v420, %v418
      %v521 = vpack.c.b16 %v423, %v421
      %v522 = vpack.c.b16 %v424, %v422
      %v523 = vpack.c.b16 %v427, %v425
      %v524 = vpack.c.b16 %v428, %v426
      %v525 = vpack.c.b16 %v431, %v429
      %v526 = vpack.c.b16 %v432, %v430
      %v527 = vpack.c.b16 %v435, %v433
      %v528 = vpack.c.b16 %v436, %v434
      %v529 = vpack.c.b16 %v439, %v437
      %v530 = vpack.c.b16 %v440, %v438
      %v531 = vpack.c.b16 %v443, %v441
      %v532 = vpack.c.b16 %v444, %v442
      %v533 = vpack.c.b16 %v447, %v445
      %v534 = vpack.c.b16 %v448, %v446
      %v535 = vpack.c.b16 %v451, %v449
      %v536 = vpack.c.b16 %v452, %v450
      %v537 = vpack.c.b16 %v455, %v453
      %v538 = vpack.c.b16 %v456, %v454
      %v539 = vpack.c.b16 %v459, %v457
      %v540 = vpack.c.b16 %v460, %v458
      %v541 = vpack.c.b16 %v463, %v461
      %v542 = vpack.c.b16 %v464, %v462
      %v543 = vpack.c.b16 %v467, %v465
      %v544 = vpack.c.b16 %v468, %v466
      %v545 = vpack.c.b16 %v471, %v469
      %v546 = vpack.c.b16 %v472, %v470
      %v547 = vpack.c.b16 %v475, %v473
      %v548 = vpack.c.b16 %v476, %v474
      %v549 = vpack.c.b16 %v479, %v477
      %v550 = vpack.c.b16 %v480, %v478
      %v551 = vpack.c.b16 %v483, %v481
      %v552 = vpack.c.b16 %v484, %v482
      %v553 = vpack.c.b16 %v487, %v485
      %v554 = vpack.c.b16 %v488, %v486
      %v555 = vpack.c.b16 %v491, %v489
      %v556 = vpack.c.b16 %v492, %v490
      %v653 = vunpack.c.l.b16 %v269
      %v654 = vunpack.c.l.b16 %v270
      %v655 = vunpack.c.l.b16 %v271
      %v656 = vunpack.c.l.b16 %v272
      %v657 = vunpack.c.l.b16 %v273
      %v658 = vunpack.c.l.b16 %v274
      %v659 = vunpack.c.l.b16 %v275
      %v660 = vunpack.c.l.b16 %v276
      %v661 = vunpack.c.l.b16 %v277
      %v662 = vunpack.c.l.b16 %v278
      %v663 = vunpack.c.l.b16 %v279
      %v664 = vunpack.c.l.b16 %v280
      %v665 = vunpack.c.l.b16 %v281
      %v666 = vunpack.c.l.b16 %v282
      %v667 = vunpack.c.l.b16 %v283
      %v668 = vunpack.c.l.b16 %v284
      %v669 = vunpack.c.l.b16 %v285
      %v670 = vunpack.c.l.b16 %v286
      %v671 = vunpack.c.l.b16 %v287
      %v672 = vunpack.c.l.b16 %v288
      %v673 = vunpack.c.l.b16 %v289
      %v674 = vunpack.c.l.b16 %v290
      %v675 = vunpack.c.l.b16 %v291
      %v676 = vunpack.c.l.b16 %v292
      %v677 = vunpack.c.l.b16 %v293
      %v678 = vunpack.c.l.b16 %v294
      %v679 = vunpack.c.l.b16 %v295
      %v680 = vunpack.c.l.b16 %v296
      %v681 = vunpack.c.l.b16 %v297
      %v682 = vunpack.c.l.b16 %v298
      %v683 = vunpack.c.l.b16 %v299
      %v684 = vunpack.c.l.b16 %v300
      %v685 = vpack.c.b16 %v654, %v653
      %v686 = vpack.c.b16 %v656, %v655
      %v687 = vpack.c.b16 %v658, %v657
      %v688 = vpack.c.b16 %v660, %v659
      %v689 = vpack.c.b16 %v662, %v661
      %v690 = vpack.c.b16 %v664, %v663
      %v691 = vpack.c.b16 %v666, %v665
      %v692 = vpack.c.b16 %v668, %v667
      %v693 = vpack.c.b16 %v670, %v669
      %v694 = vpack.c.b16 %v672, %v671
      %v695 = vpack.c.b16 %v674, %v673
      %v696 = vpack.c.b16 %v676, %v675
      %v697 = vpack.c.b16 %v678, %v677
      %v698 = vpack.c.b16 %v680, %v679
      %v699 = vpack.c.b16 %v682, %v681
      %v700 = vpack.c.b16 %v684, %v683
      %717 = vmatprep.subr.bf16.mxu0 0
      %718 = vmatpush1.bf16.msra.mxu0 %v685
      %719 = vmatprep.subr.bf16.mxu0 0
      %720 = vmatpush1.bf16.msra.mxu0 %v686
      %721 = vmatprep.subr.bf16.mxu0 0
      %722 = vmatpush1.bf16.msra.mxu0 %v687
      %723 = vmatprep.subr.bf16.mxu0 0
      %724 = vmatpush1.bf16.msra.mxu0 %v688
      %725 = vmatprep.subr.bf16.mxu0 0
      %726 = vmatpush1.bf16.msra.mxu0 %v689
      %727 = vmatprep.subr.bf16.mxu0 0
      %728 = vmatpush1.bf16.msra.mxu0 %v690
      %729 = vmatprep.subr.bf16.mxu0 0
      %730 = vmatpush1.bf16.msra.mxu0 %v691
      %731 = vmatprep.subr.bf16.mxu0 0
      %732 = vmatpush1.bf16.msra.mxu0 %v692
      %733 = vmatprep.subr.bf16.mxu0 0
      %734 = vmatpush1.bf16.msra.mxu0 %v693
      %735 = vmatprep.subr.bf16.mxu0 0
      %736 = vmatpush1.bf16.msra.mxu0 %v694
      %737 = vmatprep.subr.bf16.mxu0 0
      %738 = vmatpush1.bf16.msra.mxu0 %v695
      %739 = vmatprep.subr.bf16.mxu0 0
      %740 = vmatpush1.bf16.msra.mxu0 %v696
      %741 = vmatprep.subr.bf16.mxu0 0
      %742 = vmatpush1.bf16.msra.mxu0 %v697
      %743 = vmatprep.subr.bf16.mxu0 0
      %744 = vmatpush1.bf16.msra.mxu0 %v698
      %745 = vmatprep.subr.bf16.mxu0 0
      %746 = vmatpush1.bf16.msra.mxu0 %v699
      %747 = vmatprep.subr.bf16.mxu0 0
      %748 = vmatpush1.bf16.msra.mxu0 %v700
      %749 = vmatprep.mubr.bf16.mxu0 %v494
      %750 = vmatmul.mubr.bf16.gmra.mrb[0].mxu0 %v493
      %v751 = vpop.f32.mrb[0].mxu0
      %v752 = vadd.f32 0.0, %v751
      %v753 = vpop.f32.mrb[0].mxu0
      %v754 = vpop.f32.mrb[0].mxu0
      %v755 = vadd.f32 0.0, %v754
      %v756 = vpop.f32.mrb[0].mxu0
      %757 = vmatprep.mubr.bf16.mxu0 %v496
      %758 = vmatmul.mubr.bf16.gmra.mrb[0].mxu0 %v495
      %v759 = vpop.f32.mrb[0].mxu0
      %v760 = vadd.f32 0.0, %v759
      %v761 = vpop.f32.mrb[0].mxu0
      %v762 = vpop.f32.mrb[0].mxu0
      %v763 = vadd.f32 0.0, %v762
      %v764 = vpop.f32.mrb[0].mxu0
      %765 = vmatprep.mubr.bf16.mxu0 %v498
      %766 = vmatmul.mubr.bf16.gmra.mrb[0].mxu0 %v497
      %v767 = vpop.f32.mrb[0].mxu0
      %v768 = vadd.f32 0.0, %v767
      %v769 = vpop.f32.mrb[0].mxu0
      %v770 = vpop.f32.mrb[0].mxu0
      %v771 = vadd.f32 0.0, %v770
      %v772 = vpop.f32.mrb[0].mxu0
      %773 = vmatprep.mubr.bf16.mxu0 %v500
      %774 = vmatmul.mubr.bf16.gmra.mrb[0].mxu0 %v499
      %v775 = vpop.f32.mrb[0].mxu0
      %v776 = vadd.f32 0.0, %v775
      %v777 = vpop.f32.mrb[0].mxu0
      %v778 = vpop.f32.mrb[0].mxu0
      %v779 = vadd.f32 0.0, %v778
      %v780 = vpop.f32.mrb[0].mxu0
      %781 = vmatprep.mubr.bf16.mxu0 %v502
      %782 = vmatmul.mubr.bf16.gmra.mrb[0].mxu0 %v501
      %v783 = vpop.f32.mrb[0].mxu0
      %v784 = vadd.f32 0.0, %v783
      %v785 = vpop.f32.mrb[0].mxu0
      %v786 = vpop.f32.mrb[0].mxu0
      %v787 = vadd.f32 0.0, %v786
      %v788 = vpop.f32.mrb[0].mxu0
      %789 = vmatprep.mubr.bf16.mxu0 %v504
      %790 = vmatmul.mubr.bf16.gmra.mrb[0].mxu0 %v503
      %v791 = vpop.f32.mrb[0].mxu0
      %v792 = vadd.f32 0.0, %v791
      %v793 = vpop.f32.mrb[0].mxu0
      %v794 = vpop.f32.mrb[0].mxu0
      %v795 = vadd.f32 0.0, %v794
      %v796 = vpop.f32.mrb[0].mxu0
      %797 = vmatprep.mubr.bf16.mxu0 %v506
      %798 = vmatmul.mubr.bf16.gmra.mrb[0].mxu0 %v505
      %v799 = vpop.f32.mrb[0].mxu0
      %v800 = vadd.f32 0.0, %v799
      %v801 = vpop.f32.mrb[0].mxu0
      %v802 = vpop.f32.mrb[0].mxu0
      %v803 = vadd.f32 0.0, %v802
      %v804 = vpop.f32.mrb[0].mxu0
      %805 = vmatprep.mubr.bf16.mxu0 %v508
      %806 = vmatmul.mubr.bf16.gmra.mrb[0].mxu0 %v507
      %v807 = vpop.f32.mrb[0].mxu0
      %v808 = vadd.f32 0.0, %v807
      %v809 = vpop.f32.mrb[0].mxu0
      %v810 = vpop.f32.mrb[0].mxu0
      %v811 = vadd.f32 0.0, %v810
      %v812 = vpop.f32.mrb[0].mxu0
      %813 = vmatprep.mubr.bf16.mxu0 %v510
      %814 = vmatmul.mubr.bf16.gmra.mrb[0].mxu0 %v509
      %v815 = vpop.f32.mrb[0].mxu0
      %v816 = vadd.f32 0.0, %v815
      %v817 = vpop.f32.mrb[0].mxu0
      %v818 = vpop.f32.mrb[0].mxu0
      %v819 = vadd.f32 0.0, %v818
      %v820 = vpop.f32.mrb[0].mxu0
      %821 = vmatprep.mubr.bf16.mxu0 %v512
      %822 = vmatmul.mubr.bf16.gmra.mrb[0].mxu0 %v511
      %v823 = vpop.f32.mrb[0].mxu0
      %v824 = vadd.f32 0.0, %v823
      %v825 = vpop.f32.mrb[0].mxu0
      %v826 = vpop.f32.mrb[0].mxu0
      %v827 = vadd.f32 0.0, %v826
      %v828 = vpop.f32.mrb[0].mxu0
      %829 = vmatprep.mubr.bf16.mxu0 %v514
      %830 = vmatmul.mubr.bf16.gmra.mrb[0].mxu0 %v513
      %v831 = vpop.f32.mrb[0].mxu0
      %v832 = vadd.f32 0.0, %v831
      %v833 = vpop.f32.mrb[0].mxu0
      %v834 = vpop.f32.mrb[0].mxu0
      %v835 = vadd.f32 0.0, %v834
      %v836 = vpop.f32.mrb[0].mxu0
      %837 = vmatprep.mubr.bf16.mxu0 %v516
      %838 = vmatmul.mubr.bf16.gmra.mrb[0].mxu0 %v515
      %v839 = vpop.f32.mrb[0].mxu0
      %v840 = vadd.f32 0.0, %v839
      %v841 = vpop.f32.mrb[0].mxu0
      %v842 = vpop.f32.mrb[0].mxu0
      %v843 = vadd.f32 0.0, %v842
      %v844 = vpop.f32.mrb[0].mxu0
      %845 = vmatprep.mubr.bf16.mxu0 %v518
      %846 = vmatmul.mubr.bf16.gmra.mrb[0].mxu0 %v517
      %v847 = vpop.f32.mrb[0].mxu0
      %v848 = vadd.f32 0.0, %v847
      %v849 = vpop.f32.mrb[0].mxu0
      %v850 = vpop.f32.mrb[0].mxu0
      %v851 = vadd.f32 0.0, %v850
      %v852 = vpop.f32.mrb[0].mxu0
      %853 = vmatprep.mubr.bf16.mxu0 %v520
      %854 = vmatmul.mubr.bf16.gmra.mrb[0].mxu0 %v519
      %v855 = vpop.f32.mrb[0].mxu0
      %v856 = vadd.f32 0.0, %v855
      %v857 = vpop.f32.mrb[0].mxu0
      %v858 = vpop.f32.mrb[0].mxu0
      %v859 = vadd.f32 0.0, %v858
      %v860 = vpop.f32.mrb[0].mxu0
      %861 = vmatprep.mubr.bf16.mxu0 %v522
      %862 = vmatmul.mubr.bf16.gmra.mrb[0].mxu0 %v521
      %v863 = vpop.f32.mrb[0].mxu0
      %v864 = vadd.f32 0.0, %v863
      %v865 = vpop.f32.mrb[0].mxu0
      %v866 = vpop.f32.mrb[0].mxu0
      %v867 = vadd.f32 0.0, %v866
      %v868 = vpop.f32.mrb[0].mxu0
      %869 = vmatprep.mubr.bf16.mxu0 %v524
      %870 = vmatmul.mubr.bf16.gmra.mrb[0].mxu0 %v523
      %v871 = vpop.f32.mrb[0].mxu0
      %v872 = vadd.f32 0.0, %v871
      %v873 = vpop.f32.mrb[0].mxu0
      %v874 = vpop.f32.mrb[0].mxu0
      %v875 = vadd.f32 0.0, %v874
      %v876 = vpop.f32.mrb[0].mxu0
      %877 = vmatprep.mubr.bf16.mxu0 %v526
      %878 = vmatmul.mubr.bf16.gmra.mrb[0].mxu0 %v525
      %v879 = vpop.f32.mrb[0].mxu0
      %v880 = vadd.f32 0.0, %v879
      %v881 = vpop.f32.mrb[0].mxu0
      %v882 = vpop.f32.mrb[0].mxu0
      %v883 = vadd.f32 0.0, %v882
      %v884 = vpop.f32.mrb[0].mxu0
      %885 = vmatprep.mubr.bf16.mxu0 %v528
      %886 = vmatmul.mubr.bf16.gmra.mrb[0].mxu0 %v527
      %v887 = vpop.f32.mrb[0].mxu0
      %v888 = vadd.f32 0.0, %v887
      %v889 = vpop.f32.mrb[0].mxu0
      %v890 = vpop.f32.mrb[0].mxu0
      %v891 = vadd.f32 0.0, %v890
      %v892 = vpop.f32.mrb[0].mxu0
      %893 = vmatprep.mubr.bf16.mxu0 %v530
      %894 = vmatmul.mubr.bf16.gmra.mrb[0].mxu0 %v529
      %v895 = vpop.f32.mrb[0].mxu0
      %v896 = vadd.f32 0.0, %v895
      %v897 = vpop.f32.mrb[0].mxu0
      %v898 = vpop.f32.mrb[0].mxu0
      %v899 = vadd.f32 0.0, %v898
      %v900 = vpop.f32.mrb[0].mxu0
      %901 = vmatprep.mubr.bf16.mxu0 %v532
      %902 = vmatmul.mubr.bf16.gmra.mrb[0].mxu0 %v531
      %v903 = vpop.f32.mrb[0].mxu0
      %v904 = vadd.f32 0.0, %v903
      %v905 = vpop.f32.mrb[0].mxu0
      %v906 = vpop.f32.mrb[0].mxu0
      %v907 = vadd.f32 0.0, %v906
      %v908 = vpop.f32.mrb[0].mxu0
      %909 = vmatprep.mubr.bf16.mxu0 %v534
      %910 = vmatmul.mubr.bf16.gmra.mrb[0].mxu0 %v533
      %v911 = vpop.f32.mrb[0].mxu0
      %v912 = vadd.f32 0.0, %v911
      %v913 = vpop.f32.mrb[0].mxu0
      %v914 = vpop.f32.mrb[0].mxu0
      %v915 = vadd.f32 0.0, %v914
      %v916 = vpop.f32.mrb[0].mxu0
      %917 = vmatprep.mubr.bf16.mxu0 %v536
      %918 = vmatmul.mubr.bf16.gmra.mrb[0].mxu0 %v535
      %v919 = vpop.f32.mrb[0].mxu0
      %v920 = vadd.f32 0.0, %v919
      %v921 = vpop.f32.mrb[0].mxu0
      %v922 = vpop.f32.mrb[0].mxu0
      %v923 = vadd.f32 0.0, %v922
      %v924 = vpop.f32.mrb[0].mxu0
      %925 = vmatprep.mubr.bf16.mxu0 %v538
      %926 = vmatmul.mubr.bf16.gmra.mrb[0].mxu0 %v537
      %v927 = vpop.f32.mrb[0].mxu0
      %v928 = vadd.f32 0.0, %v927
      %v929 = vpop.f32.mrb[0].mxu0
      %v930 = vpop.f32.mrb[0].mxu0
      %v931 = vadd.f32 0.0, %v930
      %v932 = vpop.f32.mrb[0].mxu0
      %933 = vmatprep.mubr.bf16.mxu0 %v540
      %934 = vmatmul.mubr.bf16.gmra.mrb[0].mxu0 %v539
      %v935 = vpop.f32.mrb[0].mxu0
      %v936 = vadd.f32 0.0, %v935
      %v937 = vpop.f32.mrb[0].mxu0
      %v938 = vpop.f32.mrb[0].mxu0
      %v939 = vadd.f32 0.0, %v938
      %v940 = vpop.f32.mrb[0].mxu0
      %941 = vmatprep.mubr.bf16.mxu0 %v542
      %942 = vmatmul.mubr.bf16.gmra.mrb[0].mxu0 %v541
      %v943 = vpop.f32.mrb[0].mxu0
      %v944 = vadd.f32 0.0, %v943
      %v945 = vpop.f32.mrb[0].mxu0
      %v946 = vpop.f32.mrb[0].mxu0
      %v947 = vadd.f32 0.0, %v946
      %v948 = vpop.f32.mrb[0].mxu0
      %949 = vmatprep.mubr.bf16.mxu0 %v544
      %950 = vmatmul.mubr.bf16.gmra.mrb[0].mxu0 %v543
      %v951 = vpop.f32.mrb[0].mxu0
      %v952 = vadd.f32 0.0, %v951
      %v953 = vpop.f32.mrb[0].mxu0
      %v954 = vpop.f32.mrb[0].mxu0
      %v955 = vadd.f32 0.0, %v954
      %v956 = vpop.f32.mrb[0].mxu0
      %957 = vmatprep.mubr.bf16.mxu0 %v546
      %958 = vmatmul.mubr.bf16.gmra.mrb[0].mxu0 %v545
      %v959 = vpop.f32.mrb[0].mxu0
      %v960 = vadd.f32 0.0, %v959
      %v961 = vpop.f32.mrb[0].mxu0
      %v962 = vpop.f32.mrb[0].mxu0
      %v963 = vadd.f32 0.0, %v962
      %v964 = vpop.f32.mrb[0].mxu0
      %965 = vmatprep.mubr.bf16.mxu0 %v548
      %966 = vmatmul.mubr.bf16.gmra.mrb[0].mxu0 %v547
      %v967 = vpop.f32.mrb[0].mxu0
      %v968 = vadd.f32 0.0, %v967
      %v969 = vpop.f32.mrb[0].mxu0
      %v970 = vpop.f32.mrb[0].mxu0
      %v971 = vadd.f32 0.0, %v970
      %v972 = vpop.f32.mrb[0].mxu0
      %973 = vmatprep.mubr.bf16.mxu0 %v550
      %974 = vmatmul.mubr.bf16.gmra.mrb[0].mxu0 %v549
      %v975 = vpop.f32.mrb[0].mxu0
      %v976 = vadd.f32 0.0, %v975
      %v977 = vpop.f32.mrb[0].mxu0
      %v978 = vpop.f32.mrb[0].mxu0
      %v979 = vadd.f32 0.0, %v978
      %v980 = vpop.f32.mrb[0].mxu0
      %981 = vmatprep.mubr.bf16.mxu0 %v552
      %982 = vmatmul.mubr.bf16.gmra.mrb[0].mxu0 %v551
      %v983 = vpop.f32.mrb[0].mxu0
      %v984 = vadd.f32 0.0, %v983
      %v985 = vpop.f32.mrb[0].mxu0
      %v986 = vpop.f32.mrb[0].mxu0
      %v987 = vadd.f32 0.0, %v986
      %v988 = vpop.f32.mrb[0].mxu0
      %989 = vmatprep.mubr.bf16.mxu0 %v554
      %990 = vmatmul.mubr.bf16.gmra.mrb[0].mxu0 %v553
      %v991 = vpop.f32.mrb[0].mxu0
      %v992 = vadd.f32 0.0, %v991
      %v993 = vpop.f32.mrb[0].mxu0
      %v994 = vpop.f32.mrb[0].mxu0
      %v995 = vadd.f32 0.0, %v994
      %v996 = vpop.f32.mrb[0].mxu0
      %997 = vmatprep.mubr.bf16.mxu0 %v556
      %998 = vmatmul.mubr.bf16.gmra.mrb[0].mxu0 %v555
      %v999 = vpop.f32.mrb[0].mxu0
      %v1000 = vadd.f32 0.0, %v999
      %v1001 = vpop.f32.mrb[0].mxu0
      %v1002 = vpop.f32.mrb[0].mxu0
      %v1003 = vadd.f32 0.0, %v1002
      %v1004 = vpop.f32.mrb[0].mxu0
      %1005 = vdwg.mxu0
      %v1006 = vld [vmem:[%s2] sm:$0x1]
      %v1008 = vlaneseq
      %v1009 = vshrl.u32 %v1008, 7
      %v1010 = vsub.s32 0, %v1009
      %v1011 = vrot.slane %v1006, %v1010
      %v1013 = vmul.f32 %v752, %v1011
      %v1014 = vmul.f32 %v755, %v1011
      %v1015 = vmul.f32 %v760, %v1011
      %v1016 = vmul.f32 %v763, %v1011
      %v1017 = vmul.f32 %v768, %v1011
      %v1018 = vmul.f32 %v771, %v1011
      %v1019 = vmul.f32 %v776, %v1011
      %v1020 = vmul.f32 %v779, %v1011
      %v1021 = vmul.f32 %v784, %v1011
      %v1022 = vmul.f32 %v787, %v1011
      %v1023 = vmul.f32 %v792, %v1011
      %v1024 = vmul.f32 %v795, %v1011
      %v1025 = vmul.f32 %v800, %v1011
      %v1026 = vmul.f32 %v803, %v1011
      %v1027 = vmul.f32 %v808, %v1011
      %v1028 = vmul.f32 %v811, %v1011
      %v1029 = vmul.f32 %v816, %v1011
      %v1030 = vmul.f32 %v819, %v1011
      %v1031 = vmul.f32 %v824, %v1011
      %v1032 = vmul.f32 %v827, %v1011
      %v1033 = vmul.f32 %v832, %v1011
      %v1034 = vmul.f32 %v835, %v1011
      %v1035 = vmul.f32 %v840, %v1011
      %v1036 = vmul.f32 %v843, %v1011
      %v1037 = vmul.f32 %v848, %v1011
      %v1038 = vmul.f32 %v851, %v1011
      %v1039 = vmul.f32 %v856, %v1011
      %v1040 = vmul.f32 %v859, %v1011
      %v1041 = vmul.f32 %v864, %v1011
      %v1042 = vmul.f32 %v867, %v1011
      %v1043 = vmul.f32 %v872, %v1011
      %v1044 = vmul.f32 %v875, %v1011
      %v1045 = vmul.f32 %v880, %v1011
      %v1046 = vmul.f32 %v883, %v1011
      %v1047 = vmul.f32 %v888, %v1011
      %v1048 = vmul.f32 %v891, %v1011
      %v1049 = vmul.f32 %v896, %v1011
      %v1050 = vmul.f32 %v899, %v1011
      %v1051 = vmul.f32 %v904, %v1011
      %v1052 = vmul.f32 %v907, %v1011
      %v1053 = vmul.f32 %v912, %v1011
      %v1054 = vmul.f32 %v915, %v1011
      %v1055 = vmul.f32 %v920, %v1011
      %v1056 = vmul.f32 %v923, %v1011
      %v1057 = vmul.f32 %v928, %v1011
      %v1058 = vmul.f32 %v931, %v1011
      %v1059 = vmul.f32 %v936, %v1011
      %v1060 = vmul.f32 %v939, %v1011
      %v1061 = vmul.f32 %v944, %v1011
      %v1062 = vmul.f32 %v947, %v1011
      %v1063 = vmul.f32 %v952, %v1011
      %v1064 = vmul.f32 %v955, %v1011
      %v1065 = vmul.f32 %v960, %v1011
      %v1066 = vmul.f32 %v963, %v1011
      %v1067 = vmul.f32 %v968, %v1011
      %v1068 = vmul.f32 %v971, %v1011
      %v1069 = vmul.f32 %v976, %v1011
      %v1070 = vmul.f32 %v979, %v1011
      %v1071 = vmul.f32 %v984, %v1011
      %v1072 = vmul.f32 %v987, %v1011
      %v1073 = vmul.f32 %v992, %v1011
      %v1074 = vmul.f32 %v995, %v1011
      %v1075 = vmul.f32 %v1000, %v1011
      %v1076 = vmul.f32 %v1003, %v1011
      %v1077 = vld [vmem:[%s3] sm:$0x1]
      %v1079 = vlaneseq
      %v1080 = vshrl.u32 %v1079, 7
      %v1081 = vsub.s32 0, %v1080
      %v1082 = vrot.slane %v1077, %v1081
      %v1084 = vadd.f32 %v1013, %v1082
      %v1085 = vadd.f32 %v1014, %v1082
      %v1086 = vadd.f32 %v1015, %v1082
      %v1087 = vadd.f32 %v1016, %v1082
      %v1088 = vadd.f32 %v1017, %v1082
      %v1089 = vadd.f32 %v1018, %v1082
      %v1090 = vadd.f32 %v1019, %v1082
      %v1091 = vadd.f32 %v1020, %v1082
      %v1092 = vadd.f32 %v1021, %v1082
      %v1093 = vadd.f32 %v1022, %v1082
      %v1094 = vadd.f32 %v1023, %v1082
      %v1095 = vadd.f32 %v1024, %v1082
      %v1096 = vadd.f32 %v1025, %v1082
      %v1097 = vadd.f32 %v1026, %v1082
      %v1098 = vadd.f32 %v1027, %v1082
      %v1099 = vadd.f32 %v1028, %v1082
      %v1100 = vadd.f32 %v1029, %v1082
      %v1101 = vadd.f32 %v1030, %v1082
      %v1102 = vadd.f32 %v1031, %v1082
      %v1103 = vadd.f32 %v1032, %v1082
      %v1104 = vadd.f32 %v1033, %v1082
      %v1105 = vadd.f32 %v1034, %v1082
      %v1106 = vadd.f32 %v1035, %v1082
      %v1107 = vadd.f32 %v1036, %v1082
      %v1108 = vadd.f32 %v1037, %v1082
      %v1109 = vadd.f32 %v1038, %v1082
      %v1110 = vadd.f32 %v1039, %v1082
      %v1111 = vadd.f32 %v1040, %v1082
      %v1112 = vadd.f32 %v1041, %v1082
      %v1113 = vadd.f32 %v1042, %v1082
      %v1114 = vadd.f32 %v1043, %v1082
      %v1115 = vadd.f32 %v1044, %v1082
      %v1116 = vadd.f32 %v1045, %v1082
      %v1117 = vadd.f32 %v1046, %v1082
      %v1118 = vadd.f32 %v1047, %v1082
      %v1119 = vadd.f32 %v1048, %v1082
      %v1120 = vadd.f32 %v1049, %v1082
      %v1121 = vadd.f32 %v1050, %v1082
      %v1122 = vadd.f32 %v1051, %v1082
      %v1123 = vadd.f32 %v1052, %v1082
      %v1124 = vadd.f32 %v1053, %v1082
      %v1125 = vadd.f32 %v1054, %v1082
      %v1126 = vadd.f32 %v1055, %v1082
      %v1127 = vadd.f32 %v1056, %v1082
      %v1128 = vadd.f32 %v1057, %v1082
      %v1129 = vadd.f32 %v1058, %v1082
      %v1130 = vadd.f32 %v1059, %v1082
      %v1131 = vadd.f32 %v1060, %v1082
      %v1132 = vadd.f32 %v1061, %v1082
      %v1133 = vadd.f32 %v1062, %v1082
      %v1134 = vadd.f32 %v1063, %v1082
      %v1135 = vadd.f32 %v1064, %v1082
      %v1136 = vadd.f32 %v1065, %v1082
      %v1137 = vadd.f32 %v1066, %v1082
      %v1138 = vadd.f32 %v1067, %v1082
      %v1139 = vadd.f32 %v1068, %v1082
      %v1140 = vadd.f32 %v1069, %v1082
      %v1141 = vadd.f32 %v1070, %v1082
      %v1142 = vadd.f32 %v1071, %v1082
      %v1143 = vadd.f32 %v1072, %v1082
      %v1144 = vadd.f32 %v1073, %v1082
      %v1145 = vadd.f32 %v1074, %v1082
      %v1146 = vadd.f32 %v1075, %v1082
      %v1147 = vadd.f32 %v1076, %v1082
      %v1148 = vmax.f32 %v1084, 0.0
      %v1149 = vmax.f32 %v1085, 0.0
      %v1150 = vmax.f32 %v1086, 0.0
      %v1151 = vmax.f32 %v1087, 0.0
      %v1152 = vmax.f32 %v1088, 0.0
      %v1153 = vmax.f32 %v1089, 0.0
      %v1154 = vmax.f32 %v1090, 0.0
      %v1155 = vmax.f32 %v1091, 0.0
      %v1156 = vmax.f32 %v1092, 0.0
      %v1157 = vmax.f32 %v1093, 0.0
      %v1158 = vmax.f32 %v1094, 0.0
      %v1159 = vmax.f32 %v1095, 0.0
      %v1160 = vmax.f32 %v1096, 0.0
      %v1161 = vmax.f32 %v1097, 0.0
      %v1162 = vmax.f32 %v1098, 0.0
      %v1163 = vmax.f32 %v1099, 0.0
      %v1164 = vmax.f32 %v1100, 0.0
      %v1165 = vmax.f32 %v1101, 0.0
      %v1166 = vmax.f32 %v1102, 0.0
      %v1167 = vmax.f32 %v1103, 0.0
      %v1168 = vmax.f32 %v1104, 0.0
      %v1169 = vmax.f32 %v1105, 0.0
      %v1170 = vmax.f32 %v1106, 0.0
      %v1171 = vmax.f32 %v1107, 0.0
      %v1172 = vmax.f32 %v1108, 0.0
      %v1173 = vmax.f32 %v1109, 0.0
      %v1174 = vmax.f32 %v1110, 0.0
      %v1175 = vmax.f32 %v1111, 0.0
      %v1176 = vmax.f32 %v1112, 0.0
      %v1177 = vmax.f32 %v1113, 0.0
      %v1178 = vmax.f32 %v1114, 0.0
      %v1179 = vmax.f32 %v1115, 0.0
      %v1180 = vmax.f32 %v1116, 0.0
      %v1181 = vmax.f32 %v1117, 0.0
      %v1182 = vmax.f32 %v1118, 0.0
      %v1183 = vmax.f32 %v1119, 0.0
      %v1184 = vmax.f32 %v1120, 0.0
      %v1185 = vmax.f32 %v1121, 0.0
      %v1186 = vmax.f32 %v1122, 0.0
      %v1187 = vmax.f32 %v1123, 0.0
      %v1188 = vmax.f32 %v1124, 0.0
      %v1189 = vmax.f32 %v1125, 0.0
      %v1190 = vmax.f32 %v1126, 0.0
      %v1191 = vmax.f32 %v1127, 0.0
      %v1192 = vmax.f32 %v1128, 0.0
      %v1193 = vmax.f32 %v1129, 0.0
      %v1194 = vmax.f32 %v1130, 0.0
      %v1195 = vmax.f32 %v1131, 0.0
      %v1196 = vmax.f32 %v1132, 0.0
      %v1197 = vmax.f32 %v1133, 0.0
      %v1198 = vmax.f32 %v1134, 0.0
      %v1199 = vmax.f32 %v1135, 0.0
      %v1200 = vmax.f32 %v1136, 0.0
      %v1201 = vmax.f32 %v1137, 0.0
      %v1202 = vmax.f32 %v1138, 0.0
      %v1203 = vmax.f32 %v1139, 0.0
      %v1204 = vmax.f32 %v1140, 0.0
      %v1205 = vmax.f32 %v1141, 0.0
      %v1206 = vmax.f32 %v1142, 0.0
      %v1207 = vmax.f32 %v1143, 0.0
      %v1208 = vmax.f32 %v1144, 0.0
      %v1209 = vmax.f32 %v1145, 0.0
      %v1210 = vmax.f32 %v1146, 0.0
      %v1211 = vmax.f32 %v1147, 0.0
      %1212 = vst [vmem:[%s202] sm:$0xff] %v1148
      %1213 = vst [vmem:[%s202 + $0x8] sm:$0xff] %v1149
      %1214 = vst [vmem:[%s202 + $0x10] sm:$0xff] %v1150
      %1215 = vst [vmem:[%s202 + $0x18] sm:$0xff] %v1151
      %1216 = vst [vmem:[%s202 + $0x20] sm:$0xff] %v1152
      %1217 = vst [vmem:[%s202 + $0x28] sm:$0xff] %v1153
      %1218 = vst [vmem:[%s202 + $0x30] sm:$0xff] %v1154
      %1219 = vst [vmem:[%s202 + $0x38] sm:$0xff] %v1155
      %1220 = vst [vmem:[%s202 + $0x40] sm:$0xff] %v1156
      %1221 = vst [vmem:[%s202 + $0x48] sm:$0xff] %v1157
      %1222 = vst [vmem:[%s202 + $0x50] sm:$0xff] %v1158
      %1223 = vst [vmem:[%s202 + $0x58] sm:$0xff] %v1159
      %1224 = vst [vmem:[%s202 + $0x60] sm:$0xff] %v1160
      %1225 = vst [vmem:[%s202 + $0x68] sm:$0xff] %v1161
      %1226 = vst [vmem:[%s202 + $0x70] sm:$0xff] %v1162
      %1227 = vst [vmem:[%s202 + $0x78] sm:$0xff] %v1163
      %1228 = vst [vmem:[%s202 + $0x80] sm:$0xff] %v1164
      %1229 = vst [vmem:[%s202 + $0x88] sm:$0xff] %v1165
      %1230 = vst [vmem:[%s202 + $0x90] sm:$0xff] %v1166
      %1231 = vst [vmem:[%s202 + $0x98] sm:$0xff] %v1167
      %1232 = vst [vmem:[%s202 + $0xa0] sm:$0xff] %v1168
      %1233 = vst [vmem:[%s202 + $0xa8] sm:$0xff] %v1169
      %1234 = vst [vmem:[%s202 + $0xb0] sm:$0xff] %v1170
      %1235 = vst [vmem:[%s202 + $0xb8] sm:$0xff] %v1171
      %1236 = vst [vmem:[%s202 + $0xc0] sm:$0xff] %v1172
      %1237 = vst [vmem:[%s202 + $0xc8] sm:$0xff] %v1173
      %1238 = vst [vmem:[%s202 + $0xd0] sm:$0xff] %v1174
      %1239 = vst [vmem:[%s202 + $0xd8] sm:$0xff] %v1175
      %1240 = vst [vmem:[%s202 + $0xe0] sm:$0xff] %v1176
      %1241 = vst [vmem:[%s202 + $0xe8] sm:$0xff] %v1177
      %1242 = vst [vmem:[%s202 + $0xf0] sm:$0xff] %v1178
      %1243 = vst [vmem:[%s202 + $0xf8] sm:$0xff] %v1179
      %1244 = vst [vmem:[%s202 + $0x100] sm:$0xff] %v1180
      %1245 = vst [vmem:[%s202 + $0x108] sm:$0xff] %v1181
      %1246 = vst [vmem:[%s202 + $0x110] sm:$0xff] %v1182
      %1247 = vst [vmem:[%s202 + $0x118] sm:$0xff] %v1183
      %1248 = vst [vmem:[%s202 + $0x120] sm:$0xff] %v1184
      %1249 = vst [vmem:[%s202 + $0x128] sm:$0xff] %v1185
      %1250 = vst [vmem:[%s202 + $0x130] sm:$0xff] %v1186
      %1251 = vst [vmem:[%s202 + $0x138] sm:$0xff] %v1187
      %1252 = vst [vmem:[%s202 + $0x140] sm:$0xff] %v1188
      %1253 = vst [vmem:[%s202 + $0x148] sm:$0xff] %v1189
      %1254 = vst [vmem:[%s202 + $0x150] sm:$0xff] %v1190
      %1255 = vst [vmem:[%s202 + $0x158] sm:$0xff] %v1191
      %1256 = vst [vmem:[%s202 + $0x160] sm:$0xff] %v1192
      %1257 = vst [vmem:[%s202 + $0x168] sm:$0xff] %v1193
      %1258 = vst [vmem:[%s202 + $0x170] sm:$0xff] %v1194
      %1259 = vst [vmem:[%s202 + $0x178] sm:$0xff] %v1195
      %1260 = vst [vmem:[%s202 + $0x180] sm:$0xff] %v1196
      %1261 = vst [vmem:[%s202 + $0x188] sm:$0xff] %v1197
      %1262 = vst [vmem:[%s202 + $0x190] sm:$0xff] %v1198
      %1263 = vst [vmem:[%s202 + $0x198] sm:$0xff] %v1199
      %1264 = vst [vmem:[%s202 + $0x1a0] sm:$0xff] %v1200
      %1265 = vst [vmem:[%s202 + $0x1a8] sm:$0xff] %v1201
      %1266 = vst [vmem:[%s202 + $0x1b0] sm:$0xff] %v1202
      %1267 = vst [vmem:[%s202 + $0x1b8] sm:$0xff] %v1203
      %1268 = vst [vmem:[%s202 + $0x1c0] sm:$0xff] %v1204
      %1269 = vst [vmem:[%s202 + $0x1c8] sm:$0xff] %v1205
      %1270 = vst [vmem:[%s202 + $0x1d0] sm:$0xff] %v1206
      %1271 = vst [vmem:[%s202 + $0x1d8] sm:$0xff] %v1207
      %1272 = vst [vmem:[%s202 + $0x1e0] sm:$0xff] %v1208
      %1273 = vst [vmem:[%s202 + $0x1e8] sm:$0xff] %v1209
      %1274 = vst [vmem:[%s202 + $0x1f0] sm:$0xff] %v1210
      %1275 = vst [vmem:[%s202 + $0x1f8] sm:$0xff] %v1211
      %s1276 = smul.u32 64, %s15
      %p1277 = scmp.lt.s32.totalorder %s1276, 255
      %s1278 = scalar_select %p1277, %s1276, 255
      %s1279 = smul.addr %s1278, 8
      %s1280 = scalar_lea.vmem %s4, %s1279
      // Predicated region
      $region37: #{cam_forward.20} parent=35 // pred_check
        %p1281 = pneg %p122
      $region38: #{cam_forward.20} parent=35 // pred_check_branch
        %1283 = sbr.rel (%p1281) target = $region40
      $region39: #{cam_forward.20} parent=35 // pred_region
        %s1284 = smul.u32 64, %s15
      $region40: #{cam_forward.20} parent=35 // pred_fallthru
        _
    $region36: #{cam_forward.20} parent=5 // pred_fallthru
      _
    %p1285 = scmp.le.s32.totalorder 2, %s10
    // Predicated region
    $region41: #{cam_forward.20} parent=5 // pred_check
      %p1286 = pneg %p1285
    $region42: #{cam_forward.20} parent=5 // pred_check_branch
      %1288 = sbr.rel (%p1286) target = $region44
    $region43: #{cam_forward.20} parent=5 // pred_region
      %s1289 = ssub.s32 %s10, 2
      // Predicated region
      $region45: #{cam_forward.20} parent=43 // pred_check
        %p1290 = pneg %p128
      $region46: #{cam_forward.20} parent=43 // pred_check_branch
        %1292 = sbr.rel (%p1290) target = $region48
      $region47: #{cam_forward.20} parent=43 // pred_region
        %s1293 = smul.u32 64, %s16
        %p1294 = scmp.lt.s32.totalorder %s1293, 255
        %s1295 = scalar_select %p1294, %s1293, 255
        %s1296 = smul.addr %s1295, 8
        %s1297 = scalar_lea.vmem %s4, %s1296
      $region48: #{cam_forward.20} parent=43 // pred_fallthru
        _
    $region44: #{cam_forward.20} parent=5 // pred_fallthru
      _
  $region6: #{cam_forward.20} parent=0 // loop_footer
    %s14 = sadd.s32 1, %s10
  $region7: #{cam_forward.20} parent=0 // loop_footer_branch
    %9 = sbr.rel target = $region3
  $region8: #{cam_forward.20} parent=0 // loop_exit
    _

// kernel: cam_forward.21
$region0: #{cam_forward.21}
  #allocation0 [shape = 'u32[]', space=smem, size = 0x4, offset = 0x4, fixed_abs, tag = 'smem constant byte address 0x4 - core index']
  #allocation1 [shape = 'u32[144,128]{1,0:T(1,128)}', space=vmem, size = 0x12000, scoped, tag = 'internal scratch']
  %s0 = inlined_call_operand.vmem [shape: bf16[512,128], index: 0, kind: input, shape index: {}]
  %s1 = inlined_call_operand.vmem [shape: bf16[128,128], index: 1, kind: input, shape index: {}]
  %s2 = inlined_call_operand.vmem [shape: f32[1,128], index: 2, kind: input, shape index: {}]
  %s3 = inlined_call_operand.vmem [shape: f32[1,128], index: 3, kind: input, shape index: {}]
  %s4 = inlined_call_operand.vmem [shape: f32[512,128], index: 4, kind: output, shape index: {}]
  %s5 = sld [smem:[#allocation0]]
  $region26: #{cam_forward.21} parent=0
    _
  %s7 = ssub.s32 1, %s5
  %s8 = scalar_select 0, %s7, %s5
  // Predicated region
  $region2: #{cam_forward.21} parent=0 // pred_check
    _
  $region3: #{cam_forward.21} parent=0 // pred_check_branch
    %10 = sbr.rel (0) target = $region5
  $region4: #{cam_forward.21} parent=0 // pred_region
    _
  $region5: #{cam_forward.21} parent=0 // pred_fallthru
    _
  // Predicated region
  $region6: #{cam_forward.21} parent=0 // pred_check
    _
  $region7: #{cam_forward.21} parent=0 // pred_check_branch
    %12 = sbr.rel (0) target = $region9
  $region8: #{cam_forward.21} parent=0 // pred_region
    _
  $region9: #{cam_forward.21} parent=0 // pred_fallthru
    _
  // Predicated region
  $region10: #{cam_forward.21} parent=0 // pred_check
    _
  $region11: #{cam_forward.21} parent=0 // pred_check_branch
    %14 = sbr.rel (0) target = $region13
  $region12: #{cam_forward.21} parent=0 // pred_region
    _
  $region13: #{cam_forward.21} parent=0 // pred_fallthru
    _
  // Predicated region
  $region14: #{cam_forward.21} parent=0 // pred_check
    _
  $region15: #{cam_forward.21} parent=0 // pred_check_branch
    %16 = sbr.rel (0) target = $region17
  $region16: #{cam_forward.21} parent=0 // pred_region
    _
  $region17: #{cam_forward.21} parent=0 // pred_fallthru
    _
  %v18 = vld [vmem:[%s0] sm:$0xf]
  %v19 = vld [vmem:[%s0 + $0x4] sm:$0xf]
  %v20 = vld [vmem:[%s0 + $0x8] sm:$0xf]
  %v21 = vld [vmem:[%s0 + $0xc] sm:$0xf]
  %v22 = vld [vmem:[%s0 + $0x10] sm:$0xf]
  %v23 = vld [vmem:[%s0 + $0x14] sm:$0xf]
  %v24 = vld [vmem:[%s0 + $0x18] sm:$0xf]
  %v25 = vld [vmem:[%s0 + $0x1c] sm:$0xf]
  %v26 = vld [vmem:[%s0 + $0x20] sm:$0xf]
  %v27 = vld [vmem:[%s0 + $0x24] sm:$0xf]
  %v28 = vld [vmem:[%s0 + $0x28] sm:$0xf]
  %v29 = vld [vmem:[%s0 + $0x2c] sm:$0xf]
  %v30 = vld [vmem:[%s0 + $0x30] sm:$0xf]
  %v31 = vld [vmem:[%s0 + $0x34] sm:$0xf]
  %v32 = vld [vmem:[%s0 + $0x38] sm:$0xf]
  %v33 = vld [vmem:[%s0 + $0x3c] sm:$0xf]
  %v34 = vld [vmem:[%s0 + $0x40] sm:$0xf]
  %v35 = vld [vmem:[%s0 + $0x44] sm:$0xf]
  %v36 = vld [vmem:[%s0 + $0x48] sm:$0xf]
  %v37 = vld [vmem:[%s0 + $0x4c] sm:$0xf]
  %v38 = vld [vmem:[%s0 + $0x50] sm:$0xf]
  %v39 = vld [vmem:[%s0 + $0x54] sm:$0xf]
  %v40 = vld [vmem:[%s0 + $0x58] sm:$0xf]
  %v41 = vld [vmem:[%s0 + $0x5c] sm:$0xf]
  %v42 = vld [vmem:[%s0 + $0x60] sm:$0xf]
  %v43 = vld [vmem:[%s0 + $0x64] sm:$0xf]
  %v44 = vld [vmem:[%s0 + $0x68] sm:$0xf]
  %v45 = vld [vmem:[%s0 + $0x6c] sm:$0xf]
  %v46 = vld [vmem:[%s0 + $0x70] sm:$0xf]
  %v47 = vld [vmem:[%s0 + $0x74] sm:$0xf]
  %v48 = vld [vmem:[%s0 + $0x78] sm:$0xf]
  %v49 = vld [vmem:[%s0 + $0x7c] sm:$0xf]
  %v50 = vld [vmem:[%s0 + $0x80] sm:$0xf]
  %v51 = vld [vmem:[%s0 + $0x84] sm:$0xf]
  %v52 = vld [vmem:[%s0 + $0x88] sm:$0xf]
  %v53 = vld [vmem:[%s0 + $0x8c] sm:$0xf]
  %v54 = vld [vmem:[%s0 + $0x90] sm:$0xf]
  %v55 = vld [vmem:[%s0 + $0x94] sm:$0xf]
  %v56 = vld [vmem:[%s0 + $0x98] sm:$0xf]
  %v57 = vld [vmem:[%s0 + $0x9c] sm:$0xf]
  %v58 = vld [vmem:[%s0 + $0xa0] sm:$0xf]
  %v59 = vld [vmem:[%s0 + $0xa4] sm:$0xf]
  %v60 = vld [vmem:[%s0 + $0xa8] sm:$0xf]
  %v61 = vld [vmem:[%s0 + $0xac] sm:$0xf]
  %v62 = vld [vmem:[%s0 + $0xb0] sm:$0xf]
  %v63 = vld [vmem:[%s0 + $0xb4] sm:$0xf]
  %v64 = vld [vmem:[%s0 + $0xb8] sm:$0xf]
  %v65 = vld [vmem:[%s0 + $0xbc] sm:$0xf]
  %v66 = vld [vmem:[%s0 + $0xc0] sm:$0xf]
  %v67 = vld [vmem:[%s0 + $0xc4] sm:$0xf]
  %v68 = vld [vmem:[%s0 + $0xc8] sm:$0xf]
  %v69 = vld [vmem:[%s0 + $0xcc] sm:$0xf]
  %v70 = vld [vmem:[%s0 + $0xd0] sm:$0xf]
  %v71 = vld [vmem:[%s0 + $0xd4] sm:$0xf]
  %v72 = vld [vmem:[%s0 + $0xd8] sm:$0xf]
  %v73 = vld [vmem:[%s0 + $0xdc] sm:$0xf]
  %v74 = vld [vmem:[%s0 + $0xe0] sm:$0xf]
  %v75 = vld [vmem:[%s0 + $0xe4] sm:$0xf]
  %v76 = vld [vmem:[%s0 + $0xe8] sm:$0xf]
  %v77 = vld [vmem:[%s0 + $0xec] sm:$0xf]
  %v78 = vld [vmem:[%s0 + $0xf0] sm:$0xf]
  %v79 = vld [vmem:[%s0 + $0xf4] sm:$0xf]
  %v80 = vld [vmem:[%s0 + $0xf8] sm:$0xf]
  %v81 = vld [vmem:[%s0 + $0xfc] sm:$0xf]
  %v82 = vld [vmem:[%s1] sm:$0xf]
  %v83 = vld [vmem:[%s1 + $0x4] sm:$0xf]
  %v84 = vld [vmem:[%s1 + $0x8] sm:$0xf]
  %v85 = vld [vmem:[%s1 + $0xc] sm:$0xf]
  %v86 = vld [vmem:[%s1 + $0x10] sm:$0xf]
  %v87 = vld [vmem:[%s1 + $0x14] sm:$0xf]
  %v88 = vld [vmem:[%s1 + $0x18] sm:$0xf]
  %v89 = vld [vmem:[%s1 + $0x1c] sm:$0xf]
  %v90 = vld [vmem:[%s1 + $0x20] sm:$0xf]
  %v91 = vld [vmem:[%s1 + $0x24] sm:$0xf]
  %v92 = vld [vmem:[%s1 + $0x28] sm:$0xf]
  %v93 = vld [vmem:[%s1 + $0x2c] sm:$0xf]
  %v94 = vld [vmem:[%s1 + $0x30] sm:$0xf]
  %v95 = vld [vmem:[%s1 + $0x34] sm:$0xf]
  %v96 = vld [vmem:[%s1 + $0x38] sm:$0xf]
  %v97 = vld [vmem:[%s1 + $0x3c] sm:$0xf]
  %v162 = vunpack.c.l.b16 %v18
  %v163 = vunpack.c.l.b16 %v19
  %v164 = vunpack.c.l.b16 %v20
  %v165 = vunpack.c.l.b16 %v21
  %v166 = vunpack.c.l.b16 %v22
  %v167 = vunpack.c.l.b16 %v23
  %v168 = vunpack.c.l.b16 %v24
  %v169 = vunpack.c.l.b16 %v25
  %v170 = vunpack.c.l.b16 %v26
  %v171 = vunpack.c.l.b16 %v27
  %v172 = vunpack.c.l.b16 %v28
  %v173 = vunpack.c.l.b16 %v29
  %v174 = vunpack.c.l.b16 %v30
  %v175 = vunpack.c.l.b16 %v31
  %v176 = vunpack.c.l.b16 %v32
  %v177 = vunpack.c.l.b16 %v33
  %v178 = vunpack.c.l.b16 %v34
  %v179 = vunpack.c.l.b16 %v35
  %v180 = vunpack.c.l.b16 %v36
  %v181 = vunpack.c.l.b16 %v37
  %v182 = vunpack.c.l.b16 %v38
  %v183 = vunpack.c.l.b16 %v39
  %v184 = vunpack.c.l.b16 %v40
  %v185 = vunpack.c.l.b16 %v41
  %v186 = vunpack.c.l.b16 %v42
  %v187 = vunpack.c.l.b16 %v43
  %v188 = vunpack.c.l.b16 %v44
  %v189 = vunpack.c.l.b16 %v45
  %v190 = vunpack.c.l.b16 %v46
  %v191 = vunpack.c.l.b16 %v47
  %v192 = vunpack.c.l.b16 %v48
  %v193 = vunpack.c.l.b16 %v49
  %v194 = vunpack.c.l.b16 %v50
  %v195 = vunpack.c.l.b16 %v51
  %v196 = vunpack.c.l.b16 %v52
  %v197 = vunpack.c.l.b16 %v53
  %v198 = vunpack.c.l.b16 %v54
  %v199 = vunpack.c.l.b16 %v55
  %v200 = vunpack.c.l.b16 %v56
  %v201 = vunpack.c.l.b16 %v57
  %v202 = vunpack.c.l.b16 %v58
  %v203 = vunpack.c.l.b16 %v59
  %v204 = vunpack.c.l.b16 %v60
  %v205 = vunpack.c.l.b16 %v61
  %v206 = vunpack.c.l.b16 %v62
  %v207 = vunpack.c.l.b16 %v63
  %v208 = vunpack.c.l.b16 %v64
  %v209 = vunpack.c.l.b16 %v65
  %v210 = vunpack.c.l.b16 %v66
  %v211 = vunpack.c.l.b16 %v67
  %v212 = vunpack.c.l.b16 %v68
  %v213 = vunpack.c.l.b16 %v69
  %v214 = vunpack.c.l.b16 %v70
  %v215 = vunpack.c.l.b16 %v71
  %v216 = vunpack.c.l.b16 %v72
  %v217 = vunpack.c.l.b16 %v73
  %v218 = vunpack.c.l.b16 %v74
  %v219 = vunpack.c.l.b16 %v75
  %v220 = vunpack.c.l.b16 %v76
  %v221 = vunpack.c.l.b16 %v77
  %v222 = vunpack.c.l.b16 %v78
  %v223 = vunpack.c.l.b16 %v79
  %v224 = vunpack.c.l.b16 %v80
  %v225 = vunpack.c.l.b16 %v81
  %v226 = vpack.c.b16 %v163, %v162
  %v227 = vpack.c.b16 %v165, %v164
  %v228 = vpack.c.b16 %v167, %v166
  %v229 = vpack.c.b16 %v169, %v168
  %v230 = vpack.c.b16 %v171, %v170
  %v231 = vpack.c.b16 %v173, %v172
  %v232 = vpack.c.b16 %v175, %v174
  %v233 = vpack.c.b16 %v177, %v176
  %v234 = vpack.c.b16 %v179, %v178
  %v235 = vpack.c.b16 %v181, %v180
  %v236 = vpack.c.b16 %v183, %v182
  %v237 = vpack.c.b16 %v185, %v184
  %v238 = vpack.c.b16 %v187, %v186
  %v239 = vpack.c.b16 %v189, %v188
  %v240 = vpack.c.b16 %v191, %v190
  %v241 = vpack.c.b16 %v193, %v192
  %v242 = vpack.c.b16 %v195, %v194
  %v243 = vpack.c.b16 %v197, %v196
  %v244 = vpack.c.b16 %v199, %v198
  %v245 = vpack.c.b16 %v201, %v200
  %v246 = vpack.c.b16 %v203, %v202
  %v247 = vpack.c.b16 %v205, %v204
  %v248 = vpack.c.b16 %v207, %v206
  %v249 = vpack.c.b16 %v209, %v208
  %v250 = vpack.c.b16 %v211, %v210
  %v251 = vpack.c.b16 %v213, %v212
  %v252 = vpack.c.b16 %v215, %v214
  %v253 = vpack.c.b16 %v217, %v216
  %v254 = vpack.c.b16 %v219, %v218
  %v255 = vpack.c.b16 %v221, %v220
  %v256 = vpack.c.b16 %v223, %v222
  %v257 = vpack.c.b16 %v225, %v224
  %v306 = vunpack.c.l.b16 %v82
  %v307 = vunpack.c.l.b16 %v83
  %v308 = vunpack.c.l.b16 %v84
  %v309 = vunpack.c.l.b16 %v85
  %v310 = vunpack.c.l.b16 %v86
  %v311 = vunpack.c.l.b16 %v87
  %v312 = vunpack.c.l.b16 %v88
  %v313 = vunpack.c.l.b16 %v89
  %v314 = vunpack.c.l.b16 %v90
  %v315 = vunpack.c.l.b16 %v91
  %v316 = vunpack.c.l.b16 %v92
  %v317 = vunpack.c.l.b16 %v93
  %v318 = vunpack.c.l.b16 %v94
  %v319 = vunpack.c.l.b16 %v95
  %v320 = vunpack.c.l.b16 %v96
  %v321 = vunpack.c.l.b16 %v97
  %v322 = vpack.c.b16 %v307, %v306
  %v323 = vpack.c.b16 %v309, %v308
  %v324 = vpack.c.b16 %v311, %v310
  %v325 = vpack.c.b16 %v313, %v312
  %v326 = vpack.c.b16 %v315, %v314
  %v327 = vpack.c.b16 %v317, %v316
  %v328 = vpack.c.b16 %v319, %v318
  %v329 = vpack.c.b16 %v321, %v320
  %338 = vmatprep.subr.bf16.mxu0 0
  %339 = vmatpush1.bf16.msra.mxu0 %v322
  %340 = vmatprep.subr.bf16.mxu0 0
  %341 = vmatpush1.bf16.msra.mxu0 %v323
  %342 = vmatprep.subr.bf16.mxu0 0
  %343 = vmatpush1.bf16.msra.mxu0 %v324
  %344 = vmatprep.subr.bf16.mxu0 0
  %345 = vmatpush1.bf16.msra.mxu0 %v325
  %346 = vmatprep.subr.bf16.mxu0 0
  %347 = vmatpush1.bf16.msra.mxu0 %v326
  %348 = vmatprep.subr.bf16.mxu0 0
  %349 = vmatpush1.bf16.msra.mxu0 %v327
  %350 = vmatprep.subr.bf16.mxu0 0
  %351 = vmatpush1.bf16.msra.mxu0 %v328
  %352 = vmatprep.subr.bf16.mxu0 0
  %353 = vmatpush1.bf16.msra.mxu0 %v329
  %354 = vmatprep.subr.bf16.mxu0 0
  %355 = vmatpush1.bf16.msra.mxu0 0
  %356 = vmatprep.subr.bf16.mxu0 0
  %357 = vmatpush1.bf16.msra.mxu0 0
  %358 = vmatprep.subr.bf16.mxu0 0
  %359 = vmatpush1.bf16.msra.mxu0 0
  %360 = vmatprep.subr.bf16.mxu0 0
  %361 = vmatpush1.bf16.msra.mxu0 0
  %362 = vmatprep.subr.bf16.mxu0 0
  %363 = vmatpush1.bf16.msra.mxu0 0
  %364 = vmatprep.subr.bf16.mxu0 0
  %365 = vmatpush1.bf16.msra.mxu0 0
  %366 = vmatprep.subr.bf16.mxu0 0
  %367 = vmatpush1.bf16.msra.mxu0 0
  %368 = vmatprep.subr.bf16.mxu0 0
  %369 = vmatpush1.bf16.msra.mxu0 0
  %370 = vmatprep.mubr.bf16.mxu0 0
  %371 = vmatmul.mubr.bf16.gmra.mrb[0].mxu0 %v226
  %v372 = vpop.f32.mrb[0].mxu0
  %v373 = vadd.f32 0.0, %v372
  %v374 = vpop.f32.mrb[0].mxu0
  %v375 = vpop.f32.mrb[0].mxu0
  %v376 = vadd.f32 0.0, %v375
  %v377 = vpop.f32.mrb[0].mxu0
  %378 = vmatprep.mubr.bf16.mxu0 0
  %379 = vmatmul.mubr.bf16.gmra.mrb[0].mxu0 %v227
  %v380 = vpop.f32.mrb[0].mxu0
  %v381 = vadd.f32 0.0, %v380
  %v382 = vpop.f32.mrb[0].mxu0
  %v383 = vpop.f32.mrb[0].mxu0
  %v384 = vadd.f32 0.0, %v383
  %v385 = vpop.f32.mrb[0].mxu0
  %386 = vmatprep.mubr.bf16.mxu0 0
  %387 = vmatmul.mubr.bf16.gmra.mrb[0].mxu0 %v228
  %v388 = vpop.f32.mrb[0].mxu0
  %v389 = vadd.f32 0.0, %v388
  %v390 = vpop.f32.mrb[0].mxu0
  %v391 = vpop.f32.mrb[0].mxu0
  %v392 = vadd.f32 0.0, %v391
  %v393 = vpop.f32.mrb[0].mxu0
  %394 = vmatprep.mubr.bf16.mxu0 0
  %395 = vmatmul.mubr.bf16.gmra.mrb[0].mxu0 %v229
  %v396 = vpop.f32.mrb[0].mxu0
  %v397 = vadd.f32 0.0, %v396
  %v398 = vpop.f32.mrb[0].mxu0
  %v399 = vpop.f32.mrb[0].mxu0
  %v400 = vadd.f32 0.0, %v399
  %v401 = vpop.f32.mrb[0].mxu0
  %402 = vmatprep.mubr.bf16.mxu0 0
  %403 = vmatmul.mubr.bf16.gmra.mrb[0].mxu0 %v230
  %v404 = vpop.f32.mrb[0].mxu0
  %v405 = vadd.f32 0.0, %v404
  %v406 = vpop.f32.mrb[0].mxu0
  %v407 = vpop.f32.mrb[0].mxu0
  %v408 = vadd.f32 0.0, %v407
  %v409 = vpop.f32.mrb[0].mxu0
  %410 = vmatprep.mubr.bf16.mxu0 0
  %411 = vmatmul.mubr.bf16.gmra.mrb[0].mxu0 %v231
  %v412 = vpop.f32.mrb[0].mxu0
  %v413 = vadd.f32 0.0, %v412
  %v414 = vpop.f32.mrb[0].mxu0
  %v415 = vpop.f32.mrb[0].mxu0
  %v416 = vadd.f32 0.0, %v415
  %v417 = vpop.f32.mrb[0].mxu0
  %418 = vmatprep.mubr.bf16.mxu0 0
  %419 = vmatmul.mubr.bf16.gmra.mrb[0].mxu0 %v232
  %v420 = vpop.f32.mrb[0].mxu0
  %v421 = vadd.f32 0.0, %v420
  %v422 = vpop.f32.mrb[0].mxu0
  %v423 = vpop.f32.mrb[0].mxu0
  %v424 = vadd.f32 0.0, %v423
  %v425 = vpop.f32.mrb[0].mxu0
  %426 = vmatprep.mubr.bf16.mxu0 0
  %427 = vmatmul.mubr.bf16.gmra.mrb[0].mxu0 %v233
  %v428 = vpop.f32.mrb[0].mxu0
  %v429 = vadd.f32 0.0, %v428
  %v430 = vpop.f32.mrb[0].mxu0
  %v431 = vpop.f32.mrb[0].mxu0
  %v432 = vadd.f32 0.0, %v431
  %v433 = vpop.f32.mrb[0].mxu0
  %434 = vmatprep.mubr.bf16.mxu0 0
  %435 = vmatmul.mubr.bf16.gmra.mrb[0].mxu0 %v234
  %v436 = vpop.f32.mrb[0].mxu0
  %v437 = vadd.f32 0.0, %v436
  %v438 = vpop.f32.mrb[0].mxu0
  %v439 = vpop.f32.mrb[0].mxu0
  %v440 = vadd.f32 0.0, %v439
  %v441 = vpop.f32.mrb[0].mxu0
  %442 = vmatprep.mubr.bf16.mxu0 0
  %443 = vmatmul.mubr.bf16.gmra.mrb[0].mxu0 %v235
  %v444 = vpop.f32.mrb[0].mxu0
  %v445 = vadd.f32 0.0, %v444
  %v446 = vpop.f32.mrb[0].mxu0
  %v447 = vpop.f32.mrb[0].mxu0
  %v448 = vadd.f32 0.0, %v447
  %v449 = vpop.f32.mrb[0].mxu0
  %450 = vmatprep.mubr.bf16.mxu0 0
  %451 = vmatmul.mubr.bf16.gmra.mrb[0].mxu0 %v236
  %v452 = vpop.f32.mrb[0].mxu0
  %v453 = vadd.f32 0.0, %v452
  %v454 = vpop.f32.mrb[0].mxu0
  %v455 = vpop.f32.mrb[0].mxu0
  %v456 = vadd.f32 0.0, %v455
  %v457 = vpop.f32.mrb[0].mxu0
  %458 = vmatprep.mubr.bf16.mxu0 0
  %459 = vmatmul.mubr.bf16.gmra.mrb[0].mxu0 %v237
  %v460 = vpop.f32.mrb[0].mxu0
  %v461 = vadd.f32 0.0, %v460
  %v462 = vpop.f32.mrb[0].mxu0
  %v463 = vpop.f32.mrb[0].mxu0
  %v464 = vadd.f32 0.0, %v463
  %v465 = vpop.f32.mrb[0].mxu0
  %466 = vmatprep.mubr.bf16.mxu0 0
  %467 = vmatmul.mubr.bf16.gmra.mrb[0].mxu0 %v238
  %v468 = vpop.f32.mrb[0].mxu0
  %v469 = vadd.f32 0.0, %v468
  %v470 = vpop.f32.mrb[0].mxu0
  %v471 = vpop.f32.mrb[0].mxu0
  %v472 = vadd.f32 0.0, %v471
  %v473 = vpop.f32.mrb[0].mxu0
  %474 = vmatprep.mubr.bf16.mxu0 0
  %475 = vmatmul.mubr.bf16.gmra.mrb[0].mxu0 %v239
  %v476 = vpop.f32.mrb[0].mxu0
  %v477 = vadd.f32 0.0, %v476
  %v478 = vpop.f32.mrb[0].mxu0
  %v479 = vpop.f32.mrb[0].mxu0
  %v480 = vadd.f32 0.0, %v479
  %v481 = vpop.f32.mrb[0].mxu0
  %482 = vmatprep.mubr.bf16.mxu0 0
  %483 = vmatmul.mubr.bf16.gmra.mrb[0].mxu0 %v240
  %v484 = vpop.f32.mrb[0].mxu0
  %v485 = vadd.f32 0.0, %v484
  %v486 = vpop.f32.mrb[0].mxu0
  %v487 = vpop.f32.mrb[0].mxu0
  %v488 = vadd.f32 0.0, %v487
  %v489 = vpop.f32.mrb[0].mxu0
  %490 = vmatprep.mubr.bf16.mxu0 0
  %491 = vmatmul.mubr.bf16.gmra.mrb[0].mxu0 %v241
  %v492 = vpop.f32.mrb[0].mxu0
  %v493 = vadd.f32 0.0, %v492
  %v494 = vpop.f32.mrb[0].mxu0
  %v495 = vpop.f32.mrb[0].mxu0
  %v496 = vadd.f32 0.0, %v495
  %v497 = vpop.f32.mrb[0].mxu0
  %498 = vmatprep.mubr.bf16.mxu0 0
  %499 = vmatmul.mubr.bf16.gmra.mrb[0].mxu0 %v242
  %v500 = vpop.f32.mrb[0].mxu0
  %v501 = vadd.f32 0.0, %v500
  %v502 = vpop.f32.mrb[0].mxu0
  %v503 = vpop.f32.mrb[0].mxu0
  %v504 = vadd.f32 0.0, %v503
  %v505 = vpop.f32.mrb[0].mxu0
  %506 = vmatprep.mubr.bf16.mxu0 0
  %507 = vmatmul.mubr.bf16.gmra.mrb[0].mxu0 %v243
  %v508 = vpop.f32.mrb[0].mxu0
  %v509 = vadd.f32 0.0, %v508
  %v510 = vpop.f32.mrb[0].mxu0
  %v511 = vpop.f32.mrb[0].mxu0
  %v512 = vadd.f32 0.0, %v511
  %v513 = vpop.f32.mrb[0].mxu0
  %514 = vmatprep.mubr.bf16.mxu0 0
  %515 = vmatmul.mubr.bf16.gmra.mrb[0].mxu0 %v244
  %v516 = vpop.f32.mrb[0].mxu0
  %v517 = vadd.f32 0.0, %v516
  %v518 = vpop.f32.mrb[0].mxu0
  %v519 = vpop.f32.mrb[0].mxu0
  %v520 = vadd.f32 0.0, %v519
  %v521 = vpop.f32.mrb[0].mxu0
  %522 = vmatprep.mubr.bf16.mxu0 0
  %523 = vmatmul.mubr.bf16.gmra.mrb[0].mxu0 %v245
  %v524 = vpop.f32.mrb[0].mxu0
  %v525 = vadd.f32 0.0, %v524
  %v526 = vpop.f32.mrb[0].mxu0
  %v527 = vpop.f32.mrb[0].mxu0
  %v528 = vadd.f32 0.0, %v527
  %v529 = vpop.f32.mrb[0].mxu0
  %530 = vmatprep.mubr.bf16.mxu0 0
  %531 = vmatmul.mubr.bf16.gmra.mrb[0].mxu0 %v246
  %v532 = vpop.f32.mrb[0].mxu0
  %v533 = vadd.f32 0.0, %v532
  %v534 = vpop.f32.mrb[0].mxu0
  %v535 = vpop.f32.mrb[0].mxu0
  %v536 = vadd.f32 0.0, %v535
  %v537 = vpop.f32.mrb[0].mxu0
  %538 = vmatprep.mubr.bf16.mxu0 0
  %539 = vmatmul.mubr.bf16.gmra.mrb[0].mxu0 %v247
  %v540 = vpop.f32.mrb[0].mxu0
  %v541 = vadd.f32 0.0, %v540
  %v542 = vpop.f32.mrb[0].mxu0
  %v543 = vpop.f32.mrb[0].mxu0
  %v544 = vadd.f32 0.0, %v543
  %v545 = vpop.f32.mrb[0].mxu0
  %546 = vmatprep.mubr.bf16.mxu0 0
  %547 = vmatmul.mubr.bf16.gmra.mrb[0].mxu0 %v248
  %v548 = vpop.f32.mrb[0].mxu0
  %v549 = vadd.f32 0.0, %v548
  %v550 = vpop.f32.mrb[0].mxu0
  %v551 = vpop.f32.mrb[0].mxu0
  %v552 = vadd.f32 0.0, %v551
  %v553 = vpop.f32.mrb[0].mxu0
  %554 = vmatprep.mubr.bf16.mxu0 0
  %555 = vmatmul.mubr.bf16.gmra.mrb[0].mxu0 %v249
  %v556 = vpop.f32.mrb[0].mxu0
  %v557 = vadd.f32 0.0, %v556
  %v558 = vpop.f32.mrb[0].mxu0
  %v559 = vpop.f32.mrb[0].mxu0
  %v560 = vadd.f32 0.0, %v559
  %v561 = vpop.f32.mrb[0].mxu0
  %562 = vmatprep.mubr.bf16.mxu0 0
  %563 = vmatmul.mubr.bf16.gmra.mrb[0].mxu0 %v250
  %v564 = vpop.f32.mrb[0].mxu0
  %v565 = vadd.f32 0.0, %v564
  %v566 = vpop.f32.mrb[0].mxu0
  %v567 = vpop.f32.mrb[0].mxu0
  %v568 = vadd.f32 0.0, %v567
  %v569 = vpop.f32.mrb[0].mxu0
  %570 = vmatprep.mubr.bf16.mxu0 0
  %571 = vmatmul.mubr.bf16.gmra.mrb[0].mxu0 %v251
  %v572 = vpop.f32.mrb[0].mxu0
  %v573 = vadd.f32 0.0, %v572
  %v574 = vpop.f32.mrb[0].mxu0
  %v575 = vpop.f32.mrb[0].mxu0
  %v576 = vadd.f32 0.0, %v575
  %v577 = vpop.f32.mrb[0].mxu0
  %578 = vmatprep.mubr.bf16.mxu0 0
  %579 = vmatmul.mubr.bf16.gmra.mrb[0].mxu0 %v252
  %v580 = vpop.f32.mrb[0].mxu0
  %v581 = vadd.f32 0.0, %v580
  %v582 = vpop.f32.mrb[0].mxu0
  %v583 = vpop.f32.mrb[0].mxu0
  %v584 = vadd.f32 0.0, %v583
  %v585 = vpop.f32.mrb[0].mxu0
  %586 = vmatprep.mubr.bf16.mxu0 0
  %587 = vmatmul.mubr.bf16.gmra.mrb[0].mxu0 %v253
  %v588 = vpop.f32.mrb[0].mxu0
  %v589 = vadd.f32 0.0, %v588
  %v590 = vpop.f32.mrb[0].mxu0
  %v591 = vpop.f32.mrb[0].mxu0
  %v592 = vadd.f32 0.0, %v591
  %v593 = vpop.f32.mrb[0].mxu0
  %594 = vmatprep.mubr.bf16.mxu0 0
  %595 = vmatmul.mubr.bf16.gmra.mrb[0].mxu0 %v254
  %v596 = vpop.f32.mrb[0].mxu0
  %v597 = vadd.f32 0.0, %v596
  %v598 = vpop.f32.mrb[0].mxu0
  %v599 = vpop.f32.mrb[0].mxu0
  %v600 = vadd.f32 0.0, %v599
  %v601 = vpop.f32.mrb[0].mxu0
  %602 = vmatprep.mubr.bf16.mxu0 0
  %603 = vmatmul.mubr.bf16.gmra.mrb[0].mxu0 %v255
  %v604 = vpop.f32.mrb[0].mxu0
  %v605 = vadd.f32 0.0, %v604
  %v606 = vpop.f32.mrb[0].mxu0
  %v607 = vpop.f32.mrb[0].mxu0
  %v608 = vadd.f32 0.0, %v607
  %v609 = vpop.f32.mrb[0].mxu0
  %610 = vmatprep.mubr.bf16.mxu0 0
  %611 = vmatmul.mubr.bf16.gmra.mrb[0].mxu0 %v256
  %v612 = vpop.f32.mrb[0].mxu0
  %v613 = vadd.f32 0.0, %v612
  %v614 = vpop.f32.mrb[0].mxu0
  %v615 = vpop.f32.mrb[0].mxu0
  %v616 = vadd.f32 0.0, %v615
  %v617 = vpop.f32.mrb[0].mxu0
  %618 = vmatprep.mubr.bf16.mxu0 0
  %619 = vmatmul.mubr.bf16.gmra.mrb[0].mxu0 %v257
  %v620 = vpop.f32.mrb[0].mxu0
  %v621 = vadd.f32 0.0, %v620
  %v622 = vpop.f32.mrb[0].mxu0
  %v623 = vpop.f32.mrb[0].mxu0
  %v624 = vadd.f32 0.0, %v623
  %v625 = vpop.f32.mrb[0].mxu0
  %626 = vdwg.mxu0
  %v627 = vld [vmem:[%s2] sm:$0x1]
  %v629 = vlaneseq
  %v630 = vshrl.u32 %v629, 7
  %v631 = vsub.s32 0, %v630
  %v632 = vrot.slane %v627, %v631
  %v634 = vmul.f32 %v373, %v632
  %v635 = vmul.f32 %v376, %v632
  %v636 = vmul.f32 %v381, %v632
  %v637 = vmul.f32 %v384, %v632
  %v638 = vmul.f32 %v389, %v632
  %v639 = vmul.f32 %v392, %v632
  %v640 = vmul.f32 %v397, %v632
  %v641 = vmul.f32 %v400, %v632
  %v642 = vmul.f32 %v405, %v632
  %v643 = vmul.f32 %v408, %v632
  %v644 = vmul.f32 %v413, %v632
  %v645 = vmul.f32 %v416, %v632
  %v646 = vmul.f32 %v421, %v632
  %v647 = vmul.f32 %v424, %v632
  %v648 = vmul.f32 %v429, %v632
  %v649 = vmul.f32 %v432, %v632
  %v650 = vmul.f32 %v437, %v632
  %v651 = vmul.f32 %v440, %v632
  %v652 = vmul.f32 %v445, %v632
  %v653 = vmul.f32 %v448, %v632
  %v654 = vmul.f32 %v453, %v632
  %v655 = vmul.f32 %v456, %v632
  %v656 = vmul.f32 %v461, %v632
  %v657 = vmul.f32 %v464, %v632
  %v658 = vmul.f32 %v469, %v632
  %v659 = vmul.f32 %v472, %v632
  %v660 = vmul.f32 %v477, %v632
  %v661 = vmul.f32 %v480, %v632
  %v662 = vmul.f32 %v485, %v632
  %v663 = vmul.f32 %v488, %v632
  %v664 = vmul.f32 %v493, %v632
  %v665 = vmul.f32 %v496, %v632
  %v666 = vmul.f32 %v501, %v632
  %v667 = vmul.f32 %v504, %v632
  %v668 = vmul.f32 %v509, %v632
  %v669 = vmul.f32 %v512, %v632
  %v670 = vmul.f32 %v517, %v632
  %v671 = vmul.f32 %v520, %v632
  %v672 = vmul.f32 %v525, %v632
  %v673 = vmul.f32 %v528, %v632
  %v674 = vmul.f32 %v533, %v632
  %v675 = vmul.f32 %v536, %v632
  %v676 = vmul.f32 %v541, %v632
  %v677 = vmul.f32 %v544, %v632
  %v678 = vmul.f32 %v549, %v632
  %v679 = vmul.f32 %v552, %v632
  %v680 = vmul.f32 %v557, %v632
  %v681 = vmul.f32 %v560, %v632
  %v682 = vmul.f32 %v565, %v632
  %v683 = vmul.f32 %v568, %v632
  %v684 = vmul.f32 %v573, %v632
  %v685 = vmul.f32 %v576, %v632
  %v686 = vmul.f32 %v581, %v632
  %v687 = vmul.f32 %v584, %v632
  %v688 = vmul.f32 %v589, %v632
  %v689 = vmul.f32 %v592, %v632
  %v690 = vmul.f32 %v597, %v632
  %v691 = vmul.f32 %v600, %v632
  %v692 = vmul.f32 %v605, %v632
  %v693 = vmul.f32 %v608, %v632
  %v694 = vmul.f32 %v613, %v632
  %v695 = vmul.f32 %v616, %v632
  %v696 = vmul.f32 %v621, %v632
  %v697 = vmul.f32 %v624, %v632
  %v698 = vld [vmem:[%s3] sm:$0x1]
  %v700 = vlaneseq
  %v701 = vshrl.u32 %v700, 7
  %v702 = vsub.s32 0, %v701
  %v703 = vrot.slane %v698, %v702
  %v705 = vadd.f32 %v634, %v703
  %v706 = vadd.f32 %v635, %v703
  %v707 = vadd.f32 %v636, %v703
  %v708 = vadd.f32 %v637, %v703
  %v709 = vadd.f32 %v638, %v703
  %v710 = vadd.f32 %v639, %v703
  %v711 = vadd.f32 %v640, %v703
  %v712 = vadd.f32 %v641, %v703
  %v713 = vadd.f32 %v642, %v703
  %v714 = vadd.f32 %v643, %v703
  %v715 = vadd.f32 %v644, %v703
  %v716 = vadd.f32 %v645, %v703
  %v717 = vadd.f32 %v646, %v703
  %v718 = vadd.f32 %v647, %v703
  %v719 = vadd.f32 %v648, %v703
  %v720 = vadd.f32 %v649, %v703
  %v721 = vadd.f32 %v650, %v703
  %v722 = vadd.f32 %v651, %v703
  %v723 = vadd.f32 %v652, %v703
  %v724 = vadd.f32 %v653, %v703
  %v725 = vadd.f32 %v654, %v703
  %v726 = vadd.f32 %v655, %v703
  %v727 = vadd.f32 %v656, %v703
  %v728 = vadd.f32 %v657, %v703
  %v729 = vadd.f32 %v658, %v703
  %v730 = vadd.f32 %v659, %v703
  %v731 = vadd.f32 %v660, %v703
  %v732 = vadd.f32 %v661, %v703
  %v733 = vadd.f32 %v662, %v703
  %v734 = vadd.f32 %v663, %v703
  %v735 = vadd.f32 %v664, %v703
  %v736 = vadd.f32 %v665, %v703
  %v737 = vadd.f32 %v666, %v703
  %v738 = vadd.f32 %v667, %v703
  %v739 = vadd.f32 %v668, %v703
  %v740 = vadd.f32 %v669, %v703
  %v741 = vadd.f32 %v670, %v703
  %v742 = vadd.f32 %v671, %v703
  %v743 = vadd.f32 %v672, %v703
  %v744 = vadd.f32 %v673, %v703
  %v745 = vadd.f32 %v674, %v703
  %v746 = vadd.f32 %v675, %v703
  %v747 = vadd.f32 %v676, %v703
  %v748 = vadd.f32 %v677, %v703
  %v749 = vadd.f32 %v678, %v703
  %v750 = vadd.f32 %v679, %v703
  %v751 = vadd.f32 %v680, %v703
  %v752 = vadd.f32 %v681, %v703
  %v753 = vadd.f32 %v682, %v703
  %v754 = vadd.f32 %v683, %v703
  %v755 = vadd.f32 %v684, %v703
  %v756 = vadd.f32 %v685, %v703
  %v757 = vadd.f32 %v686, %v703
  %v758 = vadd.f32 %v687, %v703
  %v759 = vadd.f32 %v688, %v703
  %v760 = vadd.f32 %v689, %v703
  %v761 = vadd.f32 %v690, %v703
  %v762 = vadd.f32 %v691, %v703
  %v763 = vadd.f32 %v692, %v703
  %v764 = vadd.f32 %v693, %v703
  %v765 = vadd.f32 %v694, %v703
  %v766 = vadd.f32 %v695, %v703
  %v767 = vadd.f32 %v696, %v703
  %v768 = vadd.f32 %v697, %v703
  %v769 = vmax.f32 %v705, 0.0
  %v770 = vmax.f32 %v706, 0.0
  %v771 = vmax.f32 %v707, 0.0
  %v772 = vmax.f32 %v708, 0.0
  %v773 = vmax.f32 %v709, 0.0
  %v774 = vmax.f32 %v710, 0.0
  %v775 = vmax.f32 %v711, 0.0
  %v776 = vmax.f32 %v712, 0.0
  %v777 = vmax.f32 %v713, 0.0
  %v778 = vmax.f32 %v714, 0.0
  %v779 = vmax.f32 %v715, 0.0
  %v780 = vmax.f32 %v716, 0.0
  %v781 = vmax.f32 %v717, 0.0
  %v782 = vmax.f32 %v718, 0.0
  %v783 = vmax.f32 %v719, 0.0
  %v784 = vmax.f32 %v720, 0.0
  %v785 = vmax.f32 %v721, 0.0
  %v786 = vmax.f32 %v722, 0.0
  %v787 = vmax.f32 %v723, 0.0
  %v788 = vmax.f32 %v724, 0.0
  %v789 = vmax.f32 %v725, 0.0
  %v790 = vmax.f32 %v726, 0.0
  %v791 = vmax.f32 %v727, 0.0
  %v792 = vmax.f32 %v728, 0.0
  %v793 = vmax.f32 %v729, 0.0
  %v794 = vmax.f32 %v730, 0.0
  %v795 = vmax.f32 %v731, 0.0
  %v796 = vmax.f32 %v732, 0.0
  %v797 = vmax.f32 %v733, 0.0
  %v798 = vmax.f32 %v734, 0.0
  %v799 = vmax.f32 %v735, 0.0
  %v800 = vmax.f32 %v736, 0.0
  %v801 = vmax.f32 %v737, 0.0
  %v802 = vmax.f32 %v738, 0.0
  %v803 = vmax.f32 %v739, 0.0
  %v804 = vmax.f32 %v740, 0.0
  %v805 = vmax.f32 %v741, 0.0
  %v806 = vmax.f32 %v742, 0.0
  %v807 = vmax.f32 %v743, 0.0
  %v808 = vmax.f32 %v744, 0.0
  %v809 = vmax.f32 %v745, 0.0
  %v810 = vmax.f32 %v746, 0.0
  %v811 = vmax.f32 %v747, 0.0
  %v812 = vmax.f32 %v748, 0.0
  %v813 = vmax.f32 %v749, 0.0
  %v814 = vmax.f32 %v750, 0.0
  %v815 = vmax.f32 %v751, 0.0
  %v816 = vmax.f32 %v752, 0.0
  %v817 = vmax.f32 %v753, 0.0
  %v818 = vmax.f32 %v754, 0.0
  %v819 = vmax.f32 %v755, 0.0
  %v820 = vmax.f32 %v756, 0.0
  %v821 = vmax.f32 %v757, 0.0
  %v822 = vmax.f32 %v758, 0.0
  %v823 = vmax.f32 %v759, 0.0
  %v824 = vmax.f32 %v760, 0.0
  %v825 = vmax.f32 %v761, 0.0
  %v826 = vmax.f32 %v762, 0.0
  %v827 = vmax.f32 %v763, 0.0
  %v828 = vmax.f32 %v764, 0.0
  %v829 = vmax.f32 %v765, 0.0
  %v830 = vmax.f32 %v766, 0.0
  %v831 = vmax.f32 %v767, 0.0
  %v832 = vmax.f32 %v768, 0.0
  %833 = vst [vmem:[%s4] sm:$0xff] %v769
  %834 = vst [vmem:[%s4 + $0x8] sm:$0xff] %v770
  %835 = vst [vmem:[%s4 + $0x10] sm:$0xff] %v771
  %836 = vst [vmem:[%s4 + $0x18] sm:$0xff] %v772
  %837 = vst [vmem:[%s4 + $0x20] sm:$0xff] %v773
  %838 = vst [vmem:[%s4 + $0x28] sm:$0xff] %v774
  %839 = vst [vmem:[%s4 + $0x30] sm:$0xff] %v775
  %840 = vst [vmem:[%s4 + $0x38] sm:$0xff] %v776
  %841 = vst [vmem:[%s4 + $0x40] sm:$0xff] %v777
  %842 = vst [vmem:[%s4 + $0x48] sm:$0xff] %v778
  %843 = vst [vmem:[%s4 + $0x50] sm:$0xff] %v779
  %844 = vst [vmem:[%s4 + $0x58] sm:$0xff] %v780
  %845 = vst [vmem:[%s4 + $0x60] sm:$0xff] %v781
  %846 = vst [vmem:[%s4 + $0x68] sm:$0xff] %v782
  %847 = vst [vmem:[%s4 + $0x70] sm:$0xff] %v783
  %848 = vst [vmem:[%s4 + $0x78] sm:$0xff] %v784
  %849 = vst [vmem:[%s4 + $0x80] sm:$0xff] %v785
  %850 = vst [vmem:[%s4 + $0x88] sm:$0xff] %v786
  %851 = vst [vmem:[%s4 + $0x90] sm:$0xff] %v787
  %852 = vst [vmem:[%s4 + $0x98] sm:$0xff] %v788
  %853 = vst [vmem:[%s4 + $0xa0] sm:$0xff] %v789
  %854 = vst [vmem:[%s4 + $0xa8] sm:$0xff] %v790
  %855 = vst [vmem:[%s4 + $0xb0] sm:$0xff] %v791
  %856 = vst [vmem:[%s4 + $0xb8] sm:$0xff] %v792
  %857 = vst [vmem:[%s4 + $0xc0] sm:$0xff] %v793
  %858 = vst [vmem:[%s4 + $0xc8] sm:$0xff] %v794
  %859 = vst [vmem:[%s4 + $0xd0] sm:$0xff] %v795
  %860 = vst [vmem:[%s4 + $0xd8] sm:$0xff] %v796
  %861 = vst [vmem:[%s4 + $0xe0] sm:$0xff] %v797
  %862 = vst [vmem:[%s4 + $0xe8] sm:$0xff] %v798
  %863 = vst [vmem:[%s4 + $0xf0] sm:$0xff] %v799
  %864 = vst [vmem:[%s4 + $0xf8] sm:$0xff] %v800
  %865 = vst [vmem:[%s4 + $0x100] sm:$0xff] %v801
  %866 = vst [vmem:[%s4 + $0x108] sm:$0xff] %v802
  %867 = vst [vmem:[%s4 + $0x110] sm:$0xff] %v803
  %868 = vst [vmem:[%s4 + $0x118] sm:$0xff] %v804
  %869 = vst [vmem:[%s4 + $0x120] sm:$0xff] %v805
  %870 = vst [vmem:[%s4 + $0x128] sm:$0xff] %v806
  %871 = vst [vmem:[%s4 + $0x130] sm:$0xff] %v807
  %872 = vst [vmem:[%s4 + $0x138] sm:$0xff] %v808
  %873 = vst [vmem:[%s4 + $0x140] sm:$0xff] %v809
  %874 = vst [vmem:[%s4 + $0x148] sm:$0xff] %v810
  %875 = vst [vmem:[%s4 + $0x150] sm:$0xff] %v811
  %876 = vst [vmem:[%s4 + $0x158] sm:$0xff] %v812
  %877 = vst [vmem:[%s4 + $0x160] sm:$0xff] %v813
  %878 = vst [vmem:[%s4 + $0x168] sm:$0xff] %v814
  %879 = vst [vmem:[%s4 + $0x170] sm:$0xff] %v815
  %880 = vst [vmem:[%s4 + $0x178] sm:$0xff] %v816
  %881 = vst [vmem:[%s4 + $0x180] sm:$0xff] %v817
  %882 = vst [vmem:[%s4 + $0x188] sm:$0xff] %v818
  %883 = vst [vmem:[%s4 + $0x190] sm:$0xff] %v819
  %884 = vst [vmem:[%s4 + $0x198] sm:$0xff] %v820
  %885 = vst [vmem:[%s4 + $0x1a0] sm:$0xff] %v821
  %886 = vst [vmem:[%s4 + $0x1a8] sm:$0xff] %v822
  %887 = vst [vmem:[%s4 + $0x1b0] sm:$0xff] %v823
  %888 = vst [vmem:[%s4 + $0x1b8] sm:$0xff] %v824
  %889 = vst [vmem:[%s4 + $0x1c0] sm:$0xff] %v825
  %890 = vst [vmem:[%s4 + $0x1c8] sm:$0xff] %v826
  %891 = vst [vmem:[%s4 + $0x1d0] sm:$0xff] %v827
  %892 = vst [vmem:[%s4 + $0x1d8] sm:$0xff] %v828
  %893 = vst [vmem:[%s4 + $0x1e0] sm:$0xff] %v829
  %894 = vst [vmem:[%s4 + $0x1e8] sm:$0xff] %v830
  %895 = vst [vmem:[%s4 + $0x1f0] sm:$0xff] %v831
  %896 = vst [vmem:[%s4 + $0x1f8] sm:$0xff] %v832
  // Predicated region
  $region18: #{cam_forward.21} parent=0 // pred_check
    _
  $region19: #{cam_forward.21} parent=0 // pred_check_branch
    %898 = sbr.rel (0) target = $region21
  $region20: #{cam_forward.21} parent=0 // pred_region
    _
  $region21: #{cam_forward.21} parent=0 // pred_fallthru
    _
  // Predicated region
  $region22: #{cam_forward.21} parent=0 // pred_check
    _
  $region23: #{cam_forward.21} parent=0 // pred_check_branch
    %900 = sbr.rel (0) target = $region25
  $region24: #{cam_forward.21} parent=0 // pred_region
    _
  $region25: #{cam_forward.21} parent=0 // pred_fallthru
    _

// kernel: cam_forward.22
$region0: #{cam_forward.22}
  #allocation0 [shape = 'u32[]', space=smem, size = 0x4, offset = 0x4, fixed_abs, tag = 'smem constant byte address 0x4 - core index']
  #allocation1 [shape = 'u32[144,128]{1,0:T(1,128)}', space=vmem, size = 0x12000, scoped, tag = 'internal scratch']
  %s0 = inlined_call_operand.vmem [shape: bf16[512,128], index: 0, kind: input, shape index: {}]
  %s1 = inlined_call_operand.vmem [shape: bf16[128,128], index: 1, kind: input, shape index: {}]
  %s2 = inlined_call_operand.vmem [shape: f32[1,128], index: 2, kind: input, shape index: {}]
  %s3 = inlined_call_operand.vmem [shape: f32[1,128], index: 3, kind: input, shape index: {}]
  %s4 = inlined_call_operand.vmem [shape: f32[512,128], index: 4, kind: input, shape index: {}]
  %s5 = inlined_call_operand.vmem [shape: f32[512,128], index: 5, kind: output, shape index: {}]
  %s6 = sld [smem:[#allocation0]]
  $region30: #{cam_forward.22} parent=0
    _
  %s8 = ssub.s32 1, %s6
  %s9 = scalar_select 0, %s8, %s6
  // Predicated region
  $region2: #{cam_forward.22} parent=0 // pred_check
    _
  $region3: #{cam_forward.22} parent=0 // pred_check_branch
    %11 = sbr.rel (0) target = $region5
  $region4: #{cam_forward.22} parent=0 // pred_region
    _
  $region5: #{cam_forward.22} parent=0 // pred_fallthru
    _
  // Predicated region
  $region6: #{cam_forward.22} parent=0 // pred_check
    _
  $region7: #{cam_forward.22} parent=0 // pred_check_branch
    %13 = sbr.rel (0) target = $region9
  $region8: #{cam_forward.22} parent=0 // pred_region
    _
  $region9: #{cam_forward.22} parent=0 // pred_fallthru
    _
  // Predicated region
  $region10: #{cam_forward.22} parent=0 // pred_check
    _
  $region11: #{cam_forward.22} parent=0 // pred_check_branch
    %15 = sbr.rel (0) target = $region13
  $region12: #{cam_forward.22} parent=0 // pred_region
    _
  $region13: #{cam_forward.22} parent=0 // pred_fallthru
    _
  // Predicated region
  $region14: #{cam_forward.22} parent=0 // pred_check
    _
  $region15: #{cam_forward.22} parent=0 // pred_check_branch
    %17 = sbr.rel (0) target = $region17
  $region16: #{cam_forward.22} parent=0 // pred_region
    _
  $region17: #{cam_forward.22} parent=0 // pred_fallthru
    _
  // Predicated region
  $region18: #{cam_forward.22} parent=0 // pred_check
    _
  $region19: #{cam_forward.22} parent=0 // pred_check_branch
    %19 = sbr.rel (0) target = $region21
  $region20: #{cam_forward.22} parent=0 // pred_region
    _
  $region21: #{cam_forward.22} parent=0 // pred_fallthru
    _
  %v21 = vld [vmem:[%s0] sm:$0xf]
  %v22 = vld [vmem:[%s0 + $0x4] sm:$0xf]
  %v23 = vld [vmem:[%s0 + $0x8] sm:$0xf]
  %v24 = vld [vmem:[%s0 + $0xc] sm:$0xf]
  %v25 = vld [vmem:[%s0 + $0x10] sm:$0xf]
  %v26 = vld [vmem:[%s0 + $0x14] sm:$0xf]
  %v27 = vld [vmem:[%s0 + $0x18] sm:$0xf]
  %v28 = vld [vmem:[%s0 + $0x1c] sm:$0xf]
  %v29 = vld [vmem:[%s0 + $0x20] sm:$0xf]
  %v30 = vld [vmem:[%s0 + $0x24] sm:$0xf]
  %v31 = vld [vmem:[%s0 + $0x28] sm:$0xf]
  %v32 = vld [vmem:[%s0 + $0x2c] sm:$0xf]
  %v33 = vld [vmem:[%s0 + $0x30] sm:$0xf]
  %v34 = vld [vmem:[%s0 + $0x34] sm:$0xf]
  %v35 = vld [vmem:[%s0 + $0x38] sm:$0xf]
  %v36 = vld [vmem:[%s0 + $0x3c] sm:$0xf]
  %v37 = vld [vmem:[%s0 + $0x40] sm:$0xf]
  %v38 = vld [vmem:[%s0 + $0x44] sm:$0xf]
  %v39 = vld [vmem:[%s0 + $0x48] sm:$0xf]
  %v40 = vld [vmem:[%s0 + $0x4c] sm:$0xf]
  %v41 = vld [vmem:[%s0 + $0x50] sm:$0xf]
  %v42 = vld [vmem:[%s0 + $0x54] sm:$0xf]
  %v43 = vld [vmem:[%s0 + $0x58] sm:$0xf]
  %v44 = vld [vmem:[%s0 + $0x5c] sm:$0xf]
  %v45 = vld [vmem:[%s0 + $0x60] sm:$0xf]
  %v46 = vld [vmem:[%s0 + $0x64] sm:$0xf]
  %v47 = vld [vmem:[%s0 + $0x68] sm:$0xf]
  %v48 = vld [vmem:[%s0 + $0x6c] sm:$0xf]
  %v49 = vld [vmem:[%s0 + $0x70] sm:$0xf]
  %v50 = vld [vmem:[%s0 + $0x74] sm:$0xf]
  %v51 = vld [vmem:[%s0 + $0x78] sm:$0xf]
  %v52 = vld [vmem:[%s0 + $0x7c] sm:$0xf]
  %v53 = vld [vmem:[%s0 + $0x80] sm:$0xf]
  %v54 = vld [vmem:[%s0 + $0x84] sm:$0xf]
  %v55 = vld [vmem:[%s0 + $0x88] sm:$0xf]
  %v56 = vld [vmem:[%s0 + $0x8c] sm:$0xf]
  %v57 = vld [vmem:[%s0 + $0x90] sm:$0xf]
  %v58 = vld [vmem:[%s0 + $0x94] sm:$0xf]
  %v59 = vld [vmem:[%s0 + $0x98] sm:$0xf]
  %v60 = vld [vmem:[%s0 + $0x9c] sm:$0xf]
  %v61 = vld [vmem:[%s0 + $0xa0] sm:$0xf]
  %v62 = vld [vmem:[%s0 + $0xa4] sm:$0xf]
  %v63 = vld [vmem:[%s0 + $0xa8] sm:$0xf]
  %v64 = vld [vmem:[%s0 + $0xac] sm:$0xf]
  %v65 = vld [vmem:[%s0 + $0xb0] sm:$0xf]
  %v66 = vld [vmem:[%s0 + $0xb4] sm:$0xf]
  %v67 = vld [vmem:[%s0 + $0xb8] sm:$0xf]
  %v68 = vld [vmem:[%s0 + $0xbc] sm:$0xf]
  %v69 = vld [vmem:[%s0 + $0xc0] sm:$0xf]
  %v70 = vld [vmem:[%s0 + $0xc4] sm:$0xf]
  %v71 = vld [vmem:[%s0 + $0xc8] sm:$0xf]
  %v72 = vld [vmem:[%s0 + $0xcc] sm:$0xf]
  %v73 = vld [vmem:[%s0 + $0xd0] sm:$0xf]
  %v74 = vld [vmem:[%s0 + $0xd4] sm:$0xf]
  %v75 = vld [vmem:[%s0 + $0xd8] sm:$0xf]
  %v76 = vld [vmem:[%s0 + $0xdc] sm:$0xf]
  %v77 = vld [vmem:[%s0 + $0xe0] sm:$0xf]
  %v78 = vld [vmem:[%s0 + $0xe4] sm:$0xf]
  %v79 = vld [vmem:[%s0 + $0xe8] sm:$0xf]
  %v80 = vld [vmem:[%s0 + $0xec] sm:$0xf]
  %v81 = vld [vmem:[%s0 + $0xf0] sm:$0xf]
  %v82 = vld [vmem:[%s0 + $0xf4] sm:$0xf]
  %v83 = vld [vmem:[%s0 + $0xf8] sm:$0xf]
  %v84 = vld [vmem:[%s0 + $0xfc] sm:$0xf]
  %v85 = vld [vmem:[%s1] sm:$0xf]
  %v86 = vld [vmem:[%s1 + $0x4] sm:$0xf]
  %v87 = vld [vmem:[%s1 + $0x8] sm:$0xf]
  %v88 = vld [vmem:[%s1 + $0xc] sm:$0xf]
  %v89 = vld [vmem:[%s1 + $0x10] sm:$0xf]
  %v90 = vld [vmem:[%s1 + $0x14] sm:$0xf]
  %v91 = vld [vmem:[%s1 + $0x18] sm:$0xf]
  %v92 = vld [vmem:[%s1 + $0x1c] sm:$0xf]
  %v93 = vld [vmem:[%s1 + $0x20] sm:$0xf]
  %v94 = vld [vmem:[%s1 + $0x24] sm:$0xf]
  %v95 = vld [vmem:[%s1 + $0x28] sm:$0xf]
  %v96 = vld [vmem:[%s1 + $0x2c] sm:$0xf]
  %v97 = vld [vmem:[%s1 + $0x30] sm:$0xf]
  %v98 = vld [vmem:[%s1 + $0x34] sm:$0xf]
  %v99 = vld [vmem:[%s1 + $0x38] sm:$0xf]
  %v100 = vld [vmem:[%s1 + $0x3c] sm:$0xf]
  %v165 = vunpack.c.l.b16 %v21
  %v166 = vunpack.c.l.b16 %v22
  %v167 = vunpack.c.l.b16 %v23
  %v168 = vunpack.c.l.b16 %v24
  %v169 = vunpack.c.l.b16 %v25
  %v170 = vunpack.c.l.b16 %v26
  %v171 = vunpack.c.l.b16 %v27
  %v172 = vunpack.c.l.b16 %v28
  %v173 = vunpack.c.l.b16 %v29
  %v174 = vunpack.c.l.b16 %v30
  %v175 = vunpack.c.l.b16 %v31
  %v176 = vunpack.c.l.b16 %v32
  %v177 = vunpack.c.l.b16 %v33
  %v178 = vunpack.c.l.b16 %v34
  %v179 = vunpack.c.l.b16 %v35
  %v180 = vunpack.c.l.b16 %v36
  %v181 = vunpack.c.l.b16 %v37
  %v182 = vunpack.c.l.b16 %v38
  %v183 = vunpack.c.l.b16 %v39
  %v184 = vunpack.c.l.b16 %v40
  %v185 = vunpack.c.l.b16 %v41
  %v186 = vunpack.c.l.b16 %v42
  %v187 = vunpack.c.l.b16 %v43
  %v188 = vunpack.c.l.b16 %v44
  %v189 = vunpack.c.l.b16 %v45
  %v190 = vunpack.c.l.b16 %v46
  %v191 = vunpack.c.l.b16 %v47
  %v192 = vunpack.c.l.b16 %v48
  %v193 = vunpack.c.l.b16 %v49
  %v194 = vunpack.c.l.b16 %v50
  %v195 = vunpack.c.l.b16 %v51
  %v196 = vunpack.c.l.b16 %v52
  %v197 = vunpack.c.l.b16 %v53
  %v198 = vunpack.c.l.b16 %v54
  %v199 = vunpack.c.l.b16 %v55
  %v200 = vunpack.c.l.b16 %v56
  %v201 = vunpack.c.l.b16 %v57
  %v202 = vunpack.c.l.b16 %v58
  %v203 = vunpack.c.l.b16 %v59
  %v204 = vunpack.c.l.b16 %v60
  %v205 = vunpack.c.l.b16 %v61
  %v206 = vunpack.c.l.b16 %v62
  %v207 = vunpack.c.l.b16 %v63
  %v208 = vunpack.c.l.b16 %v64
  %v209 = vunpack.c.l.b16 %v65
  %v210 = vunpack.c.l.b16 %v66
  %v211 = vunpack.c.l.b16 %v67
  %v212 = vunpack.c.l.b16 %v68
  %v213 = vunpack.c.l.b16 %v69
  %v214 = vunpack.c.l.b16 %v70
  %v215 = vunpack.c.l.b16 %v71
  %v216 = vunpack.c.l.b16 %v72
  %v217 = vunpack.c.l.b16 %v73
  %v218 = vunpack.c.l.b16 %v74
  %v219 = vunpack.c.l.b16 %v75
  %v220 = vunpack.c.l.b16 %v76
  %v221 = vunpack.c.l.b16 %v77
  %v222 = vunpack.c.l.b16 %v78
  %v223 = vunpack.c.l.b16 %v79
  %v224 = vunpack.c.l.b16 %v80
  %v225 = vunpack.c.l.b16 %v81
  %v226 = vunpack.c.l.b16 %v82
  %v227 = vunpack.c.l.b16 %v83
  %v228 = vunpack.c.l.b16 %v84
  %v229 = vpack.c.b16 %v166, %v165
  %v230 = vpack.c.b16 %v168, %v167
  %v231 = vpack.c.b16 %v170, %v169
  %v232 = vpack.c.b16 %v172, %v171
  %v233 = vpack.c.b16 %v174, %v173
  %v234 = vpack.c.b16 %v176, %v175
  %v235 = vpack.c.b16 %v178, %v177
  %v236 = vpack.c.b16 %v180, %v179
  %v237 = vpack.c.b16 %v182, %v181
  %v238 = vpack.c.b16 %v184, %v183
  %v239 = vpack.c.b16 %v186, %v185
  %v240 = vpack.c.b16 %v188, %v187
  %v241 = vpack.c.b16 %v190, %v189
  %v242 = vpack.c.b16 %v192, %v191
  %v243 = vpack.c.b16 %v194, %v193
  %v244 = vpack.c.b16 %v196, %v195
  %v245 = vpack.c.b16 %v198, %v197
  %v246 = vpack.c.b16 %v200, %v199
  %v247 = vpack.c.b16 %v202, %v201
  %v248 = vpack.c.b16 %v204, %v203
  %v249 = vpack.c.b16 %v206, %v205
  %v250 = vpack.c.b16 %v208, %v207
  %v251 = vpack.c.b16 %v210, %v209
  %v252 = vpack.c.b16 %v212, %v211
  %v253 = vpack.c.b16 %v214, %v213
  %v254 = vpack.c.b16 %v216, %v215
  %v255 = vpack.c.b16 %v218, %v217
  %v256 = vpack.c.b16 %v220, %v219
  %v257 = vpack.c.b16 %v222, %v221
  %v258 = vpack.c.b16 %v224, %v223
  %v259 = vpack.c.b16 %v226, %v225
  %v260 = vpack.c.b16 %v228, %v227
  %v309 = vunpack.c.l.b16 %v85
  %v310 = vunpack.c.l.b16 %v86
  %v311 = vunpack.c.l.b16 %v87
  %v312 = vunpack.c.l.b16 %v88
  %v313 = vunpack.c.l.b16 %v89
  %v314 = vunpack.c.l.b16 %v90
  %v315 = vunpack.c.l.b16 %v91
  %v316 = vunpack.c.l.b16 %v92
  %v317 = vunpack.c.l.b16 %v93
  %v318 = vunpack.c.l.b16 %v94
  %v319 = vunpack.c.l.b16 %v95
  %v320 = vunpack.c.l.b16 %v96
  %v321 = vunpack.c.l.b16 %v97
  %v322 = vunpack.c.l.b16 %v98
  %v323 = vunpack.c.l.b16 %v99
  %v324 = vunpack.c.l.b16 %v100
  %v325 = vpack.c.b16 %v310, %v309
  %v326 = vpack.c.b16 %v312, %v311
  %v327 = vpack.c.b16 %v314, %v313
  %v328 = vpack.c.b16 %v316, %v315
  %v329 = vpack.c.b16 %v318, %v317
  %v330 = vpack.c.b16 %v320, %v319
  %v331 = vpack.c.b16 %v322, %v321
  %v332 = vpack.c.b16 %v324, %v323
  %341 = vmatprep.subr.bf16.mxu0 0
  %342 = vmatpush1.bf16.msra.mxu0 %v325
  %343 = vmatprep.subr.bf16.mxu0 0
  %344 = vmatpush1.bf16.msra.mxu0 %v326
  %345 = vmatprep.subr.bf16.mxu0 0
  %346 = vmatpush1.bf16.msra.mxu0 %v327
  %347 = vmatprep.subr.bf16.mxu0 0
  %348 = vmatpush1.bf16.msra.mxu0 %v328
  %349 = vmatprep.subr.bf16.mxu0 0
  %350 = vmatpush1.bf16.msra.mxu0 %v329
  %351 = vmatprep.subr.bf16.mxu0 0
  %352 = vmatpush1.bf16.msra.mxu0 %v330
  %353 = vmatprep.subr.bf16.mxu0 0
  %354 = vmatpush1.bf16.msra.mxu0 %v331
  %355 = vmatprep.subr.bf16.mxu0 0
  %356 = vmatpush1.bf16.msra.mxu0 %v332
  %357 = vmatprep.subr.bf16.mxu0 0
  %358 = vmatpush1.bf16.msra.mxu0 0
  %359 = vmatprep.subr.bf16.mxu0 0
  %360 = vmatpush1.bf16.msra.mxu0 0
  %361 = vmatprep.subr.bf16.mxu0 0
  %362 = vmatpush1.bf16.msra.mxu0 0
  %363 = vmatprep.subr.bf16.mxu0 0
  %364 = vmatpush1.bf16.msra.mxu0 0
  %365 = vmatprep.subr.bf16.mxu0 0
  %366 = vmatpush1.bf16.msra.mxu0 0
  %367 = vmatprep.subr.bf16.mxu0 0
  %368 = vmatpush1.bf16.msra.mxu0 0
  %369 = vmatprep.subr.bf16.mxu0 0
  %370 = vmatpush1.bf16.msra.mxu0 0
  %371 = vmatprep.subr.bf16.mxu0 0
  %372 = vmatpush1.bf16.msra.mxu0 0
  %373 = vmatprep.mubr.bf16.mxu0 0
  %374 = vmatmul.mubr.bf16.gmra.mrb[0].mxu0 %v229
  %v375 = vpop.f32.mrb[0].mxu0
  %v376 = vadd.f32 0.0, %v375
  %v377 = vpop.f32.mrb[0].mxu0
  %v378 = vpop.f32.mrb[0].mxu0
  %v379 = vadd.f32 0.0, %v378
  %v380 = vpop.f32.mrb[0].mxu0
  %381 = vmatprep.mubr.bf16.mxu0 0
  %382 = vmatmul.mubr.bf16.gmra.mrb[0].mxu0 %v230
  %v383 = vpop.f32.mrb[0].mxu0
  %v384 = vadd.f32 0.0, %v383
  %v385 = vpop.f32.mrb[0].mxu0
  %v386 = vpop.f32.mrb[0].mxu0
  %v387 = vadd.f32 0.0, %v386
  %v388 = vpop.f32.mrb[0].mxu0
  %389 = vmatprep.mubr.bf16.mxu0 0
  %390 = vmatmul.mubr.bf16.gmra.mrb[0].mxu0 %v231
  %v391 = vpop.f32.mrb[0].mxu0
  %v392 = vadd.f32 0.0, %v391
  %v393 = vpop.f32.mrb[0].mxu0
  %v394 = vpop.f32.mrb[0].mxu0
  %v395 = vadd.f32 0.0, %v394
  %v396 = vpop.f32.mrb[0].mxu0
  %397 = vmatprep.mubr.bf16.mxu0 0
  %398 = vmatmul.mubr.bf16.gmra.mrb[0].mxu0 %v232
  %v399 = vpop.f32.mrb[0].mxu0
  %v400 = vadd.f32 0.0, %v399
  %v401 = vpop.f32.mrb[0].mxu0
  %v402 = vpop.f32.mrb[0].mxu0
  %v403 = vadd.f32 0.0, %v402
  %v404 = vpop.f32.mrb[0].mxu0
  %405 = vmatprep.mubr.bf16.mxu0 0
  %406 = vmatmul.mubr.bf16.gmra.mrb[0].mxu0 %v233
  %v407 = vpop.f32.mrb[0].mxu0
  %v408 = vadd.f32 0.0, %v407
  %v409 = vpop.f32.mrb[0].mxu0
  %v410 = vpop.f32.mrb[0].mxu0
  %v411 = vadd.f32 0.0, %v410
  %v412 = vpop.f32.mrb[0].mxu0
  %413 = vmatprep.mubr.bf16.mxu0 0
  %414 = vmatmul.mubr.bf16.gmra.mrb[0].mxu0 %v234
  %v415 = vpop.f32.mrb[0].mxu0
  %v416 = vadd.f32 0.0, %v415
  %v417 = vpop.f32.mrb[0].mxu0
  %v418 = vpop.f32.mrb[0].mxu0
  %v419 = vadd.f32 0.0, %v418
  %v420 = vpop.f32.mrb[0].mxu0
  %421 = vmatprep.mubr.bf16.mxu0 0
  %422 = vmatmul.mubr.bf16.gmra.mrb[0].mxu0 %v235
  %v423 = vpop.f32.mrb[0].mxu0
  %v424 = vadd.f32 0.0, %v423
  %v425 = vpop.f32.mrb[0].mxu0
  %v426 = vpop.f32.mrb[0].mxu0
  %v427 = vadd.f32 0.0, %v426
  %v428 = vpop.f32.mrb[0].mxu0
  %429 = vmatprep.mubr.bf16.mxu0 0
  %430 = vmatmul.mubr.bf16.gmra.mrb[0].mxu0 %v236
  %v431 = vpop.f32.mrb[0].mxu0
  %v432 = vadd.f32 0.0, %v431
  %v433 = vpop.f32.mrb[0].mxu0
  %v434 = vpop.f32.mrb[0].mxu0
  %v435 = vadd.f32 0.0, %v434
  %v436 = vpop.f32.mrb[0].mxu0
  %437 = vmatprep.mubr.bf16.mxu0 0
  %438 = vmatmul.mubr.bf16.gmra.mrb[0].mxu0 %v237
  %v439 = vpop.f32.mrb[0].mxu0
  %v440 = vadd.f32 0.0, %v439
  %v441 = vpop.f32.mrb[0].mxu0
  %v442 = vpop.f32.mrb[0].mxu0
  %v443 = vadd.f32 0.0, %v442
  %v444 = vpop.f32.mrb[0].mxu0
  %445 = vmatprep.mubr.bf16.mxu0 0
  %446 = vmatmul.mubr.bf16.gmra.mrb[0].mxu0 %v238
  %v447 = vpop.f32.mrb[0].mxu0
  %v448 = vadd.f32 0.0, %v447
  %v449 = vpop.f32.mrb[0].mxu0
  %v450 = vpop.f32.mrb[0].mxu0
  %v451 = vadd.f32 0.0, %v450
  %v452 = vpop.f32.mrb[0].mxu0
  %453 = vmatprep.mubr.bf16.mxu0 0
  %454 = vmatmul.mubr.bf16.gmra.mrb[0].mxu0 %v239
  %v455 = vpop.f32.mrb[0].mxu0
  %v456 = vadd.f32 0.0, %v455
  %v457 = vpop.f32.mrb[0].mxu0
  %v458 = vpop.f32.mrb[0].mxu0
  %v459 = vadd.f32 0.0, %v458
  %v460 = vpop.f32.mrb[0].mxu0
  %461 = vmatprep.mubr.bf16.mxu0 0
  %462 = vmatmul.mubr.bf16.gmra.mrb[0].mxu0 %v240
  %v463 = vpop.f32.mrb[0].mxu0
  %v464 = vadd.f32 0.0, %v463
  %v465 = vpop.f32.mrb[0].mxu0
  %v466 = vpop.f32.mrb[0].mxu0
  %v467 = vadd.f32 0.0, %v466
  %v468 = vpop.f32.mrb[0].mxu0
  %469 = vmatprep.mubr.bf16.mxu0 0
  %470 = vmatmul.mubr.bf16.gmra.mrb[0].mxu0 %v241
  %v471 = vpop.f32.mrb[0].mxu0
  %v472 = vadd.f32 0.0, %v471
  %v473 = vpop.f32.mrb[0].mxu0
  %v474 = vpop.f32.mrb[0].mxu0
  %v475 = vadd.f32 0.0, %v474
  %v476 = vpop.f32.mrb[0].mxu0
  %477 = vmatprep.mubr.bf16.mxu0 0
  %478 = vmatmul.mubr.bf16.gmra.mrb[0].mxu0 %v242
  %v479 = vpop.f32.mrb[0].mxu0
  %v480 = vadd.f32 0.0, %v479
  %v481 = vpop.f32.mrb[0].mxu0
  %v482 = vpop.f32.mrb[0].mxu0
  %v483 = vadd.f32 0.0, %v482
  %v484 = vpop.f32.mrb[0].mxu0
  %485 = vmatprep.mubr.bf16.mxu0 0
  %486 = vmatmul.mubr.bf16.gmra.mrb[0].mxu0 %v243
  %v487 = vpop.f32.mrb[0].mxu0
  %v488 = vadd.f32 0.0, %v487
  %v489 = vpop.f32.mrb[0].mxu0
  %v490 = vpop.f32.mrb[0].mxu0
  %v491 = vadd.f32 0.0, %v490
  %v492 = vpop.f32.mrb[0].mxu0
  %493 = vmatprep.mubr.bf16.mxu0 0
  %494 = vmatmul.mubr.bf16.gmra.mrb[0].mxu0 %v244
  %v495 = vpop.f32.mrb[0].mxu0
  %v496 = vadd.f32 0.0, %v495
  %v497 = vpop.f32.mrb[0].mxu0
  %v498 = vpop.f32.mrb[0].mxu0
  %v499 = vadd.f32 0.0, %v498
  %v500 = vpop.f32.mrb[0].mxu0
  %501 = vmatprep.mubr.bf16.mxu0 0
  %502 = vmatmul.mubr.bf16.gmra.mrb[0].mxu0 %v245
  %v503 = vpop.f32.mrb[0].mxu0
  %v504 = vadd.f32 0.0, %v503
  %v505 = vpop.f32.mrb[0].mxu0
  %v506 = vpop.f32.mrb[0].mxu0
  %v507 = vadd.f32 0.0, %v506
  %v508 = vpop.f32.mrb[0].mxu0
  %509 = vmatprep.mubr.bf16.mxu0 0
  %510 = vmatmul.mubr.bf16.gmra.mrb[0].mxu0 %v246
  %v511 = vpop.f32.mrb[0].mxu0
  %v512 = vadd.f32 0.0, %v511
  %v513 = vpop.f32.mrb[0].mxu0
  %v514 = vpop.f32.mrb[0].mxu0
  %v515 = vadd.f32 0.0, %v514
  %v516 = vpop.f32.mrb[0].mxu0
  %517 = vmatprep.mubr.bf16.mxu0 0
  %518 = vmatmul.mubr.bf16.gmra.mrb[0].mxu0 %v247
  %v519 = vpop.f32.mrb[0].mxu0
  %v520 = vadd.f32 0.0, %v519
  %v521 = vpop.f32.mrb[0].mxu0
  %v522 = vpop.f32.mrb[0].mxu0
  %v523 = vadd.f32 0.0, %v522
  %v524 = vpop.f32.mrb[0].mxu0
  %525 = vmatprep.mubr.bf16.mxu0 0
  %526 = vmatmul.mubr.bf16.gmra.mrb[0].mxu0 %v248
  %v527 = vpop.f32.mrb[0].mxu0
  %v528 = vadd.f32 0.0, %v527
  %v529 = vpop.f32.mrb[0].mxu0
  %v530 = vpop.f32.mrb[0].mxu0
  %v531 = vadd.f32 0.0, %v530
  %v532 = vpop.f32.mrb[0].mxu0
  %533 = vmatprep.mubr.bf16.mxu0 0
  %534 = vmatmul.mubr.bf16.gmra.mrb[0].mxu0 %v249
  %v535 = vpop.f32.mrb[0].mxu0
  %v536 = vadd.f32 0.0, %v535
  %v537 = vpop.f32.mrb[0].mxu0
  %v538 = vpop.f32.mrb[0].mxu0
  %v539 = vadd.f32 0.0, %v538
  %v540 = vpop.f32.mrb[0].mxu0
  %541 = vmatprep.mubr.bf16.mxu0 0
  %542 = vmatmul.mubr.bf16.gmra.mrb[0].mxu0 %v250
  %v543 = vpop.f32.mrb[0].mxu0
  %v544 = vadd.f32 0.0, %v543
  %v545 = vpop.f32.mrb[0].mxu0
  %v546 = vpop.f32.mrb[0].mxu0
  %v547 = vadd.f32 0.0, %v546
  %v548 = vpop.f32.mrb[0].mxu0
  %549 = vmatprep.mubr.bf16.mxu0 0
  %550 = vmatmul.mubr.bf16.gmra.mrb[0].mxu0 %v251
  %v551 = vpop.f32.mrb[0].mxu0
  %v552 = vadd.f32 0.0, %v551
  %v553 = vpop.f32.mrb[0].mxu0
  %v554 = vpop.f32.mrb[0].mxu0
  %v555 = vadd.f32 0.0, %v554
  %v556 = vpop.f32.mrb[0].mxu0
  %557 = vmatprep.mubr.bf16.mxu0 0
  %558 = vmatmul.mubr.bf16.gmra.mrb[0].mxu0 %v252
  %v559 = vpop.f32.mrb[0].mxu0
  %v560 = vadd.f32 0.0, %v559
  %v561 = vpop.f32.mrb[0].mxu0
  %v562 = vpop.f32.mrb[0].mxu0
  %v563 = vadd.f32 0.0, %v562
  %v564 = vpop.f32.mrb[0].mxu0
  %565 = vmatprep.mubr.bf16.mxu0 0
  %566 = vmatmul.mubr.bf16.gmra.mrb[0].mxu0 %v253
  %v567 = vpop.f32.mrb[0].mxu0
  %v568 = vadd.f32 0.0, %v567
  %v569 = vpop.f32.mrb[0].mxu0
  %v570 = vpop.f32.mrb[0].mxu0
  %v571 = vadd.f32 0.0, %v570
  %v572 = vpop.f32.mrb[0].mxu0
  %573 = vmatprep.mubr.bf16.mxu0 0
  %574 = vmatmul.mubr.bf16.gmra.mrb[0].mxu0 %v254
  %v575 = vpop.f32.mrb[0].mxu0
  %v576 = vadd.f32 0.0, %v575
  %v577 = vpop.f32.mrb[0].mxu0
  %v578 = vpop.f32.mrb[0].mxu0
  %v579 = vadd.f32 0.0, %v578
  %v580 = vpop.f32.mrb[0].mxu0
  %581 = vmatprep.mubr.bf16.mxu0 0
  %582 = vmatmul.mubr.bf16.gmra.mrb[0].mxu0 %v255
  %v583 = vpop.f32.mrb[0].mxu0
  %v584 = vadd.f32 0.0, %v583
  %v585 = vpop.f32.mrb[0].mxu0
  %v586 = vpop.f32.mrb[0].mxu0
  %v587 = vadd.f32 0.0, %v586
  %v588 = vpop.f32.mrb[0].mxu0
  %589 = vmatprep.mubr.bf16.mxu0 0
  %590 = vmatmul.mubr.bf16.gmra.mrb[0].mxu0 %v256
  %v591 = vpop.f32.mrb[0].mxu0
  %v592 = vadd.f32 0.0, %v591
  %v593 = vpop.f32.mrb[0].mxu0
  %v594 = vpop.f32.mrb[0].mxu0
  %v595 = vadd.f32 0.0, %v594
  %v596 = vpop.f32.mrb[0].mxu0
  %597 = vmatprep.mubr.bf16.mxu0 0
  %598 = vmatmul.mubr.bf16.gmra.mrb[0].mxu0 %v257
  %v599 = vpop.f32.mrb[0].mxu0
  %v600 = vadd.f32 0.0, %v599
  %v601 = vpop.f32.mrb[0].mxu0
  %v602 = vpop.f32.mrb[0].mxu0
  %v603 = vadd.f32 0.0, %v602
  %v604 = vpop.f32.mrb[0].mxu0
  %605 = vmatprep.mubr.bf16.mxu0 0
  %606 = vmatmul.mubr.bf16.gmra.mrb[0].mxu0 %v258
  %v607 = vpop.f32.mrb[0].mxu0
  %v608 = vadd.f32 0.0, %v607
  %v609 = vpop.f32.mrb[0].mxu0
  %v610 = vpop.f32.mrb[0].mxu0
  %v611 = vadd.f32 0.0, %v610
  %v612 = vpop.f32.mrb[0].mxu0
  %613 = vmatprep.mubr.bf16.mxu0 0
  %614 = vmatmul.mubr.bf16.gmra.mrb[0].mxu0 %v259
  %v615 = vpop.f32.mrb[0].mxu0
  %v616 = vadd.f32 0.0, %v615
  %v617 = vpop.f32.mrb[0].mxu0
  %v618 = vpop.f32.mrb[0].mxu0
  %v619 = vadd.f32 0.0, %v618
  %v620 = vpop.f32.mrb[0].mxu0
  %621 = vmatprep.mubr.bf16.mxu0 0
  %622 = vmatmul.mubr.bf16.gmra.mrb[0].mxu0 %v260
  %v623 = vpop.f32.mrb[0].mxu0
  %v624 = vadd.f32 0.0, %v623
  %v625 = vpop.f32.mrb[0].mxu0
  %v626 = vpop.f32.mrb[0].mxu0
  %v627 = vadd.f32 0.0, %v626
  %v628 = vpop.f32.mrb[0].mxu0
  %629 = vdwg.mxu0
  %v630 = vld [vmem:[%s2] sm:$0x1]
  %v632 = vlaneseq
  %v633 = vshrl.u32 %v632, 7
  %v634 = vsub.s32 0, %v633
  %v635 = vrot.slane %v630, %v634
  %v637 = vmul.f32 %v376, %v635
  %v638 = vmul.f32 %v379, %v635
  %v639 = vmul.f32 %v384, %v635
  %v640 = vmul.f32 %v387, %v635
  %v641 = vmul.f32 %v392, %v635
  %v642 = vmul.f32 %v395, %v635
  %v643 = vmul.f32 %v400, %v635
  %v644 = vmul.f32 %v403, %v635
  %v645 = vmul.f32 %v408, %v635
  %v646 = vmul.f32 %v411, %v635
  %v647 = vmul.f32 %v416, %v635
  %v648 = vmul.f32 %v419, %v635
  %v649 = vmul.f32 %v424, %v635
  %v650 = vmul.f32 %v427, %v635
  %v651 = vmul.f32 %v432, %v635
  %v652 = vmul.f32 %v435, %v635
  %v653 = vmul.f32 %v440, %v635
  %v654 = vmul.f32 %v443, %v635
  %v655 = vmul.f32 %v448, %v635
  %v656 = vmul.f32 %v451, %v635
  %v657 = vmul.f32 %v456, %v635
  %v658 = vmul.f32 %v459, %v635
  %v659 = vmul.f32 %v464, %v635
  %v660 = vmul.f32 %v467, %v635
  %v661 = vmul.f32 %v472, %v635
  %v662 = vmul.f32 %v475, %v635
  %v663 = vmul.f32 %v480, %v635
  %v664 = vmul.f32 %v483, %v635
  %v665 = vmul.f32 %v488, %v635
  %v666 = vmul.f32 %v491, %v635
  %v667 = vmul.f32 %v496, %v635
  %v668 = vmul.f32 %v499, %v635
  %v669 = vmul.f32 %v504, %v635
  %v670 = vmul.f32 %v507, %v635
  %v671 = vmul.f32 %v512, %v635
  %v672 = vmul.f32 %v515, %v635
  %v673 = vmul.f32 %v520, %v635
  %v674 = vmul.f32 %v523, %v635
  %v675 = vmul.f32 %v528, %v635
  %v676 = vmul.f32 %v531, %v635
  %v677 = vmul.f32 %v536, %v635
  %v678 = vmul.f32 %v539, %v635
  %v679 = vmul.f32 %v544, %v635
  %v680 = vmul.f32 %v547, %v635
  %v681 = vmul.f32 %v552, %v635
  %v682 = vmul.f32 %v555, %v635
  %v683 = vmul.f32 %v560, %v635
  %v684 = vmul.f32 %v563, %v635
  %v685 = vmul.f32 %v568, %v635
  %v686 = vmul.f32 %v571, %v635
  %v687 = vmul.f32 %v576, %v635
  %v688 = vmul.f32 %v579, %v635
  %v689 = vmul.f32 %v584, %v635
  %v690 = vmul.f32 %v587, %v635
  %v691 = vmul.f32 %v592, %v635
  %v692 = vmul.f32 %v595, %v635
  %v693 = vmul.f32 %v600, %v635
  %v694 = vmul.f32 %v603, %v635
  %v695 = vmul.f32 %v608, %v635
  %v696 = vmul.f32 %v611, %v635
  %v697 = vmul.f32 %v616, %v635
  %v698 = vmul.f32 %v619, %v635
  %v699 = vmul.f32 %v624, %v635
  %v700 = vmul.f32 %v627, %v635
  %v701 = vld [vmem:[%s3] sm:$0x1]
  %v703 = vlaneseq
  %v704 = vshrl.u32 %v703, 7
  %v705 = vsub.s32 0, %v704
  %v706 = vrot.slane %v701, %v705
  %v708 = vadd.f32 %v637, %v706
  %v709 = vadd.f32 %v638, %v706
  %v710 = vadd.f32 %v639, %v706
  %v711 = vadd.f32 %v640, %v706
  %v712 = vadd.f32 %v641, %v706
  %v713 = vadd.f32 %v642, %v706
  %v714 = vadd.f32 %v643, %v706
  %v715 = vadd.f32 %v644, %v706
  %v716 = vadd.f32 %v645, %v706
  %v717 = vadd.f32 %v646, %v706
  %v718 = vadd.f32 %v647, %v706
  %v719 = vadd.f32 %v648, %v706
  %v720 = vadd.f32 %v649, %v706
  %v721 = vadd.f32 %v650, %v706
  %v722 = vadd.f32 %v651, %v706
  %v723 = vadd.f32 %v652, %v706
  %v724 = vadd.f32 %v653, %v706
  %v725 = vadd.f32 %v654, %v706
  %v726 = vadd.f32 %v655, %v706
  %v727 = vadd.f32 %v656, %v706
  %v728 = vadd.f32 %v657, %v706
  %v729 = vadd.f32 %v658, %v706
  %v730 = vadd.f32 %v659, %v706
  %v731 = vadd.f32 %v660, %v706
  %v732 = vadd.f32 %v661, %v706
  %v733 = vadd.f32 %v662, %v706
  %v734 = vadd.f32 %v663, %v706
  %v735 = vadd.f32 %v664, %v706
  %v736 = vadd.f32 %v665, %v706
  %v737 = vadd.f32 %v666, %v706
  %v738 = vadd.f32 %v667, %v706
  %v739 = vadd.f32 %v668, %v706
  %v740 = vadd.f32 %v669, %v706
  %v741 = vadd.f32 %v670, %v706
  %v742 = vadd.f32 %v671, %v706
  %v743 = vadd.f32 %v672, %v706
  %v744 = vadd.f32 %v673, %v706
  %v745 = vadd.f32 %v674, %v706
  %v746 = vadd.f32 %v675, %v706
  %v747 = vadd.f32 %v676, %v706
  %v748 = vadd.f32 %v677, %v706
  %v749 = vadd.f32 %v678, %v706
  %v750 = vadd.f32 %v679, %v706
  %v751 = vadd.f32 %v680, %v706
  %v752 = vadd.f32 %v681, %v706
  %v753 = vadd.f32 %v682, %v706
  %v754 = vadd.f32 %v683, %v706
  %v755 = vadd.f32 %v684, %v706
  %v756 = vadd.f32 %v685, %v706
  %v757 = vadd.f32 %v686, %v706
  %v758 = vadd.f32 %v687, %v706
  %v759 = vadd.f32 %v688, %v706
  %v760 = vadd.f32 %v689, %v706
  %v761 = vadd.f32 %v690, %v706
  %v762 = vadd.f32 %v691, %v706
  %v763 = vadd.f32 %v692, %v706
  %v764 = vadd.f32 %v693, %v706
  %v765 = vadd.f32 %v694, %v706
  %v766 = vadd.f32 %v695, %v706
  %v767 = vadd.f32 %v696, %v706
  %v768 = vadd.f32 %v697, %v706
  %v769 = vadd.f32 %v698, %v706
  %v770 = vadd.f32 %v699, %v706
  %v771 = vadd.f32 %v700, %v706
  %v772 = vld [vmem:[%s4] sm:$0xff]
  %v773 = vld [vmem:[%s4 + $0x8] sm:$0xff]
  %v774 = vld [vmem:[%s4 + $0x10] sm:$0xff]
  %v775 = vld [vmem:[%s4 + $0x18] sm:$0xff]
  %v776 = vld [vmem:[%s4 + $0x20] sm:$0xff]
  %v777 = vld [vmem:[%s4 + $0x28] sm:$0xff]
  %v778 = vld [vmem:[%s4 + $0x30] sm:$0xff]
  %v779 = vld [vmem:[%s4 + $0x38] sm:$0xff]
  %v780 = vld [vmem:[%s4 + $0x40] sm:$0xff]
  %v781 = vld [vmem:[%s4 + $0x48] sm:$0xff]
  %v782 = vld [vmem:[%s4 + $0x50] sm:$0xff]
  %v783 = vld [vmem:[%s4 + $0x58] sm:$0xff]
  %v784 = vld [vmem:[%s4 + $0x60] sm:$0xff]
  %v785 = vld [vmem:[%s4 + $0x68] sm:$0xff]
  %v786 = vld [vmem:[%s4 + $0x70] sm:$0xff]
  %v787 = vld [vmem:[%s4 + $0x78] sm:$0xff]
  %v788 = vld [vmem:[%s4 + $0x80] sm:$0xff]
  %v789 = vld [vmem:[%s4 + $0x88] sm:$0xff]
  %v790 = vld [vmem:[%s4 + $0x90] sm:$0xff]
  %v791 = vld [vmem:[%s4 + $0x98] sm:$0xff]
  %v792 = vld [vmem:[%s4 + $0xa0] sm:$0xff]
  %v793 = vld [vmem:[%s4 + $0xa8] sm:$0xff]
  %v794 = vld [vmem:[%s4 + $0xb0] sm:$0xff]
  %v795 = vld [vmem:[%s4 + $0xb8] sm:$0xff]
  %v796 = vld [vmem:[%s4 + $0xc0] sm:$0xff]
  %v797 = vld [vmem:[%s4 + $0xc8] sm:$0xff]
  %v798 = vld [vmem:[%s4 + $0xd0] sm:$0xff]
  %v799 = vld [vmem:[%s4 + $0xd8] sm:$0xff]
  %v800 = vld [vmem:[%s4 + $0xe0] sm:$0xff]
  %v801 = vld [vmem:[%s4 + $0xe8] sm:$0xff]
  %v802 = vld [vmem:[%s4 + $0xf0] sm:$0xff]
  %v803 = vld [vmem:[%s4 + $0xf8] sm:$0xff]
  %v804 = vld [vmem:[%s4 + $0x100] sm:$0xff]
  %v805 = vld [vmem:[%s4 + $0x108] sm:$0xff]
  %v806 = vld [vmem:[%s4 + $0x110] sm:$0xff]
  %v807 = vld [vmem:[%s4 + $0x118] sm:$0xff]
  %v808 = vld [vmem:[%s4 + $0x120] sm:$0xff]
  %v809 = vld [vmem:[%s4 + $0x128] sm:$0xff]
  %v810 = vld [vmem:[%s4 + $0x130] sm:$0xff]
  %v811 = vld [vmem:[%s4 + $0x138] sm:$0xff]
  %v812 = vld [vmem:[%s4 + $0x140] sm:$0xff]
  %v813 = vld [vmem:[%s4 + $0x148] sm:$0xff]
  %v814 = vld [vmem:[%s4 + $0x150] sm:$0xff]
  %v815 = vld [vmem:[%s4 + $0x158] sm:$0xff]
  %v816 = vld [vmem:[%s4 + $0x160] sm:$0xff]
  %v817 = vld [vmem:[%s4 + $0x168] sm:$0xff]
  %v818 = vld [vmem:[%s4 + $0x170] sm:$0xff]
  %v819 = vld [vmem:[%s4 + $0x178] sm:$0xff]
  %v820 = vld [vmem:[%s4 + $0x180] sm:$0xff]
  %v821 = vld [vmem:[%s4 + $0x188] sm:$0xff]
  %v822 = vld [vmem:[%s4 + $0x190] sm:$0xff]
  %v823 = vld [vmem:[%s4 + $0x198] sm:$0xff]
  %v824 = vld [vmem:[%s4 + $0x1a0] sm:$0xff]
  %v825 = vld [vmem:[%s4 + $0x1a8] sm:$0xff]
  %v826 = vld [vmem:[%s4 + $0x1b0] sm:$0xff]
  %v827 = vld [vmem:[%s4 + $0x1b8] sm:$0xff]
  %v828 = vld [vmem:[%s4 + $0x1c0] sm:$0xff]
  %v829 = vld [vmem:[%s4 + $0x1c8] sm:$0xff]
  %v830 = vld [vmem:[%s4 + $0x1d0] sm:$0xff]
  %v831 = vld [vmem:[%s4 + $0x1d8] sm:$0xff]
  %v832 = vld [vmem:[%s4 + $0x1e0] sm:$0xff]
  %v833 = vld [vmem:[%s4 + $0x1e8] sm:$0xff]
  %v834 = vld [vmem:[%s4 + $0x1f0] sm:$0xff]
  %v835 = vld [vmem:[%s4 + $0x1f8] sm:$0xff]
  %v836 = vadd.f32 %v708, %v772
  %v837 = vadd.f32 %v709, %v773
  %v838 = vadd.f32 %v710, %v774
  %v839 = vadd.f32 %v711, %v775
  %v840 = vadd.f32 %v712, %v776
  %v841 = vadd.f32 %v713, %v777
  %v842 = vadd.f32 %v714, %v778
  %v843 = vadd.f32 %v715, %v779
  %v844 = vadd.f32 %v716, %v780
  %v845 = vadd.f32 %v717, %v781
  %v846 = vadd.f32 %v718, %v782
  %v847 = vadd.f32 %v719, %v783
  %v848 = vadd.f32 %v720, %v784
  %v849 = vadd.f32 %v721, %v785
  %v850 = vadd.f32 %v722, %v786
  %v851 = vadd.f32 %v723, %v787
  %v852 = vadd.f32 %v724, %v788
  %v853 = vadd.f32 %v725, %v789
  %v854 = vadd.f32 %v726, %v790
  %v855 = vadd.f32 %v727, %v791
  %v856 = vadd.f32 %v728, %v792
  %v857 = vadd.f32 %v729, %v793
  %v858 = vadd.f32 %v730, %v794
  %v859 = vadd.f32 %v731, %v795
  %v860 = vadd.f32 %v732, %v796
  %v861 = vadd.f32 %v733, %v797
  %v862 = vadd.f32 %v734, %v798
  %v863 = vadd.f32 %v735, %v799
  %v864 = vadd.f32 %v736, %v800
  %v865 = vadd.f32 %v737, %v801
  %v866 = vadd.f32 %v738, %v802
  %v867 = vadd.f32 %v739, %v803
  %v868 = vadd.f32 %v740, %v804
  %v869 = vadd.f32 %v741, %v805
  %v870 = vadd.f32 %v742, %v806
  %v871 = vadd.f32 %v743, %v807
  %v872 = vadd.f32 %v744, %v808
  %v873 = vadd.f32 %v745, %v809
  %v874 = vadd.f32 %v746, %v810
  %v875 = vadd.f32 %v747, %v811
  %v876 = vadd.f32 %v748, %v812
  %v877 = vadd.f32 %v749, %v813
  %v878 = vadd.f32 %v750, %v814
  %v879 = vadd.f32 %v751, %v815
  %v880 = vadd.f32 %v752, %v816
  %v881 = vadd.f32 %v753, %v817
  %v882 = vadd.f32 %v754, %v818
  %v883 = vadd.f32 %v755, %v819
  %v884 = vadd.f32 %v756, %v820
  %v885 = vadd.f32 %v757, %v821
  %v886 = vadd.f32 %v758, %v822
  %v887 = vadd.f32 %v759, %v823
  %v888 = vadd.f32 %v760, %v824
  %v889 = vadd.f32 %v761, %v825
  %v890 = vadd.f32 %v762, %v826
  %v891 = vadd.f32 %v763, %v827
  %v892 = vadd.f32 %v764, %v828
  %v893 = vadd.f32 %v765, %v829
  %v894 = vadd.f32 %v766, %v830
  %v895 = vadd.f32 %v767, %v831
  %v896 = vadd.f32 %v768, %v832
  %v897 = vadd.f32 %v769, %v833
  %v898 = vadd.f32 %v770, %v834
  %v899 = vadd.f32 %v771, %v835
  %v900 = vmax.f32 %v836, 0.0
  %v901 = vmax.f32 %v837, 0.0
  %v902 = vmax.f32 %v838, 0.0
  %v903 = vmax.f32 %v839, 0.0
  %v904 = vmax.f32 %v840, 0.0
  %v905 = vmax.f32 %v841, 0.0
  %v906 = vmax.f32 %v842, 0.0
  %v907 = vmax.f32 %v843, 0.0
  %v908 = vmax.f32 %v844, 0.0
  %v909 = vmax.f32 %v845, 0.0
  %v910 = vmax.f32 %v846, 0.0
  %v911 = vmax.f32 %v847, 0.0
  %v912 = vmax.f32 %v848, 0.0
  %v913 = vmax.f32 %v849, 0.0
  %v914 = vmax.f32 %v850, 0.0
  %v915 = vmax.f32 %v851, 0.0
  %v916 = vmax.f32 %v852, 0.0
  %v917 = vmax.f32 %v853, 0.0
  %v918 = vmax.f32 %v854, 0.0
  %v919 = vmax.f32 %v855, 0.0
  %v920 = vmax.f32 %v856, 0.0
  %v921 = vmax.f32 %v857, 0.0
  %v922 = vmax.f32 %v858, 0.0
  %v923 = vmax.f32 %v859, 0.0
  %v924 = vmax.f32 %v860, 0.0
  %v925 = vmax.f32 %v861, 0.0
  %v926 = vmax.f32 %v862, 0.0
  %v927 = vmax.f32 %v863, 0.0
  %v928 = vmax.f32 %v864, 0.0
  %v929 = vmax.f32 %v865, 0.0
  %v930 = vmax.f32 %v866, 0.0
  %v931 = vmax.f32 %v867, 0.0
  %v932 = vmax.f32 %v868, 0.0
  %v933 = vmax.f32 %v869, 0.0
  %v934 = vmax.f32 %v870, 0.0
  %v935 = vmax.f32 %v871, 0.0
  %v936 = vmax.f32 %v872, 0.0
  %v937 = vmax.f32 %v873, 0.0
  %v938 = vmax.f32 %v874, 0.0
  %v939 = vmax.f32 %v875, 0.0
  %v940 = vmax.f32 %v876, 0.0
  %v941 = vmax.f32 %v877, 0.0
  %v942 = vmax.f32 %v878, 0.0
  %v943 = vmax.f32 %v879, 0.0
  %v944 = vmax.f32 %v880, 0.0
  %v945 = vmax.f32 %v881, 0.0
  %v946 = vmax.f32 %v882, 0.0
  %v947 = vmax.f32 %v883, 0.0
  %v948 = vmax.f32 %v884, 0.0
  %v949 = vmax.f32 %v885, 0.0
  %v950 = vmax.f32 %v886, 0.0
  %v951 = vmax.f32 %v887, 0.0
  %v952 = vmax.f32 %v888, 0.0
  %v953 = vmax.f32 %v889, 0.0
  %v954 = vmax.f32 %v890, 0.0
  %v955 = vmax.f32 %v891, 0.0
  %v956 = vmax.f32 %v892, 0.0
  %v957 = vmax.f32 %v893, 0.0
  %v958 = vmax.f32 %v894, 0.0
  %v959 = vmax.f32 %v895, 0.0
  %v960 = vmax.f32 %v896, 0.0
  %v961 = vmax.f32 %v897, 0.0
  %v962 = vmax.f32 %v898, 0.0
  %v963 = vmax.f32 %v899, 0.0
  %964 = vst [vmem:[%s5] sm:$0xff] %v900
  %965 = vst [vmem:[%s5 + $0x8] sm:$0xff] %v901
  %966 = vst [vmem:[%s5 + $0x10] sm:$0xff] %v902
  %967 = vst [vmem:[%s5 + $0x18] sm:$0xff] %v903
  %968 = vst [vmem:[%s5 + $0x20] sm:$0xff] %v904
  %969 = vst [vmem:[%s5 + $0x28] sm:$0xff] %v905
  %970 = vst [vmem:[%s5 + $0x30] sm:$0xff] %v906
  %971 = vst [vmem:[%s5 + $0x38] sm:$0xff] %v907
  %972 = vst [vmem:[%s5 + $0x40] sm:$0xff] %v908
  %973 = vst [vmem:[%s5 + $0x48] sm:$0xff] %v909
  %974 = vst [vmem:[%s5 + $0x50] sm:$0xff] %v910
  %975 = vst [vmem:[%s5 + $0x58] sm:$0xff] %v911
  %976 = vst [vmem:[%s5 + $0x60] sm:$0xff] %v912
  %977 = vst [vmem:[%s5 + $0x68] sm:$0xff] %v913
  %978 = vst [vmem:[%s5 + $0x70] sm:$0xff] %v914
  %979 = vst [vmem:[%s5 + $0x78] sm:$0xff] %v915
  %980 = vst [vmem:[%s5 + $0x80] sm:$0xff] %v916
  %981 = vst [vmem:[%s5 + $0x88] sm:$0xff] %v917
  %982 = vst [vmem:[%s5 + $0x90] sm:$0xff] %v918
  %983 = vst [vmem:[%s5 + $0x98] sm:$0xff] %v919
  %984 = vst [vmem:[%s5 + $0xa0] sm:$0xff] %v920
  %985 = vst [vmem:[%s5 + $0xa8] sm:$0xff] %v921
  %986 = vst [vmem:[%s5 + $0xb0] sm:$0xff] %v922
  %987 = vst [vmem:[%s5 + $0xb8] sm:$0xff] %v923
  %988 = vst [vmem:[%s5 + $0xc0] sm:$0xff] %v924
  %989 = vst [vmem:[%s5 + $0xc8] sm:$0xff] %v925
  %990 = vst [vmem:[%s5 + $0xd0] sm:$0xff] %v926
  %991 = vst [vmem:[%s5 + $0xd8] sm:$0xff] %v927
  %992 = vst [vmem:[%s5 + $0xe0] sm:$0xff] %v928
  %993 = vst [vmem:[%s5 + $0xe8] sm:$0xff] %v929
  %994 = vst [vmem:[%s5 + $0xf0] sm:$0xff] %v930
  %995 = vst [vmem:[%s5 + $0xf8] sm:$0xff] %v931
  %996 = vst [vmem:[%s5 + $0x100] sm:$0xff] %v932
  %997 = vst [vmem:[%s5 + $0x108] sm:$0xff] %v933
  %998 = vst [vmem:[%s5 + $0x110] sm:$0xff] %v934
  %999 = vst [vmem:[%s5 + $0x118] sm:$0xff] %v935
  %1000 = vst [vmem:[%s5 + $0x120] sm:$0xff] %v936
  %1001 = vst [vmem:[%s5 + $0x128] sm:$0xff] %v937
  %1002 = vst [vmem:[%s5 + $0x130] sm:$0xff] %v938
  %1003 = vst [vmem:[%s5 + $0x138] sm:$0xff] %v939
  %1004 = vst [vmem:[%s5 + $0x140] sm:$0xff] %v940
  %1005 = vst [vmem:[%s5 + $0x148] sm:$0xff] %v941
  %1006 = vst [vmem:[%s5 + $0x150] sm:$0xff] %v942
  %1007 = vst [vmem:[%s5 + $0x158] sm:$0xff] %v943
  %1008 = vst [vmem:[%s5 + $0x160] sm:$0xff] %v944
  %1009 = vst [vmem:[%s5 + $0x168] sm:$0xff] %v945
  %1010 = vst [vmem:[%s5 + $0x170] sm:$0xff] %v946
  %1011 = vst [vmem:[%s5 + $0x178] sm:$0xff] %v947
  %1012 = vst [vmem:[%s5 + $0x180] sm:$0xff] %v948
  %1013 = vst [vmem:[%s5 + $0x188] sm:$0xff] %v949
  %1014 = vst [vmem:[%s5 + $0x190] sm:$0xff] %v950
  %1015 = vst [vmem:[%s5 + $0x198] sm:$0xff] %v951
  %1016 = vst [vmem:[%s5 + $0x1a0] sm:$0xff] %v952
  %1017 = vst [vmem:[%s5 + $0x1a8] sm:$0xff] %v953
  %1018 = vst [vmem:[%s5 + $0x1b0] sm:$0xff] %v954
  %1019 = vst [vmem:[%s5 + $0x1b8] sm:$0xff] %v955
  %1020 = vst [vmem:[%s5 + $0x1c0] sm:$0xff] %v956
  %1021 = vst [vmem:[%s5 + $0x1c8] sm:$0xff] %v957
  %1022 = vst [vmem:[%s5 + $0x1d0] sm:$0xff] %v958
  %1023 = vst [vmem:[%s5 + $0x1d8] sm:$0xff] %v959
  %1024 = vst [vmem:[%s5 + $0x1e0] sm:$0xff] %v960
  %1025 = vst [vmem:[%s5 + $0x1e8] sm:$0xff] %v961
  %1026 = vst [vmem:[%s5 + $0x1f0] sm:$0xff] %v962
  %1027 = vst [vmem:[%s5 + $0x1f8] sm:$0xff] %v963
  // Predicated region
  $region22: #{cam_forward.22} parent=0 // pred_check
    _
  $region23: #{cam_forward.22} parent=0 // pred_check_branch
    %1029 = sbr.rel (0) target = $region25
  $region24: #{cam_forward.22} parent=0 // pred_region
    _
  $region25: #{cam_forward.22} parent=0 // pred_fallthru
    _
  // Predicated region
  $region26: #{cam_forward.22} parent=0 // pred_check
    _
  $region27: #{cam_forward.22} parent=0 // pred_check_branch
    %1031 = sbr.rel (0) target = $region29
  $region28: #{cam_forward.22} parent=0 // pred_region
    _
  $region29: #{cam_forward.22} parent=0 // pred_fallthru
    _

// kernel: cam_forward.26
$region0: #{cam_forward.26}
  #allocation0 [shape = 'u32[]', space=smem, size = 0x4, offset = 0x4, fixed_abs, tag = 'smem constant byte address 0x4 - core index']
  #allocation1 [shape = 'u32[144,128]{1,0:T(1,128)}', space=vmem, size = 0x12000, scoped, tag = 'internal scratch']
  %s0 = inlined_call_operand.vmem [shape: bf16[128,128], index: 0, kind: input, shape index: {}]
  %s1 = inlined_call_operand.vmem [shape: bf16[128,128], index: 1, kind: input, shape index: {}]
  %s2 = inlined_call_operand.vmem [shape: f32[1,128], index: 2, kind: input, shape index: {}]
  %s3 = inlined_call_operand.vmem [shape: f32[1,128], index: 3, kind: input, shape index: {}]
  %s4 = inlined_call_operand.vmem [shape: f32[128,128], index: 4, kind: output, shape index: {}]
  %s5 = sld [smem:[#allocation0]]
  $region26: #{cam_forward.26} parent=0
    _
  %s7 = ssub.s32 1, %s5
  %s8 = scalar_select 0, %s7, %s5
  // Predicated region
  $region2: #{cam_forward.26} parent=0 // pred_check
    _
  $region3: #{cam_forward.26} parent=0 // pred_check_branch
    %10 = sbr.rel (0) target = $region5
  $region4: #{cam_forward.26} parent=0 // pred_region
    _
  $region5: #{cam_forward.26} parent=0 // pred_fallthru
    _
  // Predicated region
  $region6: #{cam_forward.26} parent=0 // pred_check
    _
  $region7: #{cam_forward.26} parent=0 // pred_check_branch
    %12 = sbr.rel (0) target = $region9
  $region8: #{cam_forward.26} parent=0 // pred_region
    _
  $region9: #{cam_forward.26} parent=0 // pred_fallthru
    _
  // Predicated region
  $region10: #{cam_forward.26} parent=0 // pred_check
    _
  $region11: #{cam_forward.26} parent=0 // pred_check_branch
    %14 = sbr.rel (0) target = $region13
  $region12: #{cam_forward.26} parent=0 // pred_region
    _
  $region13: #{cam_forward.26} parent=0 // pred_fallthru
    _
  // Predicated region
  $region14: #{cam_forward.26} parent=0 // pred_check
    _
  $region15: #{cam_forward.26} parent=0 // pred_check_branch
    %16 = sbr.rel (0) target = $region17
  $region16: #{cam_forward.26} parent=0 // pred_region
    _
  $region17: #{cam_forward.26} parent=0 // pred_fallthru
    _
  %v18 = vld [vmem:[%s0] sm:$0xf]
  %v19 = vld [vmem:[%s0 + $0x4] sm:$0xf]
  %v20 = vld [vmem:[%s0 + $0x8] sm:$0xf]
  %v21 = vld [vmem:[%s0 + $0xc] sm:$0xf]
  %v22 = vld [vmem:[%s0 + $0x10] sm:$0xf]
  %v23 = vld [vmem:[%s0 + $0x14] sm:$0xf]
  %v24 = vld [vmem:[%s0 + $0x18] sm:$0xf]
  %v25 = vld [vmem:[%s0 + $0x1c] sm:$0xf]
  %v26 = vld [vmem:[%s0 + $0x20] sm:$0xf]
  %v27 = vld [vmem:[%s0 + $0x24] sm:$0xf]
  %v28 = vld [vmem:[%s0 + $0x28] sm:$0xf]
  %v29 = vld [vmem:[%s0 + $0x2c] sm:$0xf]
  %v30 = vld [vmem:[%s0 + $0x30] sm:$0xf]
  %v31 = vld [vmem:[%s0 + $0x34] sm:$0xf]
  %v32 = vld [vmem:[%s0 + $0x38] sm:$0xf]
  %v33 = vld [vmem:[%s0 + $0x3c] sm:$0xf]
  %v34 = vld [vmem:[%s1] sm:$0xf]
  %v35 = vld [vmem:[%s1 + $0x4] sm:$0xf]
  %v36 = vld [vmem:[%s1 + $0x8] sm:$0xf]
  %v37 = vld [vmem:[%s1 + $0xc] sm:$0xf]
  %v38 = vld [vmem:[%s1 + $0x10] sm:$0xf]
  %v39 = vld [vmem:[%s1 + $0x14] sm:$0xf]
  %v40 = vld [vmem:[%s1 + $0x18] sm:$0xf]
  %v41 = vld [vmem:[%s1 + $0x1c] sm:$0xf]
  %v42 = vld [vmem:[%s1 + $0x20] sm:$0xf]
  %v43 = vld [vmem:[%s1 + $0x24] sm:$0xf]
  %v44 = vld [vmem:[%s1 + $0x28] sm:$0xf]
  %v45 = vld [vmem:[%s1 + $0x2c] sm:$0xf]
  %v46 = vld [vmem:[%s1 + $0x30] sm:$0xf]
  %v47 = vld [vmem:[%s1 + $0x34] sm:$0xf]
  %v48 = vld [vmem:[%s1 + $0x38] sm:$0xf]
  %v49 = vld [vmem:[%s1 + $0x3c] sm:$0xf]
  %v66 = vunpack.c.l.b16 %v18
  %v67 = vunpack.c.l.b16 %v19
  %v68 = vunpack.c.l.b16 %v20
  %v69 = vunpack.c.l.b16 %v21
  %v70 = vunpack.c.l.b16 %v22
  %v71 = vunpack.c.l.b16 %v23
  %v72 = vunpack.c.l.b16 %v24
  %v73 = vunpack.c.l.b16 %v25
  %v74 = vunpack.c.l.b16 %v26
  %v75 = vunpack.c.l.b16 %v27
  %v76 = vunpack.c.l.b16 %v28
  %v77 = vunpack.c.l.b16 %v29
  %v78 = vunpack.c.l.b16 %v30
  %v79 = vunpack.c.l.b16 %v31
  %v80 = vunpack.c.l.b16 %v32
  %v81 = vunpack.c.l.b16 %v33
  %v82 = vpack.c.b16 %v67, %v66
  %v83 = vpack.c.b16 %v69, %v68
  %v84 = vpack.c.b16 %v71, %v70
  %v85 = vpack.c.b16 %v73, %v72
  %v86 = vpack.c.b16 %v75, %v74
  %v87 = vpack.c.b16 %v77, %v76
  %v88 = vpack.c.b16 %v79, %v78
  %v89 = vpack.c.b16 %v81, %v80
  %v114 = vunpack.c.l.b16 %v34
  %v115 = vunpack.c.l.b16 %v35
  %v116 = vunpack.c.l.b16 %v36
  %v117 = vunpack.c.l.b16 %v37
  %v118 = vunpack.c.l.b16 %v38
  %v119 = vunpack.c.l.b16 %v39
  %v120 = vunpack.c.l.b16 %v40
  %v121 = vunpack.c.l.b16 %v41
  %v122 = vunpack.c.l.b16 %v42
  %v123 = vunpack.c.l.b16 %v43
  %v124 = vunpack.c.l.b16 %v44
  %v125 = vunpack.c.l.b16 %v45
  %v126 = vunpack.c.l.b16 %v46
  %v127 = vunpack.c.l.b16 %v47
  %v128 = vunpack.c.l.b16 %v48
  %v129 = vunpack.c.l.b16 %v49
  %v130 = vpack.c.b16 %v115, %v114
  %v131 = vpack.c.b16 %v117, %v116
  %v132 = vpack.c.b16 %v119, %v118
  %v133 = vpack.c.b16 %v121, %v120
  %v134 = vpack.c.b16 %v123, %v122
  %v135 = vpack.c.b16 %v125, %v124
  %v136 = vpack.c.b16 %v127, %v126
  %v137 = vpack.c.b16 %v129, %v128
  %146 = vmatprep.subr.bf16.mxu0 0
  %147 = vmatpush1.bf16.msra.mxu0 %v130
  %148 = vmatprep.subr.bf16.mxu0 0
  %149 = vmatpush1.bf16.msra.mxu0 %v131
  %150 = vmatprep.subr.bf16.mxu0 0
  %151 = vmatpush1.bf16.msra.mxu0 %v132
  %152 = vmatprep.subr.bf16.mxu0 0
  %153 = vmatpush1.bf16.msra.mxu0 %v133
  %154 = vmatprep.subr.bf16.mxu0 0
  %155 = vmatpush1.bf16.msra.mxu0 %v134
  %156 = vmatprep.subr.bf16.mxu0 0
  %157 = vmatpush1.bf16.msra.mxu0 %v135
  %158 = vmatprep.subr.bf16.mxu0 0
  %159 = vmatpush1.bf16.msra.mxu0 %v136
  %160 = vmatprep.subr.bf16.mxu0 0
  %161 = vmatpush1.bf16.msra.mxu0 %v137
  %162 = vmatprep.subr.bf16.mxu0 0
  %163 = vmatpush1.bf16.msra.mxu0 0
  %164 = vmatprep.subr.bf16.mxu0 0
  %165 = vmatpush1.bf16.msra.mxu0 0
  %166 = vmatprep.subr.bf16.mxu0 0
  %167 = vmatpush1.bf16.msra.mxu0 0
  %168 = vmatprep.subr.bf16.mxu0 0
  %169 = vmatpush1.bf16.msra.mxu0 0
  %170 = vmatprep.subr.bf16.mxu0 0
  %171 = vmatpush1.bf16.msra.mxu0 0
  %172 = vmatprep.subr.bf16.mxu0 0
  %173 = vmatpush1.bf16.msra.mxu0 0
  %174 = vmatprep.subr.bf16.mxu0 0
  %175 = vmatpush1.bf16.msra.mxu0 0
  %176 = vmatprep.subr.bf16.mxu0 0
  %177 = vmatpush1.bf16.msra.mxu0 0
  %178 = vmatprep.mubr.bf16.mxu0 0
  %179 = vmatmul.mubr.bf16.gmra.mrb[0].mxu0 %v82
  %v180 = vpop.f32.mrb[0].mxu0
  %v181 = vadd.f32 0.0, %v180
  %v182 = vpop.f32.mrb[0].mxu0
  %v183 = vpop.f32.mrb[0].mxu0
  %v184 = vadd.f32 0.0, %v183
  %v185 = vpop.f32.mrb[0].mxu0
  %186 = vmatprep.mubr.bf16.mxu0 0
  %187 = vmatmul.mubr.bf16.gmra.mrb[0].mxu0 %v83
  %v188 = vpop.f32.mrb[0].mxu0
  %v189 = vadd.f32 0.0, %v188
  %v190 = vpop.f32.mrb[0].mxu0
  %v191 = vpop.f32.mrb[0].mxu0
  %v192 = vadd.f32 0.0, %v191
  %v193 = vpop.f32.mrb[0].mxu0
  %194 = vmatprep.mubr.bf16.mxu0 0
  %195 = vmatmul.mubr.bf16.gmra.mrb[0].mxu0 %v84
  %v196 = vpop.f32.mrb[0].mxu0
  %v197 = vadd.f32 0.0, %v196
  %v198 = vpop.f32.mrb[0].mxu0
  %v199 = vpop.f32.mrb[0].mxu0
  %v200 = vadd.f32 0.0, %v199
  %v201 = vpop.f32.mrb[0].mxu0
  %202 = vmatprep.mubr.bf16.mxu0 0
  %203 = vmatmul.mubr.bf16.gmra.mrb[0].mxu0 %v85
  %v204 = vpop.f32.mrb[0].mxu0
  %v205 = vadd.f32 0.0, %v204
  %v206 = vpop.f32.mrb[0].mxu0
  %v207 = vpop.f32.mrb[0].mxu0
  %v208 = vadd.f32 0.0, %v207
  %v209 = vpop.f32.mrb[0].mxu0
  %210 = vmatprep.mubr.bf16.mxu0 0
  %211 = vmatmul.mubr.bf16.gmra.mrb[0].mxu0 %v86
  %v212 = vpop.f32.mrb[0].mxu0
  %v213 = vadd.f32 0.0, %v212
  %v214 = vpop.f32.mrb[0].mxu0
  %v215 = vpop.f32.mrb[0].mxu0
  %v216 = vadd.f32 0.0, %v215
  %v217 = vpop.f32.mrb[0].mxu0
  %218 = vmatprep.mubr.bf16.mxu0 0
  %219 = vmatmul.mubr.bf16.gmra.mrb[0].mxu0 %v87
  %v220 = vpop.f32.mrb[0].mxu0
  %v221 = vadd.f32 0.0, %v220
  %v222 = vpop.f32.mrb[0].mxu0
  %v223 = vpop.f32.mrb[0].mxu0
  %v224 = vadd.f32 0.0, %v223
  %v225 = vpop.f32.mrb[0].mxu0
  %226 = vmatprep.mubr.bf16.mxu0 0
  %227 = vmatmul.mubr.bf16.gmra.mrb[0].mxu0 %v88
  %v228 = vpop.f32.mrb[0].mxu0
  %v229 = vadd.f32 0.0, %v228
  %v230 = vpop.f32.mrb[0].mxu0
  %v231 = vpop.f32.mrb[0].mxu0
  %v232 = vadd.f32 0.0, %v231
  %v233 = vpop.f32.mrb[0].mxu0
  %234 = vmatprep.mubr.bf16.mxu0 0
  %235 = vmatmul.mubr.bf16.gmra.mrb[0].mxu0 %v89
  %v236 = vpop.f32.mrb[0].mxu0
  %v237 = vadd.f32 0.0, %v236
  %v238 = vpop.f32.mrb[0].mxu0
  %v239 = vpop.f32.mrb[0].mxu0
  %v240 = vadd.f32 0.0, %v239
  %v241 = vpop.f32.mrb[0].mxu0
  %242 = vdwg.mxu0
  %v243 = vld [vmem:[%s2] sm:$0x1]
  %v245 = vlaneseq
  %v246 = vshrl.u32 %v245, 7
  %v247 = vsub.s32 0, %v246
  %v248 = vrot.slane %v243, %v247
  %v250 = vmul.f32 %v181, %v248
  %v251 = vmul.f32 %v184, %v248
  %v252 = vmul.f32 %v189, %v248
  %v253 = vmul.f32 %v192, %v248
  %v254 = vmul.f32 %v197, %v248
  %v255 = vmul.f32 %v200, %v248
  %v256 = vmul.f32 %v205, %v248
  %v257 = vmul.f32 %v208, %v248
  %v258 = vmul.f32 %v213, %v248
  %v259 = vmul.f32 %v216, %v248
  %v260 = vmul.f32 %v221, %v248
  %v261 = vmul.f32 %v224, %v248
  %v262 = vmul.f32 %v229, %v248
  %v263 = vmul.f32 %v232, %v248
  %v264 = vmul.f32 %v237, %v248
  %v265 = vmul.f32 %v240, %v248
  %v266 = vld [vmem:[%s3] sm:$0x1]
  %v268 = vlaneseq
  %v269 = vshrl.u32 %v268, 7
  %v270 = vsub.s32 0, %v269
  %v271 = vrot.slane %v266, %v270
  %v273 = vadd.f32 %v250, %v271
  %v274 = vadd.f32 %v251, %v271
  %v275 = vadd.f32 %v252, %v271
  %v276 = vadd.f32 %v253, %v271
  %v277 = vadd.f32 %v254, %v271
  %v278 = vadd.f32 %v255, %v271
  %v279 = vadd.f32 %v256, %v271
  %v280 = vadd.f32 %v257, %v271
  %v281 = vadd.f32 %v258, %v271
  %v282 = vadd.f32 %v259, %v271
  %v283 = vadd.f32 %v260, %v271
  %v284 = vadd.f32 %v261, %v271
  %v285 = vadd.f32 %v262, %v271
  %v286 = vadd.f32 %v263, %v271
  %v287 = vadd.f32 %v264, %v271
  %v288 = vadd.f32 %v265, %v271
  %289 = vst [vmem:[%s4] sm:$0xff] %v273
  %290 = vst [vmem:[%s4 + $0x8] sm:$0xff] %v274
  %291 = vst [vmem:[%s4 + $0x10] sm:$0xff] %v275
  %292 = vst [vmem:[%s4 + $0x18] sm:$0xff] %v276
  %293 = vst [vmem:[%s4 + $0x20] sm:$0xff] %v277
  %294 = vst [vmem:[%s4 + $0x28] sm:$0xff] %v278
  %295 = vst [vmem:[%s4 + $0x30] sm:$0xff] %v279
  %296 = vst [vmem:[%s4 + $0x38] sm:$0xff] %v280
  %297 = vst [vmem:[%s4 + $0x40] sm:$0xff] %v281
  %298 = vst [vmem:[%s4 + $0x48] sm:$0xff] %v282
  %299 = vst [vmem:[%s4 + $0x50] sm:$0xff] %v283
  %300 = vst [vmem:[%s4 + $0x58] sm:$0xff] %v284
  %301 = vst [vmem:[%s4 + $0x60] sm:$0xff] %v285
  %302 = vst [vmem:[%s4 + $0x68] sm:$0xff] %v286
  %303 = vst [vmem:[%s4 + $0x70] sm:$0xff] %v287
  %304 = vst [vmem:[%s4 + $0x78] sm:$0xff] %v288
  // Predicated region
  $region18: #{cam_forward.26} parent=0 // pred_check
    _
  $region19: #{cam_forward.26} parent=0 // pred_check_branch
    %306 = sbr.rel (0) target = $region21
  $region20: #{cam_forward.26} parent=0 // pred_region
    _
  $region21: #{cam_forward.26} parent=0 // pred_fallthru
    _
  // Predicated region
  $region22: #{cam_forward.26} parent=0 // pred_check
    _
  $region23: #{cam_forward.26} parent=0 // pred_check_branch
    %308 = sbr.rel (0) target = $region25
  $region24: #{cam_forward.26} parent=0 // pred_region
    _
  $region25: #{cam_forward.26} parent=0 // pred_fallthru
    _

// kernel: cam_forward.25
$region0: #{cam_forward.25}
  #allocation0 [shape = 'u32[]', space=smem, size = 0x4, offset = 0x4, fixed_abs, tag = 'smem constant byte address 0x4 - core index']
  #allocation1 [shape = 'u32[144,128]{1,0:T(1,128)}', space=vmem, size = 0x12000, scoped, tag = 'internal scratch']
  %s0 = inlined_call_operand.vmem [shape: bf16[128,128], index: 0, kind: input, shape index: {}]
  %s1 = inlined_call_operand.vmem [shape: bf16[128,128], index: 1, kind: input, shape index: {}]
  %s2 = inlined_call_operand.vmem [shape: f32[1,128], index: 2, kind: input, shape index: {}]
  %s3 = inlined_call_operand.vmem [shape: f32[1,128], index: 3, kind: input, shape index: {}]
  %s4 = inlined_call_operand.vmem [shape: f32[128,128], index: 4, kind: output, shape index: {}]
  %s5 = sld [smem:[#allocation0]]
  $region26: #{cam_forward.25} parent=0
    _
  %s7 = ssub.s32 1, %s5
  %s8 = scalar_select 0, %s7, %s5
  // Predicated region
  $region2: #{cam_forward.25} parent=0 // pred_check
    _
  $region3: #{cam_forward.25} parent=0 // pred_check_branch
    %10 = sbr.rel (0) target = $region5
  $region4: #{cam_forward.25} parent=0 // pred_region
    _
  $region5: #{cam_forward.25} parent=0 // pred_fallthru
    _
  // Predicated region
  $region6: #{cam_forward.25} parent=0 // pred_check
    _
  $region7: #{cam_forward.25} parent=0 // pred_check_branch
    %12 = sbr.rel (0) target = $region9
  $region8: #{cam_forward.25} parent=0 // pred_region
    _
  $region9: #{cam_forward.25} parent=0 // pred_fallthru
    _
  // Predicated region
  $region10: #{cam_forward.25} parent=0 // pred_check
    _
  $region11: #{cam_forward.25} parent=0 // pred_check_branch
    %14 = sbr.rel (0) target = $region13
  $region12: #{cam_forward.25} parent=0 // pred_region
    _
  $region13: #{cam_forward.25} parent=0 // pred_fallthru
    _
  // Predicated region
  $region14: #{cam_forward.25} parent=0 // pred_check
    _
  $region15: #{cam_forward.25} parent=0 // pred_check_branch
    %16 = sbr.rel (0) target = $region17
  $region16: #{cam_forward.25} parent=0 // pred_region
    _
  $region17: #{cam_forward.25} parent=0 // pred_fallthru
    _
  %v18 = vld [vmem:[%s0] sm:$0xf]
  %v19 = vld [vmem:[%s0 + $0x4] sm:$0xf]
  %v20 = vld [vmem:[%s0 + $0x8] sm:$0xf]
  %v21 = vld [vmem:[%s0 + $0xc] sm:$0xf]
  %v22 = vld [vmem:[%s0 + $0x10] sm:$0xf]
  %v23 = vld [vmem:[%s0 + $0x14] sm:$0xf]
  %v24 = vld [vmem:[%s0 + $0x18] sm:$0xf]
  %v25 = vld [vmem:[%s0 + $0x1c] sm:$0xf]
  %v26 = vld [vmem:[%s0 + $0x20] sm:$0xf]
  %v27 = vld [vmem:[%s0 + $0x24] sm:$0xf]
  %v28 = vld [vmem:[%s0 + $0x28] sm:$0xf]
  %v29 = vld [vmem:[%s0 + $0x2c] sm:$0xf]
  %v30 = vld [vmem:[%s0 + $0x30] sm:$0xf]
  %v31 = vld [vmem:[%s0 + $0x34] sm:$0xf]
  %v32 = vld [vmem:[%s0 + $0x38] sm:$0xf]
  %v33 = vld [vmem:[%s0 + $0x3c] sm:$0xf]
  %v34 = vld [vmem:[%s1] sm:$0xf]
  %v35 = vld [vmem:[%s1 + $0x4] sm:$0xf]
  %v36 = vld [vmem:[%s1 + $0x8] sm:$0xf]
  %v37 = vld [vmem:[%s1 + $0xc] sm:$0xf]
  %v38 = vld [vmem:[%s1 + $0x10] sm:$0xf]
  %v39 = vld [vmem:[%s1 + $0x14] sm:$0xf]
  %v40 = vld [vmem:[%s1 + $0x18] sm:$0xf]
  %v41 = vld [vmem:[%s1 + $0x1c] sm:$0xf]
  %v42 = vld [vmem:[%s1 + $0x20] sm:$0xf]
  %v43 = vld [vmem:[%s1 + $0x24] sm:$0xf]
  %v44 = vld [vmem:[%s1 + $0x28] sm:$0xf]
  %v45 = vld [vmem:[%s1 + $0x2c] sm:$0xf]
  %v46 = vld [vmem:[%s1 + $0x30] sm:$0xf]
  %v47 = vld [vmem:[%s1 + $0x34] sm:$0xf]
  %v48 = vld [vmem:[%s1 + $0x38] sm:$0xf]
  %v49 = vld [vmem:[%s1 + $0x3c] sm:$0xf]
  %v66 = vunpack.c.l.b16 %v18
  %v67 = vunpack.c.l.b16 %v19
  %v68 = vunpack.c.l.b16 %v20
  %v69 = vunpack.c.l.b16 %v21
  %v70 = vunpack.c.l.b16 %v22
  %v71 = vunpack.c.l.b16 %v23
  %v72 = vunpack.c.l.b16 %v24
  %v73 = vunpack.c.l.b16 %v25
  %v74 = vunpack.c.l.b16 %v26
  %v75 = vunpack.c.l.b16 %v27
  %v76 = vunpack.c.l.b16 %v28
  %v77 = vunpack.c.l.b16 %v29
  %v78 = vunpack.c.l.b16 %v30
  %v79 = vunpack.c.l.b16 %v31
  %v80 = vunpack.c.l.b16 %v32
  %v81 = vunpack.c.l.b16 %v33
  %v82 = vpack.c.b16 %v67, %v66
  %v83 = vpack.c.b16 %v69, %v68
  %v84 = vpack.c.b16 %v71, %v70
  %v85 = vpack.c.b16 %v73, %v72
  %v86 = vpack.c.b16 %v75, %v74
  %v87 = vpack.c.b16 %v77, %v76
  %v88 = vpack.c.b16 %v79, %v78
  %v89 = vpack.c.b16 %v81, %v80
  %v114 = vunpack.c.l.b16 %v34
  %v115 = vunpack.c.l.b16 %v35
  %v116 = vunpack.c.l.b16 %v36
  %v117 = vunpack.c.l.b16 %v37
  %v118 = vunpack.c.l.b16 %v38
  %v119 = vunpack.c.l.b16 %v39
  %v120 = vunpack.c.l.b16 %v40
  %v121 = vunpack.c.l.b16 %v41
  %v122 = vunpack.c.l.b16 %v42
  %v123 = vunpack.c.l.b16 %v43
  %v124 = vunpack.c.l.b16 %v44
  %v125 = vunpack.c.l.b16 %v45
  %v126 = vunpack.c.l.b16 %v46
  %v127 = vunpack.c.l.b16 %v47
  %v128 = vunpack.c.l.b16 %v48
  %v129 = vunpack.c.l.b16 %v49
  %v130 = vpack.c.b16 %v115, %v114
  %v131 = vpack.c.b16 %v117, %v116
  %v132 = vpack.c.b16 %v119, %v118
  %v133 = vpack.c.b16 %v121, %v120
  %v134 = vpack.c.b16 %v123, %v122
  %v135 = vpack.c.b16 %v125, %v124
  %v136 = vpack.c.b16 %v127, %v126
  %v137 = vpack.c.b16 %v129, %v128
  %146 = vmatprep.subr.bf16.mxu0 0
  %147 = vmatpush1.bf16.msra.mxu0 %v130
  %148 = vmatprep.subr.bf16.mxu0 0
  %149 = vmatpush1.bf16.msra.mxu0 %v131
  %150 = vmatprep.subr.bf16.mxu0 0
  %151 = vmatpush1.bf16.msra.mxu0 %v132
  %152 = vmatprep.subr.bf16.mxu0 0
  %153 = vmatpush1.bf16.msra.mxu0 %v133
  %154 = vmatprep.subr.bf16.mxu0 0
  %155 = vmatpush1.bf16.msra.mxu0 %v134
  %156 = vmatprep.subr.bf16.mxu0 0
  %157 = vmatpush1.bf16.msra.mxu0 %v135
  %158 = vmatprep.subr.bf16.mxu0 0
  %159 = vmatpush1.bf16.msra.mxu0 %v136
  %160 = vmatprep.subr.bf16.mxu0 0
  %161 = vmatpush1.bf16.msra.mxu0 %v137
  %162 = vmatprep.subr.bf16.mxu0 0
  %163 = vmatpush1.bf16.msra.mxu0 0
  %164 = vmatprep.subr.bf16.mxu0 0
  %165 = vmatpush1.bf16.msra.mxu0 0
  %166 = vmatprep.subr.bf16.mxu0 0
  %167 = vmatpush1.bf16.msra.mxu0 0
  %168 = vmatprep.subr.bf16.mxu0 0
  %169 = vmatpush1.bf16.msra.mxu0 0
  %170 = vmatprep.subr.bf16.mxu0 0
  %171 = vmatpush1.bf16.msra.mxu0 0
  %172 = vmatprep.subr.bf16.mxu0 0
  %173 = vmatpush1.bf16.msra.mxu0 0
  %174 = vmatprep.subr.bf16.mxu0 0
  %175 = vmatpush1.bf16.msra.mxu0 0
  %176 = vmatprep.subr.bf16.mxu0 0
  %177 = vmatpush1.bf16.msra.mxu0 0
  %178 = vmatprep.mubr.bf16.mxu0 0
  %179 = vmatmul.mubr.bf16.gmra.mrb[0].mxu0 %v82
  %v180 = vpop.f32.mrb[0].mxu0
  %v181 = vadd.f32 0.0, %v180
  %v182 = vpop.f32.mrb[0].mxu0
  %v183 = vpop.f32.mrb[0].mxu0
  %v184 = vadd.f32 0.0, %v183
  %v185 = vpop.f32.mrb[0].mxu0
  %186 = vmatprep.mubr.bf16.mxu0 0
  %187 = vmatmul.mubr.bf16.gmra.mrb[0].mxu0 %v83
  %v188 = vpop.f32.mrb[0].mxu0
  %v189 = vadd.f32 0.0, %v188
  %v190 = vpop.f32.mrb[0].mxu0
  %v191 = vpop.f32.mrb[0].mxu0
  %v192 = vadd.f32 0.0, %v191
  %v193 = vpop.f32.mrb[0].mxu0
  %194 = vmatprep.mubr.bf16.mxu0 0
  %195 = vmatmul.mubr.bf16.gmra.mrb[0].mxu0 %v84
  %v196 = vpop.f32.mrb[0].mxu0
  %v197 = vadd.f32 0.0, %v196
  %v198 = vpop.f32.mrb[0].mxu0
  %v199 = vpop.f32.mrb[0].mxu0
  %v200 = vadd.f32 0.0, %v199
  %v201 = vpop.f32.mrb[0].mxu0
  %202 = vmatprep.mubr.bf16.mxu0 0
  %203 = vmatmul.mubr.bf16.gmra.mrb[0].mxu0 %v85
  %v204 = vpop.f32.mrb[0].mxu0
  %v205 = vadd.f32 0.0, %v204
  %v206 = vpop.f32.mrb[0].mxu0
  %v207 = vpop.f32.mrb[0].mxu0
  %v208 = vadd.f32 0.0, %v207
  %v209 = vpop.f32.mrb[0].mxu0
  %210 = vmatprep.mubr.bf16.mxu0 0
  %211 = vmatmul.mubr.bf16.gmra.mrb[0].mxu0 %v86
  %v212 = vpop.f32.mrb[0].mxu0
  %v213 = vadd.f32 0.0, %v212
  %v214 = vpop.f32.mrb[0].mxu0
  %v215 = vpop.f32.mrb[0].mxu0
  %v216 = vadd.f32 0.0, %v215
  %v217 = vpop.f32.mrb[0].mxu0
  %218 = vmatprep.mubr.bf16.mxu0 0
  %219 = vmatmul.mubr.bf16.gmra.mrb[0].mxu0 %v87
  %v220 = vpop.f32.mrb[0].mxu0
  %v221 = vadd.f32 0.0, %v220
  %v222 = vpop.f32.mrb[0].mxu0
  %v223 = vpop.f32.mrb[0].mxu0
  %v224 = vadd.f32 0.0, %v223
  %v225 = vpop.f32.mrb[0].mxu0
  %226 = vmatprep.mubr.bf16.mxu0 0
  %227 = vmatmul.mubr.bf16.gmra.mrb[0].mxu0 %v88
  %v228 = vpop.f32.mrb[0].mxu0
  %v229 = vadd.f32 0.0, %v228
  %v230 = vpop.f32.mrb[0].mxu0
  %v231 = vpop.f32.mrb[0].mxu0
  %v232 = vadd.f32 0.0, %v231
  %v233 = vpop.f32.mrb[0].mxu0
  %234 = vmatprep.mubr.bf16.mxu0 0
  %235 = vmatmul.mubr.bf16.gmra.mrb[0].mxu0 %v89
  %v236 = vpop.f32.mrb[0].mxu0
  %v237 = vadd.f32 0.0, %v236
  %v238 = vpop.f32.mrb[0].mxu0
  %v239 = vpop.f32.mrb[0].mxu0
  %v240 = vadd.f32 0.0, %v239
  %v241 = vpop.f32.mrb[0].mxu0
  %242 = vdwg.mxu0
  %v243 = vld [vmem:[%s2] sm:$0x1]
  %v245 = vlaneseq
  %v246 = vshrl.u32 %v245, 7
  %v247 = vsub.s32 0, %v246
  %v248 = vrot.slane %v243, %v247
  %v250 = vmul.f32 %v181, %v248
  %v251 = vmul.f32 %v184, %v248
  %v252 = vmul.f32 %v189, %v248
  %v253 = vmul.f32 %v192, %v248
  %v254 = vmul.f32 %v197, %v248
  %v255 = vmul.f32 %v200, %v248
  %v256 = vmul.f32 %v205, %v248
  %v257 = vmul.f32 %v208, %v248
  %v258 = vmul.f32 %v213, %v248
  %v259 = vmul.f32 %v216, %v248
  %v260 = vmul.f32 %v221, %v248
  %v261 = vmul.f32 %v224, %v248
  %v262 = vmul.f32 %v229, %v248
  %v263 = vmul.f32 %v232, %v248
  %v264 = vmul.f32 %v237, %v248
  %v265 = vmul.f32 %v240, %v248
  %v266 = vld [vmem:[%s3] sm:$0x1]
  %v268 = vlaneseq
  %v269 = vshrl.u32 %v268, 7
  %v270 = vsub.s32 0, %v269
  %v271 = vrot.slane %v266, %v270
  %v273 = vadd.f32 %v250, %v271
  %v274 = vadd.f32 %v251, %v271
  %v275 = vadd.f32 %v252, %v271
  %v276 = vadd.f32 %v253, %v271
  %v277 = vadd.f32 %v254, %v271
  %v278 = vadd.f32 %v255, %v271
  %v279 = vadd.f32 %v256, %v271
  %v280 = vadd.f32 %v257, %v271
  %v281 = vadd.f32 %v258, %v271
  %v282 = vadd.f32 %v259, %v271
  %v283 = vadd.f32 %v260, %v271
  %v284 = vadd.f32 %v261, %v271
  %v285 = vadd.f32 %v262, %v271
  %v286 = vadd.f32 %v263, %v271
  %v287 = vadd.f32 %v264, %v271
  %v288 = vadd.f32 %v265, %v271
  %v289 = vmax.f32 %v273, 0.0
  %v290 = vmax.f32 %v274, 0.0
  %v291 = vmax.f32 %v275, 0.0
  %v292 = vmax.f32 %v276, 0.0
  %v293 = vmax.f32 %v277, 0.0
  %v294 = vmax.f32 %v278, 0.0
  %v295 = vmax.f32 %v279, 0.0
  %v296 = vmax.f32 %v280, 0.0
  %v297 = vmax.f32 %v281, 0.0
  %v298 = vmax.f32 %v282, 0.0
  %v299 = vmax.f32 %v283, 0.0
  %v300 = vmax.f32 %v284, 0.0
  %v301 = vmax.f32 %v285, 0.0
  %v302 = vmax.f32 %v286, 0.0
  %v303 = vmax.f32 %v287, 0.0
  %v304 = vmax.f32 %v288, 0.0
  %305 = vst [vmem:[%s4] sm:$0xff] %v289
  %306 = vst [vmem:[%s4 + $0x8] sm:$0xff] %v290
  %307 = vst [vmem:[%s4 + $0x10] sm:$0xff] %v291
  %308 = vst [vmem:[%s4 + $0x18] sm:$0xff] %v292
  %309 = vst [vmem:[%s4 + $0x20] sm:$0xff] %v293
  %310 = vst [vmem:[%s4 + $0x28] sm:$0xff] %v294
  %311 = vst [vmem:[%s4 + $0x30] sm:$0xff] %v295
  %312 = vst [vmem:[%s4 + $0x38] sm:$0xff] %v296
  %313 = vst [vmem:[%s4 + $0x40] sm:$0xff] %v297
  %314 = vst [vmem:[%s4 + $0x48] sm:$0xff] %v298
  %315 = vst [vmem:[%s4 + $0x50] sm:$0xff] %v299
  %316 = vst [vmem:[%s4 + $0x58] sm:$0xff] %v300
  %317 = vst [vmem:[%s4 + $0x60] sm:$0xff] %v301
  %318 = vst [vmem:[%s4 + $0x68] sm:$0xff] %v302
  %319 = vst [vmem:[%s4 + $0x70] sm:$0xff] %v303
  %320 = vst [vmem:[%s4 + $0x78] sm:$0xff] %v304
  // Predicated region
  $region18: #{cam_forward.25} parent=0 // pred_check
    _
  $region19: #{cam_forward.25} parent=0 // pred_check_branch
    %322 = sbr.rel (0) target = $region21
  $region20: #{cam_forward.25} parent=0 // pred_region
    _
  $region21: #{cam_forward.25} parent=0 // pred_fallthru
    _
  // Predicated region
  $region22: #{cam_forward.25} parent=0 // pred_check
    _
  $region23: #{cam_forward.25} parent=0 // pred_check_branch
    %324 = sbr.rel (0) target = $region25
  $region24: #{cam_forward.25} parent=0 // pred_region
    _
  $region25: #{cam_forward.25} parent=0 // pred_fallthru
    _

// kernel: cam_forward.27
$region0: #{cam_forward.27}
  #allocation0 [shape = 'u32[]', space=smem, size = 0x4, offset = 0x4, fixed_abs, tag = 'smem constant byte address 0x4 - core index']
  #allocation1 [shape = 'u32[144,128]{1,0:T(1,128)}', space=vmem, size = 0x12000, scoped, tag = 'internal scratch']
  %s0 = inlined_call_operand.vmem [shape: bf16[128,256], index: 0, kind: input, shape index: {}]
  %s1 = inlined_call_operand.vmem [shape: bf16[256,128], index: 1, kind: input, shape index: {}]
  %s2 = inlined_call_operand.vmem [shape: f32[1,128], index: 2, kind: input, shape index: {}]
  %s3 = inlined_call_operand.vmem [shape: f32[1,128], index: 3, kind: input, shape index: {}]
  %s4 = inlined_call_operand.vmem [shape: f32[128,128], index: 4, kind: input, shape index: {}]
  %s5 = inlined_call_operand.vmem [shape: f32[128,128], index: 5, kind: output, shape index: {}]
  %s6 = sld [smem:[#allocation0]]
  $region30: #{cam_forward.27} parent=0
    _
  %s8 = ssub.s32 1, %s6
  %s9 = scalar_select 0, %s8, %s6
  // Predicated region
  $region2: #{cam_forward.27} parent=0 // pred_check
    _
  $region3: #{cam_forward.27} parent=0 // pred_check_branch
    %11 = sbr.rel (0) target = $region5
  $region4: #{cam_forward.27} parent=0 // pred_region
    _
  $region5: #{cam_forward.27} parent=0 // pred_fallthru
    _
  // Predicated region
  $region6: #{cam_forward.27} parent=0 // pred_check
    _
  $region7: #{cam_forward.27} parent=0 // pred_check_branch
    %13 = sbr.rel (0) target = $region9
  $region8: #{cam_forward.27} parent=0 // pred_region
    _
  $region9: #{cam_forward.27} parent=0 // pred_fallthru
    _
  // Predicated region
  $region10: #{cam_forward.27} parent=0 // pred_check
    _
  $region11: #{cam_forward.27} parent=0 // pred_check_branch
    %15 = sbr.rel (0) target = $region13
  $region12: #{cam_forward.27} parent=0 // pred_region
    _
  $region13: #{cam_forward.27} parent=0 // pred_fallthru
    _
  // Predicated region
  $region14: #{cam_forward.27} parent=0 // pred_check
    _
  $region15: #{cam_forward.27} parent=0 // pred_check_branch
    %17 = sbr.rel (0) target = $region17
  $region16: #{cam_forward.27} parent=0 // pred_region
    _
  $region17: #{cam_forward.27} parent=0 // pred_fallthru
    _
  // Predicated region
  $region18: #{cam_forward.27} parent=0 // pred_check
    _
  $region19: #{cam_forward.27} parent=0 // pred_check_branch
    %19 = sbr.rel (0) target = $region21
  $region20: #{cam_forward.27} parent=0 // pred_region
    _
  $region21: #{cam_forward.27} parent=0 // pred_fallthru
    _
  %v21 = vld [vmem:[%s0] sm:$0xff]
  %v22 = vld [vmem:[%s0 + $0x8] sm:$0xff]
  %v23 = vld [vmem:[%s0 + $0x10] sm:$0xff]
  %v24 = vld [vmem:[%s0 + $0x18] sm:$0xff]
  %v25 = vld [vmem:[%s0 + $0x20] sm:$0xff]
  %v26 = vld [vmem:[%s0 + $0x28] sm:$0xff]
  %v27 = vld [vmem:[%s0 + $0x30] sm:$0xff]
  %v28 = vld [vmem:[%s0 + $0x38] sm:$0xff]
  %v29 = vld [vmem:[%s0 + $0x40] sm:$0xff]
  %v30 = vld [vmem:[%s0 + $0x48] sm:$0xff]
  %v31 = vld [vmem:[%s0 + $0x50] sm:$0xff]
  %v32 = vld [vmem:[%s0 + $0x58] sm:$0xff]
  %v33 = vld [vmem:[%s0 + $0x60] sm:$0xff]
  %v34 = vld [vmem:[%s0 + $0x68] sm:$0xff]
  %v35 = vld [vmem:[%s0 + $0x70] sm:$0xff]
  %v36 = vld [vmem:[%s0 + $0x78] sm:$0xff]
  %v37 = vld [vmem:[%s1] sm:$0xf]
  %v38 = vld [vmem:[%s1 + $0x4] sm:$0xf]
  %v39 = vld [vmem:[%s1 + $0x8] sm:$0xf]
  %v40 = vld [vmem:[%s1 + $0xc] sm:$0xf]
  %v41 = vld [vmem:[%s1 + $0x10] sm:$0xf]
  %v42 = vld [vmem:[%s1 + $0x14] sm:$0xf]
  %v43 = vld [vmem:[%s1 + $0x18] sm:$0xf]
  %v44 = vld [vmem:[%s1 + $0x1c] sm:$0xf]
  %v45 = vld [vmem:[%s1 + $0x20] sm:$0xf]
  %v46 = vld [vmem:[%s1 + $0x24] sm:$0xf]
  %v47 = vld [vmem:[%s1 + $0x28] sm:$0xf]
  %v48 = vld [vmem:[%s1 + $0x2c] sm:$0xf]
  %v49 = vld [vmem:[%s1 + $0x30] sm:$0xf]
  %v50 = vld [vmem:[%s1 + $0x34] sm:$0xf]
  %v51 = vld [vmem:[%s1 + $0x38] sm:$0xf]
  %v52 = vld [vmem:[%s1 + $0x3c] sm:$0xf]
  %v53 = vld [vmem:[%s1 + $0x40] sm:$0xf]
  %v54 = vld [vmem:[%s1 + $0x44] sm:$0xf]
  %v55 = vld [vmem:[%s1 + $0x48] sm:$0xf]
  %v56 = vld [vmem:[%s1 + $0x4c] sm:$0xf]
  %v57 = vld [vmem:[%s1 + $0x50] sm:$0xf]
  %v58 = vld [vmem:[%s1 + $0x54] sm:$0xf]
  %v59 = vld [vmem:[%s1 + $0x58] sm:$0xf]
  %v60 = vld [vmem:[%s1 + $0x5c] sm:$0xf]
  %v61 = vld [vmem:[%s1 + $0x60] sm:$0xf]
  %v62 = vld [vmem:[%s1 + $0x64] sm:$0xf]
  %v63 = vld [vmem:[%s1 + $0x68] sm:$0xf]
  %v64 = vld [vmem:[%s1 + $0x6c] sm:$0xf]
  %v65 = vld [vmem:[%s1 + $0x70] sm:$0xf]
  %v66 = vld [vmem:[%s1 + $0x74] sm:$0xf]
  %v67 = vld [vmem:[%s1 + $0x78] sm:$0xf]
  %v68 = vld [vmem:[%s1 + $0x7c] sm:$0xf]
  %v85 = vunpack.c.l.b16 %v21
  %v86 = vunpack.c.h.b16 %v21
  %v87 = vunpack.c.l.b16 %v22
  %v88 = vunpack.c.h.b16 %v22
  %v89 = vunpack.c.l.b16 %v23
  %v90 = vunpack.c.h.b16 %v23
  %v91 = vunpack.c.l.b16 %v24
  %v92 = vunpack.c.h.b16 %v24
  %v93 = vunpack.c.l.b16 %v25
  %v94 = vunpack.c.h.b16 %v25
  %v95 = vunpack.c.l.b16 %v26
  %v96 = vunpack.c.h.b16 %v26
  %v97 = vunpack.c.l.b16 %v27
  %v98 = vunpack.c.h.b16 %v27
  %v99 = vunpack.c.l.b16 %v28
  %v100 = vunpack.c.h.b16 %v28
  %v101 = vunpack.c.l.b16 %v29
  %v102 = vunpack.c.h.b16 %v29
  %v103 = vunpack.c.l.b16 %v30
  %v104 = vunpack.c.h.b16 %v30
  %v105 = vunpack.c.l.b16 %v31
  %v106 = vunpack.c.h.b16 %v31
  %v107 = vunpack.c.l.b16 %v32
  %v108 = vunpack.c.h.b16 %v32
  %v109 = vunpack.c.l.b16 %v33
  %v110 = vunpack.c.h.b16 %v33
  %v111 = vunpack.c.l.b16 %v34
  %v112 = vunpack.c.h.b16 %v34
  %v113 = vunpack.c.l.b16 %v35
  %v114 = vunpack.c.h.b16 %v35
  %v115 = vunpack.c.l.b16 %v36
  %v116 = vunpack.c.h.b16 %v36
  %v117 = vpack.c.b16 %v87, %v85
  %v118 = vpack.c.b16 %v88, %v86
  %v119 = vpack.c.b16 %v91, %v89
  %v120 = vpack.c.b16 %v92, %v90
  %v121 = vpack.c.b16 %v95, %v93
  %v122 = vpack.c.b16 %v96, %v94
  %v123 = vpack.c.b16 %v99, %v97
  %v124 = vpack.c.b16 %v100, %v98
  %v125 = vpack.c.b16 %v103, %v101
  %v126 = vpack.c.b16 %v104, %v102
  %v127 = vpack.c.b16 %v107, %v105
  %v128 = vpack.c.b16 %v108, %v106
  %v129 = vpack.c.b16 %v111, %v109
  %v130 = vpack.c.b16 %v112, %v110
  %v131 = vpack.c.b16 %v115, %v113
  %v132 = vpack.c.b16 %v116, %v114
  %v181 = vunpack.c.l.b16 %v37
  %v182 = vunpack.c.l.b16 %v38
  %v183 = vunpack.c.l.b16 %v39
  %v184 = vunpack.c.l.b16 %v40
  %v185 = vunpack.c.l.b16 %v41
  %v186 = vunpack.c.l.b16 %v42
  %v187 = vunpack.c.l.b16 %v43
  %v188 = vunpack.c.l.b16 %v44
  %v189 = vunpack.c.l.b16 %v45
  %v190 = vunpack.c.l.b16 %v46
  %v191 = vunpack.c.l.b16 %v47
  %v192 = vunpack.c.l.b16 %v48
  %v193 = vunpack.c.l.b16 %v49
  %v194 = vunpack.c.l.b16 %v50
  %v195 = vunpack.c.l.b16 %v51
  %v196 = vunpack.c.l.b16 %v52
  %v197 = vunpack.c.l.b16 %v53
  %v198 = vunpack.c.l.b16 %v54
  %v199 = vunpack.c.l.b16 %v55
  %v200 = vunpack.c.l.b16 %v56
  %v201 = vunpack.c.l.b16 %v57
  %v202 = vunpack.c.l.b16 %v58
  %v203 = vunpack.c.l.b16 %v59
  %v204 = vunpack.c.l.b16 %v60
  %v205 = vunpack.c.l.b16 %v61
  %v206 = vunpack.c.l.b16 %v62
  %v207 = vunpack.c.l.b16 %v63
  %v208 = vunpack.c.l.b16 %v64
  %v209 = vunpack.c.l.b16 %v65
  %v210 = vunpack.c.l.b16 %v66
  %v211 = vunpack.c.l.b16 %v67
  %v212 = vunpack.c.l.b16 %v68
  %v213 = vpack.c.b16 %v182, %v181
  %v214 = vpack.c.b16 %v184, %v183
  %v215 = vpack.c.b16 %v186, %v185
  %v216 = vpack.c.b16 %v188, %v187
  %v217 = vpack.c.b16 %v190, %v189
  %v218 = vpack.c.b16 %v192, %v191
  %v219 = vpack.c.b16 %v194, %v193
  %v220 = vpack.c.b16 %v196, %v195
  %v221 = vpack.c.b16 %v198, %v197
  %v222 = vpack.c.b16 %v200, %v199
  %v223 = vpack.c.b16 %v202, %v201
  %v224 = vpack.c.b16 %v204, %v203
  %v225 = vpack.c.b16 %v206, %v205
  %v226 = vpack.c.b16 %v208, %v207
  %v227 = vpack.c.b16 %v210, %v209
  %v228 = vpack.c.b16 %v212, %v211
  %245 = vmatprep.subr.bf16.mxu0 0
  %246 = vmatpush1.bf16.msra.mxu0 %v213
  %247 = vmatprep.subr.bf16.mxu0 0
  %248 = vmatpush1.bf16.msra.mxu0 %v214
  %249 = vmatprep.subr.bf16.mxu0 0
  %250 = vmatpush1.bf16.msra.mxu0 %v215
  %251 = vmatprep.subr.bf16.mxu0 0
  %252 = vmatpush1.bf16.msra.mxu0 %v216
  %253 = vmatprep.subr.bf16.mxu0 0
  %254 = vmatpush1.bf16.msra.mxu0 %v217
  %255 = vmatprep.subr.bf16.mxu0 0
  %256 = vmatpush1.bf16.msra.mxu0 %v218
  %257 = vmatprep.subr.bf16.mxu0 0
  %258 = vmatpush1.bf16.msra.mxu0 %v219
  %259 = vmatprep.subr.bf16.mxu0 0
  %260 = vmatpush1.bf16.msra.mxu0 %v220
  %261 = vmatprep.subr.bf16.mxu0 0
  %262 = vmatpush1.bf16.msra.mxu0 %v221
  %263 = vmatprep.subr.bf16.mxu0 0
  %264 = vmatpush1.bf16.msra.mxu0 %v222
  %265 = vmatprep.subr.bf16.mxu0 0
  %266 = vmatpush1.bf16.msra.mxu0 %v223
  %267 = vmatprep.subr.bf16.mxu0 0
  %268 = vmatpush1.bf16.msra.mxu0 %v224
  %269 = vmatprep.subr.bf16.mxu0 0
  %270 = vmatpush1.bf16.msra.mxu0 %v225
  %271 = vmatprep.subr.bf16.mxu0 0
  %272 = vmatpush1.bf16.msra.mxu0 %v226
  %273 = vmatprep.subr.bf16.mxu0 0
  %274 = vmatpush1.bf16.msra.mxu0 %v227
  %275 = vmatprep.subr.bf16.mxu0 0
  %276 = vmatpush1.bf16.msra.mxu0 %v228
  %277 = vmatprep.mubr.bf16.mxu0 %v118
  %278 = vmatmul.mubr.bf16.gmra.mrb[0].mxu0 %v117
  %v279 = vpop.f32.mrb[0].mxu0
  %v280 = vadd.f32 0.0, %v279
  %v281 = vpop.f32.mrb[0].mxu0
  %v282 = vpop.f32.mrb[0].mxu0
  %v283 = vadd.f32 0.0, %v282
  %v284 = vpop.f32.mrb[0].mxu0
  %285 = vmatprep.mubr.bf16.mxu0 %v120
  %286 = vmatmul.mubr.bf16.gmra.mrb[0].mxu0 %v119
  %v287 = vpop.f32.mrb[0].mxu0
  %v288 = vadd.f32 0.0, %v287
  %v289 = vpop.f32.mrb[0].mxu0
  %v290 = vpop.f32.mrb[0].mxu0
  %v291 = vadd.f32 0.0, %v290
  %v292 = vpop.f32.mrb[0].mxu0
  %293 = vmatprep.mubr.bf16.mxu0 %v122
  %294 = vmatmul.mubr.bf16.gmra.mrb[0].mxu0 %v121
  %v295 = vpop.f32.mrb[0].mxu0
  %v296 = vadd.f32 0.0, %v295
  %v297 = vpop.f32.mrb[0].mxu0
  %v298 = vpop.f32.mrb[0].mxu0
  %v299 = vadd.f32 0.0, %v298
  %v300 = vpop.f32.mrb[0].mxu0
  %301 = vmatprep.mubr.bf16.mxu0 %v124
  %302 = vmatmul.mubr.bf16.gmra.mrb[0].mxu0 %v123
  %v303 = vpop.f32.mrb[0].mxu0
  %v304 = vadd.f32 0.0, %v303
  %v305 = vpop.f32.mrb[0].mxu0
  %v306 = vpop.f32.mrb[0].mxu0
  %v307 = vadd.f32 0.0, %v306
  %v308 = vpop.f32.mrb[0].mxu0
  %309 = vmatprep.mubr.bf16.mxu0 %v126
  %310 = vmatmul.mubr.bf16.gmra.mrb[0].mxu0 %v125
  %v311 = vpop.f32.mrb[0].mxu0
  %v312 = vadd.f32 0.0, %v311
  %v313 = vpop.f32.mrb[0].mxu0
  %v314 = vpop.f32.mrb[0].mxu0
  %v315 = vadd.f32 0.0, %v314
  %v316 = vpop.f32.mrb[0].mxu0
  %317 = vmatprep.mubr.bf16.mxu0 %v128
  %318 = vmatmul.mubr.bf16.gmra.mrb[0].mxu0 %v127
  %v319 = vpop.f32.mrb[0].mxu0
  %v320 = vadd.f32 0.0, %v319
  %v321 = vpop.f32.mrb[0].mxu0
  %v322 = vpop.f32.mrb[0].mxu0
  %v323 = vadd.f32 0.0, %v322
  %v324 = vpop.f32.mrb[0].mxu0
  %325 = vmatprep.mubr.bf16.mxu0 %v130
  %326 = vmatmul.mubr.bf16.gmra.mrb[0].mxu0 %v129
  %v327 = vpop.f32.mrb[0].mxu0
  %v328 = vadd.f32 0.0, %v327
  %v329 = vpop.f32.mrb[0].mxu0
  %v330 = vpop.f32.mrb[0].mxu0
  %v331 = vadd.f32 0.0, %v330
  %v332 = vpop.f32.mrb[0].mxu0
  %333 = vmatprep.mubr.bf16.mxu0 %v132
  %334 = vmatmul.mubr.bf16.gmra.mrb[0].mxu0 %v131
  %v335 = vpop.f32.mrb[0].mxu0
  %v336 = vadd.f32 0.0, %v335
  %v337 = vpop.f32.mrb[0].mxu0
  %v338 = vpop.f32.mrb[0].mxu0
  %v339 = vadd.f32 0.0, %v338
  %v340 = vpop.f32.mrb[0].mxu0
  %341 = vdwg.mxu0
  %v342 = vld [vmem:[%s2] sm:$0x1]
  %v344 = vlaneseq
  %v345 = vshrl.u32 %v344, 7
  %v346 = vsub.s32 0, %v345
  %v347 = vrot.slane %v342, %v346
  %v349 = vmul.f32 %v280, %v347
  %v350 = vmul.f32 %v283, %v347
  %v351 = vmul.f32 %v288, %v347
  %v352 = vmul.f32 %v291, %v347
  %v353 = vmul.f32 %v296, %v347
  %v354 = vmul.f32 %v299, %v347
  %v355 = vmul.f32 %v304, %v347
  %v356 = vmul.f32 %v307, %v347
  %v357 = vmul.f32 %v312, %v347
  %v358 = vmul.f32 %v315, %v347
  %v359 = vmul.f32 %v320, %v347
  %v360 = vmul.f32 %v323, %v347
  %v361 = vmul.f32 %v328, %v347
  %v362 = vmul.f32 %v331, %v347
  %v363 = vmul.f32 %v336, %v347
  %v364 = vmul.f32 %v339, %v347
  %v365 = vld [vmem:[%s3] sm:$0x1]
  %v367 = vlaneseq
  %v368 = vshrl.u32 %v367, 7
  %v369 = vsub.s32 0, %v368
  %v370 = vrot.slane %v365, %v369
  %v372 = vadd.f32 %v349, %v370
  %v373 = vadd.f32 %v350, %v370
  %v374 = vadd.f32 %v351, %v370
  %v375 = vadd.f32 %v352, %v370
  %v376 = vadd.f32 %v353, %v370
  %v377 = vadd.f32 %v354, %v370
  %v378 = vadd.f32 %v355, %v370
  %v379 = vadd.f32 %v356, %v370
  %v380 = vadd.f32 %v357, %v370
  %v381 = vadd.f32 %v358, %v370
  %v382 = vadd.f32 %v359, %v370
  %v383 = vadd.f32 %v360, %v370
  %v384 = vadd.f32 %v361, %v370
  %v385 = vadd.f32 %v362, %v370
  %v386 = vadd.f32 %v363, %v370
  %v387 = vadd.f32 %v364, %v370
  %v388 = vld [vmem:[%s4] sm:$0xff]
  %v389 = vld [vmem:[%s4 + $0x8] sm:$0xff]
  %v390 = vld [vmem:[%s4 + $0x10] sm:$0xff]
  %v391 = vld [vmem:[%s4 + $0x18] sm:$0xff]
  %v392 = vld [vmem:[%s4 + $0x20] sm:$0xff]
  %v393 = vld [vmem:[%s4 + $0x28] sm:$0xff]
  %v394 = vld [vmem:[%s4 + $0x30] sm:$0xff]
  %v395 = vld [vmem:[%s4 + $0x38] sm:$0xff]
  %v396 = vld [vmem:[%s4 + $0x40] sm:$0xff]
  %v397 = vld [vmem:[%s4 + $0x48] sm:$0xff]
  %v398 = vld [vmem:[%s4 + $0x50] sm:$0xff]
  %v399 = vld [vmem:[%s4 + $0x58] sm:$0xff]
  %v400 = vld [vmem:[%s4 + $0x60] sm:$0xff]
  %v401 = vld [vmem:[%s4 + $0x68] sm:$0xff]
  %v402 = vld [vmem:[%s4 + $0x70] sm:$0xff]
  %v403 = vld [vmem:[%s4 + $0x78] sm:$0xff]
  %v404 = vadd.f32 %v372, %v388
  %v405 = vadd.f32 %v373, %v389
  %v406 = vadd.f32 %v374, %v390
  %v407 = vadd.f32 %v375, %v391
  %v408 = vadd.f32 %v376, %v392
  %v409 = vadd.f32 %v377, %v393
  %v410 = vadd.f32 %v378, %v394
  %v411 = vadd.f32 %v379, %v395
  %v412 = vadd.f32 %v380, %v396
  %v413 = vadd.f32 %v381, %v397
  %v414 = vadd.f32 %v382, %v398
  %v415 = vadd.f32 %v383, %v399
  %v416 = vadd.f32 %v384, %v400
  %v417 = vadd.f32 %v385, %v401
  %v418 = vadd.f32 %v386, %v402
  %v419 = vadd.f32 %v387, %v403
  %v420 = vmax.f32 %v404, 0.0
  %v421 = vmax.f32 %v405, 0.0
  %v422 = vmax.f32 %v406, 0.0
  %v423 = vmax.f32 %v407, 0.0
  %v424 = vmax.f32 %v408, 0.0
  %v425 = vmax.f32 %v409, 0.0
  %v426 = vmax.f32 %v410, 0.0
  %v427 = vmax.f32 %v411, 0.0
  %v428 = vmax.f32 %v412, 0.0
  %v429 = vmax.f32 %v413, 0.0
  %v430 = vmax.f32 %v414, 0.0
  %v431 = vmax.f32 %v415, 0.0
  %v432 = vmax.f32 %v416, 0.0
  %v433 = vmax.f32 %v417, 0.0
  %v434 = vmax.f32 %v418, 0.0
  %v435 = vmax.f32 %v419, 0.0
  %436 = vst [vmem:[%s5] sm:$0xff] %v420
  %437 = vst [vmem:[%s5 + $0x8] sm:$0xff] %v421
  %438 = vst [vmem:[%s5 + $0x10] sm:$0xff] %v422
  %439 = vst [vmem:[%s5 + $0x18] sm:$0xff] %v423
  %440 = vst [vmem:[%s5 + $0x20] sm:$0xff] %v424
  %441 = vst [vmem:[%s5 + $0x28] sm:$0xff] %v425
  %442 = vst [vmem:[%s5 + $0x30] sm:$0xff] %v426
  %443 = vst [vmem:[%s5 + $0x38] sm:$0xff] %v427
  %444 = vst [vmem:[%s5 + $0x40] sm:$0xff] %v428
  %445 = vst [vmem:[%s5 + $0x48] sm:$0xff] %v429
  %446 = vst [vmem:[%s5 + $0x50] sm:$0xff] %v430
  %447 = vst [vmem:[%s5 + $0x58] sm:$0xff] %v431
  %448 = vst [vmem:[%s5 + $0x60] sm:$0xff] %v432
  %449 = vst [vmem:[%s5 + $0x68] sm:$0xff] %v433
  %450 = vst [vmem:[%s5 + $0x70] sm:$0xff] %v434
  %451 = vst [vmem:[%s5 + $0x78] sm:$0xff] %v435
  // Predicated region
  $region22: #{cam_forward.27} parent=0 // pred_check
    _
  $region23: #{cam_forward.27} parent=0 // pred_check_branch
    %453 = sbr.rel (0) target = $region25
  $region24: #{cam_forward.27} parent=0 // pred_region
    _
  $region25: #{cam_forward.27} parent=0 // pred_fallthru
    _
  // Predicated region
  $region26: #{cam_forward.27} parent=0 // pred_check
    _
  $region27: #{cam_forward.27} parent=0 // pred_check_branch
    %455 = sbr.rel (0) target = $region29
  $region28: #{cam_forward.27} parent=0 // pred_region
    _
  $region29: #{cam_forward.27} parent=0 // pred_fallthru
    _

// kernel: cam_forward.28
$region0: #{cam_forward.28}
  #allocation0 [shape = 'u32[]', space=smem, size = 0x4, offset = 0x4, fixed_abs, tag = 'smem constant byte address 0x4 - core index']
  #allocation1 [shape = 'u32[144,128]{1,0:T(1,128)}', space=vmem, size = 0x12000, scoped, tag = 'internal scratch']
  %s0 = inlined_call_operand.vmem [shape: bf16[128,256], index: 0, kind: input, shape index: {}]
  %s1 = inlined_call_operand.vmem [shape: bf16[256,128], index: 1, kind: input, shape index: {}]
  %s2 = inlined_call_operand.vmem [shape: f32[1,128], index: 2, kind: input, shape index: {}]
  %s3 = inlined_call_operand.vmem [shape: f32[1,128], index: 3, kind: input, shape index: {}]
  %s4 = inlined_call_operand.vmem [shape: f32[128,128], index: 4, kind: output, shape index: {}]
  %s5 = sld [smem:[#allocation0]]
  $region26: #{cam_forward.28} parent=0
    _
  %s7 = ssub.s32 1, %s5
  %s8 = scalar_select 0, %s7, %s5
  // Predicated region
  $region2: #{cam_forward.28} parent=0 // pred_check
    _
  $region3: #{cam_forward.28} parent=0 // pred_check_branch
    %10 = sbr.rel (0) target = $region5
  $region4: #{cam_forward.28} parent=0 // pred_region
    _
  $region5: #{cam_forward.28} parent=0 // pred_fallthru
    _
  // Predicated region
  $region6: #{cam_forward.28} parent=0 // pred_check
    _
  $region7: #{cam_forward.28} parent=0 // pred_check_branch
    %12 = sbr.rel (0) target = $region9
  $region8: #{cam_forward.28} parent=0 // pred_region
    _
  $region9: #{cam_forward.28} parent=0 // pred_fallthru
    _
  // Predicated region
  $region10: #{cam_forward.28} parent=0 // pred_check
    _
  $region11: #{cam_forward.28} parent=0 // pred_check_branch
    %14 = sbr.rel (0) target = $region13
  $region12: #{cam_forward.28} parent=0 // pred_region
    _
  $region13: #{cam_forward.28} parent=0 // pred_fallthru
    _
  // Predicated region
  $region14: #{cam_forward.28} parent=0 // pred_check
    _
  $region15: #{cam_forward.28} parent=0 // pred_check_branch
    %16 = sbr.rel (0) target = $region17
  $region16: #{cam_forward.28} parent=0 // pred_region
    _
  $region17: #{cam_forward.28} parent=0 // pred_fallthru
    _
  %v18 = vld [vmem:[%s0] sm:$0xff]
  %v19 = vld [vmem:[%s0 + $0x8] sm:$0xff]
  %v20 = vld [vmem:[%s0 + $0x10] sm:$0xff]
  %v21 = vld [vmem:[%s0 + $0x18] sm:$0xff]
  %v22 = vld [vmem:[%s0 + $0x20] sm:$0xff]
  %v23 = vld [vmem:[%s0 + $0x28] sm:$0xff]
  %v24 = vld [vmem:[%s0 + $0x30] sm:$0xff]
  %v25 = vld [vmem:[%s0 + $0x38] sm:$0xff]
  %v26 = vld [vmem:[%s0 + $0x40] sm:$0xff]
  %v27 = vld [vmem:[%s0 + $0x48] sm:$0xff]
  %v28 = vld [vmem:[%s0 + $0x50] sm:$0xff]
  %v29 = vld [vmem:[%s0 + $0x58] sm:$0xff]
  %v30 = vld [vmem:[%s0 + $0x60] sm:$0xff]
  %v31 = vld [vmem:[%s0 + $0x68] sm:$0xff]
  %v32 = vld [vmem:[%s0 + $0x70] sm:$0xff]
  %v33 = vld [vmem:[%s0 + $0x78] sm:$0xff]
  %v34 = vld [vmem:[%s1] sm:$0xf]
  %v35 = vld [vmem:[%s1 + $0x4] sm:$0xf]
  %v36 = vld [vmem:[%s1 + $0x8] sm:$0xf]
  %v37 = vld [vmem:[%s1 + $0xc] sm:$0xf]
  %v38 = vld [vmem:[%s1 + $0x10] sm:$0xf]
  %v39 = vld [vmem:[%s1 + $0x14] sm:$0xf]
  %v40 = vld [vmem:[%s1 + $0x18] sm:$0xf]
  %v41 = vld [vmem:[%s1 + $0x1c] sm:$0xf]
  %v42 = vld [vmem:[%s1 + $0x20] sm:$0xf]
  %v43 = vld [vmem:[%s1 + $0x24] sm:$0xf]
  %v44 = vld [vmem:[%s1 + $0x28] sm:$0xf]
  %v45 = vld [vmem:[%s1 + $0x2c] sm:$0xf]
  %v46 = vld [vmem:[%s1 + $0x30] sm:$0xf]
  %v47 = vld [vmem:[%s1 + $0x34] sm:$0xf]
  %v48 = vld [vmem:[%s1 + $0x38] sm:$0xf]
  %v49 = vld [vmem:[%s1 + $0x3c] sm:$0xf]
  %v50 = vld [vmem:[%s1 + $0x40] sm:$0xf]
  %v51 = vld [vmem:[%s1 + $0x44] sm:$0xf]
  %v52 = vld [vmem:[%s1 + $0x48] sm:$0xf]
  %v53 = vld [vmem:[%s1 + $0x4c] sm:$0xf]
  %v54 = vld [vmem:[%s1 + $0x50] sm:$0xf]
  %v55 = vld [vmem:[%s1 + $0x54] sm:$0xf]
  %v56 = vld [vmem:[%s1 + $0x58] sm:$0xf]
  %v57 = vld [vmem:[%s1 + $0x5c] sm:$0xf]
  %v58 = vld [vmem:[%s1 + $0x60] sm:$0xf]
  %v59 = vld [vmem:[%s1 + $0x64] sm:$0xf]
  %v60 = vld [vmem:[%s1 + $0x68] sm:$0xf]
  %v61 = vld [vmem:[%s1 + $0x6c] sm:$0xf]
  %v62 = vld [vmem:[%s1 + $0x70] sm:$0xf]
  %v63 = vld [vmem:[%s1 + $0x74] sm:$0xf]
  %v64 = vld [vmem:[%s1 + $0x78] sm:$0xf]
  %v65 = vld [vmem:[%s1 + $0x7c] sm:$0xf]
  %v82 = vunpack.c.l.b16 %v18
  %v83 = vunpack.c.h.b16 %v18
  %v84 = vunpack.c.l.b16 %v19
  %v85 = vunpack.c.h.b16 %v19
  %v86 = vunpack.c.l.b16 %v20
  %v87 = vunpack.c.h.b16 %v20
  %v88 = vunpack.c.l.b16 %v21
  %v89 = vunpack.c.h.b16 %v21
  %v90 = vunpack.c.l.b16 %v22
  %v91 = vunpack.c.h.b16 %v22
  %v92 = vunpack.c.l.b16 %v23
  %v93 = vunpack.c.h.b16 %v23
  %v94 = vunpack.c.l.b16 %v24
  %v95 = vunpack.c.h.b16 %v24
  %v96 = vunpack.c.l.b16 %v25
  %v97 = vunpack.c.h.b16 %v25
  %v98 = vunpack.c.l.b16 %v26
  %v99 = vunpack.c.h.b16 %v26
  %v100 = vunpack.c.l.b16 %v27
  %v101 = vunpack.c.h.b16 %v27
  %v102 = vunpack.c.l.b16 %v28
  %v103 = vunpack.c.h.b16 %v28
  %v104 = vunpack.c.l.b16 %v29
  %v105 = vunpack.c.h.b16 %v29
  %v106 = vunpack.c.l.b16 %v30
  %v107 = vunpack.c.h.b16 %v30
  %v108 = vunpack.c.l.b16 %v31
  %v109 = vunpack.c.h.b16 %v31
  %v110 = vunpack.c.l.b16 %v32
  %v111 = vunpack.c.h.b16 %v32
  %v112 = vunpack.c.l.b16 %v33
  %v113 = vunpack.c.h.b16 %v33
  %v114 = vpack.c.b16 %v84, %v82
  %v115 = vpack.c.b16 %v85, %v83
  %v116 = vpack.c.b16 %v88, %v86
  %v117 = vpack.c.b16 %v89, %v87
  %v118 = vpack.c.b16 %v92, %v90
  %v119 = vpack.c.b16 %v93, %v91
  %v120 = vpack.c.b16 %v96, %v94
  %v121 = vpack.c.b16 %v97, %v95
  %v122 = vpack.c.b16 %v100, %v98
  %v123 = vpack.c.b16 %v101, %v99
  %v124 = vpack.c.b16 %v104, %v102
  %v125 = vpack.c.b16 %v105, %v103
  %v126 = vpack.c.b16 %v108, %v106
  %v127 = vpack.c.b16 %v109, %v107
  %v128 = vpack.c.b16 %v112, %v110
  %v129 = vpack.c.b16 %v113, %v111
  %v178 = vunpack.c.l.b16 %v34
  %v179 = vunpack.c.l.b16 %v35
  %v180 = vunpack.c.l.b16 %v36
  %v181 = vunpack.c.l.b16 %v37
  %v182 = vunpack.c.l.b16 %v38
  %v183 = vunpack.c.l.b16 %v39
  %v184 = vunpack.c.l.b16 %v40
  %v185 = vunpack.c.l.b16 %v41
  %v186 = vunpack.c.l.b16 %v42
  %v187 = vunpack.c.l.b16 %v43
  %v188 = vunpack.c.l.b16 %v44
  %v189 = vunpack.c.l.b16 %v45
  %v190 = vunpack.c.l.b16 %v46
  %v191 = vunpack.c.l.b16 %v47
  %v192 = vunpack.c.l.b16 %v48
  %v193 = vunpack.c.l.b16 %v49
  %v194 = vunpack.c.l.b16 %v50
  %v195 = vunpack.c.l.b16 %v51
  %v196 = vunpack.c.l.b16 %v52
  %v197 = vunpack.c.l.b16 %v53
  %v198 = vunpack.c.l.b16 %v54
  %v199 = vunpack.c.l.b16 %v55
  %v200 = vunpack.c.l.b16 %v56
  %v201 = vunpack.c.l.b16 %v57
  %v202 = vunpack.c.l.b16 %v58
  %v203 = vunpack.c.l.b16 %v59
  %v204 = vunpack.c.l.b16 %v60
  %v205 = vunpack.c.l.b16 %v61
  %v206 = vunpack.c.l.b16 %v62
  %v207 = vunpack.c.l.b16 %v63
  %v208 = vunpack.c.l.b16 %v64
  %v209 = vunpack.c.l.b16 %v65
  %v210 = vpack.c.b16 %v179, %v178
  %v211 = vpack.c.b16 %v181, %v180
  %v212 = vpack.c.b16 %v183, %v182
  %v213 = vpack.c.b16 %v185, %v184
  %v214 = vpack.c.b16 %v187, %v186
  %v215 = vpack.c.b16 %v189, %v188
  %v216 = vpack.c.b16 %v191, %v190
  %v217 = vpack.c.b16 %v193, %v192
  %v218 = vpack.c.b16 %v195, %v194
  %v219 = vpack.c.b16 %v197, %v196
  %v220 = vpack.c.b16 %v199, %v198
  %v221 = vpack.c.b16 %v201, %v200
  %v222 = vpack.c.b16 %v203, %v202
  %v223 = vpack.c.b16 %v205, %v204
  %v224 = vpack.c.b16 %v207, %v206
  %v225 = vpack.c.b16 %v209, %v208
  %242 = vmatprep.subr.bf16.mxu0 0
  %243 = vmatpush1.bf16.msra.mxu0 %v210
  %244 = vmatprep.subr.bf16.mxu0 0
  %245 = vmatpush1.bf16.msra.mxu0 %v211
  %246 = vmatprep.subr.bf16.mxu0 0
  %247 = vmatpush1.bf16.msra.mxu0 %v212
  %248 = vmatprep.subr.bf16.mxu0 0
  %249 = vmatpush1.bf16.msra.mxu0 %v213
  %250 = vmatprep.subr.bf16.mxu0 0
  %251 = vmatpush1.bf16.msra.mxu0 %v214
  %252 = vmatprep.subr.bf16.mxu0 0
  %253 = vmatpush1.bf16.msra.mxu0 %v215
  %254 = vmatprep.subr.bf16.mxu0 0
  %255 = vmatpush1.bf16.msra.mxu0 %v216
  %256 = vmatprep.subr.bf16.mxu0 0
  %257 = vmatpush1.bf16.msra.mxu0 %v217
  %258 = vmatprep.subr.bf16.mxu0 0
  %259 = vmatpush1.bf16.msra.mxu0 %v218
  %260 = vmatprep.subr.bf16.mxu0 0
  %261 = vmatpush1.bf16.msra.mxu0 %v219
  %262 = vmatprep.subr.bf16.mxu0 0
  %263 = vmatpush1.bf16.msra.mxu0 %v220
  %264 = vmatprep.subr.bf16.mxu0 0
  %265 = vmatpush1.bf16.msra.mxu0 %v221
  %266 = vmatprep.subr.bf16.mxu0 0
  %267 = vmatpush1.bf16.msra.mxu0 %v222
  %268 = vmatprep.subr.bf16.mxu0 0
  %269 = vmatpush1.bf16.msra.mxu0 %v223
  %270 = vmatprep.subr.bf16.mxu0 0
  %271 = vmatpush1.bf16.msra.mxu0 %v224
  %272 = vmatprep.subr.bf16.mxu0 0
  %273 = vmatpush1.bf16.msra.mxu0 %v225
  %274 = vmatprep.mubr.bf16.mxu0 %v115
  %275 = vmatmul.mubr.bf16.gmra.mrb[0].mxu0 %v114
  %v276 = vpop.f32.mrb[0].mxu0
  %v277 = vadd.f32 0.0, %v276
  %v278 = vpop.f32.mrb[0].mxu0
  %v279 = vpop.f32.mrb[0].mxu0
  %v280 = vadd.f32 0.0, %v279
  %v281 = vpop.f32.mrb[0].mxu0
  %282 = vmatprep.mubr.bf16.mxu0 %v117
  %283 = vmatmul.mubr.bf16.gmra.mrb[0].mxu0 %v116
  %v284 = vpop.f32.mrb[0].mxu0
  %v285 = vadd.f32 0.0, %v284
  %v286 = vpop.f32.mrb[0].mxu0
  %v287 = vpop.f32.mrb[0].mxu0
  %v288 = vadd.f32 0.0, %v287
  %v289 = vpop.f32.mrb[0].mxu0
  %290 = vmatprep.mubr.bf16.mxu0 %v119
  %291 = vmatmul.mubr.bf16.gmra.mrb[0].mxu0 %v118
  %v292 = vpop.f32.mrb[0].mxu0
  %v293 = vadd.f32 0.0, %v292
  %v294 = vpop.f32.mrb[0].mxu0
  %v295 = vpop.f32.mrb[0].mxu0
  %v296 = vadd.f32 0.0, %v295
  %v297 = vpop.f32.mrb[0].mxu0
  %298 = vmatprep.mubr.bf16.mxu0 %v121
  %299 = vmatmul.mubr.bf16.gmra.mrb[0].mxu0 %v120
  %v300 = vpop.f32.mrb[0].mxu0
  %v301 = vadd.f32 0.0, %v300
  %v302 = vpop.f32.mrb[0].mxu0
  %v303 = vpop.f32.mrb[0].mxu0
  %v304 = vadd.f32 0.0, %v303
  %v305 = vpop.f32.mrb[0].mxu0
  %306 = vmatprep.mubr.bf16.mxu0 %v123
  %307 = vmatmul.mubr.bf16.gmra.mrb[0].mxu0 %v122
  %v308 = vpop.f32.mrb[0].mxu0
  %v309 = vadd.f32 0.0, %v308
  %v310 = vpop.f32.mrb[0].mxu0
  %v311 = vpop.f32.mrb[0].mxu0
  %v312 = vadd.f32 0.0, %v311
  %v313 = vpop.f32.mrb[0].mxu0
  %314 = vmatprep.mubr.bf16.mxu0 %v125
  %315 = vmatmul.mubr.bf16.gmra.mrb[0].mxu0 %v124
  %v316 = vpop.f32.mrb[0].mxu0
  %v317 = vadd.f32 0.0, %v316
  %v318 = vpop.f32.mrb[0].mxu0
  %v319 = vpop.f32.mrb[0].mxu0
  %v320 = vadd.f32 0.0, %v319
  %v321 = vpop.f32.mrb[0].mxu0
  %322 = vmatprep.mubr.bf16.mxu0 %v127
  %323 = vmatmul.mubr.bf16.gmra.mrb[0].mxu0 %v126
  %v324 = vpop.f32.mrb[0].mxu0
  %v325 = vadd.f32 0.0, %v324
  %v326 = vpop.f32.mrb[0].mxu0
  %v327 = vpop.f32.mrb[0].mxu0
  %v328 = vadd.f32 0.0, %v327
  %v329 = vpop.f32.mrb[0].mxu0
  %330 = vmatprep.mubr.bf16.mxu0 %v129
  %331 = vmatmul.mubr.bf16.gmra.mrb[0].mxu0 %v128
  %v332 = vpop.f32.mrb[0].mxu0
  %v333 = vadd.f32 0.0, %v332
  %v334 = vpop.f32.mrb[0].mxu0
  %v335 = vpop.f32.mrb[0].mxu0
  %v336 = vadd.f32 0.0, %v335
  %v337 = vpop.f32.mrb[0].mxu0
  %338 = vdwg.mxu0
  %v339 = vld [vmem:[%s2] sm:$0x1]
  %v341 = vlaneseq
  %v342 = vshrl.u32 %v341, 7
  %v343 = vsub.s32 0, %v342
  %v344 = vrot.slane %v339, %v343
  %v346 = vmul.f32 %v277, %v344
  %v347 = vmul.f32 %v280, %v344
  %v348 = vmul.f32 %v285, %v344
  %v349 = vmul.f32 %v288, %v344
  %v350 = vmul.f32 %v293, %v344
  %v351 = vmul.f32 %v296, %v344
  %v352 = vmul.f32 %v301, %v344
  %v353 = vmul.f32 %v304, %v344
  %v354 = vmul.f32 %v309, %v344
  %v355 = vmul.f32 %v312, %v344
  %v356 = vmul.f32 %v317, %v344
  %v357 = vmul.f32 %v320, %v344
  %v358 = vmul.f32 %v325, %v344
  %v359 = vmul.f32 %v328, %v344
  %v360 = vmul.f32 %v333, %v344
  %v361 = vmul.f32 %v336, %v344
  %v362 = vld [vmem:[%s3] sm:$0x1]
  %v364 = vlaneseq
  %v365 = vshrl.u32 %v364, 7
  %v366 = vsub.s32 0, %v365
  %v367 = vrot.slane %v362, %v366
  %v369 = vadd.f32 %v346, %v367
  %v370 = vadd.f32 %v347, %v367
  %v371 = vadd.f32 %v348, %v367
  %v372 = vadd.f32 %v349, %v367
  %v373 = vadd.f32 %v350, %v367
  %v374 = vadd.f32 %v351, %v367
  %v375 = vadd.f32 %v352, %v367
  %v376 = vadd.f32 %v353, %v367
  %v377 = vadd.f32 %v354, %v367
  %v378 = vadd.f32 %v355, %v367
  %v379 = vadd.f32 %v356, %v367
  %v380 = vadd.f32 %v357, %v367
  %v381 = vadd.f32 %v358, %v367
  %v382 = vadd.f32 %v359, %v367
  %v383 = vadd.f32 %v360, %v367
  %v384 = vadd.f32 %v361, %v367
  %v385 = vmax.f32 %v369, 0.0
  %v386 = vmax.f32 %v370, 0.0
  %v387 = vmax.f32 %v371, 0.0
  %v388 = vmax.f32 %v372, 0.0
  %v389 = vmax.f32 %v373, 0.0
  %v390 = vmax.f32 %v374, 0.0
  %v391 = vmax.f32 %v375, 0.0
  %v392 = vmax.f32 %v376, 0.0
  %v393 = vmax.f32 %v377, 0.0
  %v394 = vmax.f32 %v378, 0.0
  %v395 = vmax.f32 %v379, 0.0
  %v396 = vmax.f32 %v380, 0.0
  %v397 = vmax.f32 %v381, 0.0
  %v398 = vmax.f32 %v382, 0.0
  %v399 = vmax.f32 %v383, 0.0
  %v400 = vmax.f32 %v384, 0.0
  %401 = vst [vmem:[%s4] sm:$0xff] %v385
  %402 = vst [vmem:[%s4 + $0x8] sm:$0xff] %v386
  %403 = vst [vmem:[%s4 + $0x10] sm:$0xff] %v387
  %404 = vst [vmem:[%s4 + $0x18] sm:$0xff] %v388
  %405 = vst [vmem:[%s4 + $0x20] sm:$0xff] %v389
  %406 = vst [vmem:[%s4 + $0x28] sm:$0xff] %v390
  %407 = vst [vmem:[%s4 + $0x30] sm:$0xff] %v391
  %408 = vst [vmem:[%s4 + $0x38] sm:$0xff] %v392
  %409 = vst [vmem:[%s4 + $0x40] sm:$0xff] %v393
  %410 = vst [vmem:[%s4 + $0x48] sm:$0xff] %v394
  %411 = vst [vmem:[%s4 + $0x50] sm:$0xff] %v395
  %412 = vst [vmem:[%s4 + $0x58] sm:$0xff] %v396
  %413 = vst [vmem:[%s4 + $0x60] sm:$0xff] %v397
  %414 = vst [vmem:[%s4 + $0x68] sm:$0xff] %v398
  %415 = vst [vmem:[%s4 + $0x70] sm:$0xff] %v399
  %416 = vst [vmem:[%s4 + $0x78] sm:$0xff] %v400
  // Predicated region
  $region18: #{cam_forward.28} parent=0 // pred_check
    _
  $region19: #{cam_forward.28} parent=0 // pred_check_branch
    %418 = sbr.rel (0) target = $region21
  $region20: #{cam_forward.28} parent=0 // pred_region
    _
  $region21: #{cam_forward.28} parent=0 // pred_fallthru
    _
  // Predicated region
  $region22: #{cam_forward.28} parent=0 // pred_check
    _
  $region23: #{cam_forward.28} parent=0 // pred_check_branch
    %420 = sbr.rel (0) target = $region25
  $region24: #{cam_forward.28} parent=0 // pred_region
    _
  $region25: #{cam_forward.28} parent=0 // pred_fallthru
    _

// kernel: cam_forward.31
$region0: #{cam_forward.31}
  #allocation0 [shape = 'u32[]', space=smem, size = 0x4, offset = 0x4, fixed_abs, tag = 'smem constant byte address 0x4 - core index']
  #allocation1 [shape = 'u32[144,128]{1,0:T(1,128)}', space=vmem, size = 0x12000, scoped, tag = 'internal scratch']
  %s0 = inlined_call_operand.vmem [shape: bf16[32,128], index: 0, kind: input, shape index: {}]
  %s1 = inlined_call_operand.vmem [shape: bf16[128,128], index: 1, kind: input, shape index: {}]
  %s2 = inlined_call_operand.vmem [shape: f32[1,128], index: 2, kind: input, shape index: {}]
  %s3 = inlined_call_operand.vmem [shape: f32[1,128], index: 3, kind: input, shape index: {}]
  %s4 = inlined_call_operand.vmem [shape: f32[32,128], index: 4, kind: output, shape index: {}]
  %s5 = sld [smem:[#allocation0]]
  $region26: #{cam_forward.31} parent=0
    _
  %s7 = ssub.s32 1, %s5
  %s8 = scalar_select 0, %s7, %s5
  // Predicated region
  $region2: #{cam_forward.31} parent=0 // pred_check
    _
  $region3: #{cam_forward.31} parent=0 // pred_check_branch
    %10 = sbr.rel (0) target = $region5
  $region4: #{cam_forward.31} parent=0 // pred_region
    _
  $region5: #{cam_forward.31} parent=0 // pred_fallthru
    _
  // Predicated region
  $region6: #{cam_forward.31} parent=0 // pred_check
    _
  $region7: #{cam_forward.31} parent=0 // pred_check_branch
    %12 = sbr.rel (0) target = $region9
  $region8: #{cam_forward.31} parent=0 // pred_region
    _
  $region9: #{cam_forward.31} parent=0 // pred_fallthru
    _
  // Predicated region
  $region10: #{cam_forward.31} parent=0 // pred_check
    _
  $region11: #{cam_forward.31} parent=0 // pred_check_branch
    %14 = sbr.rel (0) target = $region13
  $region12: #{cam_forward.31} parent=0 // pred_region
    _
  $region13: #{cam_forward.31} parent=0 // pred_fallthru
    _
  // Predicated region
  $region14: #{cam_forward.31} parent=0 // pred_check
    _
  $region15: #{cam_forward.31} parent=0 // pred_check_branch
    %16 = sbr.rel (0) target = $region17
  $region16: #{cam_forward.31} parent=0 // pred_region
    _
  $region17: #{cam_forward.31} parent=0 // pred_fallthru
    _
  %v18 = vld [vmem:[%s0] sm:$0xf]
  %v19 = vld [vmem:[%s0 + $0x4] sm:$0xf]
  %v20 = vld [vmem:[%s0 + $0x8] sm:$0xf]
  %v21 = vld [vmem:[%s0 + $0xc] sm:$0xf]
  %v22 = vld [vmem:[%s1] sm:$0xf]
  %v23 = vld [vmem:[%s1 + $0x4] sm:$0xf]
  %v24 = vld [vmem:[%s1 + $0x8] sm:$0xf]
  %v25 = vld [vmem:[%s1 + $0xc] sm:$0xf]
  %v26 = vld [vmem:[%s1 + $0x10] sm:$0xf]
  %v27 = vld [vmem:[%s1 + $0x14] sm:$0xf]
  %v28 = vld [vmem:[%s1 + $0x18] sm:$0xf]
  %v29 = vld [vmem:[%s1 + $0x1c] sm:$0xf]
  %v30 = vld [vmem:[%s1 + $0x20] sm:$0xf]
  %v31 = vld [vmem:[%s1 + $0x24] sm:$0xf]
  %v32 = vld [vmem:[%s1 + $0x28] sm:$0xf]
  %v33 = vld [vmem:[%s1 + $0x2c] sm:$0xf]
  %v34 = vld [vmem:[%s1 + $0x30] sm:$0xf]
  %v35 = vld [vmem:[%s1 + $0x34] sm:$0xf]
  %v36 = vld [vmem:[%s1 + $0x38] sm:$0xf]
  %v37 = vld [vmem:[%s1 + $0x3c] sm:$0xf]
  %v42 = vunpack.c.l.b16 %v18
  %v43 = vunpack.c.l.b16 %v19
  %v44 = vunpack.c.l.b16 %v20
  %v45 = vunpack.c.l.b16 %v21
  %v46 = vpack.c.b16 %v43, %v42
  %v47 = vpack.c.b16 %v45, %v44
  %v66 = vunpack.c.l.b16 %v22
  %v67 = vunpack.c.l.b16 %v23
  %v68 = vunpack.c.l.b16 %v24
  %v69 = vunpack.c.l.b16 %v25
  %v70 = vunpack.c.l.b16 %v26
  %v71 = vunpack.c.l.b16 %v27
  %v72 = vunpack.c.l.b16 %v28
  %v73 = vunpack.c.l.b16 %v29
  %v74 = vunpack.c.l.b16 %v30
  %v75 = vunpack.c.l.b16 %v31
  %v76 = vunpack.c.l.b16 %v32
  %v77 = vunpack.c.l.b16 %v33
  %v78 = vunpack.c.l.b16 %v34
  %v79 = vunpack.c.l.b16 %v35
  %v80 = vunpack.c.l.b16 %v36
  %v81 = vunpack.c.l.b16 %v37
  %v82 = vpack.c.b16 %v67, %v66
  %v83 = vpack.c.b16 %v69, %v68
  %v84 = vpack.c.b16 %v71, %v70
  %v85 = vpack.c.b16 %v73, %v72
  %v86 = vpack.c.b16 %v75, %v74
  %v87 = vpack.c.b16 %v77, %v76
  %v88 = vpack.c.b16 %v79, %v78
  %v89 = vpack.c.b16 %v81, %v80
  %98 = vmatprep.subr.bf16.mxu0 0
  %99 = vmatpush1.bf16.msra.mxu0 %v82
  %100 = vmatprep.subr.bf16.mxu0 0
  %101 = vmatpush1.bf16.msra.mxu0 %v83
  %102 = vmatprep.subr.bf16.mxu0 0
  %103 = vmatpush1.bf16.msra.mxu0 %v84
  %104 = vmatprep.subr.bf16.mxu0 0
  %105 = vmatpush1.bf16.msra.mxu0 %v85
  %106 = vmatprep.subr.bf16.mxu0 0
  %107 = vmatpush1.bf16.msra.mxu0 %v86
  %108 = vmatprep.subr.bf16.mxu0 0
  %109 = vmatpush1.bf16.msra.mxu0 %v87
  %110 = vmatprep.subr.bf16.mxu0 0
  %111 = vmatpush1.bf16.msra.mxu0 %v88
  %112 = vmatprep.subr.bf16.mxu0 0
  %113 = vmatpush1.bf16.msra.mxu0 %v89
  %114 = vmatprep.subr.bf16.mxu0 0
  %115 = vmatpush1.bf16.msra.mxu0 0
  %116 = vmatprep.subr.bf16.mxu0 0
  %117 = vmatpush1.bf16.msra.mxu0 0
  %118 = vmatprep.subr.bf16.mxu0 0
  %119 = vmatpush1.bf16.msra.mxu0 0
  %120 = vmatprep.subr.bf16.mxu0 0
  %121 = vmatpush1.bf16.msra.mxu0 0
  %122 = vmatprep.subr.bf16.mxu0 0
  %123 = vmatpush1.bf16.msra.mxu0 0
  %124 = vmatprep.subr.bf16.mxu0 0
  %125 = vmatpush1.bf16.msra.mxu0 0
  %126 = vmatprep.subr.bf16.mxu0 0
  %127 = vmatpush1.bf16.msra.mxu0 0
  %128 = vmatprep.subr.bf16.mxu0 0
  %129 = vmatpush1.bf16.msra.mxu0 0
  %130 = vmatprep.mubr.bf16.mxu0 0
  %131 = vmatmul.mubr.bf16.gmra.mrb[0].mxu0 %v46
  %v132 = vpop.f32.mrb[0].mxu0
  %v133 = vadd.f32 0.0, %v132
  %v134 = vpop.f32.mrb[0].mxu0
  %v135 = vpop.f32.mrb[0].mxu0
  %v136 = vadd.f32 0.0, %v135
  %v137 = vpop.f32.mrb[0].mxu0
  %138 = vmatprep.mubr.bf16.mxu0 0
  %139 = vmatmul.mubr.bf16.gmra.mrb[0].mxu0 %v47
  %v140 = vpop.f32.mrb[0].mxu0
  %v141 = vadd.f32 0.0, %v140
  %v142 = vpop.f32.mrb[0].mxu0
  %v143 = vpop.f32.mrb[0].mxu0
  %v144 = vadd.f32 0.0, %v143
  %v145 = vpop.f32.mrb[0].mxu0
  %146 = vdwg.mxu0
  %v147 = vld [vmem:[%s2] sm:$0x1]
  %v149 = vlaneseq
  %v150 = vshrl.u32 %v149, 7
  %v151 = vsub.s32 0, %v150
  %v152 = vrot.slane %v147, %v151
  %v154 = vmul.f32 %v133, %v152
  %v155 = vmul.f32 %v136, %v152
  %v156 = vmul.f32 %v141, %v152
  %v157 = vmul.f32 %v144, %v152
  %v158 = vld [vmem:[%s3] sm:$0x1]
  %v160 = vlaneseq
  %v161 = vshrl.u32 %v160, 7
  %v162 = vsub.s32 0, %v161
  %v163 = vrot.slane %v158, %v162
  %v165 = vadd.f32 %v154, %v163
  %v166 = vadd.f32 %v155, %v163
  %v167 = vadd.f32 %v156, %v163
  %v168 = vadd.f32 %v157, %v163
  %169 = vst [vmem:[%s4] sm:$0xff] %v165
  %170 = vst [vmem:[%s4 + $0x8] sm:$0xff] %v166
  %171 = vst [vmem:[%s4 + $0x10] sm:$0xff] %v167
  %172 = vst [vmem:[%s4 + $0x18] sm:$0xff] %v168
  // Predicated region
  $region18: #{cam_forward.31} parent=0 // pred_check
    _
  $region19: #{cam_forward.31} parent=0 // pred_check_branch
    %174 = sbr.rel (0) target = $region21
  $region20: #{cam_forward.31} parent=0 // pred_region
    _
  $region21: #{cam_forward.31} parent=0 // pred_fallthru
    _
  // Predicated region
  $region22: #{cam_forward.31} parent=0 // pred_check
    _
  $region23: #{cam_forward.31} parent=0 // pred_check_branch
    %176 = sbr.rel (0) target = $region25
  $region24: #{cam_forward.31} parent=0 // pred_region
    _
  $region25: #{cam_forward.31} parent=0 // pred_fallthru
    _

// kernel: cam_forward.30
$region0: #{cam_forward.30}
  #allocation0 [shape = 'u32[]', space=smem, size = 0x4, offset = 0x4, fixed_abs, tag = 'smem constant byte address 0x4 - core index']
  #allocation1 [shape = 'u32[144,128]{1,0:T(1,128)}', space=vmem, size = 0x12000, scoped, tag = 'internal scratch']
  %s0 = inlined_call_operand.vmem [shape: bf16[32,256], index: 0, kind: input, shape index: {}]
  %s1 = inlined_call_operand.vmem [shape: bf16[256,128], index: 1, kind: input, shape index: {}]
  %s2 = inlined_call_operand.vmem [shape: f32[1,128], index: 2, kind: input, shape index: {}]
  %s3 = inlined_call_operand.vmem [shape: f32[1,128], index: 3, kind: input, shape index: {}]
  %s4 = inlined_call_operand.vmem [shape: f32[32,128], index: 4, kind: output, shape index: {}]
  %s5 = sld [smem:[#allocation0]]
  $region26: #{cam_forward.30} parent=0
    _
  %s7 = ssub.s32 1, %s5
  %s8 = scalar_select 0, %s7, %s5
  // Predicated region
  $region2: #{cam_forward.30} parent=0 // pred_check
    _
  $region3: #{cam_forward.30} parent=0 // pred_check_branch
    %10 = sbr.rel (0) target = $region5
  $region4: #{cam_forward.30} parent=0 // pred_region
    _
  $region5: #{cam_forward.30} parent=0 // pred_fallthru
    _
  // Predicated region
  $region6: #{cam_forward.30} parent=0 // pred_check
    _
  $region7: #{cam_forward.30} parent=0 // pred_check_branch
    %12 = sbr.rel (0) target = $region9
  $region8: #{cam_forward.30} parent=0 // pred_region
    _
  $region9: #{cam_forward.30} parent=0 // pred_fallthru
    _
  // Predicated region
  $region10: #{cam_forward.30} parent=0 // pred_check
    _
  $region11: #{cam_forward.30} parent=0 // pred_check_branch
    %14 = sbr.rel (0) target = $region13
  $region12: #{cam_forward.30} parent=0 // pred_region
    _
  $region13: #{cam_forward.30} parent=0 // pred_fallthru
    _
  // Predicated region
  $region14: #{cam_forward.30} parent=0 // pred_check
    _
  $region15: #{cam_forward.30} parent=0 // pred_check_branch
    %16 = sbr.rel (0) target = $region17
  $region16: #{cam_forward.30} parent=0 // pred_region
    _
  $region17: #{cam_forward.30} parent=0 // pred_fallthru
    _
  %v18 = vld [vmem:[%s0] sm:$0xff]
  %v19 = vld [vmem:[%s0 + $0x8] sm:$0xff]
  %v20 = vld [vmem:[%s0 + $0x10] sm:$0xff]
  %v21 = vld [vmem:[%s0 + $0x18] sm:$0xff]
  %v22 = vld [vmem:[%s1] sm:$0xf]
  %v23 = vld [vmem:[%s1 + $0x4] sm:$0xf]
  %v24 = vld [vmem:[%s1 + $0x8] sm:$0xf]
  %v25 = vld [vmem:[%s1 + $0xc] sm:$0xf]
  %v26 = vld [vmem:[%s1 + $0x10] sm:$0xf]
  %v27 = vld [vmem:[%s1 + $0x14] sm:$0xf]
  %v28 = vld [vmem:[%s1 + $0x18] sm:$0xf]
  %v29 = vld [vmem:[%s1 + $0x1c] sm:$0xf]
  %v30 = vld [vmem:[%s1 + $0x20] sm:$0xf]
  %v31 = vld [vmem:[%s1 + $0x24] sm:$0xf]
  %v32 = vld [vmem:[%s1 + $0x28] sm:$0xf]
  %v33 = vld [vmem:[%s1 + $0x2c] sm:$0xf]
  %v34 = vld [vmem:[%s1 + $0x30] sm:$0xf]
  %v35 = vld [vmem:[%s1 + $0x34] sm:$0xf]
  %v36 = vld [vmem:[%s1 + $0x38] sm:$0xf]
  %v37 = vld [vmem:[%s1 + $0x3c] sm:$0xf]
  %v38 = vld [vmem:[%s1 + $0x40] sm:$0xf]
  %v39 = vld [vmem:[%s1 + $0x44] sm:$0xf]
  %v40 = vld [vmem:[%s1 + $0x48] sm:$0xf]
  %v41 = vld [vmem:[%s1 + $0x4c] sm:$0xf]
  %v42 = vld [vmem:[%s1 + $0x50] sm:$0xf]
  %v43 = vld [vmem:[%s1 + $0x54] sm:$0xf]
  %v44 = vld [vmem:[%s1 + $0x58] sm:$0xf]
  %v45 = vld [vmem:[%s1 + $0x5c] sm:$0xf]
  %v46 = vld [vmem:[%s1 + $0x60] sm:$0xf]
  %v47 = vld [vmem:[%s1 + $0x64] sm:$0xf]
  %v48 = vld [vmem:[%s1 + $0x68] sm:$0xf]
  %v49 = vld [vmem:[%s1 + $0x6c] sm:$0xf]
  %v50 = vld [vmem:[%s1 + $0x70] sm:$0xf]
  %v51 = vld [vmem:[%s1 + $0x74] sm:$0xf]
  %v52 = vld [vmem:[%s1 + $0x78] sm:$0xf]
  %v53 = vld [vmem:[%s1 + $0x7c] sm:$0xf]
  %v58 = vunpack.c.l.b16 %v18
  %v59 = vunpack.c.h.b16 %v18
  %v60 = vunpack.c.l.b16 %v19
  %v61 = vunpack.c.h.b16 %v19
  %v62 = vunpack.c.l.b16 %v20
  %v63 = vunpack.c.h.b16 %v20
  %v64 = vunpack.c.l.b16 %v21
  %v65 = vunpack.c.h.b16 %v21
  %v66 = vpack.c.b16 %v60, %v58
  %v67 = vpack.c.b16 %v61, %v59
  %v68 = vpack.c.b16 %v64, %v62
  %v69 = vpack.c.b16 %v65, %v63
  %v106 = vunpack.c.l.b16 %v22
  %v107 = vunpack.c.l.b16 %v23
  %v108 = vunpack.c.l.b16 %v24
  %v109 = vunpack.c.l.b16 %v25
  %v110 = vunpack.c.l.b16 %v26
  %v111 = vunpack.c.l.b16 %v27
  %v112 = vunpack.c.l.b16 %v28
  %v113 = vunpack.c.l.b16 %v29
  %v114 = vunpack.c.l.b16 %v30
  %v115 = vunpack.c.l.b16 %v31
  %v116 = vunpack.c.l.b16 %v32
  %v117 = vunpack.c.l.b16 %v33
  %v118 = vunpack.c.l.b16 %v34
  %v119 = vunpack.c.l.b16 %v35
  %v120 = vunpack.c.l.b16 %v36
  %v121 = vunpack.c.l.b16 %v37
  %v122 = vunpack.c.l.b16 %v38
  %v123 = vunpack.c.l.b16 %v39
  %v124 = vunpack.c.l.b16 %v40
  %v125 = vunpack.c.l.b16 %v41
  %v126 = vunpack.c.l.b16 %v42
  %v127 = vunpack.c.l.b16 %v43
  %v128 = vunpack.c.l.b16 %v44
  %v129 = vunpack.c.l.b16 %v45
  %v130 = vunpack.c.l.b16 %v46
  %v131 = vunpack.c.l.b16 %v47
  %v132 = vunpack.c.l.b16 %v48
  %v133 = vunpack.c.l.b16 %v49
  %v134 = vunpack.c.l.b16 %v50
  %v135 = vunpack.c.l.b16 %v51
  %v136 = vunpack.c.l.b16 %v52
  %v137 = vunpack.c.l.b16 %v53
  %v138 = vpack.c.b16 %v107, %v106
  %v139 = vpack.c.b16 %v109, %v108
  %v140 = vpack.c.b16 %v111, %v110
  %v141 = vpack.c.b16 %v113, %v112
  %v142 = vpack.c.b16 %v115, %v114
  %v143 = vpack.c.b16 %v117, %v116
  %v144 = vpack.c.b16 %v119, %v118
  %v145 = vpack.c.b16 %v121, %v120
  %v146 = vpack.c.b16 %v123, %v122
  %v147 = vpack.c.b16 %v125, %v124
  %v148 = vpack.c.b16 %v127, %v126
  %v149 = vpack.c.b16 %v129, %v128
  %v150 = vpack.c.b16 %v131, %v130
  %v151 = vpack.c.b16 %v133, %v132
  %v152 = vpack.c.b16 %v135, %v134
  %v153 = vpack.c.b16 %v137, %v136
  %170 = vmatprep.subr.bf16.mxu0 0
  %171 = vmatpush1.bf16.msra.mxu0 %v138
  %172 = vmatprep.subr.bf16.mxu0 0
  %173 = vmatpush1.bf16.msra.mxu0 %v139
  %174 = vmatprep.subr.bf16.mxu0 0
  %175 = vmatpush1.bf16.msra.mxu0 %v140
  %176 = vmatprep.subr.bf16.mxu0 0
  %177 = vmatpush1.bf16.msra.mxu0 %v141
  %178 = vmatprep.subr.bf16.mxu0 0
  %179 = vmatpush1.bf16.msra.mxu0 %v142
  %180 = vmatprep.subr.bf16.mxu0 0
  %181 = vmatpush1.bf16.msra.mxu0 %v143
  %182 = vmatprep.subr.bf16.mxu0 0
  %183 = vmatpush1.bf16.msra.mxu0 %v144
  %184 = vmatprep.subr.bf16.mxu0 0
  %185 = vmatpush1.bf16.msra.mxu0 %v145
  %186 = vmatprep.subr.bf16.mxu0 0
  %187 = vmatpush1.bf16.msra.mxu0 %v146
  %188 = vmatprep.subr.bf16.mxu0 0
  %189 = vmatpush1.bf16.msra.mxu0 %v147
  %190 = vmatprep.subr.bf16.mxu0 0
  %191 = vmatpush1.bf16.msra.mxu0 %v148
  %192 = vmatprep.subr.bf16.mxu0 0
  %193 = vmatpush1.bf16.msra.mxu0 %v149
  %194 = vmatprep.subr.bf16.mxu0 0
  %195 = vmatpush1.bf16.msra.mxu0 %v150
  %196 = vmatprep.subr.bf16.mxu0 0
  %197 = vmatpush1.bf16.msra.mxu0 %v151
  %198 = vmatprep.subr.bf16.mxu0 0
  %199 = vmatpush1.bf16.msra.mxu0 %v152
  %200 = vmatprep.subr.bf16.mxu0 0
  %201 = vmatpush1.bf16.msra.mxu0 %v153
  %202 = vmatprep.mubr.bf16.mxu0 %v67
  %203 = vmatmul.mubr.bf16.gmra.mrb[0].mxu0 %v66
  %v204 = vpop.f32.mrb[0].mxu0
  %v205 = vadd.f32 0.0, %v204
  %v206 = vpop.f32.mrb[0].mxu0
  %v207 = vpop.f32.mrb[0].mxu0
  %v208 = vadd.f32 0.0, %v207
  %v209 = vpop.f32.mrb[0].mxu0
  %210 = vmatprep.mubr.bf16.mxu0 %v69
  %211 = vmatmul.mubr.bf16.gmra.mrb[0].mxu0 %v68
  %v212 = vpop.f32.mrb[0].mxu0
  %v213 = vadd.f32 0.0, %v212
  %v214 = vpop.f32.mrb[0].mxu0
  %v215 = vpop.f32.mrb[0].mxu0
  %v216 = vadd.f32 0.0, %v215
  %v217 = vpop.f32.mrb[0].mxu0
  %218 = vdwg.mxu0
  %v219 = vld [vmem:[%s2] sm:$0x1]
  %v221 = vlaneseq
  %v222 = vshrl.u32 %v221, 7
  %v223 = vsub.s32 0, %v222
  %v224 = vrot.slane %v219, %v223
  %v226 = vmul.f32 %v205, %v224
  %v227 = vmul.f32 %v208, %v224
  %v228 = vmul.f32 %v213, %v224
  %v229 = vmul.f32 %v216, %v224
  %v230 = vld [vmem:[%s3] sm:$0x1]
  %v232 = vlaneseq
  %v233 = vshrl.u32 %v232, 7
  %v234 = vsub.s32 0, %v233
  %v235 = vrot.slane %v230, %v234
  %v237 = vadd.f32 %v226, %v235
  %v238 = vadd.f32 %v227, %v235
  %v239 = vadd.f32 %v228, %v235
  %v240 = vadd.f32 %v229, %v235
  %v241 = vmax.f32 %v237, 0.0
  %v242 = vmax.f32 %v238, 0.0
  %v243 = vmax.f32 %v239, 0.0
  %v244 = vmax.f32 %v240, 0.0
  %245 = vst [vmem:[%s4] sm:$0xff] %v241
  %246 = vst [vmem:[%s4 + $0x8] sm:$0xff] %v242
  %247 = vst [vmem:[%s4 + $0x10] sm:$0xff] %v243
  %248 = vst [vmem:[%s4 + $0x18] sm:$0xff] %v244
  // Predicated region
  $region18: #{cam_forward.30} parent=0 // pred_check
    _
  $region19: #{cam_forward.30} parent=0 // pred_check_branch
    %250 = sbr.rel (0) target = $region21
  $region20: #{cam_forward.30} parent=0 // pred_region
    _
  $region21: #{cam_forward.30} parent=0 // pred_fallthru
    _
  // Predicated region
  $region22: #{cam_forward.30} parent=0 // pred_check
    _
  $region23: #{cam_forward.30} parent=0 // pred_check_branch
    %252 = sbr.rel (0) target = $region25
  $region24: #{cam_forward.30} parent=0 // pred_region
    _
  $region25: #{cam_forward.30} parent=0 // pred_fallthru
    _

// kernel: cam_forward.33
$region0: #{cam_forward.33}
  #allocation0 [shape = 'u32[]', space=smem, size = 0x4, offset = 0x4, fixed_abs, tag = 'smem constant byte address 0x4 - core index']
  #allocation1 [shape = 'u32[144,128]{1,0:T(1,128)}', space=vmem, size = 0x12000, scoped, tag = 'internal scratch']
  %s0 = inlined_call_operand.vmem [shape: bf16[32,384], index: 0, kind: input, shape index: {}]
  %s1 = inlined_call_operand.vmem [shape: bf16[384,128], index: 1, kind: input, shape index: {}]
  %s2 = inlined_call_operand.vmem [shape: f32[1,128], index: 2, kind: input, shape index: {}]
  %s3 = inlined_call_operand.vmem [shape: f32[1,128], index: 3, kind: input, shape index: {}]
  %s4 = inlined_call_operand.vmem [shape: f32[32,128], index: 4, kind: output, shape index: {}]
  %s5 = sld [smem:[#allocation0]]
  $region26: #{cam_forward.33} parent=0
    _
  %s7 = ssub.s32 1, %s5
  %s8 = scalar_select 0, %s7, %s5
  // Predicated region
  $region2: #{cam_forward.33} parent=0 // pred_check
    _
  $region3: #{cam_forward.33} parent=0 // pred_check_branch
    %10 = sbr.rel (0) target = $region5
  $region4: #{cam_forward.33} parent=0 // pred_region
    _
  $region5: #{cam_forward.33} parent=0 // pred_fallthru
    _
  // Predicated region
  $region6: #{cam_forward.33} parent=0 // pred_check
    _
  $region7: #{cam_forward.33} parent=0 // pred_check_branch
    %12 = sbr.rel (0) target = $region9
  $region8: #{cam_forward.33} parent=0 // pred_region
    _
  $region9: #{cam_forward.33} parent=0 // pred_fallthru
    _
  // Predicated region
  $region10: #{cam_forward.33} parent=0 // pred_check
    _
  $region11: #{cam_forward.33} parent=0 // pred_check_branch
    %14 = sbr.rel (0) target = $region13
  $region12: #{cam_forward.33} parent=0 // pred_region
    _
  $region13: #{cam_forward.33} parent=0 // pred_fallthru
    _
  // Predicated region
  $region14: #{cam_forward.33} parent=0 // pred_check
    _
  $region15: #{cam_forward.33} parent=0 // pred_check_branch
    %16 = sbr.rel (0) target = $region17
  $region16: #{cam_forward.33} parent=0 // pred_region
    _
  $region17: #{cam_forward.33} parent=0 // pred_fallthru
    _
  %v18 = vld [vmem:[%s0] sm:$0xff]
  %v19 = vld [vmem:[%s0 + $0x8] sm:$0xf]
  %v20 = vld [vmem:[%s0 + $0xc] sm:$0xff]
  %v21 = vld [vmem:[%s0 + $0x14] sm:$0xf]
  %v22 = vld [vmem:[%s0 + $0x18] sm:$0xff]
  %v23 = vld [vmem:[%s0 + $0x20] sm:$0xf]
  %v24 = vld [vmem:[%s0 + $0x24] sm:$0xff]
  %v25 = vld [vmem:[%s0 + $0x2c] sm:$0xf]
  %v26 = vld [vmem:[%s1] sm:$0xf]
  %v27 = vld [vmem:[%s1 + $0x4] sm:$0xf]
  %v28 = vld [vmem:[%s1 + $0x8] sm:$0xf]
  %v29 = vld [vmem:[%s1 + $0xc] sm:$0xf]
  %v30 = vld [vmem:[%s1 + $0x10] sm:$0xf]
  %v31 = vld [vmem:[%s1 + $0x14] sm:$0xf]
  %v32 = vld [vmem:[%s1 + $0x18] sm:$0xf]
  %v33 = vld [vmem:[%s1 + $0x1c] sm:$0xf]
  %v34 = vld [vmem:[%s1 + $0x20] sm:$0xf]
  %v35 = vld [vmem:[%s1 + $0x24] sm:$0xf]
  %v36 = vld [vmem:[%s1 + $0x28] sm:$0xf]
  %v37 = vld [vmem:[%s1 + $0x2c] sm:$0xf]
  %v38 = vld [vmem:[%s1 + $0x30] sm:$0xf]
  %v39 = vld [vmem:[%s1 + $0x34] sm:$0xf]
  %v40 = vld [vmem:[%s1 + $0x38] sm:$0xf]
  %v41 = vld [vmem:[%s1 + $0x3c] sm:$0xf]
  %v42 = vld [vmem:[%s1 + $0x40] sm:$0xf]
  %v43 = vld [vmem:[%s1 + $0x44] sm:$0xf]
  %v44 = vld [vmem:[%s1 + $0x48] sm:$0xf]
  %v45 = vld [vmem:[%s1 + $0x4c] sm:$0xf]
  %v46 = vld [vmem:[%s1 + $0x50] sm:$0xf]
  %v47 = vld [vmem:[%s1 + $0x54] sm:$0xf]
  %v48 = vld [vmem:[%s1 + $0x58] sm:$0xf]
  %v49 = vld [vmem:[%s1 + $0x5c] sm:$0xf]
  %v50 = vld [vmem:[%s1 + $0x60] sm:$0xf]
  %v51 = vld [vmem:[%s1 + $0x64] sm:$0xf]
  %v52 = vld [vmem:[%s1 + $0x68] sm:$0xf]
  %v53 = vld [vmem:[%s1 + $0x6c] sm:$0xf]
  %v54 = vld [vmem:[%s1 + $0x70] sm:$0xf]
  %v55 = vld [vmem:[%s1 + $0x74] sm:$0xf]
  %v56 = vld [vmem:[%s1 + $0x78] sm:$0xf]
  %v57 = vld [vmem:[%s1 + $0x7c] sm:$0xf]
  %v58 = vld [vmem:[%s1 + $0x80] sm:$0xf]
  %v59 = vld [vmem:[%s1 + $0x84] sm:$0xf]
  %v60 = vld [vmem:[%s1 + $0x88] sm:$0xf]
  %v61 = vld [vmem:[%s1 + $0x8c] sm:$0xf]
  %v62 = vld [vmem:[%s1 + $0x90] sm:$0xf]
  %v63 = vld [vmem:[%s1 + $0x94] sm:$0xf]
  %v64 = vld [vmem:[%s1 + $0x98] sm:$0xf]
  %v65 = vld [vmem:[%s1 + $0x9c] sm:$0xf]
  %v66 = vld [vmem:[%s1 + $0xa0] sm:$0xf]
  %v67 = vld [vmem:[%s1 + $0xa4] sm:$0xf]
  %v68 = vld [vmem:[%s1 + $0xa8] sm:$0xf]
  %v69 = vld [vmem:[%s1 + $0xac] sm:$0xf]
  %v70 = vld [vmem:[%s1 + $0xb0] sm:$0xf]
  %v71 = vld [vmem:[%s1 + $0xb4] sm:$0xf]
  %v72 = vld [vmem:[%s1 + $0xb8] sm:$0xf]
  %v73 = vld [vmem:[%s1 + $0xbc] sm:$0xf]
  %v82 = vunpack.c.l.b16 %v18
  %v83 = vunpack.c.h.b16 %v18
  %v84 = vunpack.c.l.b16 %v19
  %v85 = vunpack.c.l.b16 %v20
  %v86 = vunpack.c.h.b16 %v20
  %v87 = vunpack.c.l.b16 %v21
  %v88 = vunpack.c.l.b16 %v22
  %v89 = vunpack.c.h.b16 %v22
  %v90 = vunpack.c.l.b16 %v23
  %v91 = vunpack.c.l.b16 %v24
  %v92 = vunpack.c.h.b16 %v24
  %v93 = vunpack.c.l.b16 %v25
  %v94 = vpack.c.b16 %v85, %v82
  %v95 = vpack.c.b16 %v86, %v83
  %v96 = vpack.c.b16 %v87, %v84
  %v97 = vpack.c.b16 %v91, %v88
  %v98 = vpack.c.b16 %v92, %v89
  %v99 = vpack.c.b16 %v93, %v90
  %v154 = vunpack.c.l.b16 %v26
  %v155 = vunpack.c.l.b16 %v27
  %v156 = vunpack.c.l.b16 %v28
  %v157 = vunpack.c.l.b16 %v29
  %v158 = vunpack.c.l.b16 %v30
  %v159 = vunpack.c.l.b16 %v31
  %v160 = vunpack.c.l.b16 %v32
  %v161 = vunpack.c.l.b16 %v33
  %v162 = vunpack.c.l.b16 %v34
  %v163 = vunpack.c.l.b16 %v35
  %v164 = vunpack.c.l.b16 %v36
  %v165 = vunpack.c.l.b16 %v37
  %v166 = vunpack.c.l.b16 %v38
  %v167 = vunpack.c.l.b16 %v39
  %v168 = vunpack.c.l.b16 %v40
  %v169 = vunpack.c.l.b16 %v41
  %v170 = vunpack.c.l.b16 %v42
  %v171 = vunpack.c.l.b16 %v43
  %v172 = vunpack.c.l.b16 %v44
  %v173 = vunpack.c.l.b16 %v45
  %v174 = vunpack.c.l.b16 %v46
  %v175 = vunpack.c.l.b16 %v47
  %v176 = vunpack.c.l.b16 %v48
  %v177 = vunpack.c.l.b16 %v49
  %v178 = vunpack.c.l.b16 %v50
  %v179 = vunpack.c.l.b16 %v51
  %v180 = vunpack.c.l.b16 %v52
  %v181 = vunpack.c.l.b16 %v53
  %v182 = vunpack.c.l.b16 %v54
  %v183 = vunpack.c.l.b16 %v55
  %v184 = vunpack.c.l.b16 %v56
  %v185 = vunpack.c.l.b16 %v57
  %v186 = vunpack.c.l.b16 %v58
  %v187 = vunpack.c.l.b16 %v59
  %v188 = vunpack.c.l.b16 %v60
  %v189 = vunpack.c.l.b16 %v61
  %v190 = vunpack.c.l.b16 %v62
  %v191 = vunpack.c.l.b16 %v63
  %v192 = vunpack.c.l.b16 %v64
  %v193 = vunpack.c.l.b16 %v65
  %v194 = vunpack.c.l.b16 %v66
  %v195 = vunpack.c.l.b16 %v67
  %v196 = vunpack.c.l.b16 %v68
  %v197 = vunpack.c.l.b16 %v69
  %v198 = vunpack.c.l.b16 %v70
  %v199 = vunpack.c.l.b16 %v71
  %v200 = vunpack.c.l.b16 %v72
  %v201 = vunpack.c.l.b16 %v73
  %v202 = vpack.c.b16 %v155, %v154
  %v203 = vpack.c.b16 %v157, %v156
  %v204 = vpack.c.b16 %v159, %v158
  %v205 = vpack.c.b16 %v161, %v160
  %v206 = vpack.c.b16 %v163, %v162
  %v207 = vpack.c.b16 %v165, %v164
  %v208 = vpack.c.b16 %v167, %v166
  %v209 = vpack.c.b16 %v169, %v168
  %v210 = vpack.c.b16 %v171, %v170
  %v211 = vpack.c.b16 %v173, %v172
  %v212 = vpack.c.b16 %v175, %v174
  %v213 = vpack.c.b16 %v177, %v176
  %v214 = vpack.c.b16 %v179, %v178
  %v215 = vpack.c.b16 %v181, %v180
  %v216 = vpack.c.b16 %v183, %v182
  %v217 = vpack.c.b16 %v185, %v184
  %v218 = vpack.c.b16 %v187, %v186
  %v219 = vpack.c.b16 %v189, %v188
  %v220 = vpack.c.b16 %v191, %v190
  %v221 = vpack.c.b16 %v193, %v192
  %v222 = vpack.c.b16 %v195, %v194
  %v223 = vpack.c.b16 %v197, %v196
  %v224 = vpack.c.b16 %v199, %v198
  %v225 = vpack.c.b16 %v201, %v200
  %250 = vmatprep.subr.bf16.mxu0 0
  %251 = vmatpush1.bf16.msra.mxu0 %v202
  %252 = vmatprep.subr.bf16.mxu0 0
  %253 = vmatpush1.bf16.msra.mxu0 %v203
  %254 = vmatprep.subr.bf16.mxu0 0
  %255 = vmatpush1.bf16.msra.mxu0 %v204
  %256 = vmatprep.subr.bf16.mxu0 0
  %257 = vmatpush1.bf16.msra.mxu0 %v205
  %258 = vmatprep.subr.bf16.mxu0 0
  %259 = vmatpush1.bf16.msra.mxu0 %v206
  %260 = vmatprep.subr.bf16.mxu0 0
  %261 = vmatpush1.bf16.msra.mxu0 %v207
  %262 = vmatprep.subr.bf16.mxu0 0
  %263 = vmatpush1.bf16.msra.mxu0 %v208
  %264 = vmatprep.subr.bf16.mxu0 0
  %265 = vmatpush1.bf16.msra.mxu0 %v209
  %266 = vmatprep.subr.bf16.mxu0 0
  %267 = vmatpush1.bf16.msra.mxu0 %v210
  %268 = vmatprep.subr.bf16.mxu0 0
  %269 = vmatpush1.bf16.msra.mxu0 %v211
  %270 = vmatprep.subr.bf16.mxu0 0
  %271 = vmatpush1.bf16.msra.mxu0 %v212
  %272 = vmatprep.subr.bf16.mxu0 0
  %273 = vmatpush1.bf16.msra.mxu0 %v213
  %274 = vmatprep.subr.bf16.mxu0 0
  %275 = vmatpush1.bf16.msra.mxu0 %v214
  %276 = vmatprep.subr.bf16.mxu0 0
  %277 = vmatpush1.bf16.msra.mxu0 %v215
  %278 = vmatprep.subr.bf16.mxu0 0
  %279 = vmatpush1.bf16.msra.mxu0 %v216
  %280 = vmatprep.subr.bf16.mxu0 0
  %281 = vmatpush1.bf16.msra.mxu0 %v217
  %282 = vmatprep.mubr.bf16.mxu0 %v95
  %283 = vmatmul.mubr.bf16.gmra.mrb[0].mxu0 %v94
  %v284 = vpop.f32.mrb[0].mxu0
  %v285 = vadd.f32 0.0, %v284
  %v286 = vpop.f32.mrb[0].mxu0
  %v287 = vpop.f32.mrb[0].mxu0
  %v288 = vadd.f32 0.0, %v287
  %v289 = vpop.f32.mrb[0].mxu0
  %290 = vmatprep.mubr.bf16.mxu0 %v98
  %291 = vmatmul.mubr.bf16.gmra.mrb[0].mxu0 %v97
  %v292 = vpop.f32.mrb[0].mxu0
  %v293 = vadd.f32 0.0, %v292
  %v294 = vpop.f32.mrb[0].mxu0
  %v295 = vpop.f32.mrb[0].mxu0
  %v296 = vadd.f32 0.0, %v295
  %v297 = vpop.f32.mrb[0].mxu0
  %298 = vdwg.mxu0
  %299 = vmatprep.subr.bf16.mxu0 0
  %300 = vmatpush1.bf16.msra.mxu0 %v218
  %301 = vmatprep.subr.bf16.mxu0 0
  %302 = vmatpush1.bf16.msra.mxu0 %v219
  %303 = vmatprep.subr.bf16.mxu0 0
  %304 = vmatpush1.bf16.msra.mxu0 %v220
  %305 = vmatprep.subr.bf16.mxu0 0
  %306 = vmatpush1.bf16.msra.mxu0 %v221
  %307 = vmatprep.subr.bf16.mxu0 0
  %308 = vmatpush1.bf16.msra.mxu0 %v222
  %309 = vmatprep.subr.bf16.mxu0 0
  %310 = vmatpush1.bf16.msra.mxu0 %v223
  %311 = vmatprep.subr.bf16.mxu0 0
  %312 = vmatpush1.bf16.msra.mxu0 %v224
  %313 = vmatprep.subr.bf16.mxu0 0
  %314 = vmatpush1.bf16.msra.mxu0 %v225
  %315 = vmatprep.subr.bf16.mxu0 0
  %316 = vmatpush1.bf16.msra.mxu0 0
  %317 = vmatprep.subr.bf16.mxu0 0
  %318 = vmatpush1.bf16.msra.mxu0 0
  %319 = vmatprep.subr.bf16.mxu0 0
  %320 = vmatpush1.bf16.msra.mxu0 0
  %321 = vmatprep.subr.bf16.mxu0 0
  %322 = vmatpush1.bf16.msra.mxu0 0
  %323 = vmatprep.subr.bf16.mxu0 0
  %324 = vmatpush1.bf16.msra.mxu0 0
  %325 = vmatprep.subr.bf16.mxu0 0
  %326 = vmatpush1.bf16.msra.mxu0 0
  %327 = vmatprep.subr.bf16.mxu0 0
  %328 = vmatpush1.bf16.msra.mxu0 0
  %329 = vmatprep.subr.bf16.mxu0 0
  %330 = vmatpush1.bf16.msra.mxu0 0
  %331 = vmatprep.mubr.bf16.mxu0 0
  %332 = vmatmul.mubr.bf16.gmra.mrb[0].mxu0 %v96
  %v333 = vpop.f32.mrb[0].mxu0
  %v334 = vadd.f32 %v285, %v333
  %v335 = vpop.f32.mrb[0].mxu0
  %v336 = vpop.f32.mrb[0].mxu0
  %v337 = vadd.f32 %v288, %v336
  %v338 = vpop.f32.mrb[0].mxu0
  %339 = vmatprep.mubr.bf16.mxu0 0
  %340 = vmatmul.mubr.bf16.gmra.mrb[0].mxu0 %v99
  %v341 = vpop.f32.mrb[0].mxu0
  %v342 = vadd.f32 %v293, %v341
  %v343 = vpop.f32.mrb[0].mxu0
  %v344 = vpop.f32.mrb[0].mxu0
  %v345 = vadd.f32 %v296, %v344
  %v346 = vpop.f32.mrb[0].mxu0
  %347 = vdwg.mxu0
  %v348 = vld [vmem:[%s2] sm:$0x1]
  %v350 = vlaneseq
  %v351 = vshrl.u32 %v350, 7
  %v352 = vsub.s32 0, %v351
  %v353 = vrot.slane %v348, %v352
  %v355 = vmul.f32 %v334, %v353
  %v356 = vmul.f32 %v337, %v353
  %v357 = vmul.f32 %v342, %v353
  %v358 = vmul.f32 %v345, %v353
  %v359 = vld [vmem:[%s3] sm:$0x1]
  %v361 = vlaneseq
  %v362 = vshrl.u32 %v361, 7
  %v363 = vsub.s32 0, %v362
  %v364 = vrot.slane %v359, %v363
  %v366 = vadd.f32 %v355, %v364
  %v367 = vadd.f32 %v356, %v364
  %v368 = vadd.f32 %v357, %v364
  %v369 = vadd.f32 %v358, %v364
  %v370 = vmax.f32 %v366, 0.0
  %v371 = vmax.f32 %v367, 0.0
  %v372 = vmax.f32 %v368, 0.0
  %v373 = vmax.f32 %v369, 0.0
  %374 = vst [vmem:[%s4] sm:$0xff] %v370
  %375 = vst [vmem:[%s4 + $0x8] sm:$0xff] %v371
  %376 = vst [vmem:[%s4 + $0x10] sm:$0xff] %v372
  %377 = vst [vmem:[%s4 + $0x18] sm:$0xff] %v373
  // Predicated region
  $region18: #{cam_forward.33} parent=0 // pred_check
    _
  $region19: #{cam_forward.33} parent=0 // pred_check_branch
    %379 = sbr.rel (0) target = $region21
  $region20: #{cam_forward.33} parent=0 // pred_region
    _
  $region21: #{cam_forward.33} parent=0 // pred_fallthru
    _
  // Predicated region
  $region22: #{cam_forward.33} parent=0 // pred_check
    _
  $region23: #{cam_forward.33} parent=0 // pred_check_branch
    %381 = sbr.rel (0) target = $region25
  $region24: #{cam_forward.33} parent=0 // pred_region
    _
  $region25: #{cam_forward.33} parent=0 // pred_fallthru
    _

// kernel: cam_forward.32
$region0: #{cam_forward.32}
  #allocation0 [shape = 'u32[]', space=smem, size = 0x4, offset = 0x4, fixed_abs, tag = 'smem constant byte address 0x4 - core index']
  #allocation1 [shape = 'u32[144,128]{1,0:T(1,128)}', space=vmem, size = 0x12000, scoped, tag = 'internal scratch']
  %s0 = inlined_call_operand.vmem [shape: bf16[32,384], index: 0, kind: input, shape index: {}]
  %s1 = inlined_call_operand.vmem [shape: bf16[384,128], index: 1, kind: input, shape index: {}]
  %s2 = inlined_call_operand.vmem [shape: f32[1,128], index: 2, kind: input, shape index: {}]
  %s3 = inlined_call_operand.vmem [shape: f32[1,128], index: 3, kind: input, shape index: {}]
  %s4 = inlined_call_operand.vmem [shape: f32[32,128], index: 4, kind: input, shape index: {}]
  %s5 = inlined_call_operand.vmem [shape: f32[32,128], index: 5, kind: output, shape index: {}]
  %s6 = sld [smem:[#allocation0]]
  $region30: #{cam_forward.32} parent=0
    _
  %s8 = ssub.s32 1, %s6
  %s9 = scalar_select 0, %s8, %s6
  // Predicated region
  $region2: #{cam_forward.32} parent=0 // pred_check
    _
  $region3: #{cam_forward.32} parent=0 // pred_check_branch
    %11 = sbr.rel (0) target = $region5
  $region4: #{cam_forward.32} parent=0 // pred_region
    _
  $region5: #{cam_forward.32} parent=0 // pred_fallthru
    _
  // Predicated region
  $region6: #{cam_forward.32} parent=0 // pred_check
    _
  $region7: #{cam_forward.32} parent=0 // pred_check_branch
    %13 = sbr.rel (0) target = $region9
  $region8: #{cam_forward.32} parent=0 // pred_region
    _
  $region9: #{cam_forward.32} parent=0 // pred_fallthru
    _
  // Predicated region
  $region10: #{cam_forward.32} parent=0 // pred_check
    _
  $region11: #{cam_forward.32} parent=0 // pred_check_branch
    %15 = sbr.rel (0) target = $region13
  $region12: #{cam_forward.32} parent=0 // pred_region
    _
  $region13: #{cam_forward.32} parent=0 // pred_fallthru
    _
  // Predicated region
  $region14: #{cam_forward.32} parent=0 // pred_check
    _
  $region15: #{cam_forward.32} parent=0 // pred_check_branch
    %17 = sbr.rel (0) target = $region17
  $region16: #{cam_forward.32} parent=0 // pred_region
    _
  $region17: #{cam_forward.32} parent=0 // pred_fallthru
    _
  // Predicated region
  $region18: #{cam_forward.32} parent=0 // pred_check
    _
  $region19: #{cam_forward.32} parent=0 // pred_check_branch
    %19 = sbr.rel (0) target = $region21
  $region20: #{cam_forward.32} parent=0 // pred_region
    _
  $region21: #{cam_forward.32} parent=0 // pred_fallthru
    _
  %v21 = vld [vmem:[%s0] sm:$0xff]
  %v22 = vld [vmem:[%s0 + $0x8] sm:$0xf]
  %v23 = vld [vmem:[%s0 + $0xc] sm:$0xff]
  %v24 = vld [vmem:[%s0 + $0x14] sm:$0xf]
  %v25 = vld [vmem:[%s0 + $0x18] sm:$0xff]
  %v26 = vld [vmem:[%s0 + $0x20] sm:$0xf]
  %v27 = vld [vmem:[%s0 + $0x24] sm:$0xff]
  %v28 = vld [vmem:[%s0 + $0x2c] sm:$0xf]
  %v29 = vld [vmem:[%s1] sm:$0xf]
  %v30 = vld [vmem:[%s1 + $0x4] sm:$0xf]
  %v31 = vld [vmem:[%s1 + $0x8] sm:$0xf]
  %v32 = vld [vmem:[%s1 + $0xc] sm:$0xf]
  %v33 = vld [vmem:[%s1 + $0x10] sm:$0xf]
  %v34 = vld [vmem:[%s1 + $0x14] sm:$0xf]
  %v35 = vld [vmem:[%s1 + $0x18] sm:$0xf]
  %v36 = vld [vmem:[%s1 + $0x1c] sm:$0xf]
  %v37 = vld [vmem:[%s1 + $0x20] sm:$0xf]
  %v38 = vld [vmem:[%s1 + $0x24] sm:$0xf]
  %v39 = vld [vmem:[%s1 + $0x28] sm:$0xf]
  %v40 = vld [vmem:[%s1 + $0x2c] sm:$0xf]
  %v41 = vld [vmem:[%s1 + $0x30] sm:$0xf]
  %v42 = vld [vmem:[%s1 + $0x34] sm:$0xf]
  %v43 = vld [vmem:[%s1 + $0x38] sm:$0xf]
  %v44 = vld [vmem:[%s1 + $0x3c] sm:$0xf]
  %v45 = vld [vmem:[%s1 + $0x40] sm:$0xf]
  %v46 = vld [vmem:[%s1 + $0x44] sm:$0xf]
  %v47 = vld [vmem:[%s1 + $0x48] sm:$0xf]
  %v48 = vld [vmem:[%s1 + $0x4c] sm:$0xf]
  %v49 = vld [vmem:[%s1 + $0x50] sm:$0xf]
  %v50 = vld [vmem:[%s1 + $0x54] sm:$0xf]
  %v51 = vld [vmem:[%s1 + $0x58] sm:$0xf]
  %v52 = vld [vmem:[%s1 + $0x5c] sm:$0xf]
  %v53 = vld [vmem:[%s1 + $0x60] sm:$0xf]
  %v54 = vld [vmem:[%s1 + $0x64] sm:$0xf]
  %v55 = vld [vmem:[%s1 + $0x68] sm:$0xf]
  %v56 = vld [vmem:[%s1 + $0x6c] sm:$0xf]
  %v57 = vld [vmem:[%s1 + $0x70] sm:$0xf]
  %v58 = vld [vmem:[%s1 + $0x74] sm:$0xf]
  %v59 = vld [vmem:[%s1 + $0x78] sm:$0xf]
  %v60 = vld [vmem:[%s1 + $0x7c] sm:$0xf]
  %v61 = vld [vmem:[%s1 + $0x80] sm:$0xf]
  %v62 = vld [vmem:[%s1 + $0x84] sm:$0xf]
  %v63 = vld [vmem:[%s1 + $0x88] sm:$0xf]
  %v64 = vld [vmem:[%s1 + $0x8c] sm:$0xf]
  %v65 = vld [vmem:[%s1 + $0x90] sm:$0xf]
  %v66 = vld [vmem:[%s1 + $0x94] sm:$0xf]
  %v67 = vld [vmem:[%s1 + $0x98] sm:$0xf]
  %v68 = vld [vmem:[%s1 + $0x9c] sm:$0xf]
  %v69 = vld [vmem:[%s1 + $0xa0] sm:$0xf]
  %v70 = vld [vmem:[%s1 + $0xa4] sm:$0xf]
  %v71 = vld [vmem:[%s1 + $0xa8] sm:$0xf]
  %v72 = vld [vmem:[%s1 + $0xac] sm:$0xf]
  %v73 = vld [vmem:[%s1 + $0xb0] sm:$0xf]
  %v74 = vld [vmem:[%s1 + $0xb4] sm:$0xf]
  %v75 = vld [vmem:[%s1 + $0xb8] sm:$0xf]
  %v76 = vld [vmem:[%s1 + $0xbc] sm:$0xf]
  %v85 = vunpack.c.l.b16 %v21
  %v86 = vunpack.c.h.b16 %v21
  %v87 = vunpack.c.l.b16 %v22
  %v88 = vunpack.c.l.b16 %v23
  %v89 = vunpack.c.h.b16 %v23
  %v90 = vunpack.c.l.b16 %v24
  %v91 = vunpack.c.l.b16 %v25
  %v92 = vunpack.c.h.b16 %v25
  %v93 = vunpack.c.l.b16 %v26
  %v94 = vunpack.c.l.b16 %v27
  %v95 = vunpack.c.h.b16 %v27
  %v96 = vunpack.c.l.b16 %v28
  %v97 = vpack.c.b16 %v88, %v85
  %v98 = vpack.c.b16 %v89, %v86
  %v99 = vpack.c.b16 %v90, %v87
  %v100 = vpack.c.b16 %v94, %v91
  %v101 = vpack.c.b16 %v95, %v92
  %v102 = vpack.c.b16 %v96, %v93
  %v157 = vunpack.c.l.b16 %v29
  %v158 = vunpack.c.l.b16 %v30
  %v159 = vunpack.c.l.b16 %v31
  %v160 = vunpack.c.l.b16 %v32
  %v161 = vunpack.c.l.b16 %v33
  %v162 = vunpack.c.l.b16 %v34
  %v163 = vunpack.c.l.b16 %v35
  %v164 = vunpack.c.l.b16 %v36
  %v165 = vunpack.c.l.b16 %v37
  %v166 = vunpack.c.l.b16 %v38
  %v167 = vunpack.c.l.b16 %v39
  %v168 = vunpack.c.l.b16 %v40
  %v169 = vunpack.c.l.b16 %v41
  %v170 = vunpack.c.l.b16 %v42
  %v171 = vunpack.c.l.b16 %v43
  %v172 = vunpack.c.l.b16 %v44
  %v173 = vunpack.c.l.b16 %v45
  %v174 = vunpack.c.l.b16 %v46
  %v175 = vunpack.c.l.b16 %v47
  %v176 = vunpack.c.l.b16 %v48
  %v177 = vunpack.c.l.b16 %v49
  %v178 = vunpack.c.l.b16 %v50
  %v179 = vunpack.c.l.b16 %v51
  %v180 = vunpack.c.l.b16 %v52
  %v181 = vunpack.c.l.b16 %v53
  %v182 = vunpack.c.l.b16 %v54
  %v183 = vunpack.c.l.b16 %v55
  %v184 = vunpack.c.l.b16 %v56
  %v185 = vunpack.c.l.b16 %v57
  %v186 = vunpack.c.l.b16 %v58
  %v187 = vunpack.c.l.b16 %v59
  %v188 = vunpack.c.l.b16 %v60
  %v189 = vunpack.c.l.b16 %v61
  %v190 = vunpack.c.l.b16 %v62
  %v191 = vunpack.c.l.b16 %v63
  %v192 = vunpack.c.l.b16 %v64
  %v193 = vunpack.c.l.b16 %v65
  %v194 = vunpack.c.l.b16 %v66
  %v195 = vunpack.c.l.b16 %v67
  %v196 = vunpack.c.l.b16 %v68
  %v197 = vunpack.c.l.b16 %v69
  %v198 = vunpack.c.l.b16 %v70
  %v199 = vunpack.c.l.b16 %v71
  %v200 = vunpack.c.l.b16 %v72
  %v201 = vunpack.c.l.b16 %v73
  %v202 = vunpack.c.l.b16 %v74
  %v203 = vunpack.c.l.b16 %v75
  %v204 = vunpack.c.l.b16 %v76
  %v205 = vpack.c.b16 %v158, %v157
  %v206 = vpack.c.b16 %v160, %v159
  %v207 = vpack.c.b16 %v162, %v161
  %v208 = vpack.c.b16 %v164, %v163
  %v209 = vpack.c.b16 %v166, %v165
  %v210 = vpack.c.b16 %v168, %v167
  %v211 = vpack.c.b16 %v170, %v169
  %v212 = vpack.c.b16 %v172, %v171
  %v213 = vpack.c.b16 %v174, %v173
  %v214 = vpack.c.b16 %v176, %v175
  %v215 = vpack.c.b16 %v178, %v177
  %v216 = vpack.c.b16 %v180, %v179
  %v217 = vpack.c.b16 %v182, %v181
  %v218 = vpack.c.b16 %v184, %v183
  %v219 = vpack.c.b16 %v186, %v185
  %v220 = vpack.c.b16 %v188, %v187
  %v221 = vpack.c.b16 %v190, %v189
  %v222 = vpack.c.b16 %v192, %v191
  %v223 = vpack.c.b16 %v194, %v193
  %v224 = vpack.c.b16 %v196, %v195
  %v225 = vpack.c.b16 %v198, %v197
  %v226 = vpack.c.b16 %v200, %v199
  %v227 = vpack.c.b16 %v202, %v201
  %v228 = vpack.c.b16 %v204, %v203
  %253 = vmatprep.subr.bf16.mxu0 0
  %254 = vmatpush1.bf16.msra.mxu0 %v205
  %255 = vmatprep.subr.bf16.mxu0 0
  %256 = vmatpush1.bf16.msra.mxu0 %v206
  %257 = vmatprep.subr.bf16.mxu0 0
  %258 = vmatpush1.bf16.msra.mxu0 %v207
  %259 = vmatprep.subr.bf16.mxu0 0
  %260 = vmatpush1.bf16.msra.mxu0 %v208
  %261 = vmatprep.subr.bf16.mxu0 0
  %262 = vmatpush1.bf16.msra.mxu0 %v209
  %263 = vmatprep.subr.bf16.mxu0 0
  %264 = vmatpush1.bf16.msra.mxu0 %v210
  %265 = vmatprep.subr.bf16.mxu0 0
  %266 = vmatpush1.bf16.msra.mxu0 %v211
  %267 = vmatprep.subr.bf16.mxu0 0
  %268 = vmatpush1.bf16.msra.mxu0 %v212
  %269 = vmatprep.subr.bf16.mxu0 0
  %270 = vmatpush1.bf16.msra.mxu0 %v213
  %271 = vmatprep.subr.bf16.mxu0 0
  %272 = vmatpush1.bf16.msra.mxu0 %v214
  %273 = vmatprep.subr.bf16.mxu0 0
  %274 = vmatpush1.bf16.msra.mxu0 %v215
  %275 = vmatprep.subr.bf16.mxu0 0
  %276 = vmatpush1.bf16.msra.mxu0 %v216
  %277 = vmatprep.subr.bf16.mxu0 0
  %278 = vmatpush1.bf16.msra.mxu0 %v217
  %279 = vmatprep.subr.bf16.mxu0 0
  %280 = vmatpush1.bf16.msra.mxu0 %v218
  %281 = vmatprep.subr.bf16.mxu0 0
  %282 = vmatpush1.bf16.msra.mxu0 %v219
  %283 = vmatprep.subr.bf16.mxu0 0
  %284 = vmatpush1.bf16.msra.mxu0 %v220
  %285 = vmatprep.mubr.bf16.mxu0 %v98
  %286 = vmatmul.mubr.bf16.gmra.mrb[0].mxu0 %v97
  %v287 = vpop.f32.mrb[0].mxu0
  %v288 = vadd.f32 0.0, %v287
  %v289 = vpop.f32.mrb[0].mxu0
  %v290 = vpop.f32.mrb[0].mxu0
  %v291 = vadd.f32 0.0, %v290
  %v292 = vpop.f32.mrb[0].mxu0
  %293 = vmatprep.mubr.bf16.mxu0 %v101
  %294 = vmatmul.mubr.bf16.gmra.mrb[0].mxu0 %v100
  %v295 = vpop.f32.mrb[0].mxu0
  %v296 = vadd.f32 0.0, %v295
  %v297 = vpop.f32.mrb[0].mxu0
  %v298 = vpop.f32.mrb[0].mxu0
  %v299 = vadd.f32 0.0, %v298
  %v300 = vpop.f32.mrb[0].mxu0
  %301 = vdwg.mxu0
  %302 = vmatprep.subr.bf16.mxu0 0
  %303 = vmatpush1.bf16.msra.mxu0 %v221
  %304 = vmatprep.subr.bf16.mxu0 0
  %305 = vmatpush1.bf16.msra.mxu0 %v222
  %306 = vmatprep.subr.bf16.mxu0 0
  %307 = vmatpush1.bf16.msra.mxu0 %v223
  %308 = vmatprep.subr.bf16.mxu0 0
  %309 = vmatpush1.bf16.msra.mxu0 %v224
  %310 = vmatprep.subr.bf16.mxu0 0
  %311 = vmatpush1.bf16.msra.mxu0 %v225
  %312 = vmatprep.subr.bf16.mxu0 0
  %313 = vmatpush1.bf16.msra.mxu0 %v226
  %314 = vmatprep.subr.bf16.mxu0 0
  %315 = vmatpush1.bf16.msra.mxu0 %v227
  %316 = vmatprep.subr.bf16.mxu0 0
  %317 = vmatpush1.bf16.msra.mxu0 %v228
  %318 = vmatprep.subr.bf16.mxu0 0
  %319 = vmatpush1.bf16.msra.mxu0 0
  %320 = vmatprep.subr.bf16.mxu0 0
  %321 = vmatpush1.bf16.msra.mxu0 0
  %322 = vmatprep.subr.bf16.mxu0 0
  %323 = vmatpush1.bf16.msra.mxu0 0
  %324 = vmatprep.subr.bf16.mxu0 0
  %325 = vmatpush1.bf16.msra.mxu0 0
  %326 = vmatprep.subr.bf16.mxu0 0
  %327 = vmatpush1.bf16.msra.mxu0 0
  %328 = vmatprep.subr.bf16.mxu0 0
  %329 = vmatpush1.bf16.msra.mxu0 0
  %330 = vmatprep.subr.bf16.mxu0 0
  %331 = vmatpush1.bf16.msra.mxu0 0
  %332 = vmatprep.subr.bf16.mxu0 0
  %333 = vmatpush1.bf16.msra.mxu0 0
  %334 = vmatprep.mubr.bf16.mxu0 0
  %335 = vmatmul.mubr.bf16.gmra.mrb[0].mxu0 %v99
  %v336 = vpop.f32.mrb[0].mxu0
  %v337 = vadd.f32 %v288, %v336
  %v338 = vpop.f32.mrb[0].mxu0
  %v339 = vpop.f32.mrb[0].mxu0
  %v340 = vadd.f32 %v291, %v339
  %v341 = vpop.f32.mrb[0].mxu0
  %342 = vmatprep.mubr.bf16.mxu0 0
  %343 = vmatmul.mubr.bf16.gmra.mrb[0].mxu0 %v102
  %v344 = vpop.f32.mrb[0].mxu0
  %v345 = vadd.f32 %v296, %v344
  %v346 = vpop.f32.mrb[0].mxu0
  %v347 = vpop.f32.mrb[0].mxu0
  %v348 = vadd.f32 %v299, %v347
  %v349 = vpop.f32.mrb[0].mxu0
  %350 = vdwg.mxu0
  %v351 = vld [vmem:[%s2] sm:$0x1]
  %v353 = vlaneseq
  %v354 = vshrl.u32 %v353, 7
  %v355 = vsub.s32 0, %v354
  %v356 = vrot.slane %v351, %v355
  %v358 = vmul.f32 %v337, %v356
  %v359 = vmul.f32 %v340, %v356
  %v360 = vmul.f32 %v345, %v356
  %v361 = vmul.f32 %v348, %v356
  %v362 = vld [vmem:[%s3] sm:$0x1]
  %v364 = vlaneseq
  %v365 = vshrl.u32 %v364, 7
  %v366 = vsub.s32 0, %v365
  %v367 = vrot.slane %v362, %v366
  %v369 = vadd.f32 %v358, %v367
  %v370 = vadd.f32 %v359, %v367
  %v371 = vadd.f32 %v360, %v367
  %v372 = vadd.f32 %v361, %v367
  %v373 = vld [vmem:[%s4] sm:$0xff]
  %v374 = vld [vmem:[%s4 + $0x8] sm:$0xff]
  %v375 = vld [vmem:[%s4 + $0x10] sm:$0xff]
  %v376 = vld [vmem:[%s4 + $0x18] sm:$0xff]
  %v377 = vadd.f32 %v369, %v373
  %v378 = vadd.f32 %v370, %v374
  %v379 = vadd.f32 %v371, %v375
  %v380 = vadd.f32 %v372, %v376
  %v381 = vmax.f32 %v377, 0.0
  %v382 = vmax.f32 %v378, 0.0
  %v383 = vmax.f32 %v379, 0.0
  %v384 = vmax.f32 %v380, 0.0
  %385 = vst [vmem:[%s5] sm:$0xff] %v381
  %386 = vst [vmem:[%s5 + $0x8] sm:$0xff] %v382
  %387 = vst [vmem:[%s5 + $0x10] sm:$0xff] %v383
  %388 = vst [vmem:[%s5 + $0x18] sm:$0xff] %v384
  // Predicated region
  $region22: #{cam_forward.32} parent=0 // pred_check
    _
  $region23: #{cam_forward.32} parent=0 // pred_check_branch
    %390 = sbr.rel (0) target = $region25
  $region24: #{cam_forward.32} parent=0 // pred_region
    _
  $region25: #{cam_forward.32} parent=0 // pred_fallthru
    _
  // Predicated region
  $region26: #{cam_forward.32} parent=0 // pred_check
    _
  $region27: #{cam_forward.32} parent=0 // pred_check_branch
    %392 = sbr.rel (0) target = $region29
  $region28: #{cam_forward.32} parent=0 // pred_region
    _
  $region29: #{cam_forward.32} parent=0 // pred_fallthru
    _

// kernel: cam_forward.36
$region0: #{cam_forward.36}
  #allocation0 [shape = 'u32[]', space=smem, size = 0x4, offset = 0x4, fixed_abs, tag = 'smem constant byte address 0x4 - core index']
  #allocation1 [shape = 'u32[144,128]{1,0:T(1,128)}', space=vmem, size = 0x12000, scoped, tag = 'internal scratch']
  %s0 = inlined_call_operand.vmem [shape: bf16[8,128], index: 0, kind: input, shape index: {}]
  %s1 = inlined_call_operand.vmem [shape: bf16[128,128], index: 1, kind: input, shape index: {}]
  %s2 = inlined_call_operand.vmem [shape: f32[1,128], index: 2, kind: input, shape index: {}]
  %s3 = inlined_call_operand.vmem [shape: f32[1,128], index: 3, kind: input, shape index: {}]
  %s4 = inlined_call_operand.vmem [shape: f32[8,128], index: 4, kind: output, shape index: {}]
  %s5 = sld [smem:[#allocation0]]
  $region26: #{cam_forward.36} parent=0
    _
  %s7 = ssub.s32 1, %s5
  %s8 = scalar_select 0, %s7, %s5
  // Predicated region
  $region2: #{cam_forward.36} parent=0 // pred_check
    _
  $region3: #{cam_forward.36} parent=0 // pred_check_branch
    %10 = sbr.rel (0) target = $region5
  $region4: #{cam_forward.36} parent=0 // pred_region
    _
  $region5: #{cam_forward.36} parent=0 // pred_fallthru
    _
  // Predicated region
  $region6: #{cam_forward.36} parent=0 // pred_check
    _
  $region7: #{cam_forward.36} parent=0 // pred_check_branch
    %12 = sbr.rel (0) target = $region9
  $region8: #{cam_forward.36} parent=0 // pred_region
    _
  $region9: #{cam_forward.36} parent=0 // pred_fallthru
    _
  // Predicated region
  $region10: #{cam_forward.36} parent=0 // pred_check
    _
  $region11: #{cam_forward.36} parent=0 // pred_check_branch
    %14 = sbr.rel (0) target = $region13
  $region12: #{cam_forward.36} parent=0 // pred_region
    _
  $region13: #{cam_forward.36} parent=0 // pred_fallthru
    _
  // Predicated region
  $region14: #{cam_forward.36} parent=0 // pred_check
    _
  $region15: #{cam_forward.36} parent=0 // pred_check_branch
    %16 = sbr.rel (0) target = $region17
  $region16: #{cam_forward.36} parent=0 // pred_region
    _
  $region17: #{cam_forward.36} parent=0 // pred_fallthru
    _
  %v18 = vld [vmem:[%s0] sm:$0xf]
  %v19 = vld [vmem:[%s1] sm:$0xf]
  %v20 = vld [vmem:[%s1 + $0x4] sm:$0xf]
  %v21 = vld [vmem:[%s1 + $0x8] sm:$0xf]
  %v22 = vld [vmem:[%s1 + $0xc] sm:$0xf]
  %v23 = vld [vmem:[%s1 + $0x10] sm:$0xf]
  %v24 = vld [vmem:[%s1 + $0x14] sm:$0xf]
  %v25 = vld [vmem:[%s1 + $0x18] sm:$0xf]
  %v26 = vld [vmem:[%s1 + $0x1c] sm:$0xf]
  %v27 = vld [vmem:[%s1 + $0x20] sm:$0xf]
  %v28 = vld [vmem:[%s1 + $0x24] sm:$0xf]
  %v29 = vld [vmem:[%s1 + $0x28] sm:$0xf]
  %v30 = vld [vmem:[%s1 + $0x2c] sm:$0xf]
  %v31 = vld [vmem:[%s1 + $0x30] sm:$0xf]
  %v32 = vld [vmem:[%s1 + $0x34] sm:$0xf]
  %v33 = vld [vmem:[%s1 + $0x38] sm:$0xf]
  %v34 = vld [vmem:[%s1 + $0x3c] sm:$0xf]
  %v51 = vunpack.c.l.b16 %v19
  %v52 = vunpack.c.l.b16 %v20
  %v53 = vunpack.c.l.b16 %v21
  %v54 = vunpack.c.l.b16 %v22
  %v55 = vunpack.c.l.b16 %v23
  %v56 = vunpack.c.l.b16 %v24
  %v57 = vunpack.c.l.b16 %v25
  %v58 = vunpack.c.l.b16 %v26
  %v59 = vunpack.c.l.b16 %v27
  %v60 = vunpack.c.l.b16 %v28
  %v61 = vunpack.c.l.b16 %v29
  %v62 = vunpack.c.l.b16 %v30
  %v63 = vunpack.c.l.b16 %v31
  %v64 = vunpack.c.l.b16 %v32
  %v65 = vunpack.c.l.b16 %v33
  %v66 = vunpack.c.l.b16 %v34
  %v67 = vpack.c.b16 %v52, %v51
  %v68 = vpack.c.b16 %v54, %v53
  %v69 = vpack.c.b16 %v56, %v55
  %v70 = vpack.c.b16 %v58, %v57
  %v71 = vpack.c.b16 %v60, %v59
  %v72 = vpack.c.b16 %v62, %v61
  %v73 = vpack.c.b16 %v64, %v63
  %v74 = vpack.c.b16 %v66, %v65
  %83 = vmatprep.subr.bf16.mxu0 0
  %84 = vmatpush1.bf16.msra.mxu0 %v67
  %85 = vmatprep.subr.bf16.mxu0 0
  %86 = vmatpush1.bf16.msra.mxu0 %v68
  %87 = vmatprep.subr.bf16.mxu0 0
  %88 = vmatpush1.bf16.msra.mxu0 %v69
  %89 = vmatprep.subr.bf16.mxu0 0
  %90 = vmatpush1.bf16.msra.mxu0 %v70
  %91 = vmatprep.subr.bf16.mxu0 0
  %92 = vmatpush1.bf16.msra.mxu0 %v71
  %93 = vmatprep.subr.bf16.mxu0 0
  %94 = vmatpush1.bf16.msra.mxu0 %v72
  %95 = vmatprep.subr.bf16.mxu0 0
  %96 = vmatpush1.bf16.msra.mxu0 %v73
  %97 = vmatprep.subr.bf16.mxu0 0
  %98 = vmatpush1.bf16.msra.mxu0 %v74
  %99 = vmatprep.subr.bf16.mxu0 0
  %100 = vmatpush1.bf16.msra.mxu0 0
  %101 = vmatprep.subr.bf16.mxu0 0
  %102 = vmatpush1.bf16.msra.mxu0 0
  %103 = vmatprep.subr.bf16.mxu0 0
  %104 = vmatpush1.bf16.msra.mxu0 0
  %105 = vmatprep.subr.bf16.mxu0 0
  %106 = vmatpush1.bf16.msra.mxu0 0
  %107 = vmatprep.subr.bf16.mxu0 0
  %108 = vmatpush1.bf16.msra.mxu0 0
  %109 = vmatprep.subr.bf16.mxu0 0
  %110 = vmatpush1.bf16.msra.mxu0 0
  %111 = vmatprep.subr.bf16.mxu0 0
  %112 = vmatpush1.bf16.msra.mxu0 0
  %113 = vmatprep.subr.bf16.mxu0 0
  %114 = vmatpush1.bf16.msra.mxu0 0
  %115 = vmatprep.mubr.bf16.mxu0 0
  %116 = vmatmul.mubr.bf16.gmra.mrb[0].mxu0 %v18
  %v117 = vpop.f32.mrb[0].mxu0
  %v118 = vadd.f32 0.0, %v117
  %v119 = vpop.f32.mrb[0].mxu0
  %v120 = vpop.f32.mrb[0].mxu0
  %v121 = vpop.f32.mrb[0].mxu0
  %122 = vdwg.mxu0
  %v123 = vld [vmem:[%s2] sm:$0x1]
  %v125 = vlaneseq
  %v126 = vshrl.u32 %v125, 7
  %v127 = vsub.s32 0, %v126
  %v128 = vrot.slane %v123, %v127
  %v130 = vmul.f32 %v118, %v128
  %v131 = vld [vmem:[%s3] sm:$0x1]
  %v133 = vlaneseq
  %v134 = vshrl.u32 %v133, 7
  %v135 = vsub.s32 0, %v134
  %v136 = vrot.slane %v131, %v135
  %v138 = vadd.f32 %v130, %v136
  %139 = vst [vmem:[%s4] sm:$0xff] %v138
  // Predicated region
  $region18: #{cam_forward.36} parent=0 // pred_check
    _
  $region19: #{cam_forward.36} parent=0 // pred_check_branch
    %141 = sbr.rel (0) target = $region21
  $region20: #{cam_forward.36} parent=0 // pred_region
    _
  $region21: #{cam_forward.36} parent=0 // pred_fallthru
    _
  // Predicated region
  $region22: #{cam_forward.36} parent=0 // pred_check
    _
  $region23: #{cam_forward.36} parent=0 // pred_check_branch
    %143 = sbr.rel (0) target = $region25
  $region24: #{cam_forward.36} parent=0 // pred_region
    _
  $region25: #{cam_forward.36} parent=0 // pred_fallthru
    _

// kernel: cam_forward.37
$region0: #{cam_forward.37}
  #allocation0 [shape = 'u32[]', space=smem, size = 0x4, offset = 0x4, fixed_abs, tag = 'smem constant byte address 0x4 - core index']
  #allocation1 [shape = 'u32[144,128]{1,0:T(1,128)}', space=vmem, size = 0x12000, scoped, tag = 'internal scratch']
  %s0 = inlined_call_operand.vmem [shape: bf16[8,640], index: 0, kind: input, shape index: {}]
  %s1 = inlined_call_operand.vmem [shape: bf16[640,128], index: 1, kind: input, shape index: {}]
  %s2 = inlined_call_operand.vmem [shape: f32[1,128], index: 2, kind: input, shape index: {}]
  %s3 = inlined_call_operand.vmem [shape: f32[1,128], index: 3, kind: input, shape index: {}]
  %s4 = inlined_call_operand.vmem [shape: f32[8,128], index: 4, kind: input, shape index: {}]
  %s5 = inlined_call_operand.vmem [shape: f32[8,128], index: 5, kind: output, shape index: {}]
  %s6 = sld [smem:[#allocation0]]
  $region30: #{cam_forward.37} parent=0
    _
  %s8 = ssub.s32 1, %s6
  %s9 = scalar_select 0, %s8, %s6
  // Predicated region
  $region2: #{cam_forward.37} parent=0 // pred_check
    _
  $region3: #{cam_forward.37} parent=0 // pred_check_branch
    %11 = sbr.rel (0) target = $region5
  $region4: #{cam_forward.37} parent=0 // pred_region
    _
  $region5: #{cam_forward.37} parent=0 // pred_fallthru
    _
  // Predicated region
  $region6: #{cam_forward.37} parent=0 // pred_check
    _
  $region7: #{cam_forward.37} parent=0 // pred_check_branch
    %13 = sbr.rel (0) target = $region9
  $region8: #{cam_forward.37} parent=0 // pred_region
    _
  $region9: #{cam_forward.37} parent=0 // pred_fallthru
    _
  // Predicated region
  $region10: #{cam_forward.37} parent=0 // pred_check
    _
  $region11: #{cam_forward.37} parent=0 // pred_check_branch
    %15 = sbr.rel (0) target = $region13
  $region12: #{cam_forward.37} parent=0 // pred_region
    _
  $region13: #{cam_forward.37} parent=0 // pred_fallthru
    _
  // Predicated region
  $region14: #{cam_forward.37} parent=0 // pred_check
    _
  $region15: #{cam_forward.37} parent=0 // pred_check_branch
    %17 = sbr.rel (0) target = $region17
  $region16: #{cam_forward.37} parent=0 // pred_region
    _
  $region17: #{cam_forward.37} parent=0 // pred_fallthru
    _
  // Predicated region
  $region18: #{cam_forward.37} parent=0 // pred_check
    _
  $region19: #{cam_forward.37} parent=0 // pred_check_branch
    %19 = sbr.rel (0) target = $region21
  $region20: #{cam_forward.37} parent=0 // pred_region
    _
  $region21: #{cam_forward.37} parent=0 // pred_fallthru
    _
  %v21 = vld [vmem:[%s0] sm:$0xff]
  %v22 = vld [vmem:[%s0 + $0x8] sm:$0xff]
  %v23 = vld [vmem:[%s0 + $0x10] sm:$0xf]
  %v24 = vld [vmem:[%s1] sm:$0xf]
  %v25 = vld [vmem:[%s1 + $0x4] sm:$0xf]
  %v26 = vld [vmem:[%s1 + $0x8] sm:$0xf]
  %v27 = vld [vmem:[%s1 + $0xc] sm:$0xf]
  %v28 = vld [vmem:[%s1 + $0x10] sm:$0xf]
  %v29 = vld [vmem:[%s1 + $0x14] sm:$0xf]
  %v30 = vld [vmem:[%s1 + $0x18] sm:$0xf]
  %v31 = vld [vmem:[%s1 + $0x1c] sm:$0xf]
  %v32 = vld [vmem:[%s1 + $0x20] sm:$0xf]
  %v33 = vld [vmem:[%s1 + $0x24] sm:$0xf]
  %v34 = vld [vmem:[%s1 + $0x28] sm:$0xf]
  %v35 = vld [vmem:[%s1 + $0x2c] sm:$0xf]
  %v36 = vld [vmem:[%s1 + $0x30] sm:$0xf]
  %v37 = vld [vmem:[%s1 + $0x34] sm:$0xf]
  %v38 = vld [vmem:[%s1 + $0x38] sm:$0xf]
  %v39 = vld [vmem:[%s1 + $0x3c] sm:$0xf]
  %v40 = vld [vmem:[%s1 + $0x40] sm:$0xf]
  %v41 = vld [vmem:[%s1 + $0x44] sm:$0xf]
  %v42 = vld [vmem:[%s1 + $0x48] sm:$0xf]
  %v43 = vld [vmem:[%s1 + $0x4c] sm:$0xf]
  %v44 = vld [vmem:[%s1 + $0x50] sm:$0xf]
  %v45 = vld [vmem:[%s1 + $0x54] sm:$0xf]
  %v46 = vld [vmem:[%s1 + $0x58] sm:$0xf]
  %v47 = vld [vmem:[%s1 + $0x5c] sm:$0xf]
  %v48 = vld [vmem:[%s1 + $0x60] sm:$0xf]
  %v49 = vld [vmem:[%s1 + $0x64] sm:$0xf]
  %v50 = vld [vmem:[%s1 + $0x68] sm:$0xf]
  %v51 = vld [vmem:[%s1 + $0x6c] sm:$0xf]
  %v52 = vld [vmem:[%s1 + $0x70] sm:$0xf]
  %v53 = vld [vmem:[%s1 + $0x74] sm:$0xf]
  %v54 = vld [vmem:[%s1 + $0x78] sm:$0xf]
  %v55 = vld [vmem:[%s1 + $0x7c] sm:$0xf]
  %v56 = vld [vmem:[%s1 + $0x80] sm:$0xf]
  %v57 = vld [vmem:[%s1 + $0x84] sm:$0xf]
  %v58 = vld [vmem:[%s1 + $0x88] sm:$0xf]
  %v59 = vld [vmem:[%s1 + $0x8c] sm:$0xf]
  %v60 = vld [vmem:[%s1 + $0x90] sm:$0xf]
  %v61 = vld [vmem:[%s1 + $0x94] sm:$0xf]
  %v62 = vld [vmem:[%s1 + $0x98] sm:$0xf]
  %v63 = vld [vmem:[%s1 + $0x9c] sm:$0xf]
  %v64 = vld [vmem:[%s1 + $0xa0] sm:$0xf]
  %v65 = vld [vmem:[%s1 + $0xa4] sm:$0xf]
  %v66 = vld [vmem:[%s1 + $0xa8] sm:$0xf]
  %v67 = vld [vmem:[%s1 + $0xac] sm:$0xf]
  %v68 = vld [vmem:[%s1 + $0xb0] sm:$0xf]
  %v69 = vld [vmem:[%s1 + $0xb4] sm:$0xf]
  %v70 = vld [vmem:[%s1 + $0xb8] sm:$0xf]
  %v71 = vld [vmem:[%s1 + $0xbc] sm:$0xf]
  %v72 = vld [vmem:[%s1 + $0xc0] sm:$0xf]
  %v73 = vld [vmem:[%s1 + $0xc4] sm:$0xf]
  %v74 = vld [vmem:[%s1 + $0xc8] sm:$0xf]
  %v75 = vld [vmem:[%s1 + $0xcc] sm:$0xf]
  %v76 = vld [vmem:[%s1 + $0xd0] sm:$0xf]
  %v77 = vld [vmem:[%s1 + $0xd4] sm:$0xf]
  %v78 = vld [vmem:[%s1 + $0xd8] sm:$0xf]
  %v79 = vld [vmem:[%s1 + $0xdc] sm:$0xf]
  %v80 = vld [vmem:[%s1 + $0xe0] sm:$0xf]
  %v81 = vld [vmem:[%s1 + $0xe4] sm:$0xf]
  %v82 = vld [vmem:[%s1 + $0xe8] sm:$0xf]
  %v83 = vld [vmem:[%s1 + $0xec] sm:$0xf]
  %v84 = vld [vmem:[%s1 + $0xf0] sm:$0xf]
  %v85 = vld [vmem:[%s1 + $0xf4] sm:$0xf]
  %v86 = vld [vmem:[%s1 + $0xf8] sm:$0xf]
  %v87 = vld [vmem:[%s1 + $0xfc] sm:$0xf]
  %v88 = vld [vmem:[%s1 + $0x100] sm:$0xf]
  %v89 = vld [vmem:[%s1 + $0x104] sm:$0xf]
  %v90 = vld [vmem:[%s1 + $0x108] sm:$0xf]
  %v91 = vld [vmem:[%s1 + $0x10c] sm:$0xf]
  %v92 = vld [vmem:[%s1 + $0x110] sm:$0xf]
  %v93 = vld [vmem:[%s1 + $0x114] sm:$0xf]
  %v94 = vld [vmem:[%s1 + $0x118] sm:$0xf]
  %v95 = vld [vmem:[%s1 + $0x11c] sm:$0xf]
  %v96 = vld [vmem:[%s1 + $0x120] sm:$0xf]
  %v97 = vld [vmem:[%s1 + $0x124] sm:$0xf]
  %v98 = vld [vmem:[%s1 + $0x128] sm:$0xf]
  %v99 = vld [vmem:[%s1 + $0x12c] sm:$0xf]
  %v100 = vld [vmem:[%s1 + $0x130] sm:$0xf]
  %v101 = vld [vmem:[%s1 + $0x134] sm:$0xf]
  %v102 = vld [vmem:[%s1 + $0x138] sm:$0xf]
  %v103 = vld [vmem:[%s1 + $0x13c] sm:$0xf]
  %v107 = vunpack.c.l.b16 %v21
  %v108 = vunpack.c.h.b16 %v21
  %v109 = vunpack.c.l.b16 %v22
  %v110 = vunpack.c.h.b16 %v22
  %v111 = vunpack.c.l.b16 %v23
  %v112 = vpack.c.b16 %v107, %v107
  %v113 = vpack.c.b16 %v108, %v108
  %v114 = vpack.c.b16 %v109, %v109
  %v115 = vpack.c.b16 %v110, %v110
  %v116 = vpack.c.b16 %v111, %v111
  %v202 = vunpack.c.l.b16 %v24
  %v203 = vunpack.c.l.b16 %v25
  %v204 = vunpack.c.l.b16 %v26
  %v205 = vunpack.c.l.b16 %v27
  %v206 = vunpack.c.l.b16 %v28
  %v207 = vunpack.c.l.b16 %v29
  %v208 = vunpack.c.l.b16 %v30
  %v209 = vunpack.c.l.b16 %v31
  %v210 = vunpack.c.l.b16 %v32
  %v211 = vunpack.c.l.b16 %v33
  %v212 = vunpack.c.l.b16 %v34
  %v213 = vunpack.c.l.b16 %v35
  %v214 = vunpack.c.l.b16 %v36
  %v215 = vunpack.c.l.b16 %v37
  %v216 = vunpack.c.l.b16 %v38
  %v217 = vunpack.c.l.b16 %v39
  %v218 = vunpack.c.l.b16 %v40
  %v219 = vunpack.c.l.b16 %v41
  %v220 = vunpack.c.l.b16 %v42
  %v221 = vunpack.c.l.b16 %v43
  %v222 = vunpack.c.l.b16 %v44
  %v223 = vunpack.c.l.b16 %v45
  %v224 = vunpack.c.l.b16 %v46
  %v225 = vunpack.c.l.b16 %v47
  %v226 = vunpack.c.l.b16 %v48
  %v227 = vunpack.c.l.b16 %v49
  %v228 = vunpack.c.l.b16 %v50
  %v229 = vunpack.c.l.b16 %v51
  %v230 = vunpack.c.l.b16 %v52
  %v231 = vunpack.c.l.b16 %v53
  %v232 = vunpack.c.l.b16 %v54
  %v233 = vunpack.c.l.b16 %v55
  %v234 = vunpack.c.l.b16 %v56
  %v235 = vunpack.c.l.b16 %v57
  %v236 = vunpack.c.l.b16 %v58
  %v237 = vunpack.c.l.b16 %v59
  %v238 = vunpack.c.l.b16 %v60
  %v239 = vunpack.c.l.b16 %v61
  %v240 = vunpack.c.l.b16 %v62
  %v241 = vunpack.c.l.b16 %v63
  %v242 = vunpack.c.l.b16 %v64
  %v243 = vunpack.c.l.b16 %v65
  %v244 = vunpack.c.l.b16 %v66
  %v245 = vunpack.c.l.b16 %v67
  %v246 = vunpack.c.l.b16 %v68
  %v247 = vunpack.c.l.b16 %v69
  %v248 = vunpack.c.l.b16 %v70
  %v249 = vunpack.c.l.b16 %v71
  %v250 = vunpack.c.l.b16 %v72
  %v251 = vunpack.c.l.b16 %v73
  %v252 = vunpack.c.l.b16 %v74
  %v253 = vunpack.c.l.b16 %v75
  %v254 = vunpack.c.l.b16 %v76
  %v255 = vunpack.c.l.b16 %v77
  %v256 = vunpack.c.l.b16 %v78
  %v257 = vunpack.c.l.b16 %v79
  %v258 = vunpack.c.l.b16 %v80
  %v259 = vunpack.c.l.b16 %v81
  %v260 = vunpack.c.l.b16 %v82
  %v261 = vunpack.c.l.b16 %v83
  %v262 = vunpack.c.l.b16 %v84
  %v263 = vunpack.c.l.b16 %v85
  %v264 = vunpack.c.l.b16 %v86
  %v265 = vunpack.c.l.b16 %v87
  %v266 = vunpack.c.l.b16 %v88
  %v267 = vunpack.c.l.b16 %v89
  %v268 = vunpack.c.l.b16 %v90
  %v269 = vunpack.c.l.b16 %v91
  %v270 = vunpack.c.l.b16 %v92
  %v271 = vunpack.c.l.b16 %v93
  %v272 = vunpack.c.l.b16 %v94
  %v273 = vunpack.c.l.b16 %v95
  %v274 = vunpack.c.l.b16 %v96
  %v275 = vunpack.c.l.b16 %v97
  %v276 = vunpack.c.l.b16 %v98
  %v277 = vunpack.c.l.b16 %v99
  %v278 = vunpack.c.l.b16 %v100
  %v279 = vunpack.c.l.b16 %v101
  %v280 = vunpack.c.l.b16 %v102
  %v281 = vunpack.c.l.b16 %v103
  %v282 = vpack.c.b16 %v203, %v202
  %v283 = vpack.c.b16 %v205, %v204
  %v284 = vpack.c.b16 %v207, %v206
  %v285 = vpack.c.b16 %v209, %v208
  %v286 = vpack.c.b16 %v211, %v210
  %v287 = vpack.c.b16 %v213, %v212
  %v288 = vpack.c.b16 %v215, %v214
  %v289 = vpack.c.b16 %v217, %v216
  %v290 = vpack.c.b16 %v219, %v218
  %v291 = vpack.c.b16 %v221, %v220
  %v292 = vpack.c.b16 %v223, %v222
  %v293 = vpack.c.b16 %v225, %v224
  %v294 = vpack.c.b16 %v227, %v226
  %v295 = vpack.c.b16 %v229, %v228
  %v296 = vpack.c.b16 %v231, %v230
  %v297 = vpack.c.b16 %v233, %v232
  %v298 = vpack.c.b16 %v235, %v234
  %v299 = vpack.c.b16 %v237, %v236
  %v300 = vpack.c.b16 %v239, %v238
  %v301 = vpack.c.b16 %v241, %v240
  %v302 = vpack.c.b16 %v243, %v242
  %v303 = vpack.c.b16 %v245, %v244
  %v304 = vpack.c.b16 %v247, %v246
  %v305 = vpack.c.b16 %v249, %v248
  %v306 = vpack.c.b16 %v251, %v250
  %v307 = vpack.c.b16 %v253, %v252
  %v308 = vpack.c.b16 %v255, %v254
  %v309 = vpack.c.b16 %v257, %v256
  %v310 = vpack.c.b16 %v259, %v258
  %v311 = vpack.c.b16 %v261, %v260
  %v312 = vpack.c.b16 %v263, %v262
  %v313 = vpack.c.b16 %v265, %v264
  %v314 = vpack.c.b16 %v267, %v266
  %v315 = vpack.c.b16 %v269, %v268
  %v316 = vpack.c.b16 %v271, %v270
  %v317 = vpack.c.b16 %v273, %v272
  %v318 = vpack.c.b16 %v275, %v274
  %v319 = vpack.c.b16 %v277, %v276
  %v320 = vpack.c.b16 %v279, %v278
  %v321 = vpack.c.b16 %v281, %v280
  %362 = vmatprep.subr.bf16.mxu0 0
  %363 = vmatpush1.bf16.msra.mxu0 %v282
  %364 = vmatprep.subr.bf16.mxu0 0
  %365 = vmatpush1.bf16.msra.mxu0 %v283
  %366 = vmatprep.subr.bf16.mxu0 0
  %367 = vmatpush1.bf16.msra.mxu0 %v284
  %368 = vmatprep.subr.bf16.mxu0 0
  %369 = vmatpush1.bf16.msra.mxu0 %v285
  %370 = vmatprep.subr.bf16.mxu0 0
  %371 = vmatpush1.bf16.msra.mxu0 %v286
  %372 = vmatprep.subr.bf16.mxu0 0
  %373 = vmatpush1.bf16.msra.mxu0 %v287
  %374 = vmatprep.subr.bf16.mxu0 0
  %375 = vmatpush1.bf16.msra.mxu0 %v288
  %376 = vmatprep.subr.bf16.mxu0 0
  %377 = vmatpush1.bf16.msra.mxu0 %v289
  %378 = vmatprep.subr.bf16.mxu0 0
  %379 = vmatpush1.bf16.msra.mxu0 %v290
  %380 = vmatprep.subr.bf16.mxu0 0
  %381 = vmatpush1.bf16.msra.mxu0 %v291
  %382 = vmatprep.subr.bf16.mxu0 0
  %383 = vmatpush1.bf16.msra.mxu0 %v292
  %384 = vmatprep.subr.bf16.mxu0 0
  %385 = vmatpush1.bf16.msra.mxu0 %v293
  %386 = vmatprep.subr.bf16.mxu0 0
  %387 = vmatpush1.bf16.msra.mxu0 %v294
  %388 = vmatprep.subr.bf16.mxu0 0
  %389 = vmatpush1.bf16.msra.mxu0 %v295
  %390 = vmatprep.subr.bf16.mxu0 0
  %391 = vmatpush1.bf16.msra.mxu0 %v296
  %392 = vmatprep.subr.bf16.mxu0 0
  %393 = vmatpush1.bf16.msra.mxu0 %v297
  %394 = vmatprep.mubr.bf16.mxu0 %v113
  %395 = vmatmul.mubr.bf16.gmra.mrb[0].mxu0 %v112
  %v396 = vpop.f32.mrb[0].mxu0
  %v397 = vadd.f32 0.0, %v396
  %v398 = vpop.f32.mrb[0].mxu0
  %v399 = vpop.f32.mrb[0].mxu0
  %v400 = vpop.f32.mrb[0].mxu0
  %401 = vdwg.mxu0
  %402 = vmatprep.subr.bf16.mxu0 0
  %403 = vmatpush1.bf16.msra.mxu0 %v298
  %404 = vmatprep.subr.bf16.mxu0 0
  %405 = vmatpush1.bf16.msra.mxu0 %v299
  %406 = vmatprep.subr.bf16.mxu0 0
  %407 = vmatpush1.bf16.msra.mxu0 %v300
  %408 = vmatprep.subr.bf16.mxu0 0
  %409 = vmatpush1.bf16.msra.mxu0 %v301
  %410 = vmatprep.subr.bf16.mxu0 0
  %411 = vmatpush1.bf16.msra.mxu0 %v302
  %412 = vmatprep.subr.bf16.mxu0 0
  %413 = vmatpush1.bf16.msra.mxu0 %v303
  %414 = vmatprep.subr.bf16.mxu0 0
  %415 = vmatpush1.bf16.msra.mxu0 %v304
  %416 = vmatprep.subr.bf16.mxu0 0
  %417 = vmatpush1.bf16.msra.mxu0 %v305
  %418 = vmatprep.subr.bf16.mxu0 0
  %419 = vmatpush1.bf16.msra.mxu0 %v306
  %420 = vmatprep.subr.bf16.mxu0 0
  %421 = vmatpush1.bf16.msra.mxu0 %v307
  %422 = vmatprep.subr.bf16.mxu0 0
  %423 = vmatpush1.bf16.msra.mxu0 %v308
  %424 = vmatprep.subr.bf16.mxu0 0
  %425 = vmatpush1.bf16.msra.mxu0 %v309
  %426 = vmatprep.subr.bf16.mxu0 0
  %427 = vmatpush1.bf16.msra.mxu0 %v310
  %428 = vmatprep.subr.bf16.mxu0 0
  %429 = vmatpush1.bf16.msra.mxu0 %v311
  %430 = vmatprep.subr.bf16.mxu0 0
  %431 = vmatpush1.bf16.msra.mxu0 %v312
  %432 = vmatprep.subr.bf16.mxu0 0
  %433 = vmatpush1.bf16.msra.mxu0 %v313
  %434 = vmatprep.mubr.bf16.mxu0 %v115
  %435 = vmatmul.mubr.bf16.gmra.mrb[0].mxu0 %v114
  %v436 = vpop.f32.mrb[0].mxu0
  %v437 = vadd.f32 %v397, %v436
  %v438 = vpop.f32.mrb[0].mxu0
  %v439 = vpop.f32.mrb[0].mxu0
  %v440 = vpop.f32.mrb[0].mxu0
  %441 = vdwg.mxu0
  %442 = vmatprep.subr.bf16.mxu0 0
  %443 = vmatpush1.bf16.msra.mxu0 %v314
  %444 = vmatprep.subr.bf16.mxu0 0
  %445 = vmatpush1.bf16.msra.mxu0 %v315
  %446 = vmatprep.subr.bf16.mxu0 0
  %447 = vmatpush1.bf16.msra.mxu0 %v316
  %448 = vmatprep.subr.bf16.mxu0 0
  %449 = vmatpush1.bf16.msra.mxu0 %v317
  %450 = vmatprep.subr.bf16.mxu0 0
  %451 = vmatpush1.bf16.msra.mxu0 %v318
  %452 = vmatprep.subr.bf16.mxu0 0
  %453 = vmatpush1.bf16.msra.mxu0 %v319
  %454 = vmatprep.subr.bf16.mxu0 0
  %455 = vmatpush1.bf16.msra.mxu0 %v320
  %456 = vmatprep.subr.bf16.mxu0 0
  %457 = vmatpush1.bf16.msra.mxu0 %v321
  %458 = vmatprep.subr.bf16.mxu0 0
  %459 = vmatpush1.bf16.msra.mxu0 0
  %460 = vmatprep.subr.bf16.mxu0 0
  %461 = vmatpush1.bf16.msra.mxu0 0
  %462 = vmatprep.subr.bf16.mxu0 0
  %463 = vmatpush1.bf16.msra.mxu0 0
  %464 = vmatprep.subr.bf16.mxu0 0
  %465 = vmatpush1.bf16.msra.mxu0 0
  %466 = vmatprep.subr.bf16.mxu0 0
  %467 = vmatpush1.bf16.msra.mxu0 0
  %468 = vmatprep.subr.bf16.mxu0 0
  %469 = vmatpush1.bf16.msra.mxu0 0
  %470 = vmatprep.subr.bf16.mxu0 0
  %471 = vmatpush1.bf16.msra.mxu0 0
  %472 = vmatprep.subr.bf16.mxu0 0
  %473 = vmatpush1.bf16.msra.mxu0 0
  %474 = vmatprep.mubr.bf16.mxu0 0
  %475 = vmatmul.mubr.bf16.gmra.mrb[0].mxu0 %v116
  %v476 = vpop.f32.mrb[0].mxu0
  %v477 = vadd.f32 %v437, %v476
  %v478 = vpop.f32.mrb[0].mxu0
  %v479 = vpop.f32.mrb[0].mxu0
  %v480 = vpop.f32.mrb[0].mxu0
  %481 = vdwg.mxu0
  %v482 = vld [vmem:[%s2] sm:$0x1]
  %v484 = vlaneseq
  %v485 = vshrl.u32 %v484, 7
  %v486 = vsub.s32 0, %v485
  %v487 = vrot.slane %v482, %v486
  %v489 = vmul.f32 %v477, %v487
  %v490 = vld [vmem:[%s3] sm:$0x1]
  %v492 = vlaneseq
  %v493 = vshrl.u32 %v492, 7
  %v494 = vsub.s32 0, %v493
  %v495 = vrot.slane %v490, %v494
  %v497 = vadd.f32 %v489, %v495
  %v498 = vld [vmem:[%s4] sm:$0xff]
  %v499 = vadd.f32 %v497, %v498
  %v500 = vmax.f32 %v499, 0.0
  %501 = vst [vmem:[%s5] sm:$0xff] %v500
  // Predicated region
  $region22: #{cam_forward.37} parent=0 // pred_check
    _
  $region23: #{cam_forward.37} parent=0 // pred_check_branch
    %503 = sbr.rel (0) target = $region25
  $region24: #{cam_forward.37} parent=0 // pred_region
    _
  $region25: #{cam_forward.37} parent=0 // pred_fallthru
    _
  // Predicated region
  $region26: #{cam_forward.37} parent=0 // pred_check
    _
  $region27: #{cam_forward.37} parent=0 // pred_check_branch
    %505 = sbr.rel (0) target = $region29
  $region28: #{cam_forward.37} parent=0 // pred_region
    _
  $region29: #{cam_forward.37} parent=0 // pred_fallthru
    _

// kernel: cam_forward.35
$region0: #{cam_forward.35}
  #allocation0 [shape = 'u32[]', space=smem, size = 0x4, offset = 0x4, fixed_abs, tag = 'smem constant byte address 0x4 - core index']
  #allocation1 [shape = 'u32[144,128]{1,0:T(1,128)}', space=vmem, size = 0x12000, scoped, tag = 'internal scratch']
  %s0 = inlined_call_operand.vmem [shape: bf16[8,384], index: 0, kind: input, shape index: {}]
  %s1 = inlined_call_operand.vmem [shape: bf16[384,128], index: 1, kind: input, shape index: {}]
  %s2 = inlined_call_operand.vmem [shape: f32[1,128], index: 2, kind: input, shape index: {}]
  %s3 = inlined_call_operand.vmem [shape: f32[1,128], index: 3, kind: input, shape index: {}]
  %s4 = inlined_call_operand.vmem [shape: f32[8,128], index: 4, kind: output, shape index: {}]
  %s5 = sld [smem:[#allocation0]]
  $region26: #{cam_forward.35} parent=0
    _
  %s7 = ssub.s32 1, %s5
  %s8 = scalar_select 0, %s7, %s5
  // Predicated region
  $region2: #{cam_forward.35} parent=0 // pred_check
    _
  $region3: #{cam_forward.35} parent=0 // pred_check_branch
    %10 = sbr.rel (0) target = $region5
  $region4: #{cam_forward.35} parent=0 // pred_region
    _
  $region5: #{cam_forward.35} parent=0 // pred_fallthru
    _
  // Predicated region
  $region6: #{cam_forward.35} parent=0 // pred_check
    _
  $region7: #{cam_forward.35} parent=0 // pred_check_branch
    %12 = sbr.rel (0) target = $region9
  $region8: #{cam_forward.35} parent=0 // pred_region
    _
  $region9: #{cam_forward.35} parent=0 // pred_fallthru
    _
  // Predicated region
  $region10: #{cam_forward.35} parent=0 // pred_check
    _
  $region11: #{cam_forward.35} parent=0 // pred_check_branch
    %14 = sbr.rel (0) target = $region13
  $region12: #{cam_forward.35} parent=0 // pred_region
    _
  $region13: #{cam_forward.35} parent=0 // pred_fallthru
    _
  // Predicated region
  $region14: #{cam_forward.35} parent=0 // pred_check
    _
  $region15: #{cam_forward.35} parent=0 // pred_check_branch
    %16 = sbr.rel (0) target = $region17
  $region16: #{cam_forward.35} parent=0 // pred_region
    _
  $region17: #{cam_forward.35} parent=0 // pred_fallthru
    _
  %v18 = vld [vmem:[%s0] sm:$0xff]
  %v19 = vld [vmem:[%s0 + $0x8] sm:$0xf]
  %v20 = vld [vmem:[%s1] sm:$0xf]
  %v21 = vld [vmem:[%s1 + $0x4] sm:$0xf]
  %v22 = vld [vmem:[%s1 + $0x8] sm:$0xf]
  %v23 = vld [vmem:[%s1 + $0xc] sm:$0xf]
  %v24 = vld [vmem:[%s1 + $0x10] sm:$0xf]
  %v25 = vld [vmem:[%s1 + $0x14] sm:$0xf]
  %v26 = vld [vmem:[%s1 + $0x18] sm:$0xf]
  %v27 = vld [vmem:[%s1 + $0x1c] sm:$0xf]
  %v28 = vld [vmem:[%s1 + $0x20] sm:$0xf]
  %v29 = vld [vmem:[%s1 + $0x24] sm:$0xf]
  %v30 = vld [vmem:[%s1 + $0x28] sm:$0xf]
  %v31 = vld [vmem:[%s1 + $0x2c] sm:$0xf]
  %v32 = vld [vmem:[%s1 + $0x30] sm:$0xf]
  %v33 = vld [vmem:[%s1 + $0x34] sm:$0xf]
  %v34 = vld [vmem:[%s1 + $0x38] sm:$0xf]
  %v35 = vld [vmem:[%s1 + $0x3c] sm:$0xf]
  %v36 = vld [vmem:[%s1 + $0x40] sm:$0xf]
  %v37 = vld [vmem:[%s1 + $0x44] sm:$0xf]
  %v38 = vld [vmem:[%s1 + $0x48] sm:$0xf]
  %v39 = vld [vmem:[%s1 + $0x4c] sm:$0xf]
  %v40 = vld [vmem:[%s1 + $0x50] sm:$0xf]
  %v41 = vld [vmem:[%s1 + $0x54] sm:$0xf]
  %v42 = vld [vmem:[%s1 + $0x58] sm:$0xf]
  %v43 = vld [vmem:[%s1 + $0x5c] sm:$0xf]
  %v44 = vld [vmem:[%s1 + $0x60] sm:$0xf]
  %v45 = vld [vmem:[%s1 + $0x64] sm:$0xf]
  %v46 = vld [vmem:[%s1 + $0x68] sm:$0xf]
  %v47 = vld [vmem:[%s1 + $0x6c] sm:$0xf]
  %v48 = vld [vmem:[%s1 + $0x70] sm:$0xf]
  %v49 = vld [vmem:[%s1 + $0x74] sm:$0xf]
  %v50 = vld [vmem:[%s1 + $0x78] sm:$0xf]
  %v51 = vld [vmem:[%s1 + $0x7c] sm:$0xf]
  %v52 = vld [vmem:[%s1 + $0x80] sm:$0xf]
  %v53 = vld [vmem:[%s1 + $0x84] sm:$0xf]
  %v54 = vld [vmem:[%s1 + $0x88] sm:$0xf]
  %v55 = vld [vmem:[%s1 + $0x8c] sm:$0xf]
  %v56 = vld [vmem:[%s1 + $0x90] sm:$0xf]
  %v57 = vld [vmem:[%s1 + $0x94] sm:$0xf]
  %v58 = vld [vmem:[%s1 + $0x98] sm:$0xf]
  %v59 = vld [vmem:[%s1 + $0x9c] sm:$0xf]
  %v60 = vld [vmem:[%s1 + $0xa0] sm:$0xf]
  %v61 = vld [vmem:[%s1 + $0xa4] sm:$0xf]
  %v62 = vld [vmem:[%s1 + $0xa8] sm:$0xf]
  %v63 = vld [vmem:[%s1 + $0xac] sm:$0xf]
  %v64 = vld [vmem:[%s1 + $0xb0] sm:$0xf]
  %v65 = vld [vmem:[%s1 + $0xb4] sm:$0xf]
  %v66 = vld [vmem:[%s1 + $0xb8] sm:$0xf]
  %v67 = vld [vmem:[%s1 + $0xbc] sm:$0xf]
  %v70 = vunpack.c.l.b16 %v18
  %v71 = vunpack.c.h.b16 %v18
  %v72 = vunpack.c.l.b16 %v19
  %v73 = vpack.c.b16 %v70, %v70
  %v74 = vpack.c.b16 %v71, %v71
  %v75 = vpack.c.b16 %v72, %v72
  %v127 = vunpack.c.l.b16 %v20
  %v128 = vunpack.c.l.b16 %v21
  %v129 = vunpack.c.l.b16 %v22
  %v130 = vunpack.c.l.b16 %v23
  %v131 = vunpack.c.l.b16 %v24
  %v132 = vunpack.c.l.b16 %v25
  %v133 = vunpack.c.l.b16 %v26
  %v134 = vunpack.c.l.b16 %v27
  %v135 = vunpack.c.l.b16 %v28
  %v136 = vunpack.c.l.b16 %v29
  %v137 = vunpack.c.l.b16 %v30
  %v138 = vunpack.c.l.b16 %v31
  %v139 = vunpack.c.l.b16 %v32
  %v140 = vunpack.c.l.b16 %v33
  %v141 = vunpack.c.l.b16 %v34
  %v142 = vunpack.c.l.b16 %v35
  %v143 = vunpack.c.l.b16 %v36
  %v144 = vunpack.c.l.b16 %v37
  %v145 = vunpack.c.l.b16 %v38
  %v146 = vunpack.c.l.b16 %v39
  %v147 = vunpack.c.l.b16 %v40
  %v148 = vunpack.c.l.b16 %v41
  %v149 = vunpack.c.l.b16 %v42
  %v150 = vunpack.c.l.b16 %v43
  %v151 = vunpack.c.l.b16 %v44
  %v152 = vunpack.c.l.b16 %v45
  %v153 = vunpack.c.l.b16 %v46
  %v154 = vunpack.c.l.b16 %v47
  %v155 = vunpack.c.l.b16 %v48
  %v156 = vunpack.c.l.b16 %v49
  %v157 = vunpack.c.l.b16 %v50
  %v158 = vunpack.c.l.b16 %v51
  %v159 = vunpack.c.l.b16 %v52
  %v160 = vunpack.c.l.b16 %v53
  %v161 = vunpack.c.l.b16 %v54
  %v162 = vunpack.c.l.b16 %v55
  %v163 = vunpack.c.l.b16 %v56
  %v164 = vunpack.c.l.b16 %v57
  %v165 = vunpack.c.l.b16 %v58
  %v166 = vunpack.c.l.b16 %v59
  %v167 = vunpack.c.l.b16 %v60
  %v168 = vunpack.c.l.b16 %v61
  %v169 = vunpack.c.l.b16 %v62
  %v170 = vunpack.c.l.b16 %v63
  %v171 = vunpack.c.l.b16 %v64
  %v172 = vunpack.c.l.b16 %v65
  %v173 = vunpack.c.l.b16 %v66
  %v174 = vunpack.c.l.b16 %v67
  %v175 = vpack.c.b16 %v128, %v127
  %v176 = vpack.c.b16 %v130, %v129
  %v177 = vpack.c.b16 %v132, %v131
  %v178 = vpack.c.b16 %v134, %v133
  %v179 = vpack.c.b16 %v136, %v135
  %v180 = vpack.c.b16 %v138, %v137
  %v181 = vpack.c.b16 %v140, %v139
  %v182 = vpack.c.b16 %v142, %v141
  %v183 = vpack.c.b16 %v144, %v143
  %v184 = vpack.c.b16 %v146, %v145
  %v185 = vpack.c.b16 %v148, %v147
  %v186 = vpack.c.b16 %v150, %v149
  %v187 = vpack.c.b16 %v152, %v151
  %v188 = vpack.c.b16 %v154, %v153
  %v189 = vpack.c.b16 %v156, %v155
  %v190 = vpack.c.b16 %v158, %v157
  %v191 = vpack.c.b16 %v160, %v159
  %v192 = vpack.c.b16 %v162, %v161
  %v193 = vpack.c.b16 %v164, %v163
  %v194 = vpack.c.b16 %v166, %v165
  %v195 = vpack.c.b16 %v168, %v167
  %v196 = vpack.c.b16 %v170, %v169
  %v197 = vpack.c.b16 %v172, %v171
  %v198 = vpack.c.b16 %v174, %v173
  %223 = vmatprep.subr.bf16.mxu0 0
  %224 = vmatpush1.bf16.msra.mxu0 %v175
  %225 = vmatprep.subr.bf16.mxu0 0
  %226 = vmatpush1.bf16.msra.mxu0 %v176
  %227 = vmatprep.subr.bf16.mxu0 0
  %228 = vmatpush1.bf16.msra.mxu0 %v177
  %229 = vmatprep.subr.bf16.mxu0 0
  %230 = vmatpush1.bf16.msra.mxu0 %v178
  %231 = vmatprep.subr.bf16.mxu0 0
  %232 = vmatpush1.bf16.msra.mxu0 %v179
  %233 = vmatprep.subr.bf16.mxu0 0
  %234 = vmatpush1.bf16.msra.mxu0 %v180
  %235 = vmatprep.subr.bf16.mxu0 0
  %236 = vmatpush1.bf16.msra.mxu0 %v181
  %237 = vmatprep.subr.bf16.mxu0 0
  %238 = vmatpush1.bf16.msra.mxu0 %v182
  %239 = vmatprep.subr.bf16.mxu0 0
  %240 = vmatpush1.bf16.msra.mxu0 %v183
  %241 = vmatprep.subr.bf16.mxu0 0
  %242 = vmatpush1.bf16.msra.mxu0 %v184
  %243 = vmatprep.subr.bf16.mxu0 0
  %244 = vmatpush1.bf16.msra.mxu0 %v185
  %245 = vmatprep.subr.bf16.mxu0 0
  %246 = vmatpush1.bf16.msra.mxu0 %v186
  %247 = vmatprep.subr.bf16.mxu0 0
  %248 = vmatpush1.bf16.msra.mxu0 %v187
  %249 = vmatprep.subr.bf16.mxu0 0
  %250 = vmatpush1.bf16.msra.mxu0 %v188
  %251 = vmatprep.subr.bf16.mxu0 0
  %252 = vmatpush1.bf16.msra.mxu0 %v189
  %253 = vmatprep.subr.bf16.mxu0 0
  %254 = vmatpush1.bf16.msra.mxu0 %v190
  %255 = vmatprep.mubr.bf16.mxu0 %v74
  %256 = vmatmul.mubr.bf16.gmra.mrb[0].mxu0 %v73
  %v257 = vpop.f32.mrb[0].mxu0
  %v258 = vadd.f32 0.0, %v257
  %v259 = vpop.f32.mrb[0].mxu0
  %v260 = vpop.f32.mrb[0].mxu0
  %v261 = vpop.f32.mrb[0].mxu0
  %262 = vdwg.mxu0
  %263 = vmatprep.subr.bf16.mxu0 0
  %264 = vmatpush1.bf16.msra.mxu0 %v191
  %265 = vmatprep.subr.bf16.mxu0 0
  %266 = vmatpush1.bf16.msra.mxu0 %v192
  %267 = vmatprep.subr.bf16.mxu0 0
  %268 = vmatpush1.bf16.msra.mxu0 %v193
  %269 = vmatprep.subr.bf16.mxu0 0
  %270 = vmatpush1.bf16.msra.mxu0 %v194
  %271 = vmatprep.subr.bf16.mxu0 0
  %272 = vmatpush1.bf16.msra.mxu0 %v195
  %273 = vmatprep.subr.bf16.mxu0 0
  %274 = vmatpush1.bf16.msra.mxu0 %v196
  %275 = vmatprep.subr.bf16.mxu0 0
  %276 = vmatpush1.bf16.msra.mxu0 %v197
  %277 = vmatprep.subr.bf16.mxu0 0
  %278 = vmatpush1.bf16.msra.mxu0 %v198
  %279 = vmatprep.subr.bf16.mxu0 0
  %280 = vmatpush1.bf16.msra.mxu0 0
  %281 = vmatprep.subr.bf16.mxu0 0
  %282 = vmatpush1.bf16.msra.mxu0 0
  %283 = vmatprep.subr.bf16.mxu0 0
  %284 = vmatpush1.bf16.msra.mxu0 0
  %285 = vmatprep.subr.bf16.mxu0 0
  %286 = vmatpush1.bf16.msra.mxu0 0
  %287 = vmatprep.subr.bf16.mxu0 0
  %288 = vmatpush1.bf16.msra.mxu0 0
  %289 = vmatprep.subr.bf16.mxu0 0
  %290 = vmatpush1.bf16.msra.mxu0 0
  %291 = vmatprep.subr.bf16.mxu0 0
  %292 = vmatpush1.bf16.msra.mxu0 0
  %293 = vmatprep.subr.bf16.mxu0 0
  %294 = vmatpush1.bf16.msra.mxu0 0
  %295 = vmatprep.mubr.bf16.mxu0 0
  %296 = vmatmul.mubr.bf16.gmra.mrb[0].mxu0 %v75
  %v297 = vpop.f32.mrb[0].mxu0
  %v298 = vadd.f32 %v258, %v297
  %v299 = vpop.f32.mrb[0].mxu0
  %v300 = vpop.f32.mrb[0].mxu0
  %v301 = vpop.f32.mrb[0].mxu0
  %302 = vdwg.mxu0
  %v303 = vld [vmem:[%s2] sm:$0x1]
  %v305 = vlaneseq
  %v306 = vshrl.u32 %v305, 7
  %v307 = vsub.s32 0, %v306
  %v308 = vrot.slane %v303, %v307
  %v310 = vmul.f32 %v298, %v308
  %v311 = vld [vmem:[%s3] sm:$0x1]
  %v313 = vlaneseq
  %v314 = vshrl.u32 %v313, 7
  %v315 = vsub.s32 0, %v314
  %v316 = vrot.slane %v311, %v315
  %v318 = vadd.f32 %v310, %v316
  %v319 = vmax.f32 %v318, 0.0
  %320 = vst [vmem:[%s4] sm:$0xff] %v319
  // Predicated region
  $region18: #{cam_forward.35} parent=0 // pred_check
    _
  $region19: #{cam_forward.35} parent=0 // pred_check_branch
    %322 = sbr.rel (0) target = $region21
  $region20: #{cam_forward.35} parent=0 // pred_region
    _
  $region21: #{cam_forward.35} parent=0 // pred_fallthru
    _
  // Predicated region
  $region22: #{cam_forward.35} parent=0 // pred_check
    _
  $region23: #{cam_forward.35} parent=0 // pred_check_branch
    %324 = sbr.rel (0) target = $region25
  $region24: #{cam_forward.35} parent=0 // pred_region
    _
  $region25: #{cam_forward.35} parent=0 // pred_fallthru
    _

// kernel: cam_forward.38
$region0: #{cam_forward.38}
  #allocation0 [shape = 'u32[]', space=smem, size = 0x4, offset = 0x4, fixed_abs, tag = 'smem constant byte address 0x4 - core index']
  #allocation1 [shape = 'u32[144,128]{1,0:T(1,128)}', space=vmem, size = 0x12000, scoped, tag = 'internal scratch']
  %s0 = inlined_call_operand.vmem [shape: bf16[8,640], index: 0, kind: input, shape index: {}]
  %s1 = inlined_call_operand.vmem [shape: bf16[640,128], index: 1, kind: input, shape index: {}]
  %s2 = inlined_call_operand.vmem [shape: f32[1,128], index: 2, kind: input, shape index: {}]
  %s3 = inlined_call_operand.vmem [shape: f32[1,128], index: 3, kind: input, shape index: {}]
  %s4 = inlined_call_operand.vmem [shape: f32[8,128], index: 4, kind: output, shape index: {}]
  %s5 = sld [smem:[#allocation0]]
  $region26: #{cam_forward.38} parent=0
    _
  %s7 = ssub.s32 1, %s5
  %s8 = scalar_select 0, %s7, %s5
  // Predicated region
  $region2: #{cam_forward.38} parent=0 // pred_check
    _
  $region3: #{cam_forward.38} parent=0 // pred_check_branch
    %10 = sbr.rel (0) target = $region5
  $region4: #{cam_forward.38} parent=0 // pred_region
    _
  $region5: #{cam_forward.38} parent=0 // pred_fallthru
    _
  // Predicated region
  $region6: #{cam_forward.38} parent=0 // pred_check
    _
  $region7: #{cam_forward.38} parent=0 // pred_check_branch
    %12 = sbr.rel (0) target = $region9
  $region8: #{cam_forward.38} parent=0 // pred_region
    _
  $region9: #{cam_forward.38} parent=0 // pred_fallthru
    _
  // Predicated region
  $region10: #{cam_forward.38} parent=0 // pred_check
    _
  $region11: #{cam_forward.38} parent=0 // pred_check_branch
    %14 = sbr.rel (0) target = $region13
  $region12: #{cam_forward.38} parent=0 // pred_region
    _
  $region13: #{cam_forward.38} parent=0 // pred_fallthru
    _
  // Predicated region
  $region14: #{cam_forward.38} parent=0 // pred_check
    _
  $region15: #{cam_forward.38} parent=0 // pred_check_branch
    %16 = sbr.rel (0) target = $region17
  $region16: #{cam_forward.38} parent=0 // pred_region
    _
  $region17: #{cam_forward.38} parent=0 // pred_fallthru
    _
  %v18 = vld [vmem:[%s0] sm:$0xff]
  %v19 = vld [vmem:[%s0 + $0x8] sm:$0xff]
  %v20 = vld [vmem:[%s0 + $0x10] sm:$0xf]
  %v21 = vld [vmem:[%s1] sm:$0xf]
  %v22 = vld [vmem:[%s1 + $0x4] sm:$0xf]
  %v23 = vld [vmem:[%s1 + $0x8] sm:$0xf]
  %v24 = vld [vmem:[%s1 + $0xc] sm:$0xf]
  %v25 = vld [vmem:[%s1 + $0x10] sm:$0xf]
  %v26 = vld [vmem:[%s1 + $0x14] sm:$0xf]
  %v27 = vld [vmem:[%s1 + $0x18] sm:$0xf]
  %v28 = vld [vmem:[%s1 + $0x1c] sm:$0xf]
  %v29 = vld [vmem:[%s1 + $0x20] sm:$0xf]
  %v30 = vld [vmem:[%s1 + $0x24] sm:$0xf]
  %v31 = vld [vmem:[%s1 + $0x28] sm:$0xf]
  %v32 = vld [vmem:[%s1 + $0x2c] sm:$0xf]
  %v33 = vld [vmem:[%s1 + $0x30] sm:$0xf]
  %v34 = vld [vmem:[%s1 + $0x34] sm:$0xf]
  %v35 = vld [vmem:[%s1 + $0x38] sm:$0xf]
  %v36 = vld [vmem:[%s1 + $0x3c] sm:$0xf]
  %v37 = vld [vmem:[%s1 + $0x40] sm:$0xf]
  %v38 = vld [vmem:[%s1 + $0x44] sm:$0xf]
  %v39 = vld [vmem:[%s1 + $0x48] sm:$0xf]
  %v40 = vld [vmem:[%s1 + $0x4c] sm:$0xf]
  %v41 = vld [vmem:[%s1 + $0x50] sm:$0xf]
  %v42 = vld [vmem:[%s1 + $0x54] sm:$0xf]
  %v43 = vld [vmem:[%s1 + $0x58] sm:$0xf]
  %v44 = vld [vmem:[%s1 + $0x5c] sm:$0xf]
  %v45 = vld [vmem:[%s1 + $0x60] sm:$0xf]
  %v46 = vld [vmem:[%s1 + $0x64] sm:$0xf]
  %v47 = vld [vmem:[%s1 + $0x68] sm:$0xf]
  %v48 = vld [vmem:[%s1 + $0x6c] sm:$0xf]
  %v49 = vld [vmem:[%s1 + $0x70] sm:$0xf]
  %v50 = vld [vmem:[%s1 + $0x74] sm:$0xf]
  %v51 = vld [vmem:[%s1 + $0x78] sm:$0xf]
  %v52 = vld [vmem:[%s1 + $0x7c] sm:$0xf]
  %v53 = vld [vmem:[%s1 + $0x80] sm:$0xf]
  %v54 = vld [vmem:[%s1 + $0x84] sm:$0xf]
  %v55 = vld [vmem:[%s1 + $0x88] sm:$0xf]
  %v56 = vld [vmem:[%s1 + $0x8c] sm:$0xf]
  %v57 = vld [vmem:[%s1 + $0x90] sm:$0xf]
  %v58 = vld [vmem:[%s1 + $0x94] sm:$0xf]
  %v59 = vld [vmem:[%s1 + $0x98] sm:$0xf]
  %v60 = vld [vmem:[%s1 + $0x9c] sm:$0xf]
  %v61 = vld [vmem:[%s1 + $0xa0] sm:$0xf]
  %v62 = vld [vmem:[%s1 + $0xa4] sm:$0xf]
  %v63 = vld [vmem:[%s1 + $0xa8] sm:$0xf]
  %v64 = vld [vmem:[%s1 + $0xac] sm:$0xf]
  %v65 = vld [vmem:[%s1 + $0xb0] sm:$0xf]
  %v66 = vld [vmem:[%s1 + $0xb4] sm:$0xf]
  %v67 = vld [vmem:[%s1 + $0xb8] sm:$0xf]
  %v68 = vld [vmem:[%s1 + $0xbc] sm:$0xf]
  %v69 = vld [vmem:[%s1 + $0xc0] sm:$0xf]
  %v70 = vld [vmem:[%s1 + $0xc4] sm:$0xf]
  %v71 = vld [vmem:[%s1 + $0xc8] sm:$0xf]
  %v72 = vld [vmem:[%s1 + $0xcc] sm:$0xf]
  %v73 = vld [vmem:[%s1 + $0xd0] sm:$0xf]
  %v74 = vld [vmem:[%s1 + $0xd4] sm:$0xf]
  %v75 = vld [vmem:[%s1 + $0xd8] sm:$0xf]
  %v76 = vld [vmem:[%s1 + $0xdc] sm:$0xf]
  %v77 = vld [vmem:[%s1 + $0xe0] sm:$0xf]
  %v78 = vld [vmem:[%s1 + $0xe4] sm:$0xf]
  %v79 = vld [vmem:[%s1 + $0xe8] sm:$0xf]
  %v80 = vld [vmem:[%s1 + $0xec] sm:$0xf]
  %v81 = vld [vmem:[%s1 + $0xf0] sm:$0xf]
  %v82 = vld [vmem:[%s1 + $0xf4] sm:$0xf]
  %v83 = vld [vmem:[%s1 + $0xf8] sm:$0xf]
  %v84 = vld [vmem:[%s1 + $0xfc] sm:$0xf]
  %v85 = vld [vmem:[%s1 + $0x100] sm:$0xf]
  %v86 = vld [vmem:[%s1 + $0x104] sm:$0xf]
  %v87 = vld [vmem:[%s1 + $0x108] sm:$0xf]
  %v88 = vld [vmem:[%s1 + $0x10c] sm:$0xf]
  %v89 = vld [vmem:[%s1 + $0x110] sm:$0xf]
  %v90 = vld [vmem:[%s1 + $0x114] sm:$0xf]
  %v91 = vld [vmem:[%s1 + $0x118] sm:$0xf]
  %v92 = vld [vmem:[%s1 + $0x11c] sm:$0xf]
  %v93 = vld [vmem:[%s1 + $0x120] sm:$0xf]
  %v94 = vld [vmem:[%s1 + $0x124] sm:$0xf]
  %v95 = vld [vmem:[%s1 + $0x128] sm:$0xf]
  %v96 = vld [vmem:[%s1 + $0x12c] sm:$0xf]
  %v97 = vld [vmem:[%s1 + $0x130] sm:$0xf]
  %v98 = vld [vmem:[%s1 + $0x134] sm:$0xf]
  %v99 = vld [vmem:[%s1 + $0x138] sm:$0xf]
  %v100 = vld [vmem:[%s1 + $0x13c] sm:$0xf]
  %v104 = vunpack.c.l.b16 %v18
  %v105 = vunpack.c.h.b16 %v18
  %v106 = vunpack.c.l.b16 %v19
  %v107 = vunpack.c.h.b16 %v19
  %v108 = vunpack.c.l.b16 %v20
  %v109 = vpack.c.b16 %v104, %v104
  %v110 = vpack.c.b16 %v105, %v105
  %v111 = vpack.c.b16 %v106, %v106
  %v112 = vpack.c.b16 %v107, %v107
  %v113 = vpack.c.b16 %v108, %v108
  %v199 = vunpack.c.l.b16 %v21
  %v200 = vunpack.c.l.b16 %v22
  %v201 = vunpack.c.l.b16 %v23
  %v202 = vunpack.c.l.b16 %v24
  %v203 = vunpack.c.l.b16 %v25
  %v204 = vunpack.c.l.b16 %v26
  %v205 = vunpack.c.l.b16 %v27
  %v206 = vunpack.c.l.b16 %v28
  %v207 = vunpack.c.l.b16 %v29
  %v208 = vunpack.c.l.b16 %v30
  %v209 = vunpack.c.l.b16 %v31
  %v210 = vunpack.c.l.b16 %v32
  %v211 = vunpack.c.l.b16 %v33
  %v212 = vunpack.c.l.b16 %v34
  %v213 = vunpack.c.l.b16 %v35
  %v214 = vunpack.c.l.b16 %v36
  %v215 = vunpack.c.l.b16 %v37
  %v216 = vunpack.c.l.b16 %v38
  %v217 = vunpack.c.l.b16 %v39
  %v218 = vunpack.c.l.b16 %v40
  %v219 = vunpack.c.l.b16 %v41
  %v220 = vunpack.c.l.b16 %v42
  %v221 = vunpack.c.l.b16 %v43
  %v222 = vunpack.c.l.b16 %v44
  %v223 = vunpack.c.l.b16 %v45
  %v224 = vunpack.c.l.b16 %v46
  %v225 = vunpack.c.l.b16 %v47
  %v226 = vunpack.c.l.b16 %v48
  %v227 = vunpack.c.l.b16 %v49
  %v228 = vunpack.c.l.b16 %v50
  %v229 = vunpack.c.l.b16 %v51
  %v230 = vunpack.c.l.b16 %v52
  %v231 = vunpack.c.l.b16 %v53
  %v232 = vunpack.c.l.b16 %v54
  %v233 = vunpack.c.l.b16 %v55
  %v234 = vunpack.c.l.b16 %v56
  %v235 = vunpack.c.l.b16 %v57
  %v236 = vunpack.c.l.b16 %v58
  %v237 = vunpack.c.l.b16 %v59
  %v238 = vunpack.c.l.b16 %v60
  %v239 = vunpack.c.l.b16 %v61
  %v240 = vunpack.c.l.b16 %v62
  %v241 = vunpack.c.l.b16 %v63
  %v242 = vunpack.c.l.b16 %v64
  %v243 = vunpack.c.l.b16 %v65
  %v244 = vunpack.c.l.b16 %v66
  %v245 = vunpack.c.l.b16 %v67
  %v246 = vunpack.c.l.b16 %v68
  %v247 = vunpack.c.l.b16 %v69
  %v248 = vunpack.c.l.b16 %v70
  %v249 = vunpack.c.l.b16 %v71
  %v250 = vunpack.c.l.b16 %v72
  %v251 = vunpack.c.l.b16 %v73
  %v252 = vunpack.c.l.b16 %v74
  %v253 = vunpack.c.l.b16 %v75
  %v254 = vunpack.c.l.b16 %v76
  %v255 = vunpack.c.l.b16 %v77
  %v256 = vunpack.c.l.b16 %v78
  %v257 = vunpack.c.l.b16 %v79
  %v258 = vunpack.c.l.b16 %v80
  %v259 = vunpack.c.l.b16 %v81
  %v260 = vunpack.c.l.b16 %v82
  %v261 = vunpack.c.l.b16 %v83
  %v262 = vunpack.c.l.b16 %v84
  %v263 = vunpack.c.l.b16 %v85
  %v264 = vunpack.c.l.b16 %v86
  %v265 = vunpack.c.l.b16 %v87
  %v266 = vunpack.c.l.b16 %v88
  %v267 = vunpack.c.l.b16 %v89
  %v268 = vunpack.c.l.b16 %v90
  %v269 = vunpack.c.l.b16 %v91
  %v270 = vunpack.c.l.b16 %v92
  %v271 = vunpack.c.l.b16 %v93
  %v272 = vunpack.c.l.b16 %v94
  %v273 = vunpack.c.l.b16 %v95
  %v274 = vunpack.c.l.b16 %v96
  %v275 = vunpack.c.l.b16 %v97
  %v276 = vunpack.c.l.b16 %v98
  %v277 = vunpack.c.l.b16 %v99
  %v278 = vunpack.c.l.b16 %v100
  %v279 = vpack.c.b16 %v200, %v199
  %v280 = vpack.c.b16 %v202, %v201
  %v281 = vpack.c.b16 %v204, %v203
  %v282 = vpack.c.b16 %v206, %v205
  %v283 = vpack.c.b16 %v208, %v207
  %v284 = vpack.c.b16 %v210, %v209
  %v285 = vpack.c.b16 %v212, %v211
  %v286 = vpack.c.b16 %v214, %v213
  %v287 = vpack.c.b16 %v216, %v215
  %v288 = vpack.c.b16 %v218, %v217
  %v289 = vpack.c.b16 %v220, %v219
  %v290 = vpack.c.b16 %v222, %v221
  %v291 = vpack.c.b16 %v224, %v223
  %v292 = vpack.c.b16 %v226, %v225
  %v293 = vpack.c.b16 %v228, %v227
  %v294 = vpack.c.b16 %v230, %v229
  %v295 = vpack.c.b16 %v232, %v231
  %v296 = vpack.c.b16 %v234, %v233
  %v297 = vpack.c.b16 %v236, %v235
  %v298 = vpack.c.b16 %v238, %v237
  %v299 = vpack.c.b16 %v240, %v239
  %v300 = vpack.c.b16 %v242, %v241
  %v301 = vpack.c.b16 %v244, %v243
  %v302 = vpack.c.b16 %v246, %v245
  %v303 = vpack.c.b16 %v248, %v247
  %v304 = vpack.c.b16 %v250, %v249
  %v305 = vpack.c.b16 %v252, %v251
  %v306 = vpack.c.b16 %v254, %v253
  %v307 = vpack.c.b16 %v256, %v255
  %v308 = vpack.c.b16 %v258, %v257
  %v309 = vpack.c.b16 %v260, %v259
  %v310 = vpack.c.b16 %v262, %v261
  %v311 = vpack.c.b16 %v264, %v263
  %v312 = vpack.c.b16 %v266, %v265
  %v313 = vpack.c.b16 %v268, %v267
  %v314 = vpack.c.b16 %v270, %v269
  %v315 = vpack.c.b16 %v272, %v271
  %v316 = vpack.c.b16 %v274, %v273
  %v317 = vpack.c.b16 %v276, %v275
  %v318 = vpack.c.b16 %v278, %v277
  %359 = vmatprep.subr.bf16.mxu0 0
  %360 = vmatpush1.bf16.msra.mxu0 %v279
  %361 = vmatprep.subr.bf16.mxu0 0
  %362 = vmatpush1.bf16.msra.mxu0 %v280
  %363 = vmatprep.subr.bf16.mxu0 0
  %364 = vmatpush1.bf16.msra.mxu0 %v281
  %365 = vmatprep.subr.bf16.mxu0 0
  %366 = vmatpush1.bf16.msra.mxu0 %v282
  %367 = vmatprep.subr.bf16.mxu0 0
  %368 = vmatpush1.bf16.msra.mxu0 %v283
  %369 = vmatprep.subr.bf16.mxu0 0
  %370 = vmatpush1.bf16.msra.mxu0 %v284
  %371 = vmatprep.subr.bf16.mxu0 0
  %372 = vmatpush1.bf16.msra.mxu0 %v285
  %373 = vmatprep.subr.bf16.mxu0 0
  %374 = vmatpush1.bf16.msra.mxu0 %v286
  %375 = vmatprep.subr.bf16.mxu0 0
  %376 = vmatpush1.bf16.msra.mxu0 %v287
  %377 = vmatprep.subr.bf16.mxu0 0
  %378 = vmatpush1.bf16.msra.mxu0 %v288
  %379 = vmatprep.subr.bf16.mxu0 0
  %380 = vmatpush1.bf16.msra.mxu0 %v289
  %381 = vmatprep.subr.bf16.mxu0 0
  %382 = vmatpush1.bf16.msra.mxu0 %v290
  %383 = vmatprep.subr.bf16.mxu0 0
  %384 = vmatpush1.bf16.msra.mxu0 %v291
  %385 = vmatprep.subr.bf16.mxu0 0
  %386 = vmatpush1.bf16.msra.mxu0 %v292
  %387 = vmatprep.subr.bf16.mxu0 0
  %388 = vmatpush1.bf16.msra.mxu0 %v293
  %389 = vmatprep.subr.bf16.mxu0 0
  %390 = vmatpush1.bf16.msra.mxu0 %v294
  %391 = vmatprep.mubr.bf16.mxu0 %v110
  %392 = vmatmul.mubr.bf16.gmra.mrb[0].mxu0 %v109
  %v393 = vpop.f32.mrb[0].mxu0
  %v394 = vadd.f32 0.0, %v393
  %v395 = vpop.f32.mrb[0].mxu0
  %v396 = vpop.f32.mrb[0].mxu0
  %v397 = vpop.f32.mrb[0].mxu0
  %398 = vdwg.mxu0
  %399 = vmatprep.subr.bf16.mxu0 0
  %400 = vmatpush1.bf16.msra.mxu0 %v295
  %401 = vmatprep.subr.bf16.mxu0 0
  %402 = vmatpush1.bf16.msra.mxu0 %v296
  %403 = vmatprep.subr.bf16.mxu0 0
  %404 = vmatpush1.bf16.msra.mxu0 %v297
  %405 = vmatprep.subr.bf16.mxu0 0
  %406 = vmatpush1.bf16.msra.mxu0 %v298
  %407 = vmatprep.subr.bf16.mxu0 0
  %408 = vmatpush1.bf16.msra.mxu0 %v299
  %409 = vmatprep.subr.bf16.mxu0 0
  %410 = vmatpush1.bf16.msra.mxu0 %v300
  %411 = vmatprep.subr.bf16.mxu0 0
  %412 = vmatpush1.bf16.msra.mxu0 %v301
  %413 = vmatprep.subr.bf16.mxu0 0
  %414 = vmatpush1.bf16.msra.mxu0 %v302
  %415 = vmatprep.subr.bf16.mxu0 0
  %416 = vmatpush1.bf16.msra.mxu0 %v303
  %417 = vmatprep.subr.bf16.mxu0 0
  %418 = vmatpush1.bf16.msra.mxu0 %v304
  %419 = vmatprep.subr.bf16.mxu0 0
  %420 = vmatpush1.bf16.msra.mxu0 %v305
  %421 = vmatprep.subr.bf16.mxu0 0
  %422 = vmatpush1.bf16.msra.mxu0 %v306
  %423 = vmatprep.subr.bf16.mxu0 0
  %424 = vmatpush1.bf16.msra.mxu0 %v307
  %425 = vmatprep.subr.bf16.mxu0 0
  %426 = vmatpush1.bf16.msra.mxu0 %v308
  %427 = vmatprep.subr.bf16.mxu0 0
  %428 = vmatpush1.bf16.msra.mxu0 %v309
  %429 = vmatprep.subr.bf16.mxu0 0
  %430 = vmatpush1.bf16.msra.mxu0 %v310
  %431 = vmatprep.mubr.bf16.mxu0 %v112
  %432 = vmatmul.mubr.bf16.gmra.mrb[0].mxu0 %v111
  %v433 = vpop.f32.mrb[0].mxu0
  %v434 = vadd.f32 %v394, %v433
  %v435 = vpop.f32.mrb[0].mxu0
  %v436 = vpop.f32.mrb[0].mxu0
  %v437 = vpop.f32.mrb[0].mxu0
  %438 = vdwg.mxu0
  %439 = vmatprep.subr.bf16.mxu0 0
  %440 = vmatpush1.bf16.msra.mxu0 %v311
  %441 = vmatprep.subr.bf16.mxu0 0
  %442 = vmatpush1.bf16.msra.mxu0 %v312
  %443 = vmatprep.subr.bf16.mxu0 0
  %444 = vmatpush1.bf16.msra.mxu0 %v313
  %445 = vmatprep.subr.bf16.mxu0 0
  %446 = vmatpush1.bf16.msra.mxu0 %v314
  %447 = vmatprep.subr.bf16.mxu0 0
  %448 = vmatpush1.bf16.msra.mxu0 %v315
  %449 = vmatprep.subr.bf16.mxu0 0
  %450 = vmatpush1.bf16.msra.mxu0 %v316
  %451 = vmatprep.subr.bf16.mxu0 0
  %452 = vmatpush1.bf16.msra.mxu0 %v317
  %453 = vmatprep.subr.bf16.mxu0 0
  %454 = vmatpush1.bf16.msra.mxu0 %v318
  %455 = vmatprep.subr.bf16.mxu0 0
  %456 = vmatpush1.bf16.msra.mxu0 0
  %457 = vmatprep.subr.bf16.mxu0 0
  %458 = vmatpush1.bf16.msra.mxu0 0
  %459 = vmatprep.subr.bf16.mxu0 0
  %460 = vmatpush1.bf16.msra.mxu0 0
  %461 = vmatprep.subr.bf16.mxu0 0
  %462 = vmatpush1.bf16.msra.mxu0 0
  %463 = vmatprep.subr.bf16.mxu0 0
  %464 = vmatpush1.bf16.msra.mxu0 0
  %465 = vmatprep.subr.bf16.mxu0 0
  %466 = vmatpush1.bf16.msra.mxu0 0
  %467 = vmatprep.subr.bf16.mxu0 0
  %468 = vmatpush1.bf16.msra.mxu0 0
  %469 = vmatprep.subr.bf16.mxu0 0
  %470 = vmatpush1.bf16.msra.mxu0 0
  %471 = vmatprep.mubr.bf16.mxu0 0
  %472 = vmatmul.mubr.bf16.gmra.mrb[0].mxu0 %v113
  %v473 = vpop.f32.mrb[0].mxu0
  %v474 = vadd.f32 %v434, %v473
  %v475 = vpop.f32.mrb[0].mxu0
  %v476 = vpop.f32.mrb[0].mxu0
  %v477 = vpop.f32.mrb[0].mxu0
  %478 = vdwg.mxu0
  %v479 = vld [vmem:[%s2] sm:$0x1]
  %v481 = vlaneseq
  %v482 = vshrl.u32 %v481, 7
  %v483 = vsub.s32 0, %v482
  %v484 = vrot.slane %v479, %v483
  %v486 = vmul.f32 %v474, %v484
  %v487 = vld [vmem:[%s3] sm:$0x1]
  %v489 = vlaneseq
  %v490 = vshrl.u32 %v489, 7
  %v491 = vsub.s32 0, %v490
  %v492 = vrot.slane %v487, %v491
  %v494 = vadd.f32 %v486, %v492
  %v495 = vmax.f32 %v494, 0.0
  %496 = vst [vmem:[%s4] sm:$0xff] %v495
  // Predicated region
  $region18: #{cam_forward.38} parent=0 // pred_check
    _
  $region19: #{cam_forward.38} parent=0 // pred_check_branch
    %498 = sbr.rel (0) target = $region21
  $region20: #{cam_forward.38} parent=0 // pred_region
    _
  $region21: #{cam_forward.38} parent=0 // pred_fallthru
    _
  // Predicated region
  $region22: #{cam_forward.38} parent=0 // pred_check
    _
  $region23: #{cam_forward.38} parent=0 // pred_check_branch
    %500 = sbr.rel (0) target = $region25
  $region24: #{cam_forward.38} parent=0 // pred_region
    _
  $region25: #{cam_forward.38} parent=0 // pred_fallthru
    _

// kernel: cam_forward.39
$region0: #{cam_forward.39}
  #allocation0 [shape = 'u32[]', space=smem, size = 0x4, offset = 0x4, fixed_abs, tag = 'smem constant byte address 0x4 - core index']
  #allocation1 [shape = 'u32[144,128]{1,0:T(1,128)}', space=vmem, size = 0x12000, scoped, tag = 'internal scratch']
  %s0 = inlined_call_operand.vmem [shape: bf16[8,640], index: 0, kind: input, shape index: {}]
  %s1 = inlined_call_operand.vmem [shape: bf16[640,128], index: 1, kind: input, shape index: {}]
  %s2 = inlined_call_operand.vmem [shape: f32[1,128], index: 2, kind: input, shape index: {}]
  %s3 = inlined_call_operand.vmem [shape: f32[1,128], index: 3, kind: input, shape index: {}]
  %s4 = inlined_call_operand.vmem [shape: f32[8,128], index: 4, kind: input, shape index: {}]
  %s5 = inlined_call_operand.hbm [shape: f32[8,128], index: 5, kind: output, shape index: {}]
  %s6 = sld [smem:[#allocation0]]
  $region30: #{cam_forward.39} parent=0
    _
  %s8 = ssub.s32 1, %s6
  %s9 = scalar_select 0, %s8, %s6
  $region1: #{cam_forward.39} parent=0
    #allocation2 [shape = 'u8[4096]{0}', space=vmem, size = 0x1000, scoped, tag = 'output window, operand 0, single buffered']
    #allocation3 [shape = 's32[1]{0}', space=sflag, size = 0x4, scoped, tag = 'scoped memory for cam_forward.39']
    %10 = vsyncpa [#allocation3], 0
    // Predicated region
    $region2: #{cam_forward.39} parent=1 // pred_check
      _
    $region3: #{cam_forward.39} parent=1 // pred_check_branch
      %12 = sbr.rel (0) target = $region5
    $region4: #{cam_forward.39} parent=1 // pred_region
      _
    $region5: #{cam_forward.39} parent=1 // pred_fallthru
      _
    // Predicated region
    $region6: #{cam_forward.39} parent=1 // pred_check
      _
    $region7: #{cam_forward.39} parent=1 // pred_check_branch
      %14 = sbr.rel (0) target = $region9
    $region8: #{cam_forward.39} parent=1 // pred_region
      _
    $region9: #{cam_forward.39} parent=1 // pred_fallthru
      _
    // Predicated region
    $region10: #{cam_forward.39} parent=1 // pred_check
      _
    $region11: #{cam_forward.39} parent=1 // pred_check_branch
      %16 = sbr.rel (0) target = $region13
    $region12: #{cam_forward.39} parent=1 // pred_region
      _
    $region13: #{cam_forward.39} parent=1 // pred_fallthru
      _
    // Predicated region
    $region14: #{cam_forward.39} parent=1 // pred_check
      _
    $region15: #{cam_forward.39} parent=1 // pred_check_branch
      %18 = sbr.rel (0) target = $region17
    $region16: #{cam_forward.39} parent=1 // pred_region
      _
    $region17: #{cam_forward.39} parent=1 // pred_fallthru
      _
    // Predicated region
    $region18: #{cam_forward.39} parent=1 // pred_check
      _
    $region19: #{cam_forward.39} parent=1 // pred_check_branch
      %20 = sbr.rel (0) target = $region21
    $region20: #{cam_forward.39} parent=1 // pred_region
      _
    $region21: #{cam_forward.39} parent=1 // pred_fallthru
      _
    %v22 = vld [vmem:[%s0] sm:$0xff]
    %v23 = vld [vmem:[%s0 + $0x8] sm:$0xff]
    %v24 = vld [vmem:[%s0 + $0x10] sm:$0xf]
    %v25 = vld [vmem:[%s1] sm:$0xf]
    %v26 = vld [vmem:[%s1 + $0x4] sm:$0xf]
    %v27 = vld [vmem:[%s1 + $0x8] sm:$0xf]
    %v28 = vld [vmem:[%s1 + $0xc] sm:$0xf]
    %v29 = vld [vmem:[%s1 + $0x10] sm:$0xf]
    %v30 = vld [vmem:[%s1 + $0x14] sm:$0xf]
    %v31 = vld [vmem:[%s1 + $0x18] sm:$0xf]
    %v32 = vld [vmem:[%s1 + $0x1c] sm:$0xf]
    %v33 = vld [vmem:[%s1 + $0x20] sm:$0xf]
    %v34 = vld [vmem:[%s1 + $0x24] sm:$0xf]
    %v35 = vld [vmem:[%s1 + $0x28] sm:$0xf]
    %v36 = vld [vmem:[%s1 + $0x2c] sm:$0xf]
    %v37 = vld [vmem:[%s1 + $0x30] sm:$0xf]
    %v38 = vld [vmem:[%s1 + $0x34] sm:$0xf]
    %v39 = vld [vmem:[%s1 + $0x38] sm:$0xf]
    %v40 = vld [vmem:[%s1 + $0x3c] sm:$0xf]
    %v41 = vld [vmem:[%s1 + $0x40] sm:$0xf]
    %v42 = vld [vmem:[%s1 + $0x44] sm:$0xf]
    %v43 = vld [vmem:[%s1 + $0x48] sm:$0xf]
    %v44 = vld [vmem:[%s1 + $0x4c] sm:$0xf]
    %v45 = vld [vmem:[%s1 + $0x50] sm:$0xf]
    %v46 = vld [vmem:[%s1 + $0x54] sm:$0xf]
    %v47 = vld [vmem:[%s1 + $0x58] sm:$0xf]
    %v48 = vld [vmem:[%s1 + $0x5c] sm:$0xf]
    %v49 = vld [vmem:[%s1 + $0x60] sm:$0xf]
    %v50 = vld [vmem:[%s1 + $0x64] sm:$0xf]
    %v51 = vld [vmem:[%s1 + $0x68] sm:$0xf]
    %v52 = vld [vmem:[%s1 + $0x6c] sm:$0xf]
    %v53 = vld [vmem:[%s1 + $0x70] sm:$0xf]
    %v54 = vld [vmem:[%s1 + $0x74] sm:$0xf]
    %v55 = vld [vmem:[%s1 + $0x78] sm:$0xf]
    %v56 = vld [vmem:[%s1 + $0x7c] sm:$0xf]
    %v57 = vld [vmem:[%s1 + $0x80] sm:$0xf]
    %v58 = vld [vmem:[%s1 + $0x84] sm:$0xf]
    %v59 = vld [vmem:[%s1 + $0x88] sm:$0xf]
    %v60 = vld [vmem:[%s1 + $0x8c] sm:$0xf]
    %v61 = vld [vmem:[%s1 + $0x90] sm:$0xf]
    %v62 = vld [vmem:[%s1 + $0x94] sm:$0xf]
    %v63 = vld [vmem:[%s1 + $0x98] sm:$0xf]
    %v64 = vld [vmem:[%s1 + $0x9c] sm:$0xf]
    %v65 = vld [vmem:[%s1 + $0xa0] sm:$0xf]
    %v66 = vld [vmem:[%s1 + $0xa4] sm:$0xf]
    %v67 = vld [vmem:[%s1 + $0xa8] sm:$0xf]
    %v68 = vld [vmem:[%s1 + $0xac] sm:$0xf]
    %v69 = vld [vmem:[%s1 + $0xb0] sm:$0xf]
    %v70 = vld [vmem:[%s1 + $0xb4] sm:$0xf]
    %v71 = vld [vmem:[%s1 + $0xb8] sm:$0xf]
    %v72 = vld [vmem:[%s1 + $0xbc] sm:$0xf]
    %v73 = vld [vmem:[%s1 + $0xc0] sm:$0xf]
    %v74 = vld [vmem:[%s1 + $0xc4] sm:$0xf]
    %v75 = vld [vmem:[%s1 + $0xc8] sm:$0xf]
    %v76 = vld [vmem:[%s1 + $0xcc] sm:$0xf]
    %v77 = vld [vmem:[%s1 + $0xd0] sm:$0xf]
    %v78 = vld [vmem:[%s1 + $0xd4] sm:$0xf]
    %v79 = vld [vmem:[%s1 + $0xd8] sm:$0xf]
    %v80 = vld [vmem:[%s1 + $0xdc] sm:$0xf]
    %v81 = vld [vmem:[%s1 + $0xe0] sm:$0xf]
    %v82 = vld [vmem:[%s1 + $0xe4] sm:$0xf]
    %v83 = vld [vmem:[%s1 + $0xe8] sm:$0xf]
    %v84 = vld [vmem:[%s1 + $0xec] sm:$0xf]
    %v85 = vld [vmem:[%s1 + $0xf0] sm:$0xf]
    %v86 = vld [vmem:[%s1 + $0xf4] sm:$0xf]
    %v87 = vld [vmem:[%s1 + $0xf8] sm:$0xf]
    %v88 = vld [vmem:[%s1 + $0xfc] sm:$0xf]
    %v89 = vld [vmem:[%s1 + $0x100] sm:$0xf]
    %v90 = vld [vmem:[%s1 + $0x104] sm:$0xf]
    %v91 = vld [vmem:[%s1 + $0x108] sm:$0xf]
    %v92 = vld [vmem:[%s1 + $0x10c] sm:$0xf]
    %v93 = vld [vmem:[%s1 + $0x110] sm:$0xf]
    %v94 = vld [vmem:[%s1 + $0x114] sm:$0xf]
    %v95 = vld [vmem:[%s1 + $0x118] sm:$0xf]
    %v96 = vld [vmem:[%s1 + $0x11c] sm:$0xf]
    %v97 = vld [vmem:[%s1 + $0x120] sm:$0xf]
    %v98 = vld [vmem:[%s1 + $0x124] sm:$0xf]
    %v99 = vld [vmem:[%s1 + $0x128] sm:$0xf]
    %v100 = vld [vmem:[%s1 + $0x12c] sm:$0xf]
    %v101 = vld [vmem:[%s1 + $0x130] sm:$0xf]
    %v102 = vld [vmem:[%s1 + $0x134] sm:$0xf]
    %v103 = vld [vmem:[%s1 + $0x138] sm:$0xf]
    %v104 = vld [vmem:[%s1 + $0x13c] sm:$0xf]
    %v108 = vunpack.c.l.b16 %v22
    %v109 = vunpack.c.h.b16 %v22
    %v110 = vunpack.c.l.b16 %v23
    %v111 = vunpack.c.h.b16 %v23
    %v112 = vunpack.c.l.b16 %v24
    %v113 = vpack.c.b16 %v108, %v108
    %v114 = vpack.c.b16 %v109, %v109
    %v115 = vpack.c.b16 %v110, %v110
    %v116 = vpack.c.b16 %v111, %v111
    %v117 = vpack.c.b16 %v112, %v112
    %v203 = vunpack.c.l.b16 %v25
    %v204 = vunpack.c.l.b16 %v26
    %v205 = vunpack.c.l.b16 %v27
    %v206 = vunpack.c.l.b16 %v28
    %v207 = vunpack.c.l.b16 %v29
    %v208 = vunpack.c.l.b16 %v30
    %v209 = vunpack.c.l.b16 %v31
    %v210 = vunpack.c.l.b16 %v32
    %v211 = vunpack.c.l.b16 %v33
    %v212 = vunpack.c.l.b16 %v34
    %v213 = vunpack.c.l.b16 %v35
    %v214 = vunpack.c.l.b16 %v36
    %v215 = vunpack.c.l.b16 %v37
    %v216 = vunpack.c.l.b16 %v38
    %v217 = vunpack.c.l.b16 %v39
    %v218 = vunpack.c.l.b16 %v40
    %v219 = vunpack.c.l.b16 %v41
    %v220 = vunpack.c.l.b16 %v42
    %v221 = vunpack.c.l.b16 %v43
    %v222 = vunpack.c.l.b16 %v44
    %v223 = vunpack.c.l.b16 %v45
    %v224 = vunpack.c.l.b16 %v46
    %v225 = vunpack.c.l.b16 %v47
    %v226 = vunpack.c.l.b16 %v48
    %v227 = vunpack.c.l.b16 %v49
    %v228 = vunpack.c.l.b16 %v50
    %v229 = vunpack.c.l.b16 %v51
    %v230 = vunpack.c.l.b16 %v52
    %v231 = vunpack.c.l.b16 %v53
    %v232 = vunpack.c.l.b16 %v54
    %v233 = vunpack.c.l.b16 %v55
    %v234 = vunpack.c.l.b16 %v56
    %v235 = vunpack.c.l.b16 %v57
    %v236 = vunpack.c.l.b16 %v58
    %v237 = vunpack.c.l.b16 %v59
    %v238 = vunpack.c.l.b16 %v60
    %v239 = vunpack.c.l.b16 %v61
    %v240 = vunpack.c.l.b16 %v62
    %v241 = vunpack.c.l.b16 %v63
    %v242 = vunpack.c.l.b16 %v64
    %v243 = vunpack.c.l.b16 %v65
    %v244 = vunpack.c.l.b16 %v66
    %v245 = vunpack.c.l.b16 %v67
    %v246 = vunpack.c.l.b16 %v68
    %v247 = vunpack.c.l.b16 %v69
    %v248 = vunpack.c.l.b16 %v70
    %v249 = vunpack.c.l.b16 %v71
    %v250 = vunpack.c.l.b16 %v72
    %v251 = vunpack.c.l.b16 %v73
    %v252 = vunpack.c.l.b16 %v74
    %v253 = vunpack.c.l.b16 %v75
    %v254 = vunpack.c.l.b16 %v76
    %v255 = vunpack.c.l.b16 %v77
    %v256 = vunpack.c.l.b16 %v78
    %v257 = vunpack.c.l.b16 %v79
    %v258 = vunpack.c.l.b16 %v80
    %v259 = vunpack.c.l.b16 %v81
    %v260 = vunpack.c.l.b16 %v82
    %v261 = vunpack.c.l.b16 %v83
    %v262 = vunpack.c.l.b16 %v84
    %v263 = vunpack.c.l.b16 %v85
    %v264 = vunpack.c.l.b16 %v86
    %v265 = vunpack.c.l.b16 %v87
    %v266 = vunpack.c.l.b16 %v88
    %v267 = vunpack.c.l.b16 %v89
    %v268 = vunpack.c.l.b16 %v90
    %v269 = vunpack.c.l.b16 %v91
    %v270 = vunpack.c.l.b16 %v92
    %v271 = vunpack.c.l.b16 %v93
    %v272 = vunpack.c.l.b16 %v94
    %v273 = vunpack.c.l.b16 %v95
    %v274 = vunpack.c.l.b16 %v96
    %v275 = vunpack.c.l.b16 %v97
    %v276 = vunpack.c.l.b16 %v98
    %v277 = vunpack.c.l.b16 %v99
    %v278 = vunpack.c.l.b16 %v100
    %v279 = vunpack.c.l.b16 %v101
    %v280 = vunpack.c.l.b16 %v102
    %v281 = vunpack.c.l.b16 %v103
    %v282 = vunpack.c.l.b16 %v104
    %v283 = vpack.c.b16 %v204, %v203
    %v284 = vpack.c.b16 %v206, %v205
    %v285 = vpack.c.b16 %v208, %v207
    %v286 = vpack.c.b16 %v210, %v209
    %v287 = vpack.c.b16 %v212, %v211
    %v288 = vpack.c.b16 %v214, %v213
    %v289 = vpack.c.b16 %v216, %v215
    %v290 = vpack.c.b16 %v218, %v217
    %v291 = vpack.c.b16 %v220, %v219
    %v292 = vpack.c.b16 %v222, %v221
    %v293 = vpack.c.b16 %v224, %v223
    %v294 = vpack.c.b16 %v226, %v225
    %v295 = vpack.c.b16 %v228, %v227
    %v296 = vpack.c.b16 %v230, %v229
    %v297 = vpack.c.b16 %v232, %v231
    %v298 = vpack.c.b16 %v234, %v233
    %v299 = vpack.c.b16 %v236, %v235
    %v300 = vpack.c.b16 %v238, %v237
    %v301 = vpack.c.b16 %v240, %v239
    %v302 = vpack.c.b16 %v242, %v241
    %v303 = vpack.c.b16 %v244, %v243
    %v304 = vpack.c.b16 %v246, %v245
    %v305 = vpack.c.b16 %v248, %v247
    %v306 = vpack.c.b16 %v250, %v249
    %v307 = vpack.c.b16 %v252, %v251
    %v308 = vpack.c.b16 %v254, %v253
    %v309 = vpack.c.b16 %v256, %v255
    %v310 = vpack.c.b16 %v258, %v257
    %v311 = vpack.c.b16 %v260, %v259
    %v312 = vpack.c.b16 %v262, %v261
    %v313 = vpack.c.b16 %v264, %v263
    %v314 = vpack.c.b16 %v266, %v265
    %v315 = vpack.c.b16 %v268, %v267
    %v316 = vpack.c.b16 %v270, %v269
    %v317 = vpack.c.b16 %v272, %v271
    %v318 = vpack.c.b16 %v274, %v273
    %v319 = vpack.c.b16 %v276, %v275
    %v320 = vpack.c.b16 %v278, %v277
    %v321 = vpack.c.b16 %v280, %v279
    %v322 = vpack.c.b16 %v282, %v281
    %363 = vmatprep.subr.bf16.mxu0 0
    %364 = vmatpush1.bf16.msra.mxu0 %v283
    %365 = vmatprep.subr.bf16.mxu0 0
    %366 = vmatpush1.bf16.msra.mxu0 %v284
    %367 = vmatprep.subr.bf16.mxu0 0
    %368 = vmatpush1.bf16.msra.mxu0 %v285
    %369 = vmatprep.subr.bf16.mxu0 0
    %370 = vmatpush1.bf16.msra.mxu0 %v286
    %371 = vmatprep.subr.bf16.mxu0 0
    %372 = vmatpush1.bf16.msra.mxu0 %v287
    %373 = vmatprep.subr.bf16.mxu0 0
    %374 = vmatpush1.bf16.msra.mxu0 %v288
    %375 = vmatprep.subr.bf16.mxu0 0
    %376 = vmatpush1.bf16.msra.mxu0 %v289
    %377 = vmatprep.subr.bf16.mxu0 0
    %378 = vmatpush1.bf16.msra.mxu0 %v290
    %379 = vmatprep.subr.bf16.mxu0 0
    %380 = vmatpush1.bf16.msra.mxu0 %v291
    %381 = vmatprep.subr.bf16.mxu0 0
    %382 = vmatpush1.bf16.msra.mxu0 %v292
    %383 = vmatprep.subr.bf16.mxu0 0
    %384 = vmatpush1.bf16.msra.mxu0 %v293
    %385 = vmatprep.subr.bf16.mxu0 0
    %386 = vmatpush1.bf16.msra.mxu0 %v294
    %387 = vmatprep.subr.bf16.mxu0 0
    %388 = vmatpush1.bf16.msra.mxu0 %v295
    %389 = vmatprep.subr.bf16.mxu0 0
    %390 = vmatpush1.bf16.msra.mxu0 %v296
    %391 = vmatprep.subr.bf16.mxu0 0
    %392 = vmatpush1.bf16.msra.mxu0 %v297
    %393 = vmatprep.subr.bf16.mxu0 0
    %394 = vmatpush1.bf16.msra.mxu0 %v298
    %395 = vmatprep.mubr.bf16.mxu0 %v114
    %396 = vmatmul.mubr.bf16.gmra.mrb[0].mxu0 %v113
    %v397 = vpop.f32.mrb[0].mxu0
    %v398 = vadd.f32 0.0, %v397
    %v399 = vpop.f32.mrb[0].mxu0
    %v400 = vpop.f32.mrb[0].mxu0
    %v401 = vpop.f32.mrb[0].mxu0
    %402 = vdwg.mxu0
    %403 = vmatprep.subr.bf16.mxu0 0
    %404 = vmatpush1.bf16.msra.mxu0 %v299
    %405 = vmatprep.subr.bf16.mxu0 0
    %406 = vmatpush1.bf16.msra.mxu0 %v300
    %407 = vmatprep.subr.bf16.mxu0 0
    %408 = vmatpush1.bf16.msra.mxu0 %v301
    %409 = vmatprep.subr.bf16.mxu0 0
    %410 = vmatpush1.bf16.msra.mxu0 %v302
    %411 = vmatprep.subr.bf16.mxu0 0
    %412 = vmatpush1.bf16.msra.mxu0 %v303
    %413 = vmatprep.subr.bf16.mxu0 0
    %414 = vmatpush1.bf16.msra.mxu0 %v304
    %415 = vmatprep.subr.bf16.mxu0 0
    %416 = vmatpush1.bf16.msra.mxu0 %v305
    %417 = vmatprep.subr.bf16.mxu0 0
    %418 = vmatpush1.bf16.msra.mxu0 %v306
    %419 = vmatprep.subr.bf16.mxu0 0
    %420 = vmatpush1.bf16.msra.mxu0 %v307
    %421 = vmatprep.subr.bf16.mxu0 0
    %422 = vmatpush1.bf16.msra.mxu0 %v308
    %423 = vmatprep.subr.bf16.mxu0 0
    %424 = vmatpush1.bf16.msra.mxu0 %v309
    %425 = vmatprep.subr.bf16.mxu0 0
    %426 = vmatpush1.bf16.msra.mxu0 %v310
    %427 = vmatprep.subr.bf16.mxu0 0
    %428 = vmatpush1.bf16.msra.mxu0 %v311
    %429 = vmatprep.subr.bf16.mxu0 0
    %430 = vmatpush1.bf16.msra.mxu0 %v312
    %431 = vmatprep.subr.bf16.mxu0 0
    %432 = vmatpush1.bf16.msra.mxu0 %v313
    %433 = vmatprep.subr.bf16.mxu0 0
    %434 = vmatpush1.bf16.msra.mxu0 %v314
    %435 = vmatprep.mubr.bf16.mxu0 %v116
    %436 = vmatmul.mubr.bf16.gmra.mrb[0].mxu0 %v115
    %v437 = vpop.f32.mrb[0].mxu0
    %v438 = vadd.f32 %v398, %v437
    %v439 = vpop.f32.mrb[0].mxu0
    %v440 = vpop.f32.mrb[0].mxu0
    %v441 = vpop.f32.mrb[0].mxu0
    %442 = vdwg.mxu0
    %443 = vmatprep.subr.bf16.mxu0 0
    %444 = vmatpush1.bf16.msra.mxu0 %v315
    %445 = vmatprep.subr.bf16.mxu0 0
    %446 = vmatpush1.bf16.msra.mxu0 %v316
    %447 = vmatprep.subr.bf16.mxu0 0
    %448 = vmatpush1.bf16.msra.mxu0 %v317
    %449 = vmatprep.subr.bf16.mxu0 0
    %450 = vmatpush1.bf16.msra.mxu0 %v318
    %451 = vmatprep.subr.bf16.mxu0 0
    %452 = vmatpush1.bf16.msra.mxu0 %v319
    %453 = vmatprep.subr.bf16.mxu0 0
    %454 = vmatpush1.bf16.msra.mxu0 %v320
    %455 = vmatprep.subr.bf16.mxu0 0
    %456 = vmatpush1.bf16.msra.mxu0 %v321
    %457 = vmatprep.subr.bf16.mxu0 0
    %458 = vmatpush1.bf16.msra.mxu0 %v322
    %459 = vmatprep.subr.bf16.mxu0 0
    %460 = vmatpush1.bf16.msra.mxu0 0
    %461 = vmatprep.subr.bf16.mxu0 0
    %462 = vmatpush1.bf16.msra.mxu0 0
    %463 = vmatprep.subr.bf16.mxu0 0
    %464 = vmatpush1.bf16.msra.mxu0 0
    %465 = vmatprep.subr.bf16.mxu0 0
    %466 = vmatpush1.bf16.msra.mxu0 0
    %467 = vmatprep.subr.bf16.mxu0 0
    %468 = vmatpush1.bf16.msra.mxu0 0
    %469 = vmatprep.subr.bf16.mxu0 0
    %470 = vmatpush1.bf16.msra.mxu0 0
    %471 = vmatprep.subr.bf16.mxu0 0
    %472 = vmatpush1.bf16.msra.mxu0 0
    %473 = vmatprep.subr.bf16.mxu0 0
    %474 = vmatpush1.bf16.msra.mxu0 0
    %475 = vmatprep.mubr.bf16.mxu0 0
    %476 = vmatmul.mubr.bf16.gmra.mrb[0].mxu0 %v117
    %v477 = vpop.f32.mrb[0].mxu0
    %v478 = vadd.f32 %v438, %v477
    %v479 = vpop.f32.mrb[0].mxu0
    %v480 = vpop.f32.mrb[0].mxu0
    %v481 = vpop.f32.mrb[0].mxu0
    %482 = vdwg.mxu0
    %v483 = vld [vmem:[%s2] sm:$0x1]
    %v485 = vlaneseq
    %v486 = vshrl.u32 %v485, 7
    %v487 = vsub.s32 0, %v486
    %v488 = vrot.slane %v483, %v487
    %v490 = vmul.f32 %v478, %v488
    %v491 = vld [vmem:[%s3] sm:$0x1]
    %v493 = vlaneseq
    %v494 = vshrl.u32 %v493, 7
    %v495 = vsub.s32 0, %v494
    %v496 = vrot.slane %v491, %v495
    %v498 = vadd.f32 %v490, %v496
    %v499 = vld [vmem:[%s4] sm:$0xff]
    %v500 = vadd.f32 %v498, %v499
    %v501 = vmax.f32 %v500, 0.0
    %502 = vst [vmem:[#allocation2] sm:$0xff] %v501
    // Predicated region
    $region22: #{cam_forward.39} parent=1 // pred_check
      _
    $region23: #{cam_forward.39} parent=1 // pred_check_branch
      %504 = sbr.rel (0) target = $region25
    $region24: #{cam_forward.39} parent=1 // pred_region
      %s506 = ssub.s32 128, 128
      %507 = vsyncadd [#allocation3], %s506
      %s509 = sshll.u32 [#allocation2], 4
      %s510 = int_to_ptr.vmem [resolvable:$true] %s509
      %512 = dma.vmem_to_hbm [thread:$0]  %s510, 128, %s5, [#allocation3]
    $region25: #{cam_forward.39} parent=1 // pred_fallthru
      _
    // Predicated region
    $region26: #{cam_forward.39} parent=1 // pred_check
      _
    $region27: #{cam_forward.39} parent=1 // pred_check_branch
      %514 = sbr.rel (0) target = $region29
    $region28: #{cam_forward.39} parent=1 // pred_region
      %515 = dma.done [#allocation3], 128
    $region29: #{cam_forward.39} parent=1 // pred_fallthru
      _
    %516 = vsyncpa [#allocation3], 1

</llo_original>
